<compile_context>
chip_gen: v6e
topology: v6e:2x2x1
jax: 0.10.0
libtpu: 0.0.40
codegen_flags: <defaults>
</compile_context>

<pallas_src>
import jax
import jax.numpy as jnp
from jax.experimental import pallas as pl
from jax.experimental.pallas import tpu as pltpu

# ---------------------------------------------------------------------------
# Static model configuration
# ---------------------------------------------------------------------------
N = 2                      # batch (kernel specialized for this small batch)
C0, H0, W0 = 4, 16, 16     # module-boundary input is NCHW (PyTorch convention)
C1, C2 = 8, 16             # conv channel widths
KS = 3                     # conv kernel size (stride 1, padding 1)
H1, W1 = 16, 16            # conv1 output spatial
P1H, P1W = 8, 8            # after pool1
H2, W2 = 8, 8              # conv2 output spatial
P2H, P2W = 4, 4            # after pool2
FC1, NCLS = 32, 10
FLAT = P2H * P2W * C2      # 256 flattened features
TAPS = [(di, dj) for di in range(KS) for dj in range(KS)]


# ---------------------------------------------------------------------------
# Fused Pallas kernel: whole forward pass, everything VMEM-resident
# ---------------------------------------------------------------------------
def _cnn_fused_kernel(x_ref, w1_ref, b1_ref, w2_ref, b2_ref,
                      wf1_ref, bf1_ref, wf2_ref, bf2_ref,
                      out_ref,
                      xpad_ref, h1_ref, pt1_ref, x2pad_ref, h2_ref, pt2_ref,
                      flat_ref):
    f32 = jnp.float32
    HP = H0 + 2                                       # padded height per image (18)

    # ---- zero-padded input scratch (borders stay zero) -----------------------
    xpad_ref[...] = jnp.zeros(xpad_ref.shape, f32)
    x2pad_ref[...] = jnp.zeros(x2pad_ref.shape, f32)
    for n in range(N):
        xpad_ref[n * HP + 1:n * HP + 1 + H0, 1:1 + W0, :] = x_ref[n]

    for n in range(N):                                # batch unrolled (N == 2)
        base = n * HP

        # ---- conv1 (3x3, s1, p1) + ReLU : 9 shifted matmuls, f32 accumulate --
        acc1 = jnp.zeros((H1 * W1, C1), f32)
        for t, (di, dj) in enumerate(TAPS):
            lhs = xpad_ref[base + di:base + di + H1, dj:dj + W1, :]   # (16,16,4)
            acc1 = acc1 + jnp.dot(lhs.reshape(H1 * W1, C0), w1_ref[t],
                                  preferred_element_type=f32)
        h1 = jnp.maximum(acc1 + b1_ref[...], 0.0)                     # (256, 8)
        h1_ref[...] = h1.reshape(H1, W1, C1)

        # ---- maxpool 2x2 (rows via leading-dim stride, cols via sublane stride)
        pt1_ref[...] = jnp.maximum(h1_ref[pl.ds(0, P1H, stride=2), :, :],
                                   h1_ref[pl.ds(1, P1H, stride=2), :, :])
        p1 = jnp.maximum(pt1_ref[:, pl.ds(0, P1W, stride=2), :],
                         pt1_ref[:, pl.ds(1, P1W, stride=2), :])      # (8,8,8)

        # ---- conv2 (3x3, s1, p1) + ReLU ---------------------------------------
        x2pad_ref[1:1 + P1H, 1:1 + P1W, :] = p1
        acc2 = jnp.zeros((H2 * W2, C2), f32)
        for t, (di, dj) in enumerate(TAPS):
            lhs = x2pad_ref[di:di + H2, dj:dj + W2, :]                # (8,8,8)
            acc2 = acc2 + jnp.dot(lhs.reshape(H2 * W2, C1), w2_ref[t],
                                  preferred_element_type=f32)
        h2 = jnp.maximum(acc2 + b2_ref[...], 0.0)                     # (64, 16)
        h2_ref[...] = h2.reshape(H2, W2, C2)

        # ---- maxpool 2x2 ------------------------------------------------------
        pt2_ref[...] = jnp.maximum(h2_ref[pl.ds(0, P2H, stride=2), :, :],
                                   h2_ref[pl.ds(1, P2H, stride=2), :, :])
        p2 = jnp.maximum(pt2_ref[:, pl.ds(0, P2W, stride=2), :],
                         pt2_ref[:, pl.ds(1, P2W, stride=2), :])      # (4,4,16)

        # ---- flatten (h, w, c) into one lane-dense row of the FC slab ---------
        for a in range(P2H):
            for b in range(P2W):
                s = (a * P2W + b) * C2
                flat_ref[n:n + 1, s:s + C2] = p2[a, b:b + 1, :]

    # ---- classifier: Linear(256->32) + ReLU, Linear(32->10), no softmax ------
    z1 = jnp.dot(flat_ref[...], wf1_ref[...], preferred_element_type=f32)
    z1 = jnp.maximum(z1 + bf1_ref[...], 0.0)                          # (N, 32)
    z2 = jnp.dot(z1, wf2_ref[...], preferred_element_type=f32)
    out_ref[...] = (z2 + bf2_ref[...]).astype(out_ref.dtype)


# ---------------------------------------------------------------------------
# Wrapper: boundary layout conversion + single fused pallas_call
# ---------------------------------------------------------------------------
@jax.jit
def cnn_forward(params, x_nchw):
    assert x_nchw.shape == (N, C0, H0, W0)
    x = jnp.transpose(x_nchw, (0, 2, 3, 1)).astype(jnp.float32)       # NCHW -> NHWC once

    # PyTorch-shaped params -> kernel operand layouts (tiny one-off rearrangements).
    w1 = jnp.transpose(params["conv1_w"], (2, 3, 1, 0)).reshape(KS * KS, C0, C1)
    w2 = jnp.transpose(params["conv2_w"], (2, 3, 1, 0)).reshape(KS * KS, C1, C2)
    b1 = params["conv1_b"].reshape(1, C1)
    b2 = params["conv2_b"].reshape(1, C2)
    # torch.flatten order on NCHW is (c, h, w); the kernel's flat order is (h, w, c).
    wf1 = jnp.transpose(params["fc1_w"].reshape(FC1, C2, P2H, P2W),
                        (2, 3, 1, 0)).reshape(FLAT, FC1)
    bf1 = params["fc1_b"].reshape(1, FC1)
    wf2 = params["fc2_w"].T
    bf2 = params["fc2_b"].reshape(1, NCLS)

    vmem_spec = pl.BlockSpec(memory_space=pltpu.MemorySpace.VMEM)
    return pl.pallas_call(
        _cnn_fused_kernel,
        out_shape=jax.ShapeDtypeStruct((N, NCLS), jnp.float32),
        in_specs=[vmem_spec] * 9,
        out_specs=vmem_spec,
        scratch_shapes=[
            pltpu.VMEM((N * (H0 + 2), W0 + 2, C0), jnp.float32),   # padded input (NHWC)
            pltpu.VMEM((H1, W1, C1), jnp.float32),                 # conv1 output
            pltpu.VMEM((P1H, W1, C1), jnp.float32),                # pool1 row-pooled tmp
            pltpu.VMEM((P1H + 2, P1W + 2, C1), jnp.float32),       # padded pool1 output
            pltpu.VMEM((H2, W2, C2), jnp.float32),                 # conv2 output
            pltpu.VMEM((P2H, W2, C2), jnp.float32),                # pool2 row-pooled tmp
            pltpu.VMEM((N, FLAT), jnp.float32),                    # flattened features
        ],
        compiler_params=pltpu.CompilerParams(vmem_limit_bytes=32 * 1024 * 1024),
    )(x, w1, b1, w2, b2, wf1, bf1, wf2, bf2)


# ---------------------------------------------------------------------------
# Deterministic PyTorch-layout parameters + pure-JAX reference (for validation)
# ---------------------------------------------------------------------------
def init_params(key):
    """Params in PyTorch layouts: Conv (OC,IC,KH,KW), Linear (out,in)."""
    ks = jax.random.split(key, 8)

    def u(k, shape, fan_in):
        bound = 1.0 / jnp.sqrt(jnp.float32(fan_in))
        return jax.random.uniform(k, shape, jnp.float32, -bound, bound)

    return {
        "conv1_w": u(ks[0], (C1, C0, KS, KS), C0 * KS * KS),
        "conv1_b": u(ks[1], (C1,), C0 * KS * KS),
        "conv2_w": u(ks[2], (C2, C1, KS, KS), C1 * KS * KS),
        "conv2_b": u(ks[3], (C2,), C1 * KS * KS),
        "fc1_w":   u(ks[4], (FC1, FLAT), FLAT),
        "fc1_b":   u(ks[5], (FC1,), FLAT),
        "fc2_w":   u(ks[6], (NCLS, FC1), FC1),
        "fc2_b":   u(ks[7], (NCLS,), FC1),
    }


def reference_forward(params, x):
    """Pure-JAX/XLA reference with PyTorch semantics (eval mode)."""
    def conv_relu(x, w, b):
        y = jax.lax.conv_general_dilated(
            x, w, window_strides=(1, 1), padding=((1, 1), (1, 1)),
            dimension_numbers=("NCHW", "OIHW", "NCHW"))
        return jax.nn.relu(y + b[None, :, None, None])

    def maxpool2(x):
        n, c, h, w = x.shape
        return jnp.max(x.reshape(n, c, h // 2, 2, w // 2, 2), axis=(3, 5))

    x = maxpool2(conv_relu(x, params["conv1_w"], params["conv1_b"]))
    x = maxpool2(conv_relu(x, params["conv2_w"], params["conv2_b"]))
    x = x.reshape(x.shape[0], -1)                     # torch.flatten(x, 1)
    x = jax.nn.relu(x @ params["fc1_w"].T + params["fc1_b"])
    return x @ params["fc2_w"].T + params["fc2_b"]    # use_softmax=False


if __name__ == "__main__":
    key = jax.random.PRNGKey(0)
    pkey, xkey = jax.random.split(key)
    params = init_params(pkey)
    x = jax.random.normal(xkey, (N, C0, H0, W0), jnp.float32)   # NCHW, like PyTorch

    out = jax.block_until_ready(cnn_forward(params, x))
    assert out.shape == (N, NCLS) and out.dtype == jnp.float32

    ref = jax.block_until_ready(reference_forward(params, x))
    err = float(jnp.max(jnp.abs(out - ref)))
    assert err < 1e-3, f"Pallas output mismatch vs pure-JAX reference (max abs err {err})"

    print("KERNEL_OK")
</pallas_src>

<mosaic_0001>
module attributes {stable_mosaic.version = 11 : i64} {
  func.func @_cnn_fused_kernel(%arg0: memref<2x16x16x4xf32, #tpu.memory_space<vmem>>, %arg1: memref<9x4x8xf32, #tpu.memory_space<vmem>>, %arg2: memref<1x8xf32, #tpu.memory_space<vmem>>, %arg3: memref<9x8x16xf32, #tpu.memory_space<vmem>>, %arg4: memref<1x16xf32, #tpu.memory_space<vmem>>, %arg5: memref<256x32xf32, #tpu.memory_space<vmem>>, %arg6: memref<1x32xf32, #tpu.memory_space<vmem>>, %arg7: memref<32x10xf32, #tpu.memory_space<vmem>>, %arg8: memref<1x10xf32, #tpu.memory_space<vmem>>, %arg9: memref<2x10xf32, #tpu.memory_space<vmem>>, %arg10: memref<36x18x4xf32, #tpu.memory_space<vmem>>, %arg11: memref<16x16x8xf32, #tpu.memory_space<vmem>>, %arg12: memref<8x16x8xf32, #tpu.memory_space<vmem>>, %arg13: memref<10x10x8xf32, #tpu.memory_space<vmem>>, %arg14: memref<8x8x16xf32, #tpu.memory_space<vmem>>, %arg15: memref<4x8x16xf32, #tpu.memory_space<vmem>>, %arg16: memref<2x256xf32, #tpu.memory_space<vmem>>) attributes {dimension_semantics = [], scalar_prefetch = 0 : i64, scratch_operands = 7 : i64, tpu.core_type = #tpu.core_type<tc>} {
    %cst = arith.constant 0.000000e+00 : f32
    %0 = vector.broadcast %cst : f32 to vector<36x18x4xf32>
    %c0 = arith.constant 0 : index
    %c0_0 = arith.constant 0 : index
    %c0_1 = arith.constant 0 : index
    %1 = vector.load %arg10[%c0, %c0_0, %c0_1] : memref<36x18x4xf32, #tpu.memory_space<vmem>>, vector<36x18x4xf32>
    tpu.vector_store %arg10[%c0, %c0_0, %c0_1], %0 {strides = array<i32>} : memref<36x18x4xf32, #tpu.memory_space<vmem>>, vector<36x18x4xf32>,
    %cst_2 = arith.constant 0.000000e+00 : f32
    %2 = vector.broadcast %cst_2 : f32 to vector<10x10x8xf32>
    %c0_3 = arith.constant 0 : index
    %c0_4 = arith.constant 0 : index
    %c0_5 = arith.constant 0 : index
    %3 = vector.load %arg13[%c0_3, %c0_4, %c0_5] : memref<10x10x8xf32, #tpu.memory_space<vmem>>, vector<10x10x8xf32>
    tpu.vector_store %arg13[%c0_3, %c0_4, %c0_5], %2 {strides = array<i32>} : memref<10x10x8xf32, #tpu.memory_space<vmem>>, vector<10x10x8xf32>,
    %c0_6 = arith.constant 0 : index
    %c0_7 = arith.constant 0 : index
    %c0_8 = arith.constant 0 : index
    %c0_9 = arith.constant 0 : index
    %4 = vector.load %arg0[%c0_6, %c0_7, %c0_8, %c0_9] : memref<2x16x16x4xf32, #tpu.memory_space<vmem>>, vector<1x16x16x4xf32>
    %5 = vector.shape_cast %4 : vector<1x16x16x4xf32> to vector<16x16x4xf32>
    %c1 = arith.constant 1 : index
    %c1_10 = arith.constant 1 : index
    %c0_11 = arith.constant 0 : index
    %6 = vector.load %arg10[%c1, %c1_10, %c0_11] : memref<36x18x4xf32, #tpu.memory_space<vmem>>, vector<16x16x4xf32>
    tpu.vector_store %arg10[%c1, %c1_10, %c0_11], %5 {strides = array<i32>} : memref<36x18x4xf32, #tpu.memory_space<vmem>>, vector<16x16x4xf32>,
    %c1_12 = arith.constant 1 : index
    %c0_13 = arith.constant 0 : index
    %c0_14 = arith.constant 0 : index
    %c0_15 = arith.constant 0 : index
    %7 = vector.load %arg0[%c1_12, %c0_13, %c0_14, %c0_15] : memref<2x16x16x4xf32, #tpu.memory_space<vmem>>, vector<1x16x16x4xf32>
    %8 = vector.shape_cast %7 : vector<1x16x16x4xf32> to vector<16x16x4xf32>
    %c19 = arith.constant 19 : index
    %c1_16 = arith.constant 1 : index
    %c0_17 = arith.constant 0 : index
    %9 = vector.load %arg10[%c19, %c1_16, %c0_17] : memref<36x18x4xf32, #tpu.memory_space<vmem>>, vector<16x16x4xf32>
    tpu.vector_store %arg10[%c19, %c1_16, %c0_17], %8 {strides = array<i32>} : memref<36x18x4xf32, #tpu.memory_space<vmem>>, vector<16x16x4xf32>,
    %cst_18 = arith.constant 0.000000e+00 : f32
    %10 = vector.broadcast %cst_18 : f32 to vector<256x8xf32>
    %c0_19 = arith.constant 0 : index
    %c0_20 = arith.constant 0 : index
    %c0_21 = arith.constant 0 : index
    %11 = vector.load %arg10[%c0_19, %c0_20, %c0_21] : memref<36x18x4xf32, #tpu.memory_space<vmem>>, vector<16x16x4xf32>
    %12 = vector.shape_cast %11 : vector<16x16x4xf32> to vector<256x4xf32>
    %c0_22 = arith.constant 0 : index
    %c0_23 = arith.constant 0 : index
    %c0_24 = arith.constant 0 : index
    %13 = vector.load %arg1[%c0_22, %c0_23, %c0_24] : memref<9x4x8xf32, #tpu.memory_space<vmem>>, vector<1x4x8xf32>
    %14 = vector.shape_cast %13 : vector<1x4x8xf32> to vector<4x8xf32>
    %cst_25 = arith.constant dense<0.000000e+00> : vector<256x8xf32>
    %15 = tpu.matmul %12, %14, %cst_25 {dimension_numbers = #tpu.dot_dimension_numbers<[1], [0], [0], [1], [0, 0, 1, 1], [], []>} : vector<256x4xf32>, vector<4x8xf32>, vector<256x8xf32> -> vector<256x8xf32>
    %16 = arith.addf %10, %15 : vector<256x8xf32>
    %c0_26 = arith.constant 0 : index
    %c1_27 = arith.constant 1 : index
    %c0_28 = arith.constant 0 : index
    %17 = vector.load %arg10[%c0_26, %c1_27, %c0_28] : memref<36x18x4xf32, #tpu.memory_space<vmem>>, vector<16x16x4xf32>
    %18 = vector.shape_cast %17 : vector<16x16x4xf32> to vector<256x4xf32>
    %c1_29 = arith.constant 1 : index
    %c0_30 = arith.constant 0 : index
    %c0_31 = arith.constant 0 : index
    %19 = vector.load %arg1[%c1_29, %c0_30, %c0_31] : memref<9x4x8xf32, #tpu.memory_space<vmem>>, vector<1x4x8xf32>
    %20 = vector.shape_cast %19 : vector<1x4x8xf32> to vector<4x8xf32>
    %cst_32 = arith.constant dense<0.000000e+00> : vector<256x8xf32>
    %21 = tpu.matmul %18, %20, %cst_32 {dimension_numbers = #tpu.dot_dimension_numbers<[1], [0], [0], [1], [0, 0, 1, 1], [], []>} : vector<256x4xf32>, vector<4x8xf32>, vector<256x8xf32> -> vector<256x8xf32>
    %22 = arith.addf %16, %21 : vector<256x8xf32>
    %c0_33 = arith.constant 0 : index
    %c2 = arith.constant 2 : index
    %c0_34 = arith.constant 0 : index
    %23 = vector.load %arg10[%c0_33, %c2, %c0_34] : memref<36x18x4xf32, #tpu.memory_space<vmem>>, vector<16x16x4xf32>
    %24 = vector.shape_cast %23 : vector<16x16x4xf32> to vector<256x4xf32>
    %c2_35 = arith.constant 2 : index
    %c0_36 = arith.constant 0 : index
    %c0_37 = arith.constant 0 : index
    %25 = vector.load %arg1[%c2_35, %c0_36, %c0_37] : memref<9x4x8xf32, #tpu.memory_space<vmem>>, vector<1x4x8xf32>
    %26 = vector.shape_cast %25 : vector<1x4x8xf32> to vector<4x8xf32>
    %cst_38 = arith.constant dense<0.000000e+00> : vector<256x8xf32>
    %27 = tpu.matmul %24, %26, %cst_38 {dimension_numbers = #tpu.dot_dimension_numbers<[1], [0], [0], [1], [0, 0, 1, 1], [], []>} : vector<256x4xf32>, vector<4x8xf32>, vector<256x8xf32> -> vector<256x8xf32>
    %28 = arith.addf %22, %27 : vector<256x8xf32>
    %c1_39 = arith.constant 1 : index
    %c0_40 = arith.constant 0 : index
    %c0_41 = arith.constant 0 : index
    %29 = vector.load %arg10[%c1_39, %c0_40, %c0_41] : memref<36x18x4xf32, #tpu.memory_space<vmem>>, vector<16x16x4xf32>
    %30 = vector.shape_cast %29 : vector<16x16x4xf32> to vector<256x4xf32>
    %c3 = arith.constant 3 : index
    %c0_42 = arith.constant 0 : index
    %c0_43 = arith.constant 0 : index
    %31 = vector.load %arg1[%c3, %c0_42, %c0_43] : memref<9x4x8xf32, #tpu.memory_space<vmem>>, vector<1x4x8xf32>
    %32 = vector.shape_cast %31 : vector<1x4x8xf32> to vector<4x8xf32>
    %cst_44 = arith.constant dense<0.000000e+00> : vector<256x8xf32>
    %33 = tpu.matmul %30, %32, %cst_44 {dimension_numbers = #tpu.dot_dimension_numbers<[1], [0], [0], [1], [0, 0, 1, 1], [], []>} : vector<256x4xf32>, vector<4x8xf32>, vector<256x8xf32> -> vector<256x8xf32>
    %34 = arith.addf %28, %33 : vector<256x8xf32>
    %c1_45 = arith.constant 1 : index
    %c1_46 = arith.constant 1 : index
    %c0_47 = arith.constant 0 : index
    %35 = vector.load %arg10[%c1_45, %c1_46, %c0_47] : memref<36x18x4xf32, #tpu.memory_space<vmem>>, vector<16x16x4xf32>
    %36 = vector.shape_cast %35 : vector<16x16x4xf32> to vector<256x4xf32>
    %c4 = arith.constant 4 : index
    %c0_48 = arith.constant 0 : index
    %c0_49 = arith.constant 0 : index
    %37 = vector.load %arg1[%c4, %c0_48, %c0_49] : memref<9x4x8xf32, #tpu.memory_space<vmem>>, vector<1x4x8xf32>
    %38 = vector.shape_cast %37 : vector<1x4x8xf32> to vector<4x8xf32>
    %cst_50 = arith.constant dense<0.000000e+00> : vector<256x8xf32>
    %39 = tpu.matmul %36, %38, %cst_50 {dimension_numbers = #tpu.dot_dimension_numbers<[1], [0], [0], [1], [0, 0, 1, 1], [], []>} : vector<256x4xf32>, vector<4x8xf32>, vector<256x8xf32> -> vector<256x8xf32>
    %40 = arith.addf %34, %39 : vector<256x8xf32>
    %c1_51 = arith.constant 1 : index
    %c2_52 = arith.constant 2 : index
    %c0_53 = arith.constant 0 : index
    %41 = vector.load %arg10[%c1_51, %c2_52, %c0_53] : memref<36x18x4xf32, #tpu.memory_space<vmem>>, vector<16x16x4xf32>
    %42 = vector.shape_cast %41 : vector<16x16x4xf32> to vector<256x4xf32>
    %c5 = arith.constant 5 : index
    %c0_54 = arith.constant 0 : index
    %c0_55 = arith.constant 0 : index
    %43 = vector.load %arg1[%c5, %c0_54, %c0_55] : memref<9x4x8xf32, #tpu.memory_space<vmem>>, vector<1x4x8xf32>
    %44 = vector.shape_cast %43 : vector<1x4x8xf32> to vector<4x8xf32>
    %cst_56 = arith.constant dense<0.000000e+00> : vector<256x8xf32>
    %45 = tpu.matmul %42, %44, %cst_56 {dimension_numbers = #tpu.dot_dimension_numbers<[1], [0], [0], [1], [0, 0, 1, 1], [], []>} : vector<256x4xf32>, vector<4x8xf32>, vector<256x8xf32> -> vector<256x8xf32>
    %46 = arith.addf %40, %45 : vector<256x8xf32>
    %c2_57 = arith.constant 2 : index
    %c0_58 = arith.constant 0 : index
    %c0_59 = arith.constant 0 : index
    %47 = vector.load %arg10[%c2_57, %c0_58, %c0_59] : memref<36x18x4xf32, #tpu.memory_space<vmem>>, vector<16x16x4xf32>
    %48 = vector.shape_cast %47 : vector<16x16x4xf32> to vector<256x4xf32>
    %c6 = arith.constant 6 : index
    %c0_60 = arith.constant 0 : index
    %c0_61 = arith.constant 0 : index
    %49 = vector.load %arg1[%c6, %c0_60, %c0_61] : memref<9x4x8xf32, #tpu.memory_space<vmem>>, vector<1x4x8xf32>
    %50 = vector.shape_cast %49 : vector<1x4x8xf32> to vector<4x8xf32>
    %cst_62 = arith.constant dense<0.000000e+00> : vector<256x8xf32>
    %51 = tpu.matmul %48, %50, %cst_62 {dimension_numbers = #tpu.dot_dimension_numbers<[1], [0], [0], [1], [0, 0, 1, 1], [], []>} : vector<256x4xf32>, vector<4x8xf32>, vector<256x8xf32> -> vector<256x8xf32>
    %52 = arith.addf %46, %51 : vector<256x8xf32>
    %c2_63 = arith.constant 2 : index
    %c1_64 = arith.constant 1 : index
    %c0_65 = arith.constant 0 : index
    %53 = vector.load %arg10[%c2_63, %c1_64, %c0_65] : memref<36x18x4xf32, #tpu.memory_space<vmem>>, vector<16x16x4xf32>
    %54 = vector.shape_cast %53 : vector<16x16x4xf32> to vector<256x4xf32>
    %c7 = arith.constant 7 : index
    %c0_66 = arith.constant 0 : index
    %c0_67 = arith.constant 0 : index
    %55 = vector.load %arg1[%c7, %c0_66, %c0_67] : memref<9x4x8xf32, #tpu.memory_space<vmem>>, vector<1x4x8xf32>
    %56 = vector.shape_cast %55 : vector<1x4x8xf32> to vector<4x8xf32>
    %cst_68 = arith.constant dense<0.000000e+00> : vector<256x8xf32>
    %57 = tpu.matmul %54, %56, %cst_68 {dimension_numbers = #tpu.dot_dimension_numbers<[1], [0], [0], [1], [0, 0, 1, 1], [], []>} : vector<256x4xf32>, vector<4x8xf32>, vector<256x8xf32> -> vector<256x8xf32>
    %58 = arith.addf %52, %57 : vector<256x8xf32>
    %c2_69 = arith.constant 2 : index
    %c2_70 = arith.constant 2 : index
    %c0_71 = arith.constant 0 : index
    %59 = vector.load %arg10[%c2_69, %c2_70, %c0_71] : memref<36x18x4xf32, #tpu.memory_space<vmem>>, vector<16x16x4xf32>
    %60 = vector.shape_cast %59 : vector<16x16x4xf32> to vector<256x4xf32>
    %c8 = arith.constant 8 : index
    %c0_72 = arith.constant 0 : index
    %c0_73 = arith.constant 0 : index
    %61 = vector.load %arg1[%c8, %c0_72, %c0_73] : memref<9x4x8xf32, #tpu.memory_space<vmem>>, vector<1x4x8xf32>
    %62 = vector.shape_cast %61 : vector<1x4x8xf32> to vector<4x8xf32>
    %cst_74 = arith.constant dense<0.000000e+00> : vector<256x8xf32>
    %63 = tpu.matmul %60, %62, %cst_74 {dimension_numbers = #tpu.dot_dimension_numbers<[1], [0], [0], [1], [0, 0, 1, 1], [], []>} : vector<256x4xf32>, vector<4x8xf32>, vector<256x8xf32> -> vector<256x8xf32>
    %64 = arith.addf %58, %63 : vector<256x8xf32>
    %c0_75 = arith.constant 0 : index
    %c0_76 = arith.constant 0 : index
    %65 = vector.load %arg2[%c0_75, %c0_76] : memref<1x8xf32, #tpu.memory_space<vmem>>, vector<1x8xf32>
    %66 = vector.broadcast %65 : vector<1x8xf32> to vector<256x8xf32>
    %67 = arith.addf %64, %66 : vector<256x8xf32>
    %cst_77 = arith.constant 0.000000e+00 : f32
    %68 = vector.broadcast %cst_77 : f32 to vector<256x8xf32>
    %69 = arith.maximumf %67, %68 : vector<256x8xf32>
    %70 = vector.shape_cast %69 : vector<256x8xf32> to vector<16x16x8xf32>
    %c0_78 = arith.constant 0 : index
    %c0_79 = arith.constant 0 : index
    %c0_80 = arith.constant 0 : index
    %71 = vector.load %arg11[%c0_78, %c0_79, %c0_80] : memref<16x16x8xf32, #tpu.memory_space<vmem>>, vector<16x16x8xf32>
    tpu.vector_store %arg11[%c0_78, %c0_79, %c0_80], %70 {strides = array<i32>} : memref<16x16x8xf32, #tpu.memory_space<vmem>>, vector<16x16x8xf32>,
    %c0_81 = arith.constant 0 : index
    %c0_82 = arith.constant 0 : index
    %c0_83 = arith.constant 0 : index
    %72 = tpu.strided_load %arg11[%c0_81, %c0_82, %c0_83] {strides = array<i32: 2, 1, 1>} : memref<16x16x8xf32, #tpu.memory_space<vmem>>, vector<8x16x8xf32>
    %c1_84 = arith.constant 1 : index
    %c0_85 = arith.constant 0 : index
    %c0_86 = arith.constant 0 : index
    %73 = tpu.strided_load %arg11[%c1_84, %c0_85, %c0_86] {strides = array<i32: 2, 1, 1>} : memref<16x16x8xf32, #tpu.memory_space<vmem>>, vector<8x16x8xf32>
    %74 = arith.maximumf %72, %73 : vector<8x16x8xf32>
    %c0_87 = arith.constant 0 : index
    %c0_88 = arith.constant 0 : index
    %c0_89 = arith.constant 0 : index
    %75 = vector.load %arg12[%c0_87, %c0_88, %c0_89] : memref<8x16x8xf32, #tpu.memory_space<vmem>>, vector<8x16x8xf32>
    tpu.vector_store %arg12[%c0_87, %c0_88, %c0_89], %74 {strides = array<i32>} : memref<8x16x8xf32, #tpu.memory_space<vmem>>, vector<8x16x8xf32>,
    %c0_90 = arith.constant 0 : index
    %c0_91 = arith.constant 0 : index
    %c0_92 = arith.constant 0 : index
    %76 = tpu.strided_load %arg12[%c0_90, %c0_91, %c0_92] {strides = array<i32: 1, 2, 1>} : memref<8x16x8xf32, #tpu.memory_space<vmem>>, vector<8x8x8xf32>
    %c0_93 = arith.constant 0 : index
    %c1_94 = arith.constant 1 : index
    %c0_95 = arith.constant 0 : index
    %77 = tpu.strided_load %arg12[%c0_93, %c1_94, %c0_95] {strides = array<i32: 1, 2, 1>} : memref<8x16x8xf32, #tpu.memory_space<vmem>>, vector<8x8x8xf32>
    %78 = arith.maximumf %76, %77 : vector<8x8x8xf32>
    %c1_96 = arith.constant 1 : index
    %c1_97 = arith.constant 1 : index
    %c0_98 = arith.constant 0 : index
    %79 = vector.load %arg13[%c1_96, %c1_97, %c0_98] : memref<10x10x8xf32, #tpu.memory_space<vmem>>, vector<8x8x8xf32>
    tpu.vector_store %arg13[%c1_96, %c1_97, %c0_98], %78 {strides = array<i32>} : memref<10x10x8xf32, #tpu.memory_space<vmem>>, vector<8x8x8xf32>,
    %cst_99 = arith.constant 0.000000e+00 : f32
    %80 = vector.broadcast %cst_99 : f32 to vector<64x16xf32>
    %c0_100 = arith.constant 0 : index
    %c0_101 = arith.constant 0 : index
    %c0_102 = arith.constant 0 : index
    %81 = vector.load %arg13[%c0_100, %c0_101, %c0_102] : memref<10x10x8xf32, #tpu.memory_space<vmem>>, vector<8x8x8xf32>
    %82 = vector.shape_cast %81 : vector<8x8x8xf32> to vector<64x8xf32>
    %c0_103 = arith.constant 0 : index
    %c0_104 = arith.constant 0 : index
    %c0_105 = arith.constant 0 : index
    %83 = vector.load %arg3[%c0_103, %c0_104, %c0_105] : memref<9x8x16xf32, #tpu.memory_space<vmem>>, vector<1x8x16xf32>
    %84 = vector.shape_cast %83 : vector<1x8x16xf32> to vector<8x16xf32>
    %cst_106 = arith.constant dense<0.000000e+00> : vector<64x16xf32>
    %85 = tpu.matmul %82, %84, %cst_106 {dimension_numbers = #tpu.dot_dimension_numbers<[1], [0], [0], [1], [0, 0, 1, 1], [], []>} : vector<64x8xf32>, vector<8x16xf32>, vector<64x16xf32> -> vector<64x16xf32>
    %86 = arith.addf %80, %85 : vector<64x16xf32>
    %c0_107 = arith.constant 0 : index
    %c1_108 = arith.constant 1 : index
    %c0_109 = arith.constant 0 : index
    %87 = vector.load %arg13[%c0_107, %c1_108, %c0_109] : memref<10x10x8xf32, #tpu.memory_space<vmem>>, vector<8x8x8xf32>
    %88 = vector.shape_cast %87 : vector<8x8x8xf32> to vector<64x8xf32>
    %c1_110 = arith.constant 1 : index
    %c0_111 = arith.constant 0 : index
    %c0_112 = arith.constant 0 : index
    %89 = vector.load %arg3[%c1_110, %c0_111, %c0_112] : memref<9x8x16xf32, #tpu.memory_space<vmem>>, vector<1x8x16xf32>
    %90 = vector.shape_cast %89 : vector<1x8x16xf32> to vector<8x16xf32>
    %cst_113 = arith.constant dense<0.000000e+00> : vector<64x16xf32>
    %91 = tpu.matmul %88, %90, %cst_113 {dimension_numbers = #tpu.dot_dimension_numbers<[1], [0], [0], [1], [0, 0, 1, 1], [], []>} : vector<64x8xf32>, vector<8x16xf32>, vector<64x16xf32> -> vector<64x16xf32>
    %92 = arith.addf %86, %91 : vector<64x16xf32>
    %c0_114 = arith.constant 0 : index
    %c2_115 = arith.constant 2 : index
    %c0_116 = arith.constant 0 : index
    %93 = vector.load %arg13[%c0_114, %c2_115, %c0_116] : memref<10x10x8xf32, #tpu.memory_space<vmem>>, vector<8x8x8xf32>
    %94 = vector.shape_cast %93 : vector<8x8x8xf32> to vector<64x8xf32>
    %c2_117 = arith.constant 2 : index
    %c0_118 = arith.constant 0 : index
    %c0_119 = arith.constant 0 : index
    %95 = vector.load %arg3[%c2_117, %c0_118, %c0_119] : memref<9x8x16xf32, #tpu.memory_space<vmem>>, vector<1x8x16xf32>
    %96 = vector.shape_cast %95 : vector<1x8x16xf32> to vector<8x16xf32>
    %cst_120 = arith.constant dense<0.000000e+00> : vector<64x16xf32>
    %97 = tpu.matmul %94, %96, %cst_120 {dimension_numbers = #tpu.dot_dimension_numbers<[1], [0], [0], [1], [0, 0, 1, 1], [], []>} : vector<64x8xf32>, vector<8x16xf32>, vector<64x16xf32> -> vector<64x16xf32>
    %98 = arith.addf %92, %97 : vector<64x16xf32>
    %c1_121 = arith.constant 1 : index
    %c0_122 = arith.constant 0 : index
    %c0_123 = arith.constant 0 : index
    %99 = vector.load %arg13[%c1_121, %c0_122, %c0_123] : memref<10x10x8xf32, #tpu.memory_space<vmem>>, vector<8x8x8xf32>
    %100 = vector.shape_cast %99 : vector<8x8x8xf32> to vector<64x8xf32>
    %c3_124 = arith.constant 3 : index
    %c0_125 = arith.constant 0 : index
    %c0_126 = arith.constant 0 : index
    %101 = vector.load %arg3[%c3_124, %c0_125, %c0_126] : memref<9x8x16xf32, #tpu.memory_space<vmem>>, vector<1x8x16xf32>
    %102 = vector.shape_cast %101 : vector<1x8x16xf32> to vector<8x16xf32>
    %cst_127 = arith.constant dense<0.000000e+00> : vector<64x16xf32>
    %103 = tpu.matmul %100, %102, %cst_127 {dimension_numbers = #tpu.dot_dimension_numbers<[1], [0], [0], [1], [0, 0, 1, 1], [], []>} : vector<64x8xf32>, vector<8x16xf32>, vector<64x16xf32> -> vector<64x16xf32>
    %104 = arith.addf %98, %103 : vector<64x16xf32>
    %c1_128 = arith.constant 1 : index
    %c1_129 = arith.constant 1 : index
    %c0_130 = arith.constant 0 : index
    %105 = vector.load %arg13[%c1_128, %c1_129, %c0_130] : memref<10x10x8xf32, #tpu.memory_space<vmem>>, vector<8x8x8xf32>
    %106 = vector.shape_cast %105 : vector<8x8x8xf32> to vector<64x8xf32>
    %c4_131 = arith.constant 4 : index
    %c0_132 = arith.constant 0 : index
    %c0_133 = arith.constant 0 : index
    %107 = vector.load %arg3[%c4_131, %c0_132, %c0_133] : memref<9x8x16xf32, #tpu.memory_space<vmem>>, vector<1x8x16xf32>
    %108 = vector.shape_cast %107 : vector<1x8x16xf32> to vector<8x16xf32>
    %cst_134 = arith.constant dense<0.000000e+00> : vector<64x16xf32>
    %109 = tpu.matmul %106, %108, %cst_134 {dimension_numbers = #tpu.dot_dimension_numbers<[1], [0], [0], [1], [0, 0, 1, 1], [], []>} : vector<64x8xf32>, vector<8x16xf32>, vector<64x16xf32> -> vector<64x16xf32>
    %110 = arith.addf %104, %109 : vector<64x16xf32>
    %c1_135 = arith.constant 1 : index
    %c2_136 = arith.constant 2 : index
    %c0_137 = arith.constant 0 : index
    %111 = vector.load %arg13[%c1_135, %c2_136, %c0_137] : memref<10x10x8xf32, #tpu.memory_space<vmem>>, vector<8x8x8xf32>
    %112 = vector.shape_cast %111 : vector<8x8x8xf32> to vector<64x8xf32>
    %c5_138 = arith.constant 5 : index
    %c0_139 = arith.constant 0 : index
    %c0_140 = arith.constant 0 : index
    %113 = vector.load %arg3[%c5_138, %c0_139, %c0_140] : memref<9x8x16xf32, #tpu.memory_space<vmem>>, vector<1x8x16xf32>
    %114 = vector.shape_cast %113 : vector<1x8x16xf32> to vector<8x16xf32>
    %cst_141 = arith.constant dense<0.000000e+00> : vector<64x16xf32>
    %115 = tpu.matmul %112, %114, %cst_141 {dimension_numbers = #tpu.dot_dimension_numbers<[1], [0], [0], [1], [0, 0, 1, 1], [], []>} : vector<64x8xf32>, vector<8x16xf32>, vector<64x16xf32> -> vector<64x16xf32>
    %116 = arith.addf %110, %115 : vector<64x16xf32>
    %c2_142 = arith.constant 2 : index
    %c0_143 = arith.constant 0 : index
    %c0_144 = arith.constant 0 : index
    %117 = vector.load %arg13[%c2_142, %c0_143, %c0_144] : memref<10x10x8xf32, #tpu.memory_space<vmem>>, vector<8x8x8xf32>
    %118 = vector.shape_cast %117 : vector<8x8x8xf32> to vector<64x8xf32>
    %c6_145 = arith.constant 6 : index
    %c0_146 = arith.constant 0 : index
    %c0_147 = arith.constant 0 : index
    %119 = vector.load %arg3[%c6_145, %c0_146, %c0_147] : memref<9x8x16xf32, #tpu.memory_space<vmem>>, vector<1x8x16xf32>
    %120 = vector.shape_cast %119 : vector<1x8x16xf32> to vector<8x16xf32>
    %cst_148 = arith.constant dense<0.000000e+00> : vector<64x16xf32>
    %121 = tpu.matmul %118, %120, %cst_148 {dimension_numbers = #tpu.dot_dimension_numbers<[1], [0], [0], [1], [0, 0, 1, 1], [], []>} : vector<64x8xf32>, vector<8x16xf32>, vector<64x16xf32> -> vector<64x16xf32>
    %122 = arith.addf %116, %121 : vector<64x16xf32>
    %c2_149 = arith.constant 2 : index
    %c1_150 = arith.constant 1 : index
    %c0_151 = arith.constant 0 : index
    %123 = vector.load %arg13[%c2_149, %c1_150, %c0_151] : memref<10x10x8xf32, #tpu.memory_space<vmem>>, vector<8x8x8xf32>
    %124 = vector.shape_cast %123 : vector<8x8x8xf32> to vector<64x8xf32>
    %c7_152 = arith.constant 7 : index
    %c0_153 = arith.constant 0 : index
    %c0_154 = arith.constant 0 : index
    %125 = vector.load %arg3[%c7_152, %c0_153, %c0_154] : memref<9x8x16xf32, #tpu.memory_space<vmem>>, vector<1x8x16xf32>
    %126 = vector.shape_cast %125 : vector<1x8x16xf32> to vector<8x16xf32>
    %cst_155 = arith.constant dense<0.000000e+00> : vector<64x16xf32>
    %127 = tpu.matmul %124, %126, %cst_155 {dimension_numbers = #tpu.dot_dimension_numbers<[1], [0], [0], [1], [0, 0, 1, 1], [], []>} : vector<64x8xf32>, vector<8x16xf32>, vector<64x16xf32> -> vector<64x16xf32>
    %128 = arith.addf %122, %127 : vector<64x16xf32>
    %c2_156 = arith.constant 2 : index
    %c2_157 = arith.constant 2 : index
    %c0_158 = arith.constant 0 : index
    %129 = vector.load %arg13[%c2_156, %c2_157, %c0_158] : memref<10x10x8xf32, #tpu.memory_space<vmem>>, vector<8x8x8xf32>
    %130 = vector.shape_cast %129 : vector<8x8x8xf32> to vector<64x8xf32>
    %c8_159 = arith.constant 8 : index
    %c0_160 = arith.constant 0 : index
    %c0_161 = arith.constant 0 : index
    %131 = vector.load %arg3[%c8_159, %c0_160, %c0_161] : memref<9x8x16xf32, #tpu.memory_space<vmem>>, vector<1x8x16xf32>
    %132 = vector.shape_cast %131 : vector<1x8x16xf32> to vector<8x16xf32>
    %cst_162 = arith.constant dense<0.000000e+00> : vector<64x16xf32>
    %133 = tpu.matmul %130, %132, %cst_162 {dimension_numbers = #tpu.dot_dimension_numbers<[1], [0], [0], [1], [0, 0, 1, 1], [], []>} : vector<64x8xf32>, vector<8x16xf32>, vector<64x16xf32> -> vector<64x16xf32>
    %134 = arith.addf %128, %133 : vector<64x16xf32>
    %c0_163 = arith.constant 0 : index
    %c0_164 = arith.constant 0 : index
    %135 = vector.load %arg4[%c0_163, %c0_164] : memref<1x16xf32, #tpu.memory_space<vmem>>, vector<1x16xf32>
    %136 = vector.broadcast %135 : vector<1x16xf32> to vector<64x16xf32>
    %137 = arith.addf %134, %136 : vector<64x16xf32>
    %cst_165 = arith.constant 0.000000e+00 : f32
    %138 = vector.broadcast %cst_165 : f32 to vector<64x16xf32>
    %139 = arith.maximumf %137, %138 : vector<64x16xf32>
    %140 = vector.shape_cast %139 : vector<64x16xf32> to vector<8x8x16xf32>
    %c0_166 = arith.constant 0 : index
    %c0_167 = arith.constant 0 : index
    %c0_168 = arith.constant 0 : index
    %141 = vector.load %arg14[%c0_166, %c0_167, %c0_168] : memref<8x8x16xf32, #tpu.memory_space<vmem>>, vector<8x8x16xf32>
    tpu.vector_store %arg14[%c0_166, %c0_167, %c0_168], %140 {strides = array<i32>} : memref<8x8x16xf32, #tpu.memory_space<vmem>>, vector<8x8x16xf32>,
    %c0_169 = arith.constant 0 : index
    %c0_170 = arith.constant 0 : index
    %c0_171 = arith.constant 0 : index
    %142 = tpu.strided_load %arg14[%c0_169, %c0_170, %c0_171] {strides = array<i32: 2, 1, 1>} : memref<8x8x16xf32, #tpu.memory_space<vmem>>, vector<4x8x16xf32>
    %c1_172 = arith.constant 1 : index
    %c0_173 = arith.constant 0 : index
    %c0_174 = arith.constant 0 : index
    %143 = tpu.strided_load %arg14[%c1_172, %c0_173, %c0_174] {strides = array<i32: 2, 1, 1>} : memref<8x8x16xf32, #tpu.memory_space<vmem>>, vector<4x8x16xf32>
    %144 = arith.maximumf %142, %143 : vector<4x8x16xf32>
    %c0_175 = arith.constant 0 : index
    %c0_176 = arith.constant 0 : index
    %c0_177 = arith.constant 0 : index
    %145 = vector.load %arg15[%c0_175, %c0_176, %c0_177] : memref<4x8x16xf32, #tpu.memory_space<vmem>>, vector<4x8x16xf32>
    tpu.vector_store %arg15[%c0_175, %c0_176, %c0_177], %144 {strides = array<i32>} : memref<4x8x16xf32, #tpu.memory_space<vmem>>, vector<4x8x16xf32>,
    %c0_178 = arith.constant 0 : index
    %c0_179 = arith.constant 0 : index
    %c0_180 = arith.constant 0 : index
    %146 = tpu.strided_load %arg15[%c0_178, %c0_179, %c0_180] {strides = array<i32: 1, 2, 1>} : memref<4x8x16xf32, #tpu.memory_space<vmem>>, vector<4x4x16xf32>
    %c0_181 = arith.constant 0 : index
    %c1_182 = arith.constant 1 : index
    %c0_183 = arith.constant 0 : index
    %147 = tpu.strided_load %arg15[%c0_181, %c1_182, %c0_183] {strides = array<i32: 1, 2, 1>} : memref<4x8x16xf32, #tpu.memory_space<vmem>>, vector<4x4x16xf32>
    %148 = arith.maximumf %146, %147 : vector<4x4x16xf32>
    %149 = vector.extract_strided_slice %148 {offsets = [0, 0, 0], sizes = [1, 1, 16], strides = [1, 1, 1]} : vector<4x4x16xf32> to vector<1x1x16xf32>
    %150 = vector.shape_cast %149 : vector<1x1x16xf32> to vector<1x16xf32>
    %c0_184 = arith.constant 0 : index
    %c0_185 = arith.constant 0 : index
    %151 = vector.load %arg16[%c0_184, %c0_185] : memref<2x256xf32, #tpu.memory_space<vmem>>, vector<1x16xf32>
    tpu.vector_store %arg16[%c0_184, %c0_185], %150 {strides = array<i32>} : memref<2x256xf32, #tpu.memory_space<vmem>>, vector<1x16xf32>,
    %152 = vector.extract_strided_slice %148 {offsets = [0, 1, 0], sizes = [1, 1, 16], strides = [1, 1, 1]} : vector<4x4x16xf32> to vector<1x1x16xf32>
    %153 = vector.shape_cast %152 : vector<1x1x16xf32> to vector<1x16xf32>
    %c0_186 = arith.constant 0 : index
    %c16 = arith.constant 16 : index
    %154 = vector.load %arg16[%c0_186, %c16] : memref<2x256xf32, #tpu.memory_space<vmem>>, vector<1x16xf32>
    tpu.vector_store %arg16[%c0_186, %c16], %153 {strides = array<i32>} : memref<2x256xf32, #tpu.memory_space<vmem>>, vector<1x16xf32>,
    %155 = vector.extract_strided_slice %148 {offsets = [0, 2, 0], sizes = [1, 1, 16], strides = [1, 1, 1]} : vector<4x4x16xf32> to vector<1x1x16xf32>
    %156 = vector.shape_cast %155 : vector<1x1x16xf32> to vector<1x16xf32>
    %c0_187 = arith.constant 0 : index
    %c32 = arith.constant 32 : index
    %157 = vector.load %arg16[%c0_187, %c32] : memref<2x256xf32, #tpu.memory_space<vmem>>, vector<1x16xf32>
    tpu.vector_store %arg16[%c0_187, %c32], %156 {strides = array<i32>} : memref<2x256xf32, #tpu.memory_space<vmem>>, vector<1x16xf32>,
    %158 = vector.extract_strided_slice %148 {offsets = [0, 3, 0], sizes = [1, 1, 16], strides = [1, 1, 1]} : vector<4x4x16xf32> to vector<1x1x16xf32>
    %159 = vector.shape_cast %158 : vector<1x1x16xf32> to vector<1x16xf32>
    %c0_188 = arith.constant 0 : index
    %c48 = arith.constant 48 : index
    %160 = vector.load %arg16[%c0_188, %c48] : memref<2x256xf32, #tpu.memory_space<vmem>>, vector<1x16xf32>
    tpu.vector_store %arg16[%c0_188, %c48], %159 {strides = array<i32>} : memref<2x256xf32, #tpu.memory_space<vmem>>, vector<1x16xf32>,
    %161 = vector.extract_strided_slice %148 {offsets = [1, 0, 0], sizes = [1, 1, 16], strides = [1, 1, 1]} : vector<4x4x16xf32> to vector<1x1x16xf32>
    %162 = vector.shape_cast %161 : vector<1x1x16xf32> to vector<1x16xf32>
    %c0_189 = arith.constant 0 : index
    %c64 = arith.constant 64 : index
    %163 = vector.load %arg16[%c0_189, %c64] : memref<2x256xf32, #tpu.memory_space<vmem>>, vector<1x16xf32>
    tpu.vector_store %arg16[%c0_189, %c64], %162 {strides = array<i32>} : memref<2x256xf32, #tpu.memory_space<vmem>>, vector<1x16xf32>,
    %164 = vector.extract_strided_slice %148 {offsets = [1, 1, 0], sizes = [1, 1, 16], strides = [1, 1, 1]} : vector<4x4x16xf32> to vector<1x1x16xf32>
    %165 = vector.shape_cast %164 : vector<1x1x16xf32> to vector<1x16xf32>
    %c0_190 = arith.constant 0 : index
    %c80 = arith.constant 80 : index
    %166 = vector.load %arg16[%c0_190, %c80] : memref<2x256xf32, #tpu.memory_space<vmem>>, vector<1x16xf32>
    tpu.vector_store %arg16[%c0_190, %c80], %165 {strides = array<i32>} : memref<2x256xf32, #tpu.memory_space<vmem>>, vector<1x16xf32>,
    %167 = vector.extract_strided_slice %148 {offsets = [1, 2, 0], sizes = [1, 1, 16], strides = [1, 1, 1]} : vector<4x4x16xf32> to vector<1x1x16xf32>
    %168 = vector.shape_cast %167 : vector<1x1x16xf32> to vector<1x16xf32>
    %c0_191 = arith.constant 0 : index
    %c96 = arith.constant 96 : index
    %169 = vector.load %arg16[%c0_191, %c96] : memref<2x256xf32, #tpu.memory_space<vmem>>, vector<1x16xf32>
    tpu.vector_store %arg16[%c0_191, %c96], %168 {strides = array<i32>} : memref<2x256xf32, #tpu.memory_space<vmem>>, vector<1x16xf32>,
    %170 = vector.extract_strided_slice %148 {offsets = [1, 3, 0], sizes = [1, 1, 16], strides = [1, 1, 1]} : vector<4x4x16xf32> to vector<1x1x16xf32>
    %171 = vector.shape_cast %170 : vector<1x1x16xf32> to vector<1x16xf32>
    %c0_192 = arith.constant 0 : index
    %c112 = arith.constant 112 : index
    %172 = vector.load %arg16[%c0_192, %c112] : memref<2x256xf32, #tpu.memory_space<vmem>>, vector<1x16xf32>
    tpu.vector_store %arg16[%c0_192, %c112], %171 {strides = array<i32>} : memref<2x256xf32, #tpu.memory_space<vmem>>, vector<1x16xf32>,
    %173 = vector.extract_strided_slice %148 {offsets = [2, 0, 0], sizes = [1, 1, 16], strides = [1, 1, 1]} : vector<4x4x16xf32> to vector<1x1x16xf32>
    %174 = vector.shape_cast %173 : vector<1x1x16xf32> to vector<1x16xf32>
    %c0_193 = arith.constant 0 : index
    %c128 = arith.constant 128 : index
    %175 = vector.load %arg16[%c0_193, %c128] : memref<2x256xf32, #tpu.memory_space<vmem>>, vector<1x16xf32>
    tpu.vector_store %arg16[%c0_193, %c128], %174 {strides = array<i32>} : memref<2x256xf32, #tpu.memory_space<vmem>>, vector<1x16xf32>,
    %176 = vector.extract_strided_slice %148 {offsets = [2, 1, 0], sizes = [1, 1, 16], strides = [1, 1, 1]} : vector<4x4x16xf32> to vector<1x1x16xf32>
    %177 = vector.shape_cast %176 : vector<1x1x16xf32> to vector<1x16xf32>
    %c0_194 = arith.constant 0 : index
    %c144 = arith.constant 144 : index
    %178 = vector.load %arg16[%c0_194, %c144] : memref<2x256xf32, #tpu.memory_space<vmem>>, vector<1x16xf32>
    tpu.vector_store %arg16[%c0_194, %c144], %177 {strides = array<i32>} : memref<2x256xf32, #tpu.memory_space<vmem>>, vector<1x16xf32>,
    %179 = vector.extract_strided_slice %148 {offsets = [2, 2, 0], sizes = [1, 1, 16], strides = [1, 1, 1]} : vector<4x4x16xf32> to vector<1x1x16xf32>
    %180 = vector.shape_cast %179 : vector<1x1x16xf32> to vector<1x16xf32>
    %c0_195 = arith.constant 0 : index
    %c160 = arith.constant 160 : index
    %181 = vector.load %arg16[%c0_195, %c160] : memref<2x256xf32, #tpu.memory_space<vmem>>, vector<1x16xf32>
    tpu.vector_store %arg16[%c0_195, %c160], %180 {strides = array<i32>} : memref<2x256xf32, #tpu.memory_space<vmem>>, vector<1x16xf32>,
    %182 = vector.extract_strided_slice %148 {offsets = [2, 3, 0], sizes = [1, 1, 16], strides = [1, 1, 1]} : vector<4x4x16xf32> to vector<1x1x16xf32>
    %183 = vector.shape_cast %182 : vector<1x1x16xf32> to vector<1x16xf32>
    %c0_196 = arith.constant 0 : index
    %c176 = arith.constant 176 : index
    %184 = vector.load %arg16[%c0_196, %c176] : memref<2x256xf32, #tpu.memory_space<vmem>>, vector<1x16xf32>
    tpu.vector_store %arg16[%c0_196, %c176], %183 {strides = array<i32>} : memref<2x256xf32, #tpu.memory_space<vmem>>, vector<1x16xf32>,
    %185 = vector.extract_strided_slice %148 {offsets = [3, 0, 0], sizes = [1, 1, 16], strides = [1, 1, 1]} : vector<4x4x16xf32> to vector<1x1x16xf32>
    %186 = vector.shape_cast %185 : vector<1x1x16xf32> to vector<1x16xf32>
    %c0_197 = arith.constant 0 : index
    %c192 = arith.constant 192 : index
    %187 = vector.load %arg16[%c0_197, %c192] : memref<2x256xf32, #tpu.memory_space<vmem>>, vector<1x16xf32>
    tpu.vector_store %arg16[%c0_197, %c192], %186 {strides = array<i32>} : memref<2x256xf32, #tpu.memory_space<vmem>>, vector<1x16xf32>,
    %188 = vector.extract_strided_slice %148 {offsets = [3, 1, 0], sizes = [1, 1, 16], strides = [1, 1, 1]} : vector<4x4x16xf32> to vector<1x1x16xf32>
    %189 = vector.shape_cast %188 : vector<1x1x16xf32> to vector<1x16xf32>
    %c0_198 = arith.constant 0 : index
    %c208 = arith.constant 208 : index
    %190 = vector.load %arg16[%c0_198, %c208] : memref<2x256xf32, #tpu.memory_space<vmem>>, vector<1x16xf32>
    tpu.vector_store %arg16[%c0_198, %c208], %189 {strides = array<i32>} : memref<2x256xf32, #tpu.memory_space<vmem>>, vector<1x16xf32>,
    %191 = vector.extract_strided_slice %148 {offsets = [3, 2, 0], sizes = [1, 1, 16], strides = [1, 1, 1]} : vector<4x4x16xf32> to vector<1x1x16xf32>
    %192 = vector.shape_cast %191 : vector<1x1x16xf32> to vector<1x16xf32>
    %c0_199 = arith.constant 0 : index
    %c224 = arith.constant 224 : index
    %193 = vector.load %arg16[%c0_199, %c224] : memref<2x256xf32, #tpu.memory_space<vmem>>, vector<1x16xf32>
    tpu.vector_store %arg16[%c0_199, %c224], %192 {strides = array<i32>} : memref<2x256xf32, #tpu.memory_space<vmem>>, vector<1x16xf32>,
    %194 = vector.extract_strided_slice %148 {offsets = [3, 3, 0], sizes = [1, 1, 16], strides = [1, 1, 1]} : vector<4x4x16xf32> to vector<1x1x16xf32>
    %195 = vector.shape_cast %194 : vector<1x1x16xf32> to vector<1x16xf32>
    %c0_200 = arith.constant 0 : index
    %c240 = arith.constant 240 : index
    %196 = vector.load %arg16[%c0_200, %c240] : memref<2x256xf32, #tpu.memory_space<vmem>>, vector<1x16xf32>
    tpu.vector_store %arg16[%c0_200, %c240], %195 {strides = array<i32>} : memref<2x256xf32, #tpu.memory_space<vmem>>, vector<1x16xf32>,
    %cst_201 = arith.constant 0.000000e+00 : f32
    %197 = vector.broadcast %cst_201 : f32 to vector<256x8xf32>
    %c18 = arith.constant 18 : index
    %c0_202 = arith.constant 0 : index
    %c0_203 = arith.constant 0 : index
    %198 = vector.load %arg10[%c18, %c0_202, %c0_203] : memref<36x18x4xf32, #tpu.memory_space<vmem>>, vector<16x16x4xf32>
    %199 = vector.shape_cast %198 : vector<16x16x4xf32> to vector<256x4xf32>
    %c0_204 = arith.constant 0 : index
    %c0_205 = arith.constant 0 : index
    %c0_206 = arith.constant 0 : index
    %200 = vector.load %arg1[%c0_204, %c0_205, %c0_206] : memref<9x4x8xf32, #tpu.memory_space<vmem>>, vector<1x4x8xf32>
    %201 = vector.shape_cast %200 : vector<1x4x8xf32> to vector<4x8xf32>
    %cst_207 = arith.constant dense<0.000000e+00> : vector<256x8xf32>
    %202 = tpu.matmul %199, %201, %cst_207 {dimension_numbers = #tpu.dot_dimension_numbers<[1], [0], [0], [1], [0, 0, 1, 1], [], []>} : vector<256x4xf32>, vector<4x8xf32>, vector<256x8xf32> -> vector<256x8xf32>
    %203 = arith.addf %197, %202 : vector<256x8xf32>
    %c18_208 = arith.constant 18 : index
    %c1_209 = arith.constant 1 : index
    %c0_210 = arith.constant 0 : index
    %204 = vector.load %arg10[%c18_208, %c1_209, %c0_210] : memref<36x18x4xf32, #tpu.memory_space<vmem>>, vector<16x16x4xf32>
    %205 = vector.shape_cast %204 : vector<16x16x4xf32> to vector<256x4xf32>
    %c1_211 = arith.constant 1 : index
    %c0_212 = arith.constant 0 : index
    %c0_213 = arith.constant 0 : index
    %206 = vector.load %arg1[%c1_211, %c0_212, %c0_213] : memref<9x4x8xf32, #tpu.memory_space<vmem>>, vector<1x4x8xf32>
    %207 = vector.shape_cast %206 : vector<1x4x8xf32> to vector<4x8xf32>
    %cst_214 = arith.constant dense<0.000000e+00> : vector<256x8xf32>
    %208 = tpu.matmul %205, %207, %cst_214 {dimension_numbers = #tpu.dot_dimension_numbers<[1], [0], [0], [1], [0, 0, 1, 1], [], []>} : vector<256x4xf32>, vector<4x8xf32>, vector<256x8xf32> -> vector<256x8xf32>
    %209 = arith.addf %203, %208 : vector<256x8xf32>
    %c18_215 = arith.constant 18 : index
    %c2_216 = arith.constant 2 : index
    %c0_217 = arith.constant 0 : index
    %210 = vector.load %arg10[%c18_215, %c2_216, %c0_217] : memref<36x18x4xf32, #tpu.memory_space<vmem>>, vector<16x16x4xf32>
    %211 = vector.shape_cast %210 : vector<16x16x4xf32> to vector<256x4xf32>
    %c2_218 = arith.constant 2 : index
    %c0_219 = arith.constant 0 : index
    %c0_220 = arith.constant 0 : index
    %212 = vector.load %arg1[%c2_218, %c0_219, %c0_220] : memref<9x4x8xf32, #tpu.memory_space<vmem>>, vector<1x4x8xf32>
    %213 = vector.shape_cast %212 : vector<1x4x8xf32> to vector<4x8xf32>
    %cst_221 = arith.constant dense<0.000000e+00> : vector<256x8xf32>
    %214 = tpu.matmul %211, %213, %cst_221 {dimension_numbers = #tpu.dot_dimension_numbers<[1], [0], [0], [1], [0, 0, 1, 1], [], []>} : vector<256x4xf32>, vector<4x8xf32>, vector<256x8xf32> -> vector<256x8xf32>
    %215 = arith.addf %209, %214 : vector<256x8xf32>
    %c19_222 = arith.constant 19 : index
    %c0_223 = arith.constant 0 : index
    %c0_224 = arith.constant 0 : index
    %216 = vector.load %arg10[%c19_222, %c0_223, %c0_224] : memref<36x18x4xf32, #tpu.memory_space<vmem>>, vector<16x16x4xf32>
    %217 = vector.shape_cast %216 : vector<16x16x4xf32> to vector<256x4xf32>
    %c3_225 = arith.constant 3 : index
    %c0_226 = arith.constant 0 : index
    %c0_227 = arith.constant 0 : index
    %218 = vector.load %arg1[%c3_225, %c0_226, %c0_227] : memref<9x4x8xf32, #tpu.memory_space<vmem>>, vector<1x4x8xf32>
    %219 = vector.shape_cast %218 : vector<1x4x8xf32> to vector<4x8xf32>
    %cst_228 = arith.constant dense<0.000000e+00> : vector<256x8xf32>
    %220 = tpu.matmul %217, %219, %cst_228 {dimension_numbers = #tpu.dot_dimension_numbers<[1], [0], [0], [1], [0, 0, 1, 1], [], []>} : vector<256x4xf32>, vector<4x8xf32>, vector<256x8xf32> -> vector<256x8xf32>
    %221 = arith.addf %215, %220 : vector<256x8xf32>
    %c19_229 = arith.constant 19 : index
    %c1_230 = arith.constant 1 : index
    %c0_231 = arith.constant 0 : index
    %222 = vector.load %arg10[%c19_229, %c1_230, %c0_231] : memref<36x18x4xf32, #tpu.memory_space<vmem>>, vector<16x16x4xf32>
    %223 = vector.shape_cast %222 : vector<16x16x4xf32> to vector<256x4xf32>
    %c4_232 = arith.constant 4 : index
    %c0_233 = arith.constant 0 : index
    %c0_234 = arith.constant 0 : index
    %224 = vector.load %arg1[%c4_232, %c0_233, %c0_234] : memref<9x4x8xf32, #tpu.memory_space<vmem>>, vector<1x4x8xf32>
    %225 = vector.shape_cast %224 : vector<1x4x8xf32> to vector<4x8xf32>
    %cst_235 = arith.constant dense<0.000000e+00> : vector<256x8xf32>
    %226 = tpu.matmul %223, %225, %cst_235 {dimension_numbers = #tpu.dot_dimension_numbers<[1], [0], [0], [1], [0, 0, 1, 1], [], []>} : vector<256x4xf32>, vector<4x8xf32>, vector<256x8xf32> -> vector<256x8xf32>
    %227 = arith.addf %221, %226 : vector<256x8xf32>
    %c19_236 = arith.constant 19 : index
    %c2_237 = arith.constant 2 : index
    %c0_238 = arith.constant 0 : index
    %228 = vector.load %arg10[%c19_236, %c2_237, %c0_238] : memref<36x18x4xf32, #tpu.memory_space<vmem>>, vector<16x16x4xf32>
    %229 = vector.shape_cast %228 : vector<16x16x4xf32> to vector<256x4xf32>
    %c5_239 = arith.constant 5 : index
    %c0_240 = arith.constant 0 : index
    %c0_241 = arith.constant 0 : index
    %230 = vector.load %arg1[%c5_239, %c0_240, %c0_241] : memref<9x4x8xf32, #tpu.memory_space<vmem>>, vector<1x4x8xf32>
    %231 = vector.shape_cast %230 : vector<1x4x8xf32> to vector<4x8xf32>
    %cst_242 = arith.constant dense<0.000000e+00> : vector<256x8xf32>
    %232 = tpu.matmul %229, %231, %cst_242 {dimension_numbers = #tpu.dot_dimension_numbers<[1], [0], [0], [1], [0, 0, 1, 1], [], []>} : vector<256x4xf32>, vector<4x8xf32>, vector<256x8xf32> -> vector<256x8xf32>
    %233 = arith.addf %227, %232 : vector<256x8xf32>
    %c20 = arith.constant 20 : index
    %c0_243 = arith.constant 0 : index
    %c0_244 = arith.constant 0 : index
    %234 = vector.load %arg10[%c20, %c0_243, %c0_244] : memref<36x18x4xf32, #tpu.memory_space<vmem>>, vector<16x16x4xf32>
    %235 = vector.shape_cast %234 : vector<16x16x4xf32> to vector<256x4xf32>
    %c6_245 = arith.constant 6 : index
    %c0_246 = arith.constant 0 : index
    %c0_247 = arith.constant 0 : index
    %236 = vector.load %arg1[%c6_245, %c0_246, %c0_247] : memref<9x4x8xf32, #tpu.memory_space<vmem>>, vector<1x4x8xf32>
    %237 = vector.shape_cast %236 : vector<1x4x8xf32> to vector<4x8xf32>
    %cst_248 = arith.constant dense<0.000000e+00> : vector<256x8xf32>
    %238 = tpu.matmul %235, %237, %cst_248 {dimension_numbers = #tpu.dot_dimension_numbers<[1], [0], [0], [1], [0, 0, 1, 1], [], []>} : vector<256x4xf32>, vector<4x8xf32>, vector<256x8xf32> -> vector<256x8xf32>
    %239 = arith.addf %233, %238 : vector<256x8xf32>
    %c20_249 = arith.constant 20 : index
    %c1_250 = arith.constant 1 : index
    %c0_251 = arith.constant 0 : index
    %240 = vector.load %arg10[%c20_249, %c1_250, %c0_251] : memref<36x18x4xf32, #tpu.memory_space<vmem>>, vector<16x16x4xf32>
    %241 = vector.shape_cast %240 : vector<16x16x4xf32> to vector<256x4xf32>
    %c7_252 = arith.constant 7 : index
    %c0_253 = arith.constant 0 : index
    %c0_254 = arith.constant 0 : index
    %242 = vector.load %arg1[%c7_252, %c0_253, %c0_254] : memref<9x4x8xf32, #tpu.memory_space<vmem>>, vector<1x4x8xf32>
    %243 = vector.shape_cast %242 : vector<1x4x8xf32> to vector<4x8xf32>
    %cst_255 = arith.constant dense<0.000000e+00> : vector<256x8xf32>
    %244 = tpu.matmul %241, %243, %cst_255 {dimension_numbers = #tpu.dot_dimension_numbers<[1], [0], [0], [1], [0, 0, 1, 1], [], []>} : vector<256x4xf32>, vector<4x8xf32>, vector<256x8xf32> -> vector<256x8xf32>
    %245 = arith.addf %239, %244 : vector<256x8xf32>
    %c20_256 = arith.constant 20 : index
    %c2_257 = arith.constant 2 : index
    %c0_258 = arith.constant 0 : index
    %246 = vector.load %arg10[%c20_256, %c2_257, %c0_258] : memref<36x18x4xf32, #tpu.memory_space<vmem>>, vector<16x16x4xf32>
    %247 = vector.shape_cast %246 : vector<16x16x4xf32> to vector<256x4xf32>
    %c8_259 = arith.constant 8 : index
    %c0_260 = arith.constant 0 : index
    %c0_261 = arith.constant 0 : index
    %248 = vector.load %arg1[%c8_259, %c0_260, %c0_261] : memref<9x4x8xf32, #tpu.memory_space<vmem>>, vector<1x4x8xf32>
    %249 = vector.shape_cast %248 : vector<1x4x8xf32> to vector<4x8xf32>
    %cst_262 = arith.constant dense<0.000000e+00> : vector<256x8xf32>
    %250 = tpu.matmul %247, %249, %cst_262 {dimension_numbers = #tpu.dot_dimension_numbers<[1], [0], [0], [1], [0, 0, 1, 1], [], []>} : vector<256x4xf32>, vector<4x8xf32>, vector<256x8xf32> -> vector<256x8xf32>
    %251 = arith.addf %245, %250 : vector<256x8xf32>
    %c0_263 = arith.constant 0 : index
    %c0_264 = arith.constant 0 : index
    %252 = vector.load %arg2[%c0_263, %c0_264] : memref<1x8xf32, #tpu.memory_space<vmem>>, vector<1x8xf32>
    %253 = vector.broadcast %252 : vector<1x8xf32> to vector<256x8xf32>
    %254 = arith.addf %251, %253 : vector<256x8xf32>
    %cst_265 = arith.constant 0.000000e+00 : f32
    %255 = vector.broadcast %cst_265 : f32 to vector<256x8xf32>
    %256 = arith.maximumf %254, %255 : vector<256x8xf32>
    %257 = vector.shape_cast %256 : vector<256x8xf32> to vector<16x16x8xf32>
    %c0_266 = arith.constant 0 : index
    %c0_267 = arith.constant 0 : index
    %c0_268 = arith.constant 0 : index
    %258 = vector.load %arg11[%c0_266, %c0_267, %c0_268] : memref<16x16x8xf32, #tpu.memory_space<vmem>>, vector<16x16x8xf32>
    tpu.vector_store %arg11[%c0_266, %c0_267, %c0_268], %257 {strides = array<i32>} : memref<16x16x8xf32, #tpu.memory_space<vmem>>, vector<16x16x8xf32>,
    %c0_269 = arith.constant 0 : index
    %c0_270 = arith.constant 0 : index
    %c0_271 = arith.constant 0 : index
    %259 = tpu.strided_load %arg11[%c0_269, %c0_270, %c0_271] {strides = array<i32: 2, 1, 1>} : memref<16x16x8xf32, #tpu.memory_space<vmem>>, vector<8x16x8xf32>
    %c1_272 = arith.constant 1 : index
    %c0_273 = arith.constant 0 : index
    %c0_274 = arith.constant 0 : index
    %260 = tpu.strided_load %arg11[%c1_272, %c0_273, %c0_274] {strides = array<i32: 2, 1, 1>} : memref<16x16x8xf32, #tpu.memory_space<vmem>>, vector<8x16x8xf32>
    %261 = arith.maximumf %259, %260 : vector<8x16x8xf32>
    %c0_275 = arith.constant 0 : index
    %c0_276 = arith.constant 0 : index
    %c0_277 = arith.constant 0 : index
    %262 = vector.load %arg12[%c0_275, %c0_276, %c0_277] : memref<8x16x8xf32, #tpu.memory_space<vmem>>, vector<8x16x8xf32>
    tpu.vector_store %arg12[%c0_275, %c0_276, %c0_277], %261 {strides = array<i32>} : memref<8x16x8xf32, #tpu.memory_space<vmem>>, vector<8x16x8xf32>,
    %c0_278 = arith.constant 0 : index
    %c0_279 = arith.constant 0 : index
    %c0_280 = arith.constant 0 : index
    %263 = tpu.strided_load %arg12[%c0_278, %c0_279, %c0_280] {strides = array<i32: 1, 2, 1>} : memref<8x16x8xf32, #tpu.memory_space<vmem>>, vector<8x8x8xf32>
    %c0_281 = arith.constant 0 : index
    %c1_282 = arith.constant 1 : index
    %c0_283 = arith.constant 0 : index
    %264 = tpu.strided_load %arg12[%c0_281, %c1_282, %c0_283] {strides = array<i32: 1, 2, 1>} : memref<8x16x8xf32, #tpu.memory_space<vmem>>, vector<8x8x8xf32>
    %265 = arith.maximumf %263, %264 : vector<8x8x8xf32>
    %c1_284 = arith.constant 1 : index
    %c1_285 = arith.constant 1 : index
    %c0_286 = arith.constant 0 : index
    %266 = vector.load %arg13[%c1_284, %c1_285, %c0_286] : memref<10x10x8xf32, #tpu.memory_space<vmem>>, vector<8x8x8xf32>
    tpu.vector_store %arg13[%c1_284, %c1_285, %c0_286], %265 {strides = array<i32>} : memref<10x10x8xf32, #tpu.memory_space<vmem>>, vector<8x8x8xf32>,
    %cst_287 = arith.constant 0.000000e+00 : f32
    %267 = vector.broadcast %cst_287 : f32 to vector<64x16xf32>
    %c0_288 = arith.constant 0 : index
    %c0_289 = arith.constant 0 : index
    %c0_290 = arith.constant 0 : index
    %268 = vector.load %arg13[%c0_288, %c0_289, %c0_290] : memref<10x10x8xf32, #tpu.memory_space<vmem>>, vector<8x8x8xf32>
    %269 = vector.shape_cast %268 : vector<8x8x8xf32> to vector<64x8xf32>
    %c0_291 = arith.constant 0 : index
    %c0_292 = arith.constant 0 : index
    %c0_293 = arith.constant 0 : index
    %270 = vector.load %arg3[%c0_291, %c0_292, %c0_293] : memref<9x8x16xf32, #tpu.memory_space<vmem>>, vector<1x8x16xf32>
    %271 = vector.shape_cast %270 : vector<1x8x16xf32> to vector<8x16xf32>
    %cst_294 = arith.constant dense<0.000000e+00> : vector<64x16xf32>
    %272 = tpu.matmul %269, %271, %cst_294 {dimension_numbers = #tpu.dot_dimension_numbers<[1], [0], [0], [1], [0, 0, 1, 1], [], []>} : vector<64x8xf32>, vector<8x16xf32>, vector<64x16xf32> -> vector<64x16xf32>
    %273 = arith.addf %267, %272 : vector<64x16xf32>
    %c0_295 = arith.constant 0 : index
    %c1_296 = arith.constant 1 : index
    %c0_297 = arith.constant 0 : index
    %274 = vector.load %arg13[%c0_295, %c1_296, %c0_297] : memref<10x10x8xf32, #tpu.memory_space<vmem>>, vector<8x8x8xf32>
    %275 = vector.shape_cast %274 : vector<8x8x8xf32> to vector<64x8xf32>
    %c1_298 = arith.constant 1 : index
    %c0_299 = arith.constant 0 : index
    %c0_300 = arith.constant 0 : index
    %276 = vector.load %arg3[%c1_298, %c0_299, %c0_300] : memref<9x8x16xf32, #tpu.memory_space<vmem>>, vector<1x8x16xf32>
    %277 = vector.shape_cast %276 : vector<1x8x16xf32> to vector<8x16xf32>
    %cst_301 = arith.constant dense<0.000000e+00> : vector<64x16xf32>
    %278 = tpu.matmul %275, %277, %cst_301 {dimension_numbers = #tpu.dot_dimension_numbers<[1], [0], [0], [1], [0, 0, 1, 1], [], []>} : vector<64x8xf32>, vector<8x16xf32>, vector<64x16xf32> -> vector<64x16xf32>
    %279 = arith.addf %273, %278 : vector<64x16xf32>
    %c0_302 = arith.constant 0 : index
    %c2_303 = arith.constant 2 : index
    %c0_304 = arith.constant 0 : index
    %280 = vector.load %arg13[%c0_302, %c2_303, %c0_304] : memref<10x10x8xf32, #tpu.memory_space<vmem>>, vector<8x8x8xf32>
    %281 = vector.shape_cast %280 : vector<8x8x8xf32> to vector<64x8xf32>
    %c2_305 = arith.constant 2 : index
    %c0_306 = arith.constant 0 : index
    %c0_307 = arith.constant 0 : index
    %282 = vector.load %arg3[%c2_305, %c0_306, %c0_307] : memref<9x8x16xf32, #tpu.memory_space<vmem>>, vector<1x8x16xf32>
    %283 = vector.shape_cast %282 : vector<1x8x16xf32> to vector<8x16xf32>
    %cst_308 = arith.constant dense<0.000000e+00> : vector<64x16xf32>
    %284 = tpu.matmul %281, %283, %cst_308 {dimension_numbers = #tpu.dot_dimension_numbers<[1], [0], [0], [1], [0, 0, 1, 1], [], []>} : vector<64x8xf32>, vector<8x16xf32>, vector<64x16xf32> -> vector<64x16xf32>
    %285 = arith.addf %279, %284 : vector<64x16xf32>
    %c1_309 = arith.constant 1 : index
    %c0_310 = arith.constant 0 : index
    %c0_311 = arith.constant 0 : index
    %286 = vector.load %arg13[%c1_309, %c0_310, %c0_311] : memref<10x10x8xf32, #tpu.memory_space<vmem>>, vector<8x8x8xf32>
    %287 = vector.shape_cast %286 : vector<8x8x8xf32> to vector<64x8xf32>
    %c3_312 = arith.constant 3 : index
    %c0_313 = arith.constant 0 : index
    %c0_314 = arith.constant 0 : index
    %288 = vector.load %arg3[%c3_312, %c0_313, %c0_314] : memref<9x8x16xf32, #tpu.memory_space<vmem>>, vector<1x8x16xf32>
    %289 = vector.shape_cast %288 : vector<1x8x16xf32> to vector<8x16xf32>
    %cst_315 = arith.constant dense<0.000000e+00> : vector<64x16xf32>
    %290 = tpu.matmul %287, %289, %cst_315 {dimension_numbers = #tpu.dot_dimension_numbers<[1], [0], [0], [1], [0, 0, 1, 1], [], []>} : vector<64x8xf32>, vector<8x16xf32>, vector<64x16xf32> -> vector<64x16xf32>
    %291 = arith.addf %285, %290 : vector<64x16xf32>
    %c1_316 = arith.constant 1 : index
    %c1_317 = arith.constant 1 : index
    %c0_318 = arith.constant 0 : index
    %292 = vector.load %arg13[%c1_316, %c1_317, %c0_318] : memref<10x10x8xf32, #tpu.memory_space<vmem>>, vector<8x8x8xf32>
    %293 = vector.shape_cast %292 : vector<8x8x8xf32> to vector<64x8xf32>
    %c4_319 = arith.constant 4 : index
    %c0_320 = arith.constant 0 : index
    %c0_321 = arith.constant 0 : index
    %294 = vector.load %arg3[%c4_319, %c0_320, %c0_321] : memref<9x8x16xf32, #tpu.memory_space<vmem>>, vector<1x8x16xf32>
    %295 = vector.shape_cast %294 : vector<1x8x16xf32> to vector<8x16xf32>
    %cst_322 = arith.constant dense<0.000000e+00> : vector<64x16xf32>
    %296 = tpu.matmul %293, %295, %cst_322 {dimension_numbers = #tpu.dot_dimension_numbers<[1], [0], [0], [1], [0, 0, 1, 1], [], []>} : vector<64x8xf32>, vector<8x16xf32>, vector<64x16xf32> -> vector<64x16xf32>
    %297 = arith.addf %291, %296 : vector<64x16xf32>
    %c1_323 = arith.constant 1 : index
    %c2_324 = arith.constant 2 : index
    %c0_325 = arith.constant 0 : index
    %298 = vector.load %arg13[%c1_323, %c2_324, %c0_325] : memref<10x10x8xf32, #tpu.memory_space<vmem>>, vector<8x8x8xf32>
    %299 = vector.shape_cast %298 : vector<8x8x8xf32> to vector<64x8xf32>
    %c5_326 = arith.constant 5 : index
    %c0_327 = arith.constant 0 : index
    %c0_328 = arith.constant 0 : index
    %300 = vector.load %arg3[%c5_326, %c0_327, %c0_328] : memref<9x8x16xf32, #tpu.memory_space<vmem>>, vector<1x8x16xf32>
    %301 = vector.shape_cast %300 : vector<1x8x16xf32> to vector<8x16xf32>
    %cst_329 = arith.constant dense<0.000000e+00> : vector<64x16xf32>
    %302 = tpu.matmul %299, %301, %cst_329 {dimension_numbers = #tpu.dot_dimension_numbers<[1], [0], [0], [1], [0, 0, 1, 1], [], []>} : vector<64x8xf32>, vector<8x16xf32>, vector<64x16xf32> -> vector<64x16xf32>
    %303 = arith.addf %297, %302 : vector<64x16xf32>
    %c2_330 = arith.constant 2 : index
    %c0_331 = arith.constant 0 : index
    %c0_332 = arith.constant 0 : index
    %304 = vector.load %arg13[%c2_330, %c0_331, %c0_332] : memref<10x10x8xf32, #tpu.memory_space<vmem>>, vector<8x8x8xf32>
    %305 = vector.shape_cast %304 : vector<8x8x8xf32> to vector<64x8xf32>
    %c6_333 = arith.constant 6 : index
    %c0_334 = arith.constant 0 : index
    %c0_335 = arith.constant 0 : index
    %306 = vector.load %arg3[%c6_333, %c0_334, %c0_335] : memref<9x8x16xf32, #tpu.memory_space<vmem>>, vector<1x8x16xf32>
    %307 = vector.shape_cast %306 : vector<1x8x16xf32> to vector<8x16xf32>
    %cst_336 = arith.constant dense<0.000000e+00> : vector<64x16xf32>
    %308 = tpu.matmul %305, %307, %cst_336 {dimension_numbers = #tpu.dot_dimension_numbers<[1], [0], [0], [1], [0, 0, 1, 1], [], []>} : vector<64x8xf32>, vector<8x16xf32>, vector<64x16xf32> -> vector<64x16xf32>
    %309 = arith.addf %303, %308 : vector<64x16xf32>
    %c2_337 = arith.constant 2 : index
    %c1_338 = arith.constant 1 : index
    %c0_339 = arith.constant 0 : index
    %310 = vector.load %arg13[%c2_337, %c1_338, %c0_339] : memref<10x10x8xf32, #tpu.memory_space<vmem>>, vector<8x8x8xf32>
    %311 = vector.shape_cast %310 : vector<8x8x8xf32> to vector<64x8xf32>
    %c7_340 = arith.constant 7 : index
    %c0_341 = arith.constant 0 : index
    %c0_342 = arith.constant 0 : index
    %312 = vector.load %arg3[%c7_340, %c0_341, %c0_342] : memref<9x8x16xf32, #tpu.memory_space<vmem>>, vector<1x8x16xf32>
    %313 = vector.shape_cast %312 : vector<1x8x16xf32> to vector<8x16xf32>
    %cst_343 = arith.constant dense<0.000000e+00> : vector<64x16xf32>
    %314 = tpu.matmul %311, %313, %cst_343 {dimension_numbers = #tpu.dot_dimension_numbers<[1], [0], [0], [1], [0, 0, 1, 1], [], []>} : vector<64x8xf32>, vector<8x16xf32>, vector<64x16xf32> -> vector<64x16xf32>
    %315 = arith.addf %309, %314 : vector<64x16xf32>
    %c2_344 = arith.constant 2 : index
    %c2_345 = arith.constant 2 : index
    %c0_346 = arith.constant 0 : index
    %316 = vector.load %arg13[%c2_344, %c2_345, %c0_346] : memref<10x10x8xf32, #tpu.memory_space<vmem>>, vector<8x8x8xf32>
    %317 = vector.shape_cast %316 : vector<8x8x8xf32> to vector<64x8xf32>
    %c8_347 = arith.constant 8 : index
    %c0_348 = arith.constant 0 : index
    %c0_349 = arith.constant 0 : index
    %318 = vector.load %arg3[%c8_347, %c0_348, %c0_349] : memref<9x8x16xf32, #tpu.memory_space<vmem>>, vector<1x8x16xf32>
    %319 = vector.shape_cast %318 : vector<1x8x16xf32> to vector<8x16xf32>
    %cst_350 = arith.constant dense<0.000000e+00> : vector<64x16xf32>
    %320 = tpu.matmul %317, %319, %cst_350 {dimension_numbers = #tpu.dot_dimension_numbers<[1], [0], [0], [1], [0, 0, 1, 1], [], []>} : vector<64x8xf32>, vector<8x16xf32>, vector<64x16xf32> -> vector<64x16xf32>
    %321 = arith.addf %315, %320 : vector<64x16xf32>
    %c0_351 = arith.constant 0 : index
    %c0_352 = arith.constant 0 : index
    %322 = vector.load %arg4[%c0_351, %c0_352] : memref<1x16xf32, #tpu.memory_space<vmem>>, vector<1x16xf32>
    %323 = vector.broadcast %322 : vector<1x16xf32> to vector<64x16xf32>
    %324 = arith.addf %321, %323 : vector<64x16xf32>
    %cst_353 = arith.constant 0.000000e+00 : f32
    %325 = vector.broadcast %cst_353 : f32 to vector<64x16xf32>
    %326 = arith.maximumf %324, %325 : vector<64x16xf32>
    %327 = vector.shape_cast %326 : vector<64x16xf32> to vector<8x8x16xf32>
    %c0_354 = arith.constant 0 : index
    %c0_355 = arith.constant 0 : index
    %c0_356 = arith.constant 0 : index
    %328 = vector.load %arg14[%c0_354, %c0_355, %c0_356] : memref<8x8x16xf32, #tpu.memory_space<vmem>>, vector<8x8x16xf32>
    tpu.vector_store %arg14[%c0_354, %c0_355, %c0_356], %327 {strides = array<i32>} : memref<8x8x16xf32, #tpu.memory_space<vmem>>, vector<8x8x16xf32>,
    %c0_357 = arith.constant 0 : index
    %c0_358 = arith.constant 0 : index
    %c0_359 = arith.constant 0 : index
    %329 = tpu.strided_load %arg14[%c0_357, %c0_358, %c0_359] {strides = array<i32: 2, 1, 1>} : memref<8x8x16xf32, #tpu.memory_space<vmem>>, vector<4x8x16xf32>
    %c1_360 = arith.constant 1 : index
    %c0_361 = arith.constant 0 : index
    %c0_362 = arith.constant 0 : index
    %330 = tpu.strided_load %arg14[%c1_360, %c0_361, %c0_362] {strides = array<i32: 2, 1, 1>} : memref<8x8x16xf32, #tpu.memory_space<vmem>>, vector<4x8x16xf32>
    %331 = arith.maximumf %329, %330 : vector<4x8x16xf32>
    %c0_363 = arith.constant 0 : index
    %c0_364 = arith.constant 0 : index
    %c0_365 = arith.constant 0 : index
    %332 = vector.load %arg15[%c0_363, %c0_364, %c0_365] : memref<4x8x16xf32, #tpu.memory_space<vmem>>, vector<4x8x16xf32>
    tpu.vector_store %arg15[%c0_363, %c0_364, %c0_365], %331 {strides = array<i32>} : memref<4x8x16xf32, #tpu.memory_space<vmem>>, vector<4x8x16xf32>,
    %c0_366 = arith.constant 0 : index
    %c0_367 = arith.constant 0 : index
    %c0_368 = arith.constant 0 : index
    %333 = tpu.strided_load %arg15[%c0_366, %c0_367, %c0_368] {strides = array<i32: 1, 2, 1>} : memref<4x8x16xf32, #tpu.memory_space<vmem>>, vector<4x4x16xf32>
    %c0_369 = arith.constant 0 : index
    %c1_370 = arith.constant 1 : index
    %c0_371 = arith.constant 0 : index
    %334 = tpu.strided_load %arg15[%c0_369, %c1_370, %c0_371] {strides = array<i32: 1, 2, 1>} : memref<4x8x16xf32, #tpu.memory_space<vmem>>, vector<4x4x16xf32>
    %335 = arith.maximumf %333, %334 : vector<4x4x16xf32>
    %336 = vector.extract_strided_slice %335 {offsets = [0, 0, 0], sizes = [1, 1, 16], strides = [1, 1, 1]} : vector<4x4x16xf32> to vector<1x1x16xf32>
    %337 = vector.shape_cast %336 : vector<1x1x16xf32> to vector<1x16xf32>
    %c1_372 = arith.constant 1 : index
    %c0_373 = arith.constant 0 : index
    %338 = vector.load %arg16[%c1_372, %c0_373] : memref<2x256xf32, #tpu.memory_space<vmem>>, vector<1x16xf32>
    tpu.vector_store %arg16[%c1_372, %c0_373], %337 {strides = array<i32>} : memref<2x256xf32, #tpu.memory_space<vmem>>, vector<1x16xf32>,
    %339 = vector.extract_strided_slice %335 {offsets = [0, 1, 0], sizes = [1, 1, 16], strides = [1, 1, 1]} : vector<4x4x16xf32> to vector<1x1x16xf32>
    %340 = vector.shape_cast %339 : vector<1x1x16xf32> to vector<1x16xf32>
    %c1_374 = arith.constant 1 : index
    %c16_375 = arith.constant 16 : index
    %341 = vector.load %arg16[%c1_374, %c16_375] : memref<2x256xf32, #tpu.memory_space<vmem>>, vector<1x16xf32>
    tpu.vector_store %arg16[%c1_374, %c16_375], %340 {strides = array<i32>} : memref<2x256xf32, #tpu.memory_space<vmem>>, vector<1x16xf32>,
    %342 = vector.extract_strided_slice %335 {offsets = [0, 2, 0], sizes = [1, 1, 16], strides = [1, 1, 1]} : vector<4x4x16xf32> to vector<1x1x16xf32>
    %343 = vector.shape_cast %342 : vector<1x1x16xf32> to vector<1x16xf32>
    %c1_376 = arith.constant 1 : index
    %c32_377 = arith.constant 32 : index
    %344 = vector.load %arg16[%c1_376, %c32_377] : memref<2x256xf32, #tpu.memory_space<vmem>>, vector<1x16xf32>
    tpu.vector_store %arg16[%c1_376, %c32_377], %343 {strides = array<i32>} : memref<2x256xf32, #tpu.memory_space<vmem>>, vector<1x16xf32>,
    %345 = vector.extract_strided_slice %335 {offsets = [0, 3, 0], sizes = [1, 1, 16], strides = [1, 1, 1]} : vector<4x4x16xf32> to vector<1x1x16xf32>
    %346 = vector.shape_cast %345 : vector<1x1x16xf32> to vector<1x16xf32>
    %c1_378 = arith.constant 1 : index
    %c48_379 = arith.constant 48 : index
    %347 = vector.load %arg16[%c1_378, %c48_379] : memref<2x256xf32, #tpu.memory_space<vmem>>, vector<1x16xf32>
    tpu.vector_store %arg16[%c1_378, %c48_379], %346 {strides = array<i32>} : memref<2x256xf32, #tpu.memory_space<vmem>>, vector<1x16xf32>,
    %348 = vector.extract_strided_slice %335 {offsets = [1, 0, 0], sizes = [1, 1, 16], strides = [1, 1, 1]} : vector<4x4x16xf32> to vector<1x1x16xf32>
    %349 = vector.shape_cast %348 : vector<1x1x16xf32> to vector<1x16xf32>
    %c1_380 = arith.constant 1 : index
    %c64_381 = arith.constant 64 : index
    %350 = vector.load %arg16[%c1_380, %c64_381] : memref<2x256xf32, #tpu.memory_space<vmem>>, vector<1x16xf32>
    tpu.vector_store %arg16[%c1_380, %c64_381], %349 {strides = array<i32>} : memref<2x256xf32, #tpu.memory_space<vmem>>, vector<1x16xf32>,
    %351 = vector.extract_strided_slice %335 {offsets = [1, 1, 0], sizes = [1, 1, 16], strides = [1, 1, 1]} : vector<4x4x16xf32> to vector<1x1x16xf32>
    %352 = vector.shape_cast %351 : vector<1x1x16xf32> to vector<1x16xf32>
    %c1_382 = arith.constant 1 : index
    %c80_383 = arith.constant 80 : index
    %353 = vector.load %arg16[%c1_382, %c80_383] : memref<2x256xf32, #tpu.memory_space<vmem>>, vector<1x16xf32>
    tpu.vector_store %arg16[%c1_382, %c80_383], %352 {strides = array<i32>} : memref<2x256xf32, #tpu.memory_space<vmem>>, vector<1x16xf32>,
    %354 = vector.extract_strided_slice %335 {offsets = [1, 2, 0], sizes = [1, 1, 16], strides = [1, 1, 1]} : vector<4x4x16xf32> to vector<1x1x16xf32>
    %355 = vector.shape_cast %354 : vector<1x1x16xf32> to vector<1x16xf32>
    %c1_384 = arith.constant 1 : index
    %c96_385 = arith.constant 96 : index
    %356 = vector.load %arg16[%c1_384, %c96_385] : memref<2x256xf32, #tpu.memory_space<vmem>>, vector<1x16xf32>
    tpu.vector_store %arg16[%c1_384, %c96_385], %355 {strides = array<i32>} : memref<2x256xf32, #tpu.memory_space<vmem>>, vector<1x16xf32>,
    %357 = vector.extract_strided_slice %335 {offsets = [1, 3, 0], sizes = [1, 1, 16], strides = [1, 1, 1]} : vector<4x4x16xf32> to vector<1x1x16xf32>
    %358 = vector.shape_cast %357 : vector<1x1x16xf32> to vector<1x16xf32>
    %c1_386 = arith.constant 1 : index
    %c112_387 = arith.constant 112 : index
    %359 = vector.load %arg16[%c1_386, %c112_387] : memref<2x256xf32, #tpu.memory_space<vmem>>, vector<1x16xf32>
    tpu.vector_store %arg16[%c1_386, %c112_387], %358 {strides = array<i32>} : memref<2x256xf32, #tpu.memory_space<vmem>>, vector<1x16xf32>,
    %360 = vector.extract_strided_slice %335 {offsets = [2, 0, 0], sizes = [1, 1, 16], strides = [1, 1, 1]} : vector<4x4x16xf32> to vector<1x1x16xf32>
    %361 = vector.shape_cast %360 : vector<1x1x16xf32> to vector<1x16xf32>
    %c1_388 = arith.constant 1 : index
    %c128_389 = arith.constant 128 : index
    %362 = vector.load %arg16[%c1_388, %c128_389] : memref<2x256xf32, #tpu.memory_space<vmem>>, vector<1x16xf32>
    tpu.vector_store %arg16[%c1_388, %c128_389], %361 {strides = array<i32>} : memref<2x256xf32, #tpu.memory_space<vmem>>, vector<1x16xf32>,
    %363 = vector.extract_strided_slice %335 {offsets = [2, 1, 0], sizes = [1, 1, 16], strides = [1, 1, 1]} : vector<4x4x16xf32> to vector<1x1x16xf32>
    %364 = vector.shape_cast %363 : vector<1x1x16xf32> to vector<1x16xf32>
    %c1_390 = arith.constant 1 : index
    %c144_391 = arith.constant 144 : index
    %365 = vector.load %arg16[%c1_390, %c144_391] : memref<2x256xf32, #tpu.memory_space<vmem>>, vector<1x16xf32>
    tpu.vector_store %arg16[%c1_390, %c144_391], %364 {strides = array<i32>} : memref<2x256xf32, #tpu.memory_space<vmem>>, vector<1x16xf32>,
    %366 = vector.extract_strided_slice %335 {offsets = [2, 2, 0], sizes = [1, 1, 16], strides = [1, 1, 1]} : vector<4x4x16xf32> to vector<1x1x16xf32>
    %367 = vector.shape_cast %366 : vector<1x1x16xf32> to vector<1x16xf32>
    %c1_392 = arith.constant 1 : index
    %c160_393 = arith.constant 160 : index
    %368 = vector.load %arg16[%c1_392, %c160_393] : memref<2x256xf32, #tpu.memory_space<vmem>>, vector<1x16xf32>
    tpu.vector_store %arg16[%c1_392, %c160_393], %367 {strides = array<i32>} : memref<2x256xf32, #tpu.memory_space<vmem>>, vector<1x16xf32>,
    %369 = vector.extract_strided_slice %335 {offsets = [2, 3, 0], sizes = [1, 1, 16], strides = [1, 1, 1]} : vector<4x4x16xf32> to vector<1x1x16xf32>
    %370 = vector.shape_cast %369 : vector<1x1x16xf32> to vector<1x16xf32>
    %c1_394 = arith.constant 1 : index
    %c176_395 = arith.constant 176 : index
    %371 = vector.load %arg16[%c1_394, %c176_395] : memref<2x256xf32, #tpu.memory_space<vmem>>, vector<1x16xf32>
    tpu.vector_store %arg16[%c1_394, %c176_395], %370 {strides = array<i32>} : memref<2x256xf32, #tpu.memory_space<vmem>>, vector<1x16xf32>,
    %372 = vector.extract_strided_slice %335 {offsets = [3, 0, 0], sizes = [1, 1, 16], strides = [1, 1, 1]} : vector<4x4x16xf32> to vector<1x1x16xf32>
    %373 = vector.shape_cast %372 : vector<1x1x16xf32> to vector<1x16xf32>
    %c1_396 = arith.constant 1 : index
    %c192_397 = arith.constant 192 : index
    %374 = vector.load %arg16[%c1_396, %c192_397] : memref<2x256xf32, #tpu.memory_space<vmem>>, vector<1x16xf32>
    tpu.vector_store %arg16[%c1_396, %c192_397], %373 {strides = array<i32>} : memref<2x256xf32, #tpu.memory_space<vmem>>, vector<1x16xf32>,
    %375 = vector.extract_strided_slice %335 {offsets = [3, 1, 0], sizes = [1, 1, 16], strides = [1, 1, 1]} : vector<4x4x16xf32> to vector<1x1x16xf32>
    %376 = vector.shape_cast %375 : vector<1x1x16xf32> to vector<1x16xf32>
    %c1_398 = arith.constant 1 : index
    %c208_399 = arith.constant 208 : index
    %377 = vector.load %arg16[%c1_398, %c208_399] : memref<2x256xf32, #tpu.memory_space<vmem>>, vector<1x16xf32>
    tpu.vector_store %arg16[%c1_398, %c208_399], %376 {strides = array<i32>} : memref<2x256xf32, #tpu.memory_space<vmem>>, vector<1x16xf32>,
    %378 = vector.extract_strided_slice %335 {offsets = [3, 2, 0], sizes = [1, 1, 16], strides = [1, 1, 1]} : vector<4x4x16xf32> to vector<1x1x16xf32>
    %379 = vector.shape_cast %378 : vector<1x1x16xf32> to vector<1x16xf32>
    %c1_400 = arith.constant 1 : index
    %c224_401 = arith.constant 224 : index
    %380 = vector.load %arg16[%c1_400, %c224_401] : memref<2x256xf32, #tpu.memory_space<vmem>>, vector<1x16xf32>
    tpu.vector_store %arg16[%c1_400, %c224_401], %379 {strides = array<i32>} : memref<2x256xf32, #tpu.memory_space<vmem>>, vector<1x16xf32>,
    %381 = vector.extract_strided_slice %335 {offsets = [3, 3, 0], sizes = [1, 1, 16], strides = [1, 1, 1]} : vector<4x4x16xf32> to vector<1x1x16xf32>
    %382 = vector.shape_cast %381 : vector<1x1x16xf32> to vector<1x16xf32>
    %c1_402 = arith.constant 1 : index
    %c240_403 = arith.constant 240 : index
    %383 = vector.load %arg16[%c1_402, %c240_403] : memref<2x256xf32, #tpu.memory_space<vmem>>, vector<1x16xf32>
    tpu.vector_store %arg16[%c1_402, %c240_403], %382 {strides = array<i32>} : memref<2x256xf32, #tpu.memory_space<vmem>>, vector<1x16xf32>,
    %c0_404 = arith.constant 0 : index
    %c0_405 = arith.constant 0 : index
    %384 = vector.load %arg16[%c0_404, %c0_405] : memref<2x256xf32, #tpu.memory_space<vmem>>, vector<2x256xf32>
    %c0_406 = arith.constant 0 : index
    %c0_407 = arith.constant 0 : index
    %385 = vector.load %arg5[%c0_406, %c0_407] : memref<256x32xf32, #tpu.memory_space<vmem>>, vector<256x32xf32>
    %cst_408 = arith.constant dense<0.000000e+00> : vector<2x32xf32>
    %386 = tpu.matmul %384, %385, %cst_408 {dimension_numbers = #tpu.dot_dimension_numbers<[1], [0], [0], [1], [0, 0, 1, 1], [], []>} : vector<2x256xf32>, vector<256x32xf32>, vector<2x32xf32> -> vector<2x32xf32>
    %c0_409 = arith.constant 0 : index
    %c0_410 = arith.constant 0 : index
    %387 = vector.load %arg6[%c0_409, %c0_410] : memref<1x32xf32, #tpu.memory_space<vmem>>, vector<1x32xf32>
    %388 = vector.broadcast %387 : vector<1x32xf32> to vector<2x32xf32>
    %389 = arith.addf %386, %388 : vector<2x32xf32>
    %cst_411 = arith.constant 0.000000e+00 : f32
    %390 = vector.broadcast %cst_411 : f32 to vector<2x32xf32>
    %391 = arith.maximumf %389, %390 : vector<2x32xf32>
    %c0_412 = arith.constant 0 : index
    %c0_413 = arith.constant 0 : index
    %392 = vector.load %arg7[%c0_412, %c0_413] : memref<32x10xf32, #tpu.memory_space<vmem>>, vector<32x10xf32>
    %cst_414 = arith.constant dense<0.000000e+00> : vector<2x10xf32>
    %393 = tpu.matmul %391, %392, %cst_414 {dimension_numbers = #tpu.dot_dimension_numbers<[1], [0], [0], [1], [0, 0, 1, 1], [], []>} : vector<2x32xf32>, vector<32x10xf32>, vector<2x10xf32> -> vector<2x10xf32>
    %c0_415 = arith.constant 0 : index
    %c0_416 = arith.constant 0 : index
    %394 = vector.load %arg8[%c0_415, %c0_416] : memref<1x10xf32, #tpu.memory_space<vmem>>, vector<1x10xf32>
    %395 = vector.broadcast %394 : vector<1x10xf32> to vector<2x10xf32>
    %396 = arith.addf %393, %395 : vector<2x10xf32>
    %c0_417 = arith.constant 0 : index
    %c0_418 = arith.constant 0 : index
    %397 = vector.load %arg9[%c0_417, %c0_418] : memref<2x10xf32, #tpu.memory_space<vmem>>, vector<2x10xf32>
    tpu.vector_store %arg9[%c0_417, %c0_418], %396 {strides = array<i32>} : memref<2x10xf32, #tpu.memory_space<vmem>>, vector<2x10xf32>,
    return
  }
}

</mosaic_0001>

<llo_original>
// kernel: cnn_forward.1
$region0: #{cnn_forward.1}
  #allocation0 [shape = 'u32[]', space=smem, size = 0x4, offset = 0x4, fixed_abs, tag = 'smem constant byte address 0x4 - core index']
  #allocation1 [shape = 'u32[144,128]{1,0:T(1,128)}', space=vmem, size = 0x12000, scoped, tag = 'internal scratch']
  #allocation2 [shape = 'f32[36,18,4]{2,1,0:T(8,128)}', space=vmem, size = 0x6c000, scoped, tag = 'scratch operand']
  #allocation3 [shape = 'f32[16,16,8]{2,1,0:T(8,128)}', space=vmem, size = 0x20000, scoped, tag = 'scratch operand']
  #allocation4 [shape = 'f32[8,16,8]{2,1,0:T(8,128)}', space=vmem, size = 0x10000, scoped, tag = 'scratch operand']
  #allocation5 [shape = 'f32[10,10,8]{2,1,0:T(8,128)}', space=vmem, size = 0x14000, scoped, tag = 'scratch operand']
  #allocation6 [shape = 'f32[8,8,16]{2,1,0:T(8,128)}', space=vmem, size = 0x8000, scoped, tag = 'scratch operand']
  #allocation7 [shape = 'f32[4,8,16]{2,1,0:T(8,128)}', space=vmem, size = 0x4000, scoped, tag = 'scratch operand']
  #allocation8 [shape = 'f32[2,256]{1,0:T(2,128)}', space=vmem, size = 0x800, scoped, tag = 'scratch operand']
  %s0 = inlined_call_operand.vmem [shape: f32[2,16,16,4], index: 0, kind: input, shape index: {}]
  %s1 = inlined_call_operand.vmem [shape: f32[9,4,8], index: 1, kind: input, shape index: {}]
  %s2 = inlined_call_operand.vmem [shape: f32[1,8], index: 2, kind: input, shape index: {}]
  %s3 = inlined_call_operand.vmem [shape: f32[9,8,16], index: 3, kind: input, shape index: {}]
  %s4 = inlined_call_operand.vmem [shape: f32[1,16], index: 4, kind: input, shape index: {}]
  %s5 = inlined_call_operand.vmem [shape: f32[256,32], index: 5, kind: input, shape index: {}]
  %s6 = inlined_call_operand.vmem [shape: f32[1,32], index: 6, kind: input, shape index: {}]
  %s7 = inlined_call_operand.vmem [shape: f32[32,10], index: 7, kind: input, shape index: {}]
  %s8 = inlined_call_operand.vmem [shape: f32[1,10], index: 8, kind: input, shape index: {}]
  %s9 = inlined_call_operand.hbm [shape: f32[2,10], index: 9, kind: output, shape index: {}]
  %s10 = sld [smem:[#allocation0]]
  $region46: #{cnn_forward.1} parent=0
    _
  %s12 = ssub.s32 1, %s10
  %s13 = scalar_select 0, %s12, %s10
  $region1: #{cnn_forward.1} parent=0
    #allocation9 [shape = 'u8[1024]{0}', space=vmem, size = 0x400, scoped, tag = 'output window, operand 0, single buffered']
    #allocation10 [shape = 's32[1]{0}', space=sflag, size = 0x4, scoped, tag = 'scoped memory for cnn_forward.1']
    %14 = vsyncpa [#allocation10], 0
    // Predicated region
    $region2: #{cnn_forward.1} parent=1 // pred_check
      _
    $region3: #{cnn_forward.1} parent=1 // pred_check_branch
      %16 = sbr.rel (0) target = $region5
    $region4: #{cnn_forward.1} parent=1 // pred_region
      _
    $region5: #{cnn_forward.1} parent=1 // pred_fallthru
      _
    // Predicated region
    $region6: #{cnn_forward.1} parent=1 // pred_check
      _
    $region7: #{cnn_forward.1} parent=1 // pred_check_branch
      %18 = sbr.rel (0) target = $region9
    $region8: #{cnn_forward.1} parent=1 // pred_region
      _
    $region9: #{cnn_forward.1} parent=1 // pred_fallthru
      _
    // Predicated region
    $region10: #{cnn_forward.1} parent=1 // pred_check
      _
    $region11: #{cnn_forward.1} parent=1 // pred_check_branch
      %20 = sbr.rel (0) target = $region13
    $region12: #{cnn_forward.1} parent=1 // pred_region
      _
    $region13: #{cnn_forward.1} parent=1 // pred_fallthru
      _
    // Predicated region
    $region14: #{cnn_forward.1} parent=1 // pred_check
      _
    $region15: #{cnn_forward.1} parent=1 // pred_check_branch
      %22 = sbr.rel (0) target = $region17
    $region16: #{cnn_forward.1} parent=1 // pred_region
      _
    $region17: #{cnn_forward.1} parent=1 // pred_fallthru
      _
    // Predicated region
    $region18: #{cnn_forward.1} parent=1 // pred_check
      _
    $region19: #{cnn_forward.1} parent=1 // pred_check_branch
      %24 = sbr.rel (0) target = $region21
    $region20: #{cnn_forward.1} parent=1 // pred_region
      _
    $region21: #{cnn_forward.1} parent=1 // pred_fallthru
      _
    // Predicated region
    $region22: #{cnn_forward.1} parent=1 // pred_check
      _
    $region23: #{cnn_forward.1} parent=1 // pred_check_branch
      %26 = sbr.rel (0) target = $region25
    $region24: #{cnn_forward.1} parent=1 // pred_region
      _
    $region25: #{cnn_forward.1} parent=1 // pred_fallthru
      _
    // Predicated region
    $region26: #{cnn_forward.1} parent=1 // pred_check
      _
    $region27: #{cnn_forward.1} parent=1 // pred_check_branch
      %28 = sbr.rel (0) target = $region29
    $region28: #{cnn_forward.1} parent=1 // pred_region
      _
    $region29: #{cnn_forward.1} parent=1 // pred_fallthru
      _
    // Predicated region
    $region30: #{cnn_forward.1} parent=1 // pred_check
      _
    $region31: #{cnn_forward.1} parent=1 // pred_check_branch
      %30 = sbr.rel (0) target = $region33
    $region32: #{cnn_forward.1} parent=1 // pred_region
      _
    $region33: #{cnn_forward.1} parent=1 // pred_fallthru
      _
    // Predicated region
    $region34: #{cnn_forward.1} parent=1 // pred_check
      _
    $region35: #{cnn_forward.1} parent=1 // pred_check_branch
      %32 = sbr.rel (0) target = $region37
    $region36: #{cnn_forward.1} parent=1 // pred_region
      _
    $region37: #{cnn_forward.1} parent=1 // pred_fallthru
      _
    %vm33 = vcmask 31744
    %34 = vst.msk [vmem:[#allocation2] sm:$0xff] %vm33, 0.0
    %35 = vst.msk [vmem:[#allocation2 + $0x8] sm:$0xff] %vm33, 0.0
    %vm36 = vcmask 25600
    %37 = vst.msk [vmem:[#allocation2 + $0x10] sm:$0x3] %vm36, 0.0
    %38 = vst.msk [vmem:[#allocation2 + $0x18] sm:$0xff] %vm33, 0.0
    %39 = vst.msk [vmem:[#allocation2 + $0x20] sm:$0xff] %vm33, 0.0
    %40 = vst.msk [vmem:[#allocation2 + $0x28] sm:$0x3] %vm36, 0.0
    %41 = vst.msk [vmem:[#allocation2 + $0x30] sm:$0xff] %vm33, 0.0
    %42 = vst.msk [vmem:[#allocation2 + $0x38] sm:$0xff] %vm33, 0.0
    %43 = vst.msk [vmem:[#allocation2 + $0x40] sm:$0x3] %vm36, 0.0
    %44 = vst.msk [vmem:[#allocation2 + $0x48] sm:$0xff] %vm33, 0.0
    %45 = vst.msk [vmem:[#allocation2 + $0x50] sm:$0xff] %vm33, 0.0
    %46 = vst.msk [vmem:[#allocation2 + $0x58] sm:$0x3] %vm36, 0.0
    %47 = vst.msk [vmem:[#allocation2 + $0x60] sm:$0xff] %vm33, 0.0
    %48 = vst.msk [vmem:[#allocation2 + $0x68] sm:$0xff] %vm33, 0.0
    %49 = vst.msk [vmem:[#allocation2 + $0x70] sm:$0x3] %vm36, 0.0
    %50 = vst.msk [vmem:[#allocation2 + $0x78] sm:$0xff] %vm33, 0.0
    %51 = vst.msk [vmem:[#allocation2 + $0x80] sm:$0xff] %vm33, 0.0
    %52 = vst.msk [vmem:[#allocation2 + $0x88] sm:$0x3] %vm36, 0.0
    %53 = vst.msk [vmem:[#allocation2 + $0x90] sm:$0xff] %vm33, 0.0
    %54 = vst.msk [vmem:[#allocation2 + $0x98] sm:$0xff] %vm33, 0.0
    %55 = vst.msk [vmem:[#allocation2 + $0xa0] sm:$0x3] %vm36, 0.0
    %56 = vst.msk [vmem:[#allocation2 + $0xa8] sm:$0xff] %vm33, 0.0
    %57 = vst.msk [vmem:[#allocation2 + $0xb0] sm:$0xff] %vm33, 0.0
    %58 = vst.msk [vmem:[#allocation2 + $0xb8] sm:$0x3] %vm36, 0.0
    %59 = vst.msk [vmem:[#allocation2 + $0xc0] sm:$0xff] %vm33, 0.0
    %60 = vst.msk [vmem:[#allocation2 + $0xc8] sm:$0xff] %vm33, 0.0
    %61 = vst.msk [vmem:[#allocation2 + $0xd0] sm:$0x3] %vm36, 0.0
    %62 = vst.msk [vmem:[#allocation2 + $0xd8] sm:$0xff] %vm33, 0.0
    %63 = vst.msk [vmem:[#allocation2 + $0xe0] sm:$0xff] %vm33, 0.0
    %64 = vst.msk [vmem:[#allocation2 + $0xe8] sm:$0x3] %vm36, 0.0
    %65 = vst.msk [vmem:[#allocation2 + $0xf0] sm:$0xff] %vm33, 0.0
    %66 = vst.msk [vmem:[#allocation2 + $0xf8] sm:$0xff] %vm33, 0.0
    %67 = vst.msk [vmem:[#allocation2 + $0x100] sm:$0x3] %vm36, 0.0
    %68 = vst.msk [vmem:[#allocation2 + $0x108] sm:$0xff] %vm33, 0.0
    %69 = vst.msk [vmem:[#allocation2 + $0x110] sm:$0xff] %vm33, 0.0
    %70 = vst.msk [vmem:[#allocation2 + $0x118] sm:$0x3] %vm36, 0.0
    %71 = vst.msk [vmem:[#allocation2 + $0x120] sm:$0xff] %vm33, 0.0
    %72 = vst.msk [vmem:[#allocation2 + $0x128] sm:$0xff] %vm33, 0.0
    %73 = vst.msk [vmem:[#allocation2 + $0x130] sm:$0x3] %vm36, 0.0
    %74 = vst.msk [vmem:[#allocation2 + $0x138] sm:$0xff] %vm33, 0.0
    %75 = vst.msk [vmem:[#allocation2 + $0x140] sm:$0xff] %vm33, 0.0
    %76 = vst.msk [vmem:[#allocation2 + $0x148] sm:$0x3] %vm36, 0.0
    %77 = vst.msk [vmem:[#allocation2 + $0x150] sm:$0xff] %vm33, 0.0
    %78 = vst.msk [vmem:[#allocation2 + $0x158] sm:$0xff] %vm33, 0.0
    %79 = vst.msk [vmem:[#allocation2 + $0x160] sm:$0x3] %vm36, 0.0
    %80 = vst.msk [vmem:[#allocation2 + $0x168] sm:$0xff] %vm33, 0.0
    %81 = vst.msk [vmem:[#allocation2 + $0x170] sm:$0xff] %vm33, 0.0
    %82 = vst.msk [vmem:[#allocation2 + $0x178] sm:$0x3] %vm36, 0.0
    %83 = vst.msk [vmem:[#allocation2 + $0x180] sm:$0xff] %vm33, 0.0
    %84 = vst.msk [vmem:[#allocation2 + $0x188] sm:$0xff] %vm33, 0.0
    %85 = vst.msk [vmem:[#allocation2 + $0x190] sm:$0x3] %vm36, 0.0
    %86 = vst.msk [vmem:[#allocation2 + $0x198] sm:$0xff] %vm33, 0.0
    %87 = vst.msk [vmem:[#allocation2 + $0x1a0] sm:$0xff] %vm33, 0.0
    %88 = vst.msk [vmem:[#allocation2 + $0x1a8] sm:$0x3] %vm36, 0.0
    %89 = vst.msk [vmem:[#allocation2 + $0x1b0] sm:$0xff] %vm33, 0.0
    %90 = vst.msk [vmem:[#allocation2 + $0x1b8] sm:$0xff] %vm33, 0.0
    %91 = vst.msk [vmem:[#allocation2 + $0x1c0] sm:$0x3] %vm36, 0.0
    %92 = vst.msk [vmem:[#allocation2 + $0x1c8] sm:$0xff] %vm33, 0.0
    %93 = vst.msk [vmem:[#allocation2 + $0x1d0] sm:$0xff] %vm33, 0.0
    %94 = vst.msk [vmem:[#allocation2 + $0x1d8] sm:$0x3] %vm36, 0.0
    %95 = vst.msk [vmem:[#allocation2 + $0x1e0] sm:$0xff] %vm33, 0.0
    %96 = vst.msk [vmem:[#allocation2 + $0x1e8] sm:$0xff] %vm33, 0.0
    %97 = vst.msk [vmem:[#allocation2 + $0x1f0] sm:$0x3] %vm36, 0.0
    %98 = vst.msk [vmem:[#allocation2 + $0x1f8] sm:$0xff] %vm33, 0.0
    %99 = vst.msk [vmem:[#allocation2 + $0x200] sm:$0xff] %vm33, 0.0
    %100 = vst.msk [vmem:[#allocation2 + $0x208] sm:$0x3] %vm36, 0.0
    %101 = vst.msk [vmem:[#allocation2 + $0x210] sm:$0xff] %vm33, 0.0
    %102 = vst.msk [vmem:[#allocation2 + $0x218] sm:$0xff] %vm33, 0.0
    %103 = vst.msk [vmem:[#allocation2 + $0x220] sm:$0x3] %vm36, 0.0
    %104 = vst.msk [vmem:[#allocation2 + $0x228] sm:$0xff] %vm33, 0.0
    %105 = vst.msk [vmem:[#allocation2 + $0x230] sm:$0xff] %vm33, 0.0
    %106 = vst.msk [vmem:[#allocation2 + $0x238] sm:$0x3] %vm36, 0.0
    %107 = vst.msk [vmem:[#allocation2 + $0x240] sm:$0xff] %vm33, 0.0
    %108 = vst.msk [vmem:[#allocation2 + $0x248] sm:$0xff] %vm33, 0.0
    %109 = vst.msk [vmem:[#allocation2 + $0x250] sm:$0x3] %vm36, 0.0
    %110 = vst.msk [vmem:[#allocation2 + $0x258] sm:$0xff] %vm33, 0.0
    %111 = vst.msk [vmem:[#allocation2 + $0x260] sm:$0xff] %vm33, 0.0
    %112 = vst.msk [vmem:[#allocation2 + $0x268] sm:$0x3] %vm36, 0.0
    %113 = vst.msk [vmem:[#allocation2 + $0x270] sm:$0xff] %vm33, 0.0
    %114 = vst.msk [vmem:[#allocation2 + $0x278] sm:$0xff] %vm33, 0.0
    %115 = vst.msk [vmem:[#allocation2 + $0x280] sm:$0x3] %vm36, 0.0
    %116 = vst.msk [vmem:[#allocation2 + $0x288] sm:$0xff] %vm33, 0.0
    %117 = vst.msk [vmem:[#allocation2 + $0x290] sm:$0xff] %vm33, 0.0
    %118 = vst.msk [vmem:[#allocation2 + $0x298] sm:$0x3] %vm36, 0.0
    %119 = vst.msk [vmem:[#allocation2 + $0x2a0] sm:$0xff] %vm33, 0.0
    %120 = vst.msk [vmem:[#allocation2 + $0x2a8] sm:$0xff] %vm33, 0.0
    %121 = vst.msk [vmem:[#allocation2 + $0x2b0] sm:$0x3] %vm36, 0.0
    %122 = vst.msk [vmem:[#allocation2 + $0x2b8] sm:$0xff] %vm33, 0.0
    %123 = vst.msk [vmem:[#allocation2 + $0x2c0] sm:$0xff] %vm33, 0.0
    %124 = vst.msk [vmem:[#allocation2 + $0x2c8] sm:$0x3] %vm36, 0.0
    %125 = vst.msk [vmem:[#allocation2 + $0x2d0] sm:$0xff] %vm33, 0.0
    %126 = vst.msk [vmem:[#allocation2 + $0x2d8] sm:$0xff] %vm33, 0.0
    %127 = vst.msk [vmem:[#allocation2 + $0x2e0] sm:$0x3] %vm36, 0.0
    %128 = vst.msk [vmem:[#allocation2 + $0x2e8] sm:$0xff] %vm33, 0.0
    %129 = vst.msk [vmem:[#allocation2 + $0x2f0] sm:$0xff] %vm33, 0.0
    %130 = vst.msk [vmem:[#allocation2 + $0x2f8] sm:$0x3] %vm36, 0.0
    %131 = vst.msk [vmem:[#allocation2 + $0x300] sm:$0xff] %vm33, 0.0
    %132 = vst.msk [vmem:[#allocation2 + $0x308] sm:$0xff] %vm33, 0.0
    %133 = vst.msk [vmem:[#allocation2 + $0x310] sm:$0x3] %vm36, 0.0
    %134 = vst.msk [vmem:[#allocation2 + $0x318] sm:$0xff] %vm33, 0.0
    %135 = vst.msk [vmem:[#allocation2 + $0x320] sm:$0xff] %vm33, 0.0
    %136 = vst.msk [vmem:[#allocation2 + $0x328] sm:$0x3] %vm36, 0.0
    %137 = vst.msk [vmem:[#allocation2 + $0x330] sm:$0xff] %vm33, 0.0
    %138 = vst.msk [vmem:[#allocation2 + $0x338] sm:$0xff] %vm33, 0.0
    %139 = vst.msk [vmem:[#allocation2 + $0x340] sm:$0x3] %vm36, 0.0
    %140 = vst.msk [vmem:[#allocation2 + $0x348] sm:$0xff] %vm33, 0.0
    %141 = vst.msk [vmem:[#allocation2 + $0x350] sm:$0xff] %vm33, 0.0
    %142 = vst.msk [vmem:[#allocation2 + $0x358] sm:$0x3] %vm36, 0.0
    %vm143 = vcmask 64512
    %144 = vst.msk [vmem:[#allocation5] sm:$0xff] %vm143, 0.0
    %vm145 = vcmask 58368
    %146 = vst.msk [vmem:[#allocation5 + $0x8] sm:$0x3] %vm145, 0.0
    %147 = vst.msk [vmem:[#allocation5 + $0x10] sm:$0xff] %vm143, 0.0
    %148 = vst.msk [vmem:[#allocation5 + $0x18] sm:$0x3] %vm145, 0.0
    %149 = vst.msk [vmem:[#allocation5 + $0x20] sm:$0xff] %vm143, 0.0
    %150 = vst.msk [vmem:[#allocation5 + $0x28] sm:$0x3] %vm145, 0.0
    %151 = vst.msk [vmem:[#allocation5 + $0x30] sm:$0xff] %vm143, 0.0
    %152 = vst.msk [vmem:[#allocation5 + $0x38] sm:$0x3] %vm145, 0.0
    %153 = vst.msk [vmem:[#allocation5 + $0x40] sm:$0xff] %vm143, 0.0
    %154 = vst.msk [vmem:[#allocation5 + $0x48] sm:$0x3] %vm145, 0.0
    %155 = vst.msk [vmem:[#allocation5 + $0x50] sm:$0xff] %vm143, 0.0
    %156 = vst.msk [vmem:[#allocation5 + $0x58] sm:$0x3] %vm145, 0.0
    %157 = vst.msk [vmem:[#allocation5 + $0x60] sm:$0xff] %vm143, 0.0
    %158 = vst.msk [vmem:[#allocation5 + $0x68] sm:$0x3] %vm145, 0.0
    %159 = vst.msk [vmem:[#allocation5 + $0x70] sm:$0xff] %vm143, 0.0
    %160 = vst.msk [vmem:[#allocation5 + $0x78] sm:$0x3] %vm145, 0.0
    %161 = vst.msk [vmem:[#allocation5 + $0x80] sm:$0xff] %vm143, 0.0
    %162 = vst.msk [vmem:[#allocation5 + $0x88] sm:$0x3] %vm145, 0.0
    %163 = vst.msk [vmem:[#allocation5 + $0x90] sm:$0xff] %vm143, 0.0
    %164 = vst.msk [vmem:[#allocation5 + $0x98] sm:$0x3] %vm145, 0.0
    %v165 = vld [vmem:[%s0] sm:$0xff]
    %v166 = vld [vmem:[%s0 + $0x8] sm:$0xff]
    %v167 = vld [vmem:[%s0 + $0x10] sm:$0xff]
    %v168 = vld [vmem:[%s0 + $0x18] sm:$0xff]
    %v169 = vld [vmem:[%s0 + $0x20] sm:$0xff]
    %v170 = vld [vmem:[%s0 + $0x28] sm:$0xff]
    %v171 = vld [vmem:[%s0 + $0x30] sm:$0xff]
    %v172 = vld [vmem:[%s0 + $0x38] sm:$0xff]
    %v173 = vld [vmem:[%s0 + $0x40] sm:$0xff]
    %v174 = vld [vmem:[%s0 + $0x48] sm:$0xff]
    %v175 = vld [vmem:[%s0 + $0x50] sm:$0xff]
    %v176 = vld [vmem:[%s0 + $0x58] sm:$0xff]
    %v177 = vld [vmem:[%s0 + $0x60] sm:$0xff]
    %v178 = vld [vmem:[%s0 + $0x68] sm:$0xff]
    %v179 = vld [vmem:[%s0 + $0x70] sm:$0xff]
    %v180 = vld [vmem:[%s0 + $0x78] sm:$0xff]
    %v181 = vld [vmem:[%s0 + $0x80] sm:$0xff]
    %v182 = vld [vmem:[%s0 + $0x88] sm:$0xff]
    %v183 = vld [vmem:[%s0 + $0x90] sm:$0xff]
    %v184 = vld [vmem:[%s0 + $0x98] sm:$0xff]
    %v185 = vld [vmem:[%s0 + $0xa0] sm:$0xff]
    %v186 = vld [vmem:[%s0 + $0xa8] sm:$0xff]
    %v187 = vld [vmem:[%s0 + $0xb0] sm:$0xff]
    %v188 = vld [vmem:[%s0 + $0xb8] sm:$0xff]
    %v189 = vld [vmem:[%s0 + $0xc0] sm:$0xff]
    %v190 = vld [vmem:[%s0 + $0xc8] sm:$0xff]
    %v191 = vld [vmem:[%s0 + $0xd0] sm:$0xff]
    %v192 = vld [vmem:[%s0 + $0xd8] sm:$0xff]
    %v193 = vld [vmem:[%s0 + $0xe0] sm:$0xff]
    %v194 = vld [vmem:[%s0 + $0xe8] sm:$0xff]
    %v195 = vld [vmem:[%s0 + $0xf0] sm:$0xff]
    %v196 = vld [vmem:[%s0 + $0xf8] sm:$0xff]
    %s197 = scalar_lea.vmem [#allocation2], 24
    %198 = vst.msk [vmem:[%s197 + $0x1] sm:$0xff] %vm33, %v165
    %199 = vst.msk [vmem:[%s197 + $0x9] sm:$0xff] %vm33, %v166
    %200 = vst.msk [vmem:[%s197 + $0x19] sm:$0xff] %vm33, %v167
    %201 = vst.msk [vmem:[%s197 + $0x21] sm:$0xff] %vm33, %v168
    %202 = vst.msk [vmem:[%s197 + $0x31] sm:$0xff] %vm33, %v169
    %203 = vst.msk [vmem:[%s197 + $0x39] sm:$0xff] %vm33, %v170
    %204 = vst.msk [vmem:[%s197 + $0x49] sm:$0xff] %vm33, %v171
    %205 = vst.msk [vmem:[%s197 + $0x51] sm:$0xff] %vm33, %v172
    %206 = vst.msk [vmem:[%s197 + $0x61] sm:$0xff] %vm33, %v173
    %207 = vst.msk [vmem:[%s197 + $0x69] sm:$0xff] %vm33, %v174
    %208 = vst.msk [vmem:[%s197 + $0x79] sm:$0xff] %vm33, %v175
    %209 = vst.msk [vmem:[%s197 + $0x81] sm:$0xff] %vm33, %v176
    %210 = vst.msk [vmem:[%s197 + $0x91] sm:$0xff] %vm33, %v177
    %211 = vst.msk [vmem:[%s197 + $0x99] sm:$0xff] %vm33, %v178
    %212 = vst.msk [vmem:[%s197 + $0xa9] sm:$0xff] %vm33, %v179
    %213 = vst.msk [vmem:[%s197 + $0xb1] sm:$0xff] %vm33, %v180
    %214 = vst.msk [vmem:[%s197 + $0xc1] sm:$0xff] %vm33, %v181
    %215 = vst.msk [vmem:[%s197 + $0xc9] sm:$0xff] %vm33, %v182
    %216 = vst.msk [vmem:[%s197 + $0xd9] sm:$0xff] %vm33, %v183
    %217 = vst.msk [vmem:[%s197 + $0xe1] sm:$0xff] %vm33, %v184
    %218 = vst.msk [vmem:[%s197 + $0xf1] sm:$0xff] %vm33, %v185
    %219 = vst.msk [vmem:[%s197 + $0xf9] sm:$0xff] %vm33, %v186
    %220 = vst.msk [vmem:[%s197 + $0x109] sm:$0xff] %vm33, %v187
    %221 = vst.msk [vmem:[%s197 + $0x111] sm:$0xff] %vm33, %v188
    %222 = vst.msk [vmem:[%s197 + $0x121] sm:$0xff] %vm33, %v189
    %223 = vst.msk [vmem:[%s197 + $0x129] sm:$0xff] %vm33, %v190
    %224 = vst.msk [vmem:[%s197 + $0x139] sm:$0xff] %vm33, %v191
    %225 = vst.msk [vmem:[%s197 + $0x141] sm:$0xff] %vm33, %v192
    %226 = vst.msk [vmem:[%s197 + $0x151] sm:$0xff] %vm33, %v193
    %227 = vst.msk [vmem:[%s197 + $0x159] sm:$0xff] %vm33, %v194
    %228 = vst.msk [vmem:[%s197 + $0x169] sm:$0xff] %vm33, %v195
    %229 = vst.msk [vmem:[%s197 + $0x171] sm:$0xff] %vm33, %v196
    %s230 = scalar_lea.vmem %s0, 256
    %v231 = vld [vmem:[%s230] sm:$0xff]
    %v232 = vld [vmem:[%s230 + $0x8] sm:$0xff]
    %v233 = vld [vmem:[%s230 + $0x10] sm:$0xff]
    %v234 = vld [vmem:[%s230 + $0x18] sm:$0xff]
    %v235 = vld [vmem:[%s230 + $0x20] sm:$0xff]
    %v236 = vld [vmem:[%s230 + $0x28] sm:$0xff]
    %v237 = vld [vmem:[%s230 + $0x30] sm:$0xff]
    %v238 = vld [vmem:[%s230 + $0x38] sm:$0xff]
    %v239 = vld [vmem:[%s230 + $0x40] sm:$0xff]
    %v240 = vld [vmem:[%s230 + $0x48] sm:$0xff]
    %v241 = vld [vmem:[%s230 + $0x50] sm:$0xff]
    %v242 = vld [vmem:[%s230 + $0x58] sm:$0xff]
    %v243 = vld [vmem:[%s230 + $0x60] sm:$0xff]
    %v244 = vld [vmem:[%s230 + $0x68] sm:$0xff]
    %v245 = vld [vmem:[%s230 + $0x70] sm:$0xff]
    %v246 = vld [vmem:[%s230 + $0x78] sm:$0xff]
    %v247 = vld [vmem:[%s230 + $0x80] sm:$0xff]
    %v248 = vld [vmem:[%s230 + $0x88] sm:$0xff]
    %v249 = vld [vmem:[%s230 + $0x90] sm:$0xff]
    %v250 = vld [vmem:[%s230 + $0x98] sm:$0xff]
    %v251 = vld [vmem:[%s230 + $0xa0] sm:$0xff]
    %v252 = vld [vmem:[%s230 + $0xa8] sm:$0xff]
    %v253 = vld [vmem:[%s230 + $0xb0] sm:$0xff]
    %v254 = vld [vmem:[%s230 + $0xb8] sm:$0xff]
    %v255 = vld [vmem:[%s230 + $0xc0] sm:$0xff]
    %v256 = vld [vmem:[%s230 + $0xc8] sm:$0xff]
    %v257 = vld [vmem:[%s230 + $0xd0] sm:$0xff]
    %v258 = vld [vmem:[%s230 + $0xd8] sm:$0xff]
    %v259 = vld [vmem:[%s230 + $0xe0] sm:$0xff]
    %v260 = vld [vmem:[%s230 + $0xe8] sm:$0xff]
    %v261 = vld [vmem:[%s230 + $0xf0] sm:$0xff]
    %v262 = vld [vmem:[%s230 + $0xf8] sm:$0xff]
    %s263 = scalar_lea.vmem [#allocation2], 456
    %264 = vst.msk [vmem:[%s263 + $0x1] sm:$0xff] %vm33, %v231
    %265 = vst.msk [vmem:[%s263 + $0x9] sm:$0xff] %vm33, %v232
    %266 = vst.msk [vmem:[%s263 + $0x19] sm:$0xff] %vm33, %v233
    %267 = vst.msk [vmem:[%s263 + $0x21] sm:$0xff] %vm33, %v234
    %268 = vst.msk [vmem:[%s263 + $0x31] sm:$0xff] %vm33, %v235
    %269 = vst.msk [vmem:[%s263 + $0x39] sm:$0xff] %vm33, %v236
    %270 = vst.msk [vmem:[%s263 + $0x49] sm:$0xff] %vm33, %v237
    %271 = vst.msk [vmem:[%s263 + $0x51] sm:$0xff] %vm33, %v238
    %272 = vst.msk [vmem:[%s263 + $0x61] sm:$0xff] %vm33, %v239
    %273 = vst.msk [vmem:[%s263 + $0x69] sm:$0xff] %vm33, %v240
    %274 = vst.msk [vmem:[%s263 + $0x79] sm:$0xff] %vm33, %v241
    %275 = vst.msk [vmem:[%s263 + $0x81] sm:$0xff] %vm33, %v242
    %276 = vst.msk [vmem:[%s263 + $0x91] sm:$0xff] %vm33, %v243
    %277 = vst.msk [vmem:[%s263 + $0x99] sm:$0xff] %vm33, %v244
    %278 = vst.msk [vmem:[%s263 + $0xa9] sm:$0xff] %vm33, %v245
    %279 = vst.msk [vmem:[%s263 + $0xb1] sm:$0xff] %vm33, %v246
    %280 = vst.msk [vmem:[%s263 + $0xc1] sm:$0xff] %vm33, %v247
    %281 = vst.msk [vmem:[%s263 + $0xc9] sm:$0xff] %vm33, %v248
    %282 = vst.msk [vmem:[%s263 + $0xd9] sm:$0xff] %vm33, %v249
    %283 = vst.msk [vmem:[%s263 + $0xe1] sm:$0xff] %vm33, %v250
    %284 = vst.msk [vmem:[%s263 + $0xf1] sm:$0xff] %vm33, %v251
    %285 = vst.msk [vmem:[%s263 + $0xf9] sm:$0xff] %vm33, %v252
    %286 = vst.msk [vmem:[%s263 + $0x109] sm:$0xff] %vm33, %v253
    %287 = vst.msk [vmem:[%s263 + $0x111] sm:$0xff] %vm33, %v254
    %288 = vst.msk [vmem:[%s263 + $0x121] sm:$0xff] %vm33, %v255
    %289 = vst.msk [vmem:[%s263 + $0x129] sm:$0xff] %vm33, %v256
    %290 = vst.msk [vmem:[%s263 + $0x139] sm:$0xff] %vm33, %v257
    %291 = vst.msk [vmem:[%s263 + $0x141] sm:$0xff] %vm33, %v258
    %292 = vst.msk [vmem:[%s263 + $0x151] sm:$0xff] %vm33, %v259
    %293 = vst.msk [vmem:[%s263 + $0x159] sm:$0xff] %vm33, %v260
    %294 = vst.msk [vmem:[%s263 + $0x169] sm:$0xff] %vm33, %v261
    %295 = vst.msk [vmem:[%s263 + $0x171] sm:$0xff] %vm33, %v262
    %v296 = vld [vmem:[#allocation2] sm:$0xff]
    %v297 = vld [vmem:[#allocation2 + $0x8] sm:$0xff]
    %v298 = vld [vmem:[#allocation2 + $0x18] sm:$0xff]
    %v299 = vld [vmem:[#allocation2 + $0x20] sm:$0xff]
    %v300 = vld [vmem:[#allocation2 + $0x30] sm:$0xff]
    %v301 = vld [vmem:[#allocation2 + $0x38] sm:$0xff]
    %v302 = vld [vmem:[#allocation2 + $0x48] sm:$0xff]
    %v303 = vld [vmem:[#allocation2 + $0x50] sm:$0xff]
    %v304 = vld [vmem:[#allocation2 + $0x60] sm:$0xff]
    %v305 = vld [vmem:[#allocation2 + $0x68] sm:$0xff]
    %v306 = vld [vmem:[#allocation2 + $0x78] sm:$0xff]
    %v307 = vld [vmem:[#allocation2 + $0x80] sm:$0xff]
    %v308 = vld [vmem:[#allocation2 + $0x90] sm:$0xff]
    %v309 = vld [vmem:[#allocation2 + $0x98] sm:$0xff]
    %v310 = vld [vmem:[#allocation2 + $0xa8] sm:$0xff]
    %v311 = vld [vmem:[#allocation2 + $0xb0] sm:$0xff]
    %v312 = vld [vmem:[#allocation2 + $0xc0] sm:$0xff]
    %v313 = vld [vmem:[#allocation2 + $0xc8] sm:$0xff]
    %v314 = vld [vmem:[#allocation2 + $0xd8] sm:$0xff]
    %v315 = vld [vmem:[#allocation2 + $0xe0] sm:$0xff]
    %v316 = vld [vmem:[#allocation2 + $0xf0] sm:$0xff]
    %v317 = vld [vmem:[#allocation2 + $0xf8] sm:$0xff]
    %v318 = vld [vmem:[#allocation2 + $0x108] sm:$0xff]
    %v319 = vld [vmem:[#allocation2 + $0x110] sm:$0xff]
    %v320 = vld [vmem:[#allocation2 + $0x120] sm:$0xff]
    %v321 = vld [vmem:[#allocation2 + $0x128] sm:$0xff]
    %v322 = vld [vmem:[#allocation2 + $0x138] sm:$0xff]
    %v323 = vld [vmem:[#allocation2 + $0x140] sm:$0xff]
    %v324 = vld [vmem:[#allocation2 + $0x150] sm:$0xff]
    %v325 = vld [vmem:[#allocation2 + $0x158] sm:$0xff]
    %v326 = vld [vmem:[#allocation2 + $0x168] sm:$0xff]
    %v327 = vld [vmem:[#allocation2 + $0x170] sm:$0xff]
    %v328 = vld [vmem:[%s1] sm:$0xf]
    %v329 = vld [vmem:[#allocation2 + $0x1] sm:$0xff]
    %v330 = vld [vmem:[#allocation2 + $0x9] sm:$0xff]
    %v331 = vld [vmem:[#allocation2 + $0x19] sm:$0xff]
    %v332 = vld [vmem:[#allocation2 + $0x21] sm:$0xff]
    %v333 = vld [vmem:[#allocation2 + $0x31] sm:$0xff]
    %v334 = vld [vmem:[#allocation2 + $0x39] sm:$0xff]
    %v335 = vld [vmem:[#allocation2 + $0x49] sm:$0xff]
    %v336 = vld [vmem:[#allocation2 + $0x51] sm:$0xff]
    %v337 = vld [vmem:[#allocation2 + $0x61] sm:$0xff]
    %v338 = vld [vmem:[#allocation2 + $0x69] sm:$0xff]
    %v339 = vld [vmem:[#allocation2 + $0x79] sm:$0xff]
    %v340 = vld [vmem:[#allocation2 + $0x81] sm:$0xff]
    %v341 = vld [vmem:[#allocation2 + $0x91] sm:$0xff]
    %v342 = vld [vmem:[#allocation2 + $0x99] sm:$0xff]
    %v343 = vld [vmem:[#allocation2 + $0xa9] sm:$0xff]
    %v344 = vld [vmem:[#allocation2 + $0xb1] sm:$0xff]
    %v345 = vld [vmem:[#allocation2 + $0xc1] sm:$0xff]
    %v346 = vld [vmem:[#allocation2 + $0xc9] sm:$0xff]
    %v347 = vld [vmem:[#allocation2 + $0xd9] sm:$0xff]
    %v348 = vld [vmem:[#allocation2 + $0xe1] sm:$0xff]
    %v349 = vld [vmem:[#allocation2 + $0xf1] sm:$0xff]
    %v350 = vld [vmem:[#allocation2 + $0xf9] sm:$0xff]
    %v351 = vld [vmem:[#allocation2 + $0x109] sm:$0xff]
    %v352 = vld [vmem:[#allocation2 + $0x111] sm:$0xff]
    %v353 = vld [vmem:[#allocation2 + $0x121] sm:$0xff]
    %v354 = vld [vmem:[#allocation2 + $0x129] sm:$0xff]
    %v355 = vld [vmem:[#allocation2 + $0x139] sm:$0xff]
    %v356 = vld [vmem:[#allocation2 + $0x141] sm:$0xff]
    %v357 = vld [vmem:[#allocation2 + $0x151] sm:$0xff]
    %v358 = vld [vmem:[#allocation2 + $0x159] sm:$0xff]
    %v359 = vld [vmem:[#allocation2 + $0x169] sm:$0xff]
    %v360 = vld [vmem:[#allocation2 + $0x171] sm:$0xff]
    %s361 = scalar_lea.vmem %s1, 4
    %v362 = vld [vmem:[%s361] sm:$0xf]
    %v364 = vsel %vm33, %v329, 0
    %v367 = vsel %vm33, %v330, 0
    %v370 = vsel %vm33, %v331, 0
    %v373 = vsel %vm33, %v332, 0
    %v376 = vsel %vm33, %v333, 0
    %v379 = vsel %vm33, %v334, 0
    %v382 = vsel %vm33, %v335, 0
    %v385 = vsel %vm33, %v336, 0
    %v388 = vsel %vm33, %v337, 0
    %v391 = vsel %vm33, %v338, 0
    %v394 = vsel %vm33, %v339, 0
    %v397 = vsel %vm33, %v340, 0
    %v400 = vsel %vm33, %v341, 0
    %v403 = vsel %vm33, %v342, 0
    %v406 = vsel %vm33, %v343, 0
    %v409 = vsel %vm33, %v344, 0
    %v412 = vsel %vm33, %v345, 0
    %v415 = vsel %vm33, %v346, 0
    %v418 = vsel %vm33, %v347, 0
    %v421 = vsel %vm33, %v348, 0
    %v424 = vsel %vm33, %v349, 0
    %v427 = vsel %vm33, %v350, 0
    %v430 = vsel %vm33, %v351, 0
    %v433 = vsel %vm33, %v352, 0
    %v436 = vsel %vm33, %v353, 0
    %v439 = vsel %vm33, %v354, 0
    %v442 = vsel %vm33, %v355, 0
    %v445 = vsel %vm33, %v356, 0
    %v448 = vsel %vm33, %v357, 0
    %v451 = vsel %vm33, %v358, 0
    %v454 = vsel %vm33, %v359, 0
    %v457 = vsel %vm33, %v360, 0
    %vm459 = vcmask 1043456
    %v461 = vsel %vm459, %v362, 0
    %463 = vmatprep.subr.mxu0 0.0
    %464 = vmatpush1.msra.mxu0 0.0
    %465 = vmatprep.subr.mxu0 0.0
    %466 = vmatpush1.msra.mxu0 0.0
    %467 = vmatprep.subr.mxu0 0.0
    %468 = vmatpush1.msra.mxu0 0.0
    %469 = vmatprep.subr.mxu0 0.0
    %470 = vmatpush1.msra.mxu0 0.0
    %471 = vmatprep.subr.mxu0 0.0
    %472 = vmatpush1.msra.mxu0 0.0
    %473 = vmatprep.subr.mxu0 0.0
    %474 = vmatpush1.msra.mxu0 0.0
    %475 = vmatprep.subr.mxu0 0.0
    %476 = vmatpush1.msra.mxu0 0.0
    %477 = vmatprep.subr.mxu0 0.0
    %478 = vmatpush1.msra.mxu0 0.0
    %479 = vmatprep.subr.mxu0 0.0
    %480 = vmatpush1.msra.mxu0 0.0
    %481 = vmatprep.subr.mxu0 0.0
    %482 = vmatpush1.msra.mxu0 0.0
    %483 = vmatprep.subr.mxu0 0.0
    %484 = vmatpush1.msra.mxu0 0.0
    %485 = vmatprep.subr.mxu0 0.0
    %486 = vmatpush1.msra.mxu0 0.0
    %487 = vmatprep.subr.mxu0 0.0
    %488 = vmatpush1.msra.mxu0 0.0
    %489 = vmatprep.subr.mxu0 0.0
    %490 = vmatpush1.msra.mxu0 0.0
    %491 = vmatprep.subr.mxu0 0.0
    %492 = vmatpush1.msra.mxu0 0.0
    %493 = vmatprep.subr.mxu0 0.0
    %494 = vmatpush1.msra.mxu0 %v461
    %495 = vmatprep.subr.mxu0 0.0
    %496 = vmatpush2.msra.mxu0 0.0
    %497 = vmatprep.subr.mxu0 0.0
    %498 = vmatpush2.msra.mxu0 0.0
    %499 = vmatprep.subr.mxu0 0.0
    %500 = vmatpush2.msra.mxu0 0.0
    %501 = vmatprep.subr.mxu0 0.0
    %502 = vmatpush2.msra.mxu0 0.0
    %503 = vmatprep.subr.mxu0 0.0
    %504 = vmatpush2.msra.mxu0 0.0
    %505 = vmatprep.subr.mxu0 0.0
    %506 = vmatpush2.msra.mxu0 0.0
    %507 = vmatprep.subr.mxu0 0.0
    %508 = vmatpush2.msra.mxu0 0.0
    %509 = vmatprep.subr.mxu0 0.0
    %510 = vmatpush2.msra.mxu0 0.0
    %511 = vmatprep.subr.mxu0 0.0
    %512 = vmatpush2.msra.mxu0 0.0
    %513 = vmatprep.subr.mxu0 0.0
    %514 = vmatpush2.msra.mxu0 0.0
    %515 = vmatprep.subr.mxu0 0.0
    %516 = vmatpush2.msra.mxu0 0.0
    %517 = vmatprep.subr.mxu0 0.0
    %518 = vmatpush2.msra.mxu0 0.0
    %519 = vmatprep.subr.mxu0 0.0
    %520 = vmatpush2.msra.mxu0 0.0
    %521 = vmatprep.subr.mxu0 0.0
    %522 = vmatpush2.msra.mxu0 0.0
    %523 = vmatprep.subr.mxu0 0.0
    %524 = vmatpush2.msra.mxu0 0.0
    %525 = vmatprep.subr.mxu0 0.0
    %526 = vmatpush2.msra.mxu0 0.0
    %527 = vmatprep.mubr.f32.mxu0 0.0
    %528 = vmatmul.mubr.f32.gmra.mxu0 %v364
    %v529 = vpop.f32.mrf.mxu0
    %v530 = vadd.f32 0.0, %v529
    %v531 = vpop.f32.mrf.mxu0
    %532 = vmatprep.mubr.f32.mxu0 0.0
    %533 = vmatmul.mubr.f32.gmra.mxu0 %v367
    %v534 = vpop.f32.mrf.mxu0
    %v535 = vadd.f32 0.0, %v534
    %v536 = vpop.f32.mrf.mxu0
    %537 = vmatprep.mubr.f32.mxu0 0.0
    %538 = vmatmul.mubr.f32.gmra.mxu0 %v370
    %v539 = vpop.f32.mrf.mxu0
    %v540 = vadd.f32 0.0, %v539
    %v541 = vpop.f32.mrf.mxu0
    %542 = vmatprep.mubr.f32.mxu0 0.0
    %543 = vmatmul.mubr.f32.gmra.mxu0 %v373
    %v544 = vpop.f32.mrf.mxu0
    %v545 = vadd.f32 0.0, %v544
    %v546 = vpop.f32.mrf.mxu0
    %547 = vmatprep.mubr.f32.mxu0 0.0
    %548 = vmatmul.mubr.f32.gmra.mxu0 %v376
    %v549 = vpop.f32.mrf.mxu0
    %v550 = vadd.f32 0.0, %v549
    %v551 = vpop.f32.mrf.mxu0
    %552 = vmatprep.mubr.f32.mxu0 0.0
    %553 = vmatmul.mubr.f32.gmra.mxu0 %v379
    %v554 = vpop.f32.mrf.mxu0
    %v555 = vadd.f32 0.0, %v554
    %v556 = vpop.f32.mrf.mxu0
    %557 = vmatprep.mubr.f32.mxu0 0.0
    %558 = vmatmul.mubr.f32.gmra.mxu0 %v382
    %v559 = vpop.f32.mrf.mxu0
    %v560 = vadd.f32 0.0, %v559
    %v561 = vpop.f32.mrf.mxu0
    %562 = vmatprep.mubr.f32.mxu0 0.0
    %563 = vmatmul.mubr.f32.gmra.mxu0 %v385
    %v564 = vpop.f32.mrf.mxu0
    %v565 = vadd.f32 0.0, %v564
    %v566 = vpop.f32.mrf.mxu0
    %567 = vmatprep.mubr.f32.mxu0 0.0
    %568 = vmatmul.mubr.f32.gmra.mxu0 %v388
    %v569 = vpop.f32.mrf.mxu0
    %v570 = vadd.f32 0.0, %v569
    %v571 = vpop.f32.mrf.mxu0
    %572 = vmatprep.mubr.f32.mxu0 0.0
    %573 = vmatmul.mubr.f32.gmra.mxu0 %v391
    %v574 = vpop.f32.mrf.mxu0
    %v575 = vadd.f32 0.0, %v574
    %v576 = vpop.f32.mrf.mxu0
    %577 = vmatprep.mubr.f32.mxu0 0.0
    %578 = vmatmul.mubr.f32.gmra.mxu0 %v394
    %v579 = vpop.f32.mrf.mxu0
    %v580 = vadd.f32 0.0, %v579
    %v581 = vpop.f32.mrf.mxu0
    %582 = vmatprep.mubr.f32.mxu0 0.0
    %583 = vmatmul.mubr.f32.gmra.mxu0 %v397
    %v584 = vpop.f32.mrf.mxu0
    %v585 = vadd.f32 0.0, %v584
    %v586 = vpop.f32.mrf.mxu0
    %587 = vmatprep.mubr.f32.mxu0 0.0
    %588 = vmatmul.mubr.f32.gmra.mxu0 %v400
    %v589 = vpop.f32.mrf.mxu0
    %v590 = vadd.f32 0.0, %v589
    %v591 = vpop.f32.mrf.mxu0
    %592 = vmatprep.mubr.f32.mxu0 0.0
    %593 = vmatmul.mubr.f32.gmra.mxu0 %v403
    %v594 = vpop.f32.mrf.mxu0
    %v595 = vadd.f32 0.0, %v594
    %v596 = vpop.f32.mrf.mxu0
    %597 = vmatprep.mubr.f32.mxu0 0.0
    %598 = vmatmul.mubr.f32.gmra.mxu0 %v406
    %v599 = vpop.f32.mrf.mxu0
    %v600 = vadd.f32 0.0, %v599
    %v601 = vpop.f32.mrf.mxu0
    %602 = vmatprep.mubr.f32.mxu0 0.0
    %603 = vmatmul.mubr.f32.gmra.mxu0 %v409
    %v604 = vpop.f32.mrf.mxu0
    %v605 = vadd.f32 0.0, %v604
    %v606 = vpop.f32.mrf.mxu0
    %607 = vmatprep.mubr.f32.mxu0 0.0
    %608 = vmatmul.mubr.f32.gmra.mxu0 %v412
    %v609 = vpop.f32.mrf.mxu0
    %v610 = vadd.f32 0.0, %v609
    %v611 = vpop.f32.mrf.mxu0
    %612 = vmatprep.mubr.f32.mxu0 0.0
    %613 = vmatmul.mubr.f32.gmra.mxu0 %v415
    %v614 = vpop.f32.mrf.mxu0
    %v615 = vadd.f32 0.0, %v614
    %v616 = vpop.f32.mrf.mxu0
    %617 = vmatprep.mubr.f32.mxu0 0.0
    %618 = vmatmul.mubr.f32.gmra.mxu0 %v418
    %v619 = vpop.f32.mrf.mxu0
    %v620 = vadd.f32 0.0, %v619
    %v621 = vpop.f32.mrf.mxu0
    %622 = vmatprep.mubr.f32.mxu0 0.0
    %623 = vmatmul.mubr.f32.gmra.mxu0 %v421
    %v624 = vpop.f32.mrf.mxu0
    %v625 = vadd.f32 0.0, %v624
    %v626 = vpop.f32.mrf.mxu0
    %627 = vmatprep.mubr.f32.mxu0 0.0
    %628 = vmatmul.mubr.f32.gmra.mxu0 %v424
    %v629 = vpop.f32.mrf.mxu0
    %v630 = vadd.f32 0.0, %v629
    %v631 = vpop.f32.mrf.mxu0
    %632 = vmatprep.mubr.f32.mxu0 0.0
    %633 = vmatmul.mubr.f32.gmra.mxu0 %v427
    %v634 = vpop.f32.mrf.mxu0
    %v635 = vadd.f32 0.0, %v634
    %v636 = vpop.f32.mrf.mxu0
    %637 = vmatprep.mubr.f32.mxu0 0.0
    %638 = vmatmul.mubr.f32.gmra.mxu0 %v430
    %v639 = vpop.f32.mrf.mxu0
    %v640 = vadd.f32 0.0, %v639
    %v641 = vpop.f32.mrf.mxu0
    %642 = vmatprep.mubr.f32.mxu0 0.0
    %643 = vmatmul.mubr.f32.gmra.mxu0 %v433
    %v644 = vpop.f32.mrf.mxu0
    %v645 = vadd.f32 0.0, %v644
    %v646 = vpop.f32.mrf.mxu0
    %647 = vmatprep.mubr.f32.mxu0 0.0
    %648 = vmatmul.mubr.f32.gmra.mxu0 %v436
    %v649 = vpop.f32.mrf.mxu0
    %v650 = vadd.f32 0.0, %v649
    %v651 = vpop.f32.mrf.mxu0
    %652 = vmatprep.mubr.f32.mxu0 0.0
    %653 = vmatmul.mubr.f32.gmra.mxu0 %v439
    %v654 = vpop.f32.mrf.mxu0
    %v655 = vadd.f32 0.0, %v654
    %v656 = vpop.f32.mrf.mxu0
    %657 = vmatprep.mubr.f32.mxu0 0.0
    %658 = vmatmul.mubr.f32.gmra.mxu0 %v442
    %v659 = vpop.f32.mrf.mxu0
    %v660 = vadd.f32 0.0, %v659
    %v661 = vpop.f32.mrf.mxu0
    %662 = vmatprep.mubr.f32.mxu0 0.0
    %663 = vmatmul.mubr.f32.gmra.mxu0 %v445
    %v664 = vpop.f32.mrf.mxu0
    %v665 = vadd.f32 0.0, %v664
    %v666 = vpop.f32.mrf.mxu0
    %667 = vmatprep.mubr.f32.mxu0 0.0
    %668 = vmatmul.mubr.f32.gmra.mxu0 %v448
    %v669 = vpop.f32.mrf.mxu0
    %v670 = vadd.f32 0.0, %v669
    %v671 = vpop.f32.mrf.mxu0
    %672 = vmatprep.mubr.f32.mxu0 0.0
    %673 = vmatmul.mubr.f32.gmra.mxu0 %v451
    %v674 = vpop.f32.mrf.mxu0
    %v675 = vadd.f32 0.0, %v674
    %v676 = vpop.f32.mrf.mxu0
    %677 = vmatprep.mubr.f32.mxu0 0.0
    %678 = vmatmul.mubr.f32.gmra.mxu0 %v454
    %v679 = vpop.f32.mrf.mxu0
    %v680 = vadd.f32 0.0, %v679
    %v681 = vpop.f32.mrf.mxu0
    %682 = vmatprep.mubr.f32.mxu0 0.0
    %683 = vmatmul.mubr.f32.gmra.mxu0 %v457
    %v684 = vpop.f32.mrf.mxu0
    %v685 = vadd.f32 0.0, %v684
    %v686 = vpop.f32.mrf.mxu0
    %687 = vdwg.mxu0
    %v689 = vsel %vm33, %v296, 0
    %v692 = vsel %vm33, %v297, 0
    %v695 = vsel %vm33, %v298, 0
    %v698 = vsel %vm33, %v299, 0
    %v701 = vsel %vm33, %v300, 0
    %v704 = vsel %vm33, %v301, 0
    %v707 = vsel %vm33, %v302, 0
    %v710 = vsel %vm33, %v303, 0
    %v713 = vsel %vm33, %v304, 0
    %v716 = vsel %vm33, %v305, 0
    %v719 = vsel %vm33, %v306, 0
    %v722 = vsel %vm33, %v307, 0
    %v725 = vsel %vm33, %v308, 0
    %v728 = vsel %vm33, %v309, 0
    %v731 = vsel %vm33, %v310, 0
    %v734 = vsel %vm33, %v311, 0
    %v737 = vsel %vm33, %v312, 0
    %v740 = vsel %vm33, %v313, 0
    %v743 = vsel %vm33, %v314, 0
    %v746 = vsel %vm33, %v315, 0
    %v749 = vsel %vm33, %v316, 0
    %v752 = vsel %vm33, %v317, 0
    %v755 = vsel %vm33, %v318, 0
    %v758 = vsel %vm33, %v319, 0
    %v761 = vsel %vm33, %v320, 0
    %v764 = vsel %vm33, %v321, 0
    %v767 = vsel %vm33, %v322, 0
    %v770 = vsel %vm33, %v323, 0
    %v773 = vsel %vm33, %v324, 0
    %v776 = vsel %vm33, %v325, 0
    %v779 = vsel %vm33, %v326, 0
    %v782 = vsel %vm33, %v327, 0
    %v785 = vsel %vm459, %v328, 0
    %787 = vmatprep.subr.mxu0 0.0
    %788 = vmatpush1.msra.mxu0 0.0
    %789 = vmatprep.subr.mxu0 0.0
    %790 = vmatpush1.msra.mxu0 0.0
    %791 = vmatprep.subr.mxu0 0.0
    %792 = vmatpush1.msra.mxu0 0.0
    %793 = vmatprep.subr.mxu0 0.0
    %794 = vmatpush1.msra.mxu0 0.0
    %795 = vmatprep.subr.mxu0 0.0
    %796 = vmatpush1.msra.mxu0 0.0
    %797 = vmatprep.subr.mxu0 0.0
    %798 = vmatpush1.msra.mxu0 0.0
    %799 = vmatprep.subr.mxu0 0.0
    %800 = vmatpush1.msra.mxu0 0.0
    %801 = vmatprep.subr.mxu0 0.0
    %802 = vmatpush1.msra.mxu0 0.0
    %803 = vmatprep.subr.mxu0 0.0
    %804 = vmatpush1.msra.mxu0 0.0
    %805 = vmatprep.subr.mxu0 0.0
    %806 = vmatpush1.msra.mxu0 0.0
    %807 = vmatprep.subr.mxu0 0.0
    %808 = vmatpush1.msra.mxu0 0.0
    %809 = vmatprep.subr.mxu0 0.0
    %810 = vmatpush1.msra.mxu0 0.0
    %811 = vmatprep.subr.mxu0 0.0
    %812 = vmatpush1.msra.mxu0 0.0
    %813 = vmatprep.subr.mxu0 0.0
    %814 = vmatpush1.msra.mxu0 0.0
    %815 = vmatprep.subr.mxu0 0.0
    %816 = vmatpush1.msra.mxu0 0.0
    %817 = vmatprep.subr.mxu0 0.0
    %818 = vmatpush1.msra.mxu0 %v785
    %819 = vmatprep.subr.mxu0 0.0
    %820 = vmatpush2.msra.mxu0 0.0
    %821 = vmatprep.subr.mxu0 0.0
    %822 = vmatpush2.msra.mxu0 0.0
    %823 = vmatprep.subr.mxu0 0.0
    %824 = vmatpush2.msra.mxu0 0.0
    %825 = vmatprep.subr.mxu0 0.0
    %826 = vmatpush2.msra.mxu0 0.0
    %827 = vmatprep.subr.mxu0 0.0
    %828 = vmatpush2.msra.mxu0 0.0
    %829 = vmatprep.subr.mxu0 0.0
    %830 = vmatpush2.msra.mxu0 0.0
    %831 = vmatprep.subr.mxu0 0.0
    %832 = vmatpush2.msra.mxu0 0.0
    %833 = vmatprep.subr.mxu0 0.0
    %834 = vmatpush2.msra.mxu0 0.0
    %835 = vmatprep.subr.mxu0 0.0
    %836 = vmatpush2.msra.mxu0 0.0
    %837 = vmatprep.subr.mxu0 0.0
    %838 = vmatpush2.msra.mxu0 0.0
    %839 = vmatprep.subr.mxu0 0.0
    %840 = vmatpush2.msra.mxu0 0.0
    %841 = vmatprep.subr.mxu0 0.0
    %842 = vmatpush2.msra.mxu0 0.0
    %843 = vmatprep.subr.mxu0 0.0
    %844 = vmatpush2.msra.mxu0 0.0
    %845 = vmatprep.subr.mxu0 0.0
    %846 = vmatpush2.msra.mxu0 0.0
    %847 = vmatprep.subr.mxu0 0.0
    %848 = vmatpush2.msra.mxu0 0.0
    %849 = vmatprep.subr.mxu0 0.0
    %850 = vmatpush2.msra.mxu0 0.0
    %851 = vmatprep.mubr.f32.mxu0 0.0
    %852 = vmatmul.mubr.f32.gmra.mxu0 %v689
    %v853 = vpop.f32.mrf.mxu0
    %v854 = vadd.f32 %v530, %v853
    %v855 = vpop.f32.mrf.mxu0
    %856 = vmatprep.mubr.f32.mxu0 0.0
    %857 = vmatmul.mubr.f32.gmra.mxu0 %v692
    %v858 = vpop.f32.mrf.mxu0
    %v859 = vadd.f32 %v535, %v858
    %v860 = vpop.f32.mrf.mxu0
    %861 = vmatprep.mubr.f32.mxu0 0.0
    %862 = vmatmul.mubr.f32.gmra.mxu0 %v695
    %v863 = vpop.f32.mrf.mxu0
    %v864 = vadd.f32 %v540, %v863
    %v865 = vpop.f32.mrf.mxu0
    %866 = vmatprep.mubr.f32.mxu0 0.0
    %867 = vmatmul.mubr.f32.gmra.mxu0 %v698
    %v868 = vpop.f32.mrf.mxu0
    %v869 = vadd.f32 %v545, %v868
    %v870 = vpop.f32.mrf.mxu0
    %871 = vmatprep.mubr.f32.mxu0 0.0
    %872 = vmatmul.mubr.f32.gmra.mxu0 %v701
    %v873 = vpop.f32.mrf.mxu0
    %v874 = vadd.f32 %v550, %v873
    %v875 = vpop.f32.mrf.mxu0
    %876 = vmatprep.mubr.f32.mxu0 0.0
    %877 = vmatmul.mubr.f32.gmra.mxu0 %v704
    %v878 = vpop.f32.mrf.mxu0
    %v879 = vadd.f32 %v555, %v878
    %v880 = vpop.f32.mrf.mxu0
    %881 = vmatprep.mubr.f32.mxu0 0.0
    %882 = vmatmul.mubr.f32.gmra.mxu0 %v707
    %v883 = vpop.f32.mrf.mxu0
    %v884 = vadd.f32 %v560, %v883
    %v885 = vpop.f32.mrf.mxu0
    %886 = vmatprep.mubr.f32.mxu0 0.0
    %887 = vmatmul.mubr.f32.gmra.mxu0 %v710
    %v888 = vpop.f32.mrf.mxu0
    %v889 = vadd.f32 %v565, %v888
    %v890 = vpop.f32.mrf.mxu0
    %891 = vmatprep.mubr.f32.mxu0 0.0
    %892 = vmatmul.mubr.f32.gmra.mxu0 %v713
    %v893 = vpop.f32.mrf.mxu0
    %v894 = vadd.f32 %v570, %v893
    %v895 = vpop.f32.mrf.mxu0
    %896 = vmatprep.mubr.f32.mxu0 0.0
    %897 = vmatmul.mubr.f32.gmra.mxu0 %v716
    %v898 = vpop.f32.mrf.mxu0
    %v899 = vadd.f32 %v575, %v898
    %v900 = vpop.f32.mrf.mxu0
    %901 = vmatprep.mubr.f32.mxu0 0.0
    %902 = vmatmul.mubr.f32.gmra.mxu0 %v719
    %v903 = vpop.f32.mrf.mxu0
    %v904 = vadd.f32 %v580, %v903
    %v905 = vpop.f32.mrf.mxu0
    %906 = vmatprep.mubr.f32.mxu0 0.0
    %907 = vmatmul.mubr.f32.gmra.mxu0 %v722
    %v908 = vpop.f32.mrf.mxu0
    %v909 = vadd.f32 %v585, %v908
    %v910 = vpop.f32.mrf.mxu0
    %911 = vmatprep.mubr.f32.mxu0 0.0
    %912 = vmatmul.mubr.f32.gmra.mxu0 %v725
    %v913 = vpop.f32.mrf.mxu0
    %v914 = vadd.f32 %v590, %v913
    %v915 = vpop.f32.mrf.mxu0
    %916 = vmatprep.mubr.f32.mxu0 0.0
    %917 = vmatmul.mubr.f32.gmra.mxu0 %v728
    %v918 = vpop.f32.mrf.mxu0
    %v919 = vadd.f32 %v595, %v918
    %v920 = vpop.f32.mrf.mxu0
    %921 = vmatprep.mubr.f32.mxu0 0.0
    %922 = vmatmul.mubr.f32.gmra.mxu0 %v731
    %v923 = vpop.f32.mrf.mxu0
    %v924 = vadd.f32 %v600, %v923
    %v925 = vpop.f32.mrf.mxu0
    %926 = vmatprep.mubr.f32.mxu0 0.0
    %927 = vmatmul.mubr.f32.gmra.mxu0 %v734
    %v928 = vpop.f32.mrf.mxu0
    %v929 = vadd.f32 %v605, %v928
    %v930 = vpop.f32.mrf.mxu0
    %931 = vmatprep.mubr.f32.mxu0 0.0
    %932 = vmatmul.mubr.f32.gmra.mxu0 %v737
    %v933 = vpop.f32.mrf.mxu0
    %v934 = vadd.f32 %v610, %v933
    %v935 = vpop.f32.mrf.mxu0
    %936 = vmatprep.mubr.f32.mxu0 0.0
    %937 = vmatmul.mubr.f32.gmra.mxu0 %v740
    %v938 = vpop.f32.mrf.mxu0
    %v939 = vadd.f32 %v615, %v938
    %v940 = vpop.f32.mrf.mxu0
    %941 = vmatprep.mubr.f32.mxu0 0.0
    %942 = vmatmul.mubr.f32.gmra.mxu0 %v743
    %v943 = vpop.f32.mrf.mxu0
    %v944 = vadd.f32 %v620, %v943
    %v945 = vpop.f32.mrf.mxu0
    %946 = vmatprep.mubr.f32.mxu0 0.0
    %947 = vmatmul.mubr.f32.gmra.mxu0 %v746
    %v948 = vpop.f32.mrf.mxu0
    %v949 = vadd.f32 %v625, %v948
    %v950 = vpop.f32.mrf.mxu0
    %951 = vmatprep.mubr.f32.mxu0 0.0
    %952 = vmatmul.mubr.f32.gmra.mxu0 %v749
    %v953 = vpop.f32.mrf.mxu0
    %v954 = vadd.f32 %v630, %v953
    %v955 = vpop.f32.mrf.mxu0
    %956 = vmatprep.mubr.f32.mxu0 0.0
    %957 = vmatmul.mubr.f32.gmra.mxu0 %v752
    %v958 = vpop.f32.mrf.mxu0
    %v959 = vadd.f32 %v635, %v958
    %v960 = vpop.f32.mrf.mxu0
    %961 = vmatprep.mubr.f32.mxu0 0.0
    %962 = vmatmul.mubr.f32.gmra.mxu0 %v755
    %v963 = vpop.f32.mrf.mxu0
    %v964 = vadd.f32 %v640, %v963
    %v965 = vpop.f32.mrf.mxu0
    %966 = vmatprep.mubr.f32.mxu0 0.0
    %967 = vmatmul.mubr.f32.gmra.mxu0 %v758
    %v968 = vpop.f32.mrf.mxu0
    %v969 = vadd.f32 %v645, %v968
    %v970 = vpop.f32.mrf.mxu0
    %971 = vmatprep.mubr.f32.mxu0 0.0
    %972 = vmatmul.mubr.f32.gmra.mxu0 %v761
    %v973 = vpop.f32.mrf.mxu0
    %v974 = vadd.f32 %v650, %v973
    %v975 = vpop.f32.mrf.mxu0
    %976 = vmatprep.mubr.f32.mxu0 0.0
    %977 = vmatmul.mubr.f32.gmra.mxu0 %v764
    %v978 = vpop.f32.mrf.mxu0
    %v979 = vadd.f32 %v655, %v978
    %v980 = vpop.f32.mrf.mxu0
    %981 = vmatprep.mubr.f32.mxu0 0.0
    %982 = vmatmul.mubr.f32.gmra.mxu0 %v767
    %v983 = vpop.f32.mrf.mxu0
    %v984 = vadd.f32 %v660, %v983
    %v985 = vpop.f32.mrf.mxu0
    %986 = vmatprep.mubr.f32.mxu0 0.0
    %987 = vmatmul.mubr.f32.gmra.mxu0 %v770
    %v988 = vpop.f32.mrf.mxu0
    %v989 = vadd.f32 %v665, %v988
    %v990 = vpop.f32.mrf.mxu0
    %991 = vmatprep.mubr.f32.mxu0 0.0
    %992 = vmatmul.mubr.f32.gmra.mxu0 %v773
    %v993 = vpop.f32.mrf.mxu0
    %v994 = vadd.f32 %v670, %v993
    %v995 = vpop.f32.mrf.mxu0
    %996 = vmatprep.mubr.f32.mxu0 0.0
    %997 = vmatmul.mubr.f32.gmra.mxu0 %v776
    %v998 = vpop.f32.mrf.mxu0
    %v999 = vadd.f32 %v675, %v998
    %v1000 = vpop.f32.mrf.mxu0
    %1001 = vmatprep.mubr.f32.mxu0 0.0
    %1002 = vmatmul.mubr.f32.gmra.mxu0 %v779
    %v1003 = vpop.f32.mrf.mxu0
    %v1004 = vadd.f32 %v680, %v1003
    %v1005 = vpop.f32.mrf.mxu0
    %1006 = vmatprep.mubr.f32.mxu0 0.0
    %1007 = vmatmul.mubr.f32.gmra.mxu0 %v782
    %v1008 = vpop.f32.mrf.mxu0
    %v1009 = vadd.f32 %v685, %v1008
    %v1010 = vpop.f32.mrf.mxu0
    %1011 = vdwg.mxu0
    %v1012 = vld [vmem:[#allocation2 + $0x2] sm:$0xff]
    %v1013 = vld [vmem:[#allocation2 + $0xa] sm:$0xff]
    %v1014 = vld [vmem:[#allocation2 + $0x1a] sm:$0xff]
    %v1015 = vld [vmem:[#allocation2 + $0x22] sm:$0xff]
    %v1016 = vld [vmem:[#allocation2 + $0x32] sm:$0xff]
    %v1017 = vld [vmem:[#allocation2 + $0x3a] sm:$0xff]
    %v1018 = vld [vmem:[#allocation2 + $0x4a] sm:$0xff]
    %v1019 = vld [vmem:[#allocation2 + $0x52] sm:$0xff]
    %v1020 = vld [vmem:[#allocation2 + $0x62] sm:$0xff]
    %v1021 = vld [vmem:[#allocation2 + $0x6a] sm:$0xff]
    %v1022 = vld [vmem:[#allocation2 + $0x7a] sm:$0xff]
    %v1023 = vld [vmem:[#allocation2 + $0x82] sm:$0xff]
    %v1024 = vld [vmem:[#allocation2 + $0x92] sm:$0xff]
    %v1025 = vld [vmem:[#allocation2 + $0x9a] sm:$0xff]
    %v1026 = vld [vmem:[#allocation2 + $0xaa] sm:$0xff]
    %v1027 = vld [vmem:[#allocation2 + $0xb2] sm:$0xff]
    %v1028 = vld [vmem:[#allocation2 + $0xc2] sm:$0xff]
    %v1029 = vld [vmem:[#allocation2 + $0xca] sm:$0xff]
    %v1030 = vld [vmem:[#allocation2 + $0xda] sm:$0xff]
    %v1031 = vld [vmem:[#allocation2 + $0xe2] sm:$0xff]
    %v1032 = vld [vmem:[#allocation2 + $0xf2] sm:$0xff]
    %v1033 = vld [vmem:[#allocation2 + $0xfa] sm:$0xff]
    %v1034 = vld [vmem:[#allocation2 + $0x10a] sm:$0xff]
    %v1035 = vld [vmem:[#allocation2 + $0x112] sm:$0xff]
    %v1036 = vld [vmem:[#allocation2 + $0x122] sm:$0xff]
    %v1037 = vld [vmem:[#allocation2 + $0x12a] sm:$0xff]
    %v1038 = vld [vmem:[#allocation2 + $0x13a] sm:$0xff]
    %v1039 = vld [vmem:[#allocation2 + $0x142] sm:$0xff]
    %v1040 = vld [vmem:[#allocation2 + $0x152] sm:$0xff]
    %v1041 = vld [vmem:[#allocation2 + $0x15a] sm:$0xff]
    %v1042 = vld [vmem:[#allocation2 + $0x16a] sm:$0xff]
    %v1043 = vld [vmem:[#allocation2 + $0x172] sm:$0xff]
    %s1044 = scalar_lea.vmem %s1, 8
    %v1045 = vld [vmem:[%s1044] sm:$0xf]
    %v1047 = vsel %vm33, %v1012, 0
    %v1050 = vsel %vm33, %v1013, 0
    %v1053 = vsel %vm33, %v1014, 0
    %v1056 = vsel %vm33, %v1015, 0
    %v1059 = vsel %vm33, %v1016, 0
    %v1062 = vsel %vm33, %v1017, 0
    %v1065 = vsel %vm33, %v1018, 0
    %v1068 = vsel %vm33, %v1019, 0
    %v1071 = vsel %vm33, %v1020, 0
    %v1074 = vsel %vm33, %v1021, 0
    %v1077 = vsel %vm33, %v1022, 0
    %v1080 = vsel %vm33, %v1023, 0
    %v1083 = vsel %vm33, %v1024, 0
    %v1086 = vsel %vm33, %v1025, 0
    %v1089 = vsel %vm33, %v1026, 0
    %v1092 = vsel %vm33, %v1027, 0
    %v1095 = vsel %vm33, %v1028, 0
    %v1098 = vsel %vm33, %v1029, 0
    %v1101 = vsel %vm33, %v1030, 0
    %v1104 = vsel %vm33, %v1031, 0
    %v1107 = vsel %vm33, %v1032, 0
    %v1110 = vsel %vm33, %v1033, 0
    %v1113 = vsel %vm33, %v1034, 0
    %v1116 = vsel %vm33, %v1035, 0
    %v1119 = vsel %vm33, %v1036, 0
    %v1122 = vsel %vm33, %v1037, 0
    %v1125 = vsel %vm33, %v1038, 0
    %v1128 = vsel %vm33, %v1039, 0
    %v1131 = vsel %vm33, %v1040, 0
    %v1134 = vsel %vm33, %v1041, 0
    %v1137 = vsel %vm33, %v1042, 0
    %v1140 = vsel %vm33, %v1043, 0
    %v1143 = vsel %vm459, %v1045, 0
    %1145 = vmatprep.subr.mxu0 0.0
    %1146 = vmatpush1.msra.mxu0 0.0
    %1147 = vmatprep.subr.mxu0 0.0
    %1148 = vmatpush1.msra.mxu0 0.0
    %1149 = vmatprep.subr.mxu0 0.0
    %1150 = vmatpush1.msra.mxu0 0.0
    %1151 = vmatprep.subr.mxu0 0.0
    %1152 = vmatpush1.msra.mxu0 0.0
    %1153 = vmatprep.subr.mxu0 0.0
    %1154 = vmatpush1.msra.mxu0 0.0
    %1155 = vmatprep.subr.mxu0 0.0
    %1156 = vmatpush1.msra.mxu0 0.0
    %1157 = vmatprep.subr.mxu0 0.0
    %1158 = vmatpush1.msra.mxu0 0.0
    %1159 = vmatprep.subr.mxu0 0.0
    %1160 = vmatpush1.msra.mxu0 0.0
    %1161 = vmatprep.subr.mxu0 0.0
    %1162 = vmatpush1.msra.mxu0 0.0
    %1163 = vmatprep.subr.mxu0 0.0
    %1164 = vmatpush1.msra.mxu0 0.0
    %1165 = vmatprep.subr.mxu0 0.0
    %1166 = vmatpush1.msra.mxu0 0.0
    %1167 = vmatprep.subr.mxu0 0.0
    %1168 = vmatpush1.msra.mxu0 0.0
    %1169 = vmatprep.subr.mxu0 0.0
    %1170 = vmatpush1.msra.mxu0 0.0
    %1171 = vmatprep.subr.mxu0 0.0
    %1172 = vmatpush1.msra.mxu0 0.0
    %1173 = vmatprep.subr.mxu0 0.0
    %1174 = vmatpush1.msra.mxu0 0.0
    %1175 = vmatprep.subr.mxu0 0.0
    %1176 = vmatpush1.msra.mxu0 %v1143
    %1177 = vmatprep.subr.mxu0 0.0
    %1178 = vmatpush2.msra.mxu0 0.0
    %1179 = vmatprep.subr.mxu0 0.0
    %1180 = vmatpush2.msra.mxu0 0.0
    %1181 = vmatprep.subr.mxu0 0.0
    %1182 = vmatpush2.msra.mxu0 0.0
    %1183 = vmatprep.subr.mxu0 0.0
    %1184 = vmatpush2.msra.mxu0 0.0
    %1185 = vmatprep.subr.mxu0 0.0
    %1186 = vmatpush2.msra.mxu0 0.0
    %1187 = vmatprep.subr.mxu0 0.0
    %1188 = vmatpush2.msra.mxu0 0.0
    %1189 = vmatprep.subr.mxu0 0.0
    %1190 = vmatpush2.msra.mxu0 0.0
    %1191 = vmatprep.subr.mxu0 0.0
    %1192 = vmatpush2.msra.mxu0 0.0
    %1193 = vmatprep.subr.mxu0 0.0
    %1194 = vmatpush2.msra.mxu0 0.0
    %1195 = vmatprep.subr.mxu0 0.0
    %1196 = vmatpush2.msra.mxu0 0.0
    %1197 = vmatprep.subr.mxu0 0.0
    %1198 = vmatpush2.msra.mxu0 0.0
    %1199 = vmatprep.subr.mxu0 0.0
    %1200 = vmatpush2.msra.mxu0 0.0
    %1201 = vmatprep.subr.mxu0 0.0
    %1202 = vmatpush2.msra.mxu0 0.0
    %1203 = vmatprep.subr.mxu0 0.0
    %1204 = vmatpush2.msra.mxu0 0.0
    %1205 = vmatprep.subr.mxu0 0.0
    %1206 = vmatpush2.msra.mxu0 0.0
    %1207 = vmatprep.subr.mxu0 0.0
    %1208 = vmatpush2.msra.mxu0 0.0
    %1209 = vmatprep.mubr.f32.mxu0 0.0
    %1210 = vmatmul.mubr.f32.gmra.mxu0 %v1047
    %v1211 = vpop.f32.mrf.mxu0
    %v1212 = vadd.f32 0.0, %v1211
    %v1213 = vpop.f32.mrf.mxu0
    %1214 = vmatprep.mubr.f32.mxu0 0.0
    %1215 = vmatmul.mubr.f32.gmra.mxu0 %v1050
    %v1216 = vpop.f32.mrf.mxu0
    %v1217 = vadd.f32 0.0, %v1216
    %v1218 = vpop.f32.mrf.mxu0
    %1219 = vmatprep.mubr.f32.mxu0 0.0
    %1220 = vmatmul.mubr.f32.gmra.mxu0 %v1053
    %v1221 = vpop.f32.mrf.mxu0
    %v1222 = vadd.f32 0.0, %v1221
    %v1223 = vpop.f32.mrf.mxu0
    %1224 = vmatprep.mubr.f32.mxu0 0.0
    %1225 = vmatmul.mubr.f32.gmra.mxu0 %v1056
    %v1226 = vpop.f32.mrf.mxu0
    %v1227 = vadd.f32 0.0, %v1226
    %v1228 = vpop.f32.mrf.mxu0
    %1229 = vmatprep.mubr.f32.mxu0 0.0
    %1230 = vmatmul.mubr.f32.gmra.mxu0 %v1059
    %v1231 = vpop.f32.mrf.mxu0
    %v1232 = vadd.f32 0.0, %v1231
    %v1233 = vpop.f32.mrf.mxu0
    %1234 = vmatprep.mubr.f32.mxu0 0.0
    %1235 = vmatmul.mubr.f32.gmra.mxu0 %v1062
    %v1236 = vpop.f32.mrf.mxu0
    %v1237 = vadd.f32 0.0, %v1236
    %v1238 = vpop.f32.mrf.mxu0
    %1239 = vmatprep.mubr.f32.mxu0 0.0
    %1240 = vmatmul.mubr.f32.gmra.mxu0 %v1065
    %v1241 = vpop.f32.mrf.mxu0
    %v1242 = vadd.f32 0.0, %v1241
    %v1243 = vpop.f32.mrf.mxu0
    %1244 = vmatprep.mubr.f32.mxu0 0.0
    %1245 = vmatmul.mubr.f32.gmra.mxu0 %v1068
    %v1246 = vpop.f32.mrf.mxu0
    %v1247 = vadd.f32 0.0, %v1246
    %v1248 = vpop.f32.mrf.mxu0
    %1249 = vmatprep.mubr.f32.mxu0 0.0
    %1250 = vmatmul.mubr.f32.gmra.mxu0 %v1071
    %v1251 = vpop.f32.mrf.mxu0
    %v1252 = vadd.f32 0.0, %v1251
    %v1253 = vpop.f32.mrf.mxu0
    %1254 = vmatprep.mubr.f32.mxu0 0.0
    %1255 = vmatmul.mubr.f32.gmra.mxu0 %v1074
    %v1256 = vpop.f32.mrf.mxu0
    %v1257 = vadd.f32 0.0, %v1256
    %v1258 = vpop.f32.mrf.mxu0
    %1259 = vmatprep.mubr.f32.mxu0 0.0
    %1260 = vmatmul.mubr.f32.gmra.mxu0 %v1077
    %v1261 = vpop.f32.mrf.mxu0
    %v1262 = vadd.f32 0.0, %v1261
    %v1263 = vpop.f32.mrf.mxu0
    %1264 = vmatprep.mubr.f32.mxu0 0.0
    %1265 = vmatmul.mubr.f32.gmra.mxu0 %v1080
    %v1266 = vpop.f32.mrf.mxu0
    %v1267 = vadd.f32 0.0, %v1266
    %v1268 = vpop.f32.mrf.mxu0
    %1269 = vmatprep.mubr.f32.mxu0 0.0
    %1270 = vmatmul.mubr.f32.gmra.mxu0 %v1083
    %v1271 = vpop.f32.mrf.mxu0
    %v1272 = vadd.f32 0.0, %v1271
    %v1273 = vpop.f32.mrf.mxu0
    %1274 = vmatprep.mubr.f32.mxu0 0.0
    %1275 = vmatmul.mubr.f32.gmra.mxu0 %v1086
    %v1276 = vpop.f32.mrf.mxu0
    %v1277 = vadd.f32 0.0, %v1276
    %v1278 = vpop.f32.mrf.mxu0
    %1279 = vmatprep.mubr.f32.mxu0 0.0
    %1280 = vmatmul.mubr.f32.gmra.mxu0 %v1089
    %v1281 = vpop.f32.mrf.mxu0
    %v1282 = vadd.f32 0.0, %v1281
    %v1283 = vpop.f32.mrf.mxu0
    %1284 = vmatprep.mubr.f32.mxu0 0.0
    %1285 = vmatmul.mubr.f32.gmra.mxu0 %v1092
    %v1286 = vpop.f32.mrf.mxu0
    %v1287 = vadd.f32 0.0, %v1286
    %v1288 = vpop.f32.mrf.mxu0
    %1289 = vmatprep.mubr.f32.mxu0 0.0
    %1290 = vmatmul.mubr.f32.gmra.mxu0 %v1095
    %v1291 = vpop.f32.mrf.mxu0
    %v1292 = vadd.f32 0.0, %v1291
    %v1293 = vpop.f32.mrf.mxu0
    %1294 = vmatprep.mubr.f32.mxu0 0.0
    %1295 = vmatmul.mubr.f32.gmra.mxu0 %v1098
    %v1296 = vpop.f32.mrf.mxu0
    %v1297 = vadd.f32 0.0, %v1296
    %v1298 = vpop.f32.mrf.mxu0
    %1299 = vmatprep.mubr.f32.mxu0 0.0
    %1300 = vmatmul.mubr.f32.gmra.mxu0 %v1101
    %v1301 = vpop.f32.mrf.mxu0
    %v1302 = vadd.f32 0.0, %v1301
    %v1303 = vpop.f32.mrf.mxu0
    %1304 = vmatprep.mubr.f32.mxu0 0.0
    %1305 = vmatmul.mubr.f32.gmra.mxu0 %v1104
    %v1306 = vpop.f32.mrf.mxu0
    %v1307 = vadd.f32 0.0, %v1306
    %v1308 = vpop.f32.mrf.mxu0
    %1309 = vmatprep.mubr.f32.mxu0 0.0
    %1310 = vmatmul.mubr.f32.gmra.mxu0 %v1107
    %v1311 = vpop.f32.mrf.mxu0
    %v1312 = vadd.f32 0.0, %v1311
    %v1313 = vpop.f32.mrf.mxu0
    %1314 = vmatprep.mubr.f32.mxu0 0.0
    %1315 = vmatmul.mubr.f32.gmra.mxu0 %v1110
    %v1316 = vpop.f32.mrf.mxu0
    %v1317 = vadd.f32 0.0, %v1316
    %v1318 = vpop.f32.mrf.mxu0
    %1319 = vmatprep.mubr.f32.mxu0 0.0
    %1320 = vmatmul.mubr.f32.gmra.mxu0 %v1113
    %v1321 = vpop.f32.mrf.mxu0
    %v1322 = vadd.f32 0.0, %v1321
    %v1323 = vpop.f32.mrf.mxu0
    %1324 = vmatprep.mubr.f32.mxu0 0.0
    %1325 = vmatmul.mubr.f32.gmra.mxu0 %v1116
    %v1326 = vpop.f32.mrf.mxu0
    %v1327 = vadd.f32 0.0, %v1326
    %v1328 = vpop.f32.mrf.mxu0
    %1329 = vmatprep.mubr.f32.mxu0 0.0
    %1330 = vmatmul.mubr.f32.gmra.mxu0 %v1119
    %v1331 = vpop.f32.mrf.mxu0
    %v1332 = vadd.f32 0.0, %v1331
    %v1333 = vpop.f32.mrf.mxu0
    %1334 = vmatprep.mubr.f32.mxu0 0.0
    %1335 = vmatmul.mubr.f32.gmra.mxu0 %v1122
    %v1336 = vpop.f32.mrf.mxu0
    %v1337 = vadd.f32 0.0, %v1336
    %v1338 = vpop.f32.mrf.mxu0
    %1339 = vmatprep.mubr.f32.mxu0 0.0
    %1340 = vmatmul.mubr.f32.gmra.mxu0 %v1125
    %v1341 = vpop.f32.mrf.mxu0
    %v1342 = vadd.f32 0.0, %v1341
    %v1343 = vpop.f32.mrf.mxu0
    %1344 = vmatprep.mubr.f32.mxu0 0.0
    %1345 = vmatmul.mubr.f32.gmra.mxu0 %v1128
    %v1346 = vpop.f32.mrf.mxu0
    %v1347 = vadd.f32 0.0, %v1346
    %v1348 = vpop.f32.mrf.mxu0
    %1349 = vmatprep.mubr.f32.mxu0 0.0
    %1350 = vmatmul.mubr.f32.gmra.mxu0 %v1131
    %v1351 = vpop.f32.mrf.mxu0
    %v1352 = vadd.f32 0.0, %v1351
    %v1353 = vpop.f32.mrf.mxu0
    %1354 = vmatprep.mubr.f32.mxu0 0.0
    %1355 = vmatmul.mubr.f32.gmra.mxu0 %v1134
    %v1356 = vpop.f32.mrf.mxu0
    %v1357 = vadd.f32 0.0, %v1356
    %v1358 = vpop.f32.mrf.mxu0
    %1359 = vmatprep.mubr.f32.mxu0 0.0
    %1360 = vmatmul.mubr.f32.gmra.mxu0 %v1137
    %v1361 = vpop.f32.mrf.mxu0
    %v1362 = vadd.f32 0.0, %v1361
    %v1363 = vpop.f32.mrf.mxu0
    %1364 = vmatprep.mubr.f32.mxu0 0.0
    %1365 = vmatmul.mubr.f32.gmra.mxu0 %v1140
    %v1366 = vpop.f32.mrf.mxu0
    %v1367 = vadd.f32 0.0, %v1366
    %v1368 = vpop.f32.mrf.mxu0
    %1369 = vdwg.mxu0
    %v1370 = vadd.f32 %v854, %v1212
    %v1371 = vadd.f32 %v859, %v1217
    %v1372 = vadd.f32 %v864, %v1222
    %v1373 = vadd.f32 %v869, %v1227
    %v1374 = vadd.f32 %v874, %v1232
    %v1375 = vadd.f32 %v879, %v1237
    %v1376 = vadd.f32 %v884, %v1242
    %v1377 = vadd.f32 %v889, %v1247
    %v1378 = vadd.f32 %v894, %v1252
    %v1379 = vadd.f32 %v899, %v1257
    %v1380 = vadd.f32 %v904, %v1262
    %v1381 = vadd.f32 %v909, %v1267
    %v1382 = vadd.f32 %v914, %v1272
    %v1383 = vadd.f32 %v919, %v1277
    %v1384 = vadd.f32 %v924, %v1282
    %v1385 = vadd.f32 %v929, %v1287
    %v1386 = vadd.f32 %v934, %v1292
    %v1387 = vadd.f32 %v939, %v1297
    %v1388 = vadd.f32 %v944, %v1302
    %v1389 = vadd.f32 %v949, %v1307
    %v1390 = vadd.f32 %v954, %v1312
    %v1391 = vadd.f32 %v959, %v1317
    %v1392 = vadd.f32 %v964, %v1322
    %v1393 = vadd.f32 %v969, %v1327
    %v1394 = vadd.f32 %v974, %v1332
    %v1395 = vadd.f32 %v979, %v1337
    %v1396 = vadd.f32 %v984, %v1342
    %v1397 = vadd.f32 %v989, %v1347
    %v1398 = vadd.f32 %v994, %v1352
    %v1399 = vadd.f32 %v999, %v1357
    %v1400 = vadd.f32 %v1004, %v1362
    %v1401 = vadd.f32 %v1009, %v1367
    %v1402 = vld [vmem:[%s197] sm:$0xff]
    %v1403 = vld [vmem:[%s197 + $0x8] sm:$0xff]
    %v1404 = vld [vmem:[%s197 + $0x18] sm:$0xff]
    %v1405 = vld [vmem:[%s197 + $0x20] sm:$0xff]
    %v1406 = vld [vmem:[%s197 + $0x30] sm:$0xff]
    %v1407 = vld [vmem:[%s197 + $0x38] sm:$0xff]
    %v1408 = vld [vmem:[%s197 + $0x48] sm:$0xff]
    %v1409 = vld [vmem:[%s197 + $0x50] sm:$0xff]
    %v1410 = vld [vmem:[%s197 + $0x60] sm:$0xff]
    %v1411 = vld [vmem:[%s197 + $0x68] sm:$0xff]
    %v1412 = vld [vmem:[%s197 + $0x78] sm:$0xff]
    %v1413 = vld [vmem:[%s197 + $0x80] sm:$0xff]
    %v1414 = vld [vmem:[%s197 + $0x90] sm:$0xff]
    %v1415 = vld [vmem:[%s197 + $0x98] sm:$0xff]
    %v1416 = vld [vmem:[%s197 + $0xa8] sm:$0xff]
    %v1417 = vld [vmem:[%s197 + $0xb0] sm:$0xff]
    %v1418 = vld [vmem:[%s197 + $0xc0] sm:$0xff]
    %v1419 = vld [vmem:[%s197 + $0xc8] sm:$0xff]
    %v1420 = vld [vmem:[%s197 + $0xd8] sm:$0xff]
    %v1421 = vld [vmem:[%s197 + $0xe0] sm:$0xff]
    %v1422 = vld [vmem:[%s197 + $0xf0] sm:$0xff]
    %v1423 = vld [vmem:[%s197 + $0xf8] sm:$0xff]
    %v1424 = vld [vmem:[%s197 + $0x108] sm:$0xff]
    %v1425 = vld [vmem:[%s197 + $0x110] sm:$0xff]
    %v1426 = vld [vmem:[%s197 + $0x120] sm:$0xff]
    %v1427 = vld [vmem:[%s197 + $0x128] sm:$0xff]
    %v1428 = vld [vmem:[%s197 + $0x138] sm:$0xff]
    %v1429 = vld [vmem:[%s197 + $0x140] sm:$0xff]
    %v1430 = vld [vmem:[%s197 + $0x150] sm:$0xff]
    %v1431 = vld [vmem:[%s197 + $0x158] sm:$0xff]
    %v1432 = vld [vmem:[%s197 + $0x168] sm:$0xff]
    %v1433 = vld [vmem:[%s197 + $0x170] sm:$0xff]
    %s1434 = scalar_lea.vmem %s1, 12
    %v1435 = vld [vmem:[%s1434] sm:$0xf]
    %v1437 = vsel %vm33, %v1402, 0
    %v1440 = vsel %vm33, %v1403, 0
    %v1443 = vsel %vm33, %v1404, 0
    %v1446 = vsel %vm33, %v1405, 0
    %v1449 = vsel %vm33, %v1406, 0
    %v1452 = vsel %vm33, %v1407, 0
    %v1455 = vsel %vm33, %v1408, 0
    %v1458 = vsel %vm33, %v1409, 0
    %v1461 = vsel %vm33, %v1410, 0
    %v1464 = vsel %vm33, %v1411, 0
    %v1467 = vsel %vm33, %v1412, 0
    %v1470 = vsel %vm33, %v1413, 0
    %v1473 = vsel %vm33, %v1414, 0
    %v1476 = vsel %vm33, %v1415, 0
    %v1479 = vsel %vm33, %v1416, 0
    %v1482 = vsel %vm33, %v1417, 0
    %v1485 = vsel %vm33, %v1418, 0
    %v1488 = vsel %vm33, %v1419, 0
    %v1491 = vsel %vm33, %v1420, 0
    %v1494 = vsel %vm33, %v1421, 0
    %v1497 = vsel %vm33, %v1422, 0
    %v1500 = vsel %vm33, %v1423, 0
    %v1503 = vsel %vm33, %v1424, 0
    %v1506 = vsel %vm33, %v1425, 0
    %v1509 = vsel %vm33, %v1426, 0
    %v1512 = vsel %vm33, %v1427, 0
    %v1515 = vsel %vm33, %v1428, 0
    %v1518 = vsel %vm33, %v1429, 0
    %v1521 = vsel %vm33, %v1430, 0
    %v1524 = vsel %vm33, %v1431, 0
    %v1527 = vsel %vm33, %v1432, 0
    %v1530 = vsel %vm33, %v1433, 0
    %v1533 = vsel %vm459, %v1435, 0
    %1535 = vmatprep.subr.mxu0 0.0
    %1536 = vmatpush1.msra.mxu0 0.0
    %1537 = vmatprep.subr.mxu0 0.0
    %1538 = vmatpush1.msra.mxu0 0.0
    %1539 = vmatprep.subr.mxu0 0.0
    %1540 = vmatpush1.msra.mxu0 0.0
    %1541 = vmatprep.subr.mxu0 0.0
    %1542 = vmatpush1.msra.mxu0 0.0
    %1543 = vmatprep.subr.mxu0 0.0
    %1544 = vmatpush1.msra.mxu0 0.0
    %1545 = vmatprep.subr.mxu0 0.0
    %1546 = vmatpush1.msra.mxu0 0.0
    %1547 = vmatprep.subr.mxu0 0.0
    %1548 = vmatpush1.msra.mxu0 0.0
    %1549 = vmatprep.subr.mxu0 0.0
    %1550 = vmatpush1.msra.mxu0 0.0
    %1551 = vmatprep.subr.mxu0 0.0
    %1552 = vmatpush1.msra.mxu0 0.0
    %1553 = vmatprep.subr.mxu0 0.0
    %1554 = vmatpush1.msra.mxu0 0.0
    %1555 = vmatprep.subr.mxu0 0.0
    %1556 = vmatpush1.msra.mxu0 0.0
    %1557 = vmatprep.subr.mxu0 0.0
    %1558 = vmatpush1.msra.mxu0 0.0
    %1559 = vmatprep.subr.mxu0 0.0
    %1560 = vmatpush1.msra.mxu0 0.0
    %1561 = vmatprep.subr.mxu0 0.0
    %1562 = vmatpush1.msra.mxu0 0.0
    %1563 = vmatprep.subr.mxu0 0.0
    %1564 = vmatpush1.msra.mxu0 0.0
    %1565 = vmatprep.subr.mxu0 0.0
    %1566 = vmatpush1.msra.mxu0 %v1533
    %1567 = vmatprep.subr.mxu0 0.0
    %1568 = vmatpush2.msra.mxu0 0.0
    %1569 = vmatprep.subr.mxu0 0.0
    %1570 = vmatpush2.msra.mxu0 0.0
    %1571 = vmatprep.subr.mxu0 0.0
    %1572 = vmatpush2.msra.mxu0 0.0
    %1573 = vmatprep.subr.mxu0 0.0
    %1574 = vmatpush2.msra.mxu0 0.0
    %1575 = vmatprep.subr.mxu0 0.0
    %1576 = vmatpush2.msra.mxu0 0.0
    %1577 = vmatprep.subr.mxu0 0.0
    %1578 = vmatpush2.msra.mxu0 0.0
    %1579 = vmatprep.subr.mxu0 0.0
    %1580 = vmatpush2.msra.mxu0 0.0
    %1581 = vmatprep.subr.mxu0 0.0
    %1582 = vmatpush2.msra.mxu0 0.0
    %1583 = vmatprep.subr.mxu0 0.0
    %1584 = vmatpush2.msra.mxu0 0.0
    %1585 = vmatprep.subr.mxu0 0.0
    %1586 = vmatpush2.msra.mxu0 0.0
    %1587 = vmatprep.subr.mxu0 0.0
    %1588 = vmatpush2.msra.mxu0 0.0
    %1589 = vmatprep.subr.mxu0 0.0
    %1590 = vmatpush2.msra.mxu0 0.0
    %1591 = vmatprep.subr.mxu0 0.0
    %1592 = vmatpush2.msra.mxu0 0.0
    %1593 = vmatprep.subr.mxu0 0.0
    %1594 = vmatpush2.msra.mxu0 0.0
    %1595 = vmatprep.subr.mxu0 0.0
    %1596 = vmatpush2.msra.mxu0 0.0
    %1597 = vmatprep.subr.mxu0 0.0
    %1598 = vmatpush2.msra.mxu0 0.0
    %1599 = vmatprep.mubr.f32.mxu0 0.0
    %1600 = vmatmul.mubr.f32.gmra.mxu0 %v1437
    %v1601 = vpop.f32.mrf.mxu0
    %v1602 = vadd.f32 0.0, %v1601
    %v1603 = vpop.f32.mrf.mxu0
    %1604 = vmatprep.mubr.f32.mxu0 0.0
    %1605 = vmatmul.mubr.f32.gmra.mxu0 %v1440
    %v1606 = vpop.f32.mrf.mxu0
    %v1607 = vadd.f32 0.0, %v1606
    %v1608 = vpop.f32.mrf.mxu0
    %1609 = vmatprep.mubr.f32.mxu0 0.0
    %1610 = vmatmul.mubr.f32.gmra.mxu0 %v1443
    %v1611 = vpop.f32.mrf.mxu0
    %v1612 = vadd.f32 0.0, %v1611
    %v1613 = vpop.f32.mrf.mxu0
    %1614 = vmatprep.mubr.f32.mxu0 0.0
    %1615 = vmatmul.mubr.f32.gmra.mxu0 %v1446
    %v1616 = vpop.f32.mrf.mxu0
    %v1617 = vadd.f32 0.0, %v1616
    %v1618 = vpop.f32.mrf.mxu0
    %1619 = vmatprep.mubr.f32.mxu0 0.0
    %1620 = vmatmul.mubr.f32.gmra.mxu0 %v1449
    %v1621 = vpop.f32.mrf.mxu0
    %v1622 = vadd.f32 0.0, %v1621
    %v1623 = vpop.f32.mrf.mxu0
    %1624 = vmatprep.mubr.f32.mxu0 0.0
    %1625 = vmatmul.mubr.f32.gmra.mxu0 %v1452
    %v1626 = vpop.f32.mrf.mxu0
    %v1627 = vadd.f32 0.0, %v1626
    %v1628 = vpop.f32.mrf.mxu0
    %1629 = vmatprep.mubr.f32.mxu0 0.0
    %1630 = vmatmul.mubr.f32.gmra.mxu0 %v1455
    %v1631 = vpop.f32.mrf.mxu0
    %v1632 = vadd.f32 0.0, %v1631
    %v1633 = vpop.f32.mrf.mxu0
    %1634 = vmatprep.mubr.f32.mxu0 0.0
    %1635 = vmatmul.mubr.f32.gmra.mxu0 %v1458
    %v1636 = vpop.f32.mrf.mxu0
    %v1637 = vadd.f32 0.0, %v1636
    %v1638 = vpop.f32.mrf.mxu0
    %1639 = vmatprep.mubr.f32.mxu0 0.0
    %1640 = vmatmul.mubr.f32.gmra.mxu0 %v1461
    %v1641 = vpop.f32.mrf.mxu0
    %v1642 = vadd.f32 0.0, %v1641
    %v1643 = vpop.f32.mrf.mxu0
    %1644 = vmatprep.mubr.f32.mxu0 0.0
    %1645 = vmatmul.mubr.f32.gmra.mxu0 %v1464
    %v1646 = vpop.f32.mrf.mxu0
    %v1647 = vadd.f32 0.0, %v1646
    %v1648 = vpop.f32.mrf.mxu0
    %1649 = vmatprep.mubr.f32.mxu0 0.0
    %1650 = vmatmul.mubr.f32.gmra.mxu0 %v1467
    %v1651 = vpop.f32.mrf.mxu0
    %v1652 = vadd.f32 0.0, %v1651
    %v1653 = vpop.f32.mrf.mxu0
    %1654 = vmatprep.mubr.f32.mxu0 0.0
    %1655 = vmatmul.mubr.f32.gmra.mxu0 %v1470
    %v1656 = vpop.f32.mrf.mxu0
    %v1657 = vadd.f32 0.0, %v1656
    %v1658 = vpop.f32.mrf.mxu0
    %1659 = vmatprep.mubr.f32.mxu0 0.0
    %1660 = vmatmul.mubr.f32.gmra.mxu0 %v1473
    %v1661 = vpop.f32.mrf.mxu0
    %v1662 = vadd.f32 0.0, %v1661
    %v1663 = vpop.f32.mrf.mxu0
    %1664 = vmatprep.mubr.f32.mxu0 0.0
    %1665 = vmatmul.mubr.f32.gmra.mxu0 %v1476
    %v1666 = vpop.f32.mrf.mxu0
    %v1667 = vadd.f32 0.0, %v1666
    %v1668 = vpop.f32.mrf.mxu0
    %1669 = vmatprep.mubr.f32.mxu0 0.0
    %1670 = vmatmul.mubr.f32.gmra.mxu0 %v1479
    %v1671 = vpop.f32.mrf.mxu0
    %v1672 = vadd.f32 0.0, %v1671
    %v1673 = vpop.f32.mrf.mxu0
    %1674 = vmatprep.mubr.f32.mxu0 0.0
    %1675 = vmatmul.mubr.f32.gmra.mxu0 %v1482
    %v1676 = vpop.f32.mrf.mxu0
    %v1677 = vadd.f32 0.0, %v1676
    %v1678 = vpop.f32.mrf.mxu0
    %1679 = vmatprep.mubr.f32.mxu0 0.0
    %1680 = vmatmul.mubr.f32.gmra.mxu0 %v1485
    %v1681 = vpop.f32.mrf.mxu0
    %v1682 = vadd.f32 0.0, %v1681
    %v1683 = vpop.f32.mrf.mxu0
    %1684 = vmatprep.mubr.f32.mxu0 0.0
    %1685 = vmatmul.mubr.f32.gmra.mxu0 %v1488
    %v1686 = vpop.f32.mrf.mxu0
    %v1687 = vadd.f32 0.0, %v1686
    %v1688 = vpop.f32.mrf.mxu0
    %1689 = vmatprep.mubr.f32.mxu0 0.0
    %1690 = vmatmul.mubr.f32.gmra.mxu0 %v1491
    %v1691 = vpop.f32.mrf.mxu0
    %v1692 = vadd.f32 0.0, %v1691
    %v1693 = vpop.f32.mrf.mxu0
    %1694 = vmatprep.mubr.f32.mxu0 0.0
    %1695 = vmatmul.mubr.f32.gmra.mxu0 %v1494
    %v1696 = vpop.f32.mrf.mxu0
    %v1697 = vadd.f32 0.0, %v1696
    %v1698 = vpop.f32.mrf.mxu0
    %1699 = vmatprep.mubr.f32.mxu0 0.0
    %1700 = vmatmul.mubr.f32.gmra.mxu0 %v1497
    %v1701 = vpop.f32.mrf.mxu0
    %v1702 = vadd.f32 0.0, %v1701
    %v1703 = vpop.f32.mrf.mxu0
    %1704 = vmatprep.mubr.f32.mxu0 0.0
    %1705 = vmatmul.mubr.f32.gmra.mxu0 %v1500
    %v1706 = vpop.f32.mrf.mxu0
    %v1707 = vadd.f32 0.0, %v1706
    %v1708 = vpop.f32.mrf.mxu0
    %1709 = vmatprep.mubr.f32.mxu0 0.0
    %1710 = vmatmul.mubr.f32.gmra.mxu0 %v1503
    %v1711 = vpop.f32.mrf.mxu0
    %v1712 = vadd.f32 0.0, %v1711
    %v1713 = vpop.f32.mrf.mxu0
    %1714 = vmatprep.mubr.f32.mxu0 0.0
    %1715 = vmatmul.mubr.f32.gmra.mxu0 %v1506
    %v1716 = vpop.f32.mrf.mxu0
    %v1717 = vadd.f32 0.0, %v1716
    %v1718 = vpop.f32.mrf.mxu0
    %1719 = vmatprep.mubr.f32.mxu0 0.0
    %1720 = vmatmul.mubr.f32.gmra.mxu0 %v1509
    %v1721 = vpop.f32.mrf.mxu0
    %v1722 = vadd.f32 0.0, %v1721
    %v1723 = vpop.f32.mrf.mxu0
    %1724 = vmatprep.mubr.f32.mxu0 0.0
    %1725 = vmatmul.mubr.f32.gmra.mxu0 %v1512
    %v1726 = vpop.f32.mrf.mxu0
    %v1727 = vadd.f32 0.0, %v1726
    %v1728 = vpop.f32.mrf.mxu0
    %1729 = vmatprep.mubr.f32.mxu0 0.0
    %1730 = vmatmul.mubr.f32.gmra.mxu0 %v1515
    %v1731 = vpop.f32.mrf.mxu0
    %v1732 = vadd.f32 0.0, %v1731
    %v1733 = vpop.f32.mrf.mxu0
    %1734 = vmatprep.mubr.f32.mxu0 0.0
    %1735 = vmatmul.mubr.f32.gmra.mxu0 %v1518
    %v1736 = vpop.f32.mrf.mxu0
    %v1737 = vadd.f32 0.0, %v1736
    %v1738 = vpop.f32.mrf.mxu0
    %1739 = vmatprep.mubr.f32.mxu0 0.0
    %1740 = vmatmul.mubr.f32.gmra.mxu0 %v1521
    %v1741 = vpop.f32.mrf.mxu0
    %v1742 = vadd.f32 0.0, %v1741
    %v1743 = vpop.f32.mrf.mxu0
    %1744 = vmatprep.mubr.f32.mxu0 0.0
    %1745 = vmatmul.mubr.f32.gmra.mxu0 %v1524
    %v1746 = vpop.f32.mrf.mxu0
    %v1747 = vadd.f32 0.0, %v1746
    %v1748 = vpop.f32.mrf.mxu0
    %1749 = vmatprep.mubr.f32.mxu0 0.0
    %1750 = vmatmul.mubr.f32.gmra.mxu0 %v1527
    %v1751 = vpop.f32.mrf.mxu0
    %v1752 = vadd.f32 0.0, %v1751
    %v1753 = vpop.f32.mrf.mxu0
    %1754 = vmatprep.mubr.f32.mxu0 0.0
    %1755 = vmatmul.mubr.f32.gmra.mxu0 %v1530
    %v1756 = vpop.f32.mrf.mxu0
    %v1757 = vadd.f32 0.0, %v1756
    %v1758 = vpop.f32.mrf.mxu0
    %1759 = vdwg.mxu0
    %v1760 = vadd.f32 %v1370, %v1602
    %v1761 = vadd.f32 %v1371, %v1607
    %v1762 = vadd.f32 %v1372, %v1612
    %v1763 = vadd.f32 %v1373, %v1617
    %v1764 = vadd.f32 %v1374, %v1622
    %v1765 = vadd.f32 %v1375, %v1627
    %v1766 = vadd.f32 %v1376, %v1632
    %v1767 = vadd.f32 %v1377, %v1637
    %v1768 = vadd.f32 %v1378, %v1642
    %v1769 = vadd.f32 %v1379, %v1647
    %v1770 = vadd.f32 %v1380, %v1652
    %v1771 = vadd.f32 %v1381, %v1657
    %v1772 = vadd.f32 %v1382, %v1662
    %v1773 = vadd.f32 %v1383, %v1667
    %v1774 = vadd.f32 %v1384, %v1672
    %v1775 = vadd.f32 %v1385, %v1677
    %v1776 = vadd.f32 %v1386, %v1682
    %v1777 = vadd.f32 %v1387, %v1687
    %v1778 = vadd.f32 %v1388, %v1692
    %v1779 = vadd.f32 %v1389, %v1697
    %v1780 = vadd.f32 %v1390, %v1702
    %v1781 = vadd.f32 %v1391, %v1707
    %v1782 = vadd.f32 %v1392, %v1712
    %v1783 = vadd.f32 %v1393, %v1717
    %v1784 = vadd.f32 %v1394, %v1722
    %v1785 = vadd.f32 %v1395, %v1727
    %v1786 = vadd.f32 %v1396, %v1732
    %v1787 = vadd.f32 %v1397, %v1737
    %v1788 = vadd.f32 %v1398, %v1742
    %v1789 = vadd.f32 %v1399, %v1747
    %v1790 = vadd.f32 %v1400, %v1752
    %v1791 = vadd.f32 %v1401, %v1757
    %v1792 = vld [vmem:[%s197 + $0x1] sm:$0xff]
    %v1793 = vld [vmem:[%s197 + $0x9] sm:$0xff]
    %v1794 = vld [vmem:[%s197 + $0x19] sm:$0xff]
    %v1795 = vld [vmem:[%s197 + $0x21] sm:$0xff]
    %v1796 = vld [vmem:[%s197 + $0x31] sm:$0xff]
    %v1797 = vld [vmem:[%s197 + $0x39] sm:$0xff]
    %v1798 = vld [vmem:[%s197 + $0x49] sm:$0xff]
    %v1799 = vld [vmem:[%s197 + $0x51] sm:$0xff]
    %v1800 = vld [vmem:[%s197 + $0x61] sm:$0xff]
    %v1801 = vld [vmem:[%s197 + $0x69] sm:$0xff]
    %v1802 = vld [vmem:[%s197 + $0x79] sm:$0xff]
    %v1803 = vld [vmem:[%s197 + $0x81] sm:$0xff]
    %v1804 = vld [vmem:[%s197 + $0x91] sm:$0xff]
    %v1805 = vld [vmem:[%s197 + $0x99] sm:$0xff]
    %v1806 = vld [vmem:[%s197 + $0xa9] sm:$0xff]
    %v1807 = vld [vmem:[%s197 + $0xb1] sm:$0xff]
    %v1808 = vld [vmem:[%s197 + $0xc1] sm:$0xff]
    %v1809 = vld [vmem:[%s197 + $0xc9] sm:$0xff]
    %v1810 = vld [vmem:[%s197 + $0xd9] sm:$0xff]
    %v1811 = vld [vmem:[%s197 + $0xe1] sm:$0xff]
    %v1812 = vld [vmem:[%s197 + $0xf1] sm:$0xff]
    %v1813 = vld [vmem:[%s197 + $0xf9] sm:$0xff]
    %v1814 = vld [vmem:[%s197 + $0x109] sm:$0xff]
    %v1815 = vld [vmem:[%s197 + $0x111] sm:$0xff]
    %v1816 = vld [vmem:[%s197 + $0x121] sm:$0xff]
    %v1817 = vld [vmem:[%s197 + $0x129] sm:$0xff]
    %v1818 = vld [vmem:[%s197 + $0x139] sm:$0xff]
    %v1819 = vld [vmem:[%s197 + $0x141] sm:$0xff]
    %v1820 = vld [vmem:[%s197 + $0x151] sm:$0xff]
    %v1821 = vld [vmem:[%s197 + $0x159] sm:$0xff]
    %v1822 = vld [vmem:[%s197 + $0x169] sm:$0xff]
    %v1823 = vld [vmem:[%s197 + $0x171] sm:$0xff]
    %s1824 = scalar_lea.vmem %s1, 16
    %v1825 = vld [vmem:[%s1824] sm:$0xf]
    %v1827 = vsel %vm33, %v1792, 0
    %v1830 = vsel %vm33, %v1793, 0
    %v1833 = vsel %vm33, %v1794, 0
    %v1836 = vsel %vm33, %v1795, 0
    %v1839 = vsel %vm33, %v1796, 0
    %v1842 = vsel %vm33, %v1797, 0
    %v1845 = vsel %vm33, %v1798, 0
    %v1848 = vsel %vm33, %v1799, 0
    %v1851 = vsel %vm33, %v1800, 0
    %v1854 = vsel %vm33, %v1801, 0
    %v1857 = vsel %vm33, %v1802, 0
    %v1860 = vsel %vm33, %v1803, 0
    %v1863 = vsel %vm33, %v1804, 0
    %v1866 = vsel %vm33, %v1805, 0
    %v1869 = vsel %vm33, %v1806, 0
    %v1872 = vsel %vm33, %v1807, 0
    %v1875 = vsel %vm33, %v1808, 0
    %v1878 = vsel %vm33, %v1809, 0
    %v1881 = vsel %vm33, %v1810, 0
    %v1884 = vsel %vm33, %v1811, 0
    %v1887 = vsel %vm33, %v1812, 0
    %v1890 = vsel %vm33, %v1813, 0
    %v1893 = vsel %vm33, %v1814, 0
    %v1896 = vsel %vm33, %v1815, 0
    %v1899 = vsel %vm33, %v1816, 0
    %v1902 = vsel %vm33, %v1817, 0
    %v1905 = vsel %vm33, %v1818, 0
    %v1908 = vsel %vm33, %v1819, 0
    %v1911 = vsel %vm33, %v1820, 0
    %v1914 = vsel %vm33, %v1821, 0
    %v1917 = vsel %vm33, %v1822, 0
    %v1920 = vsel %vm33, %v1823, 0
    %v1923 = vsel %vm459, %v1825, 0
    %1925 = vmatprep.subr.mxu0 0.0
    %1926 = vmatpush1.msra.mxu0 0.0
    %1927 = vmatprep.subr.mxu0 0.0
    %1928 = vmatpush1.msra.mxu0 0.0
    %1929 = vmatprep.subr.mxu0 0.0
    %1930 = vmatpush1.msra.mxu0 0.0
    %1931 = vmatprep.subr.mxu0 0.0
    %1932 = vmatpush1.msra.mxu0 0.0
    %1933 = vmatprep.subr.mxu0 0.0
    %1934 = vmatpush1.msra.mxu0 0.0
    %1935 = vmatprep.subr.mxu0 0.0
    %1936 = vmatpush1.msra.mxu0 0.0
    %1937 = vmatprep.subr.mxu0 0.0
    %1938 = vmatpush1.msra.mxu0 0.0
    %1939 = vmatprep.subr.mxu0 0.0
    %1940 = vmatpush1.msra.mxu0 0.0
    %1941 = vmatprep.subr.mxu0 0.0
    %1942 = vmatpush1.msra.mxu0 0.0
    %1943 = vmatprep.subr.mxu0 0.0
    %1944 = vmatpush1.msra.mxu0 0.0
    %1945 = vmatprep.subr.mxu0 0.0
    %1946 = vmatpush1.msra.mxu0 0.0
    %1947 = vmatprep.subr.mxu0 0.0
    %1948 = vmatpush1.msra.mxu0 0.0
    %1949 = vmatprep.subr.mxu0 0.0
    %1950 = vmatpush1.msra.mxu0 0.0
    %1951 = vmatprep.subr.mxu0 0.0
    %1952 = vmatpush1.msra.mxu0 0.0
    %1953 = vmatprep.subr.mxu0 0.0
    %1954 = vmatpush1.msra.mxu0 0.0
    %1955 = vmatprep.subr.mxu0 0.0
    %1956 = vmatpush1.msra.mxu0 %v1923
    %1957 = vmatprep.subr.mxu0 0.0
    %1958 = vmatpush2.msra.mxu0 0.0
    %1959 = vmatprep.subr.mxu0 0.0
    %1960 = vmatpush2.msra.mxu0 0.0
    %1961 = vmatprep.subr.mxu0 0.0
    %1962 = vmatpush2.msra.mxu0 0.0
    %1963 = vmatprep.subr.mxu0 0.0
    %1964 = vmatpush2.msra.mxu0 0.0
    %1965 = vmatprep.subr.mxu0 0.0
    %1966 = vmatpush2.msra.mxu0 0.0
    %1967 = vmatprep.subr.mxu0 0.0
    %1968 = vmatpush2.msra.mxu0 0.0
    %1969 = vmatprep.subr.mxu0 0.0
    %1970 = vmatpush2.msra.mxu0 0.0
    %1971 = vmatprep.subr.mxu0 0.0
    %1972 = vmatpush2.msra.mxu0 0.0
    %1973 = vmatprep.subr.mxu0 0.0
    %1974 = vmatpush2.msra.mxu0 0.0
    %1975 = vmatprep.subr.mxu0 0.0
    %1976 = vmatpush2.msra.mxu0 0.0
    %1977 = vmatprep.subr.mxu0 0.0
    %1978 = vmatpush2.msra.mxu0 0.0
    %1979 = vmatprep.subr.mxu0 0.0
    %1980 = vmatpush2.msra.mxu0 0.0
    %1981 = vmatprep.subr.mxu0 0.0
    %1982 = vmatpush2.msra.mxu0 0.0
    %1983 = vmatprep.subr.mxu0 0.0
    %1984 = vmatpush2.msra.mxu0 0.0
    %1985 = vmatprep.subr.mxu0 0.0
    %1986 = vmatpush2.msra.mxu0 0.0
    %1987 = vmatprep.subr.mxu0 0.0
    %1988 = vmatpush2.msra.mxu0 0.0
    %1989 = vmatprep.mubr.f32.mxu0 0.0
    %1990 = vmatmul.mubr.f32.gmra.mxu0 %v1827
    %v1991 = vpop.f32.mrf.mxu0
    %v1992 = vadd.f32 0.0, %v1991
    %v1993 = vpop.f32.mrf.mxu0
    %1994 = vmatprep.mubr.f32.mxu0 0.0
    %1995 = vmatmul.mubr.f32.gmra.mxu0 %v1830
    %v1996 = vpop.f32.mrf.mxu0
    %v1997 = vadd.f32 0.0, %v1996
    %v1998 = vpop.f32.mrf.mxu0
    %1999 = vmatprep.mubr.f32.mxu0 0.0
    %2000 = vmatmul.mubr.f32.gmra.mxu0 %v1833
    %v2001 = vpop.f32.mrf.mxu0
    %v2002 = vadd.f32 0.0, %v2001
    %v2003 = vpop.f32.mrf.mxu0
    %2004 = vmatprep.mubr.f32.mxu0 0.0
    %2005 = vmatmul.mubr.f32.gmra.mxu0 %v1836
    %v2006 = vpop.f32.mrf.mxu0
    %v2007 = vadd.f32 0.0, %v2006
    %v2008 = vpop.f32.mrf.mxu0
    %2009 = vmatprep.mubr.f32.mxu0 0.0
    %2010 = vmatmul.mubr.f32.gmra.mxu0 %v1839
    %v2011 = vpop.f32.mrf.mxu0
    %v2012 = vadd.f32 0.0, %v2011
    %v2013 = vpop.f32.mrf.mxu0
    %2014 = vmatprep.mubr.f32.mxu0 0.0
    %2015 = vmatmul.mubr.f32.gmra.mxu0 %v1842
    %v2016 = vpop.f32.mrf.mxu0
    %v2017 = vadd.f32 0.0, %v2016
    %v2018 = vpop.f32.mrf.mxu0
    %2019 = vmatprep.mubr.f32.mxu0 0.0
    %2020 = vmatmul.mubr.f32.gmra.mxu0 %v1845
    %v2021 = vpop.f32.mrf.mxu0
    %v2022 = vadd.f32 0.0, %v2021
    %v2023 = vpop.f32.mrf.mxu0
    %2024 = vmatprep.mubr.f32.mxu0 0.0
    %2025 = vmatmul.mubr.f32.gmra.mxu0 %v1848
    %v2026 = vpop.f32.mrf.mxu0
    %v2027 = vadd.f32 0.0, %v2026
    %v2028 = vpop.f32.mrf.mxu0
    %2029 = vmatprep.mubr.f32.mxu0 0.0
    %2030 = vmatmul.mubr.f32.gmra.mxu0 %v1851
    %v2031 = vpop.f32.mrf.mxu0
    %v2032 = vadd.f32 0.0, %v2031
    %v2033 = vpop.f32.mrf.mxu0
    %2034 = vmatprep.mubr.f32.mxu0 0.0
    %2035 = vmatmul.mubr.f32.gmra.mxu0 %v1854
    %v2036 = vpop.f32.mrf.mxu0
    %v2037 = vadd.f32 0.0, %v2036
    %v2038 = vpop.f32.mrf.mxu0
    %2039 = vmatprep.mubr.f32.mxu0 0.0
    %2040 = vmatmul.mubr.f32.gmra.mxu0 %v1857
    %v2041 = vpop.f32.mrf.mxu0
    %v2042 = vadd.f32 0.0, %v2041
    %v2043 = vpop.f32.mrf.mxu0
    %2044 = vmatprep.mubr.f32.mxu0 0.0
    %2045 = vmatmul.mubr.f32.gmra.mxu0 %v1860
    %v2046 = vpop.f32.mrf.mxu0
    %v2047 = vadd.f32 0.0, %v2046
    %v2048 = vpop.f32.mrf.mxu0
    %2049 = vmatprep.mubr.f32.mxu0 0.0
    %2050 = vmatmul.mubr.f32.gmra.mxu0 %v1863
    %v2051 = vpop.f32.mrf.mxu0
    %v2052 = vadd.f32 0.0, %v2051
    %v2053 = vpop.f32.mrf.mxu0
    %2054 = vmatprep.mubr.f32.mxu0 0.0
    %2055 = vmatmul.mubr.f32.gmra.mxu0 %v1866
    %v2056 = vpop.f32.mrf.mxu0
    %v2057 = vadd.f32 0.0, %v2056
    %v2058 = vpop.f32.mrf.mxu0
    %2059 = vmatprep.mubr.f32.mxu0 0.0
    %2060 = vmatmul.mubr.f32.gmra.mxu0 %v1869
    %v2061 = vpop.f32.mrf.mxu0
    %v2062 = vadd.f32 0.0, %v2061
    %v2063 = vpop.f32.mrf.mxu0
    %2064 = vmatprep.mubr.f32.mxu0 0.0
    %2065 = vmatmul.mubr.f32.gmra.mxu0 %v1872
    %v2066 = vpop.f32.mrf.mxu0
    %v2067 = vadd.f32 0.0, %v2066
    %v2068 = vpop.f32.mrf.mxu0
    %2069 = vmatprep.mubr.f32.mxu0 0.0
    %2070 = vmatmul.mubr.f32.gmra.mxu0 %v1875
    %v2071 = vpop.f32.mrf.mxu0
    %v2072 = vadd.f32 0.0, %v2071
    %v2073 = vpop.f32.mrf.mxu0
    %2074 = vmatprep.mubr.f32.mxu0 0.0
    %2075 = vmatmul.mubr.f32.gmra.mxu0 %v1878
    %v2076 = vpop.f32.mrf.mxu0
    %v2077 = vadd.f32 0.0, %v2076
    %v2078 = vpop.f32.mrf.mxu0
    %2079 = vmatprep.mubr.f32.mxu0 0.0
    %2080 = vmatmul.mubr.f32.gmra.mxu0 %v1881
    %v2081 = vpop.f32.mrf.mxu0
    %v2082 = vadd.f32 0.0, %v2081
    %v2083 = vpop.f32.mrf.mxu0
    %2084 = vmatprep.mubr.f32.mxu0 0.0
    %2085 = vmatmul.mubr.f32.gmra.mxu0 %v1884
    %v2086 = vpop.f32.mrf.mxu0
    %v2087 = vadd.f32 0.0, %v2086
    %v2088 = vpop.f32.mrf.mxu0
    %2089 = vmatprep.mubr.f32.mxu0 0.0
    %2090 = vmatmul.mubr.f32.gmra.mxu0 %v1887
    %v2091 = vpop.f32.mrf.mxu0
    %v2092 = vadd.f32 0.0, %v2091
    %v2093 = vpop.f32.mrf.mxu0
    %2094 = vmatprep.mubr.f32.mxu0 0.0
    %2095 = vmatmul.mubr.f32.gmra.mxu0 %v1890
    %v2096 = vpop.f32.mrf.mxu0
    %v2097 = vadd.f32 0.0, %v2096
    %v2098 = vpop.f32.mrf.mxu0
    %2099 = vmatprep.mubr.f32.mxu0 0.0
    %2100 = vmatmul.mubr.f32.gmra.mxu0 %v1893
    %v2101 = vpop.f32.mrf.mxu0
    %v2102 = vadd.f32 0.0, %v2101
    %v2103 = vpop.f32.mrf.mxu0
    %2104 = vmatprep.mubr.f32.mxu0 0.0
    %2105 = vmatmul.mubr.f32.gmra.mxu0 %v1896
    %v2106 = vpop.f32.mrf.mxu0
    %v2107 = vadd.f32 0.0, %v2106
    %v2108 = vpop.f32.mrf.mxu0
    %2109 = vmatprep.mubr.f32.mxu0 0.0
    %2110 = vmatmul.mubr.f32.gmra.mxu0 %v1899
    %v2111 = vpop.f32.mrf.mxu0
    %v2112 = vadd.f32 0.0, %v2111
    %v2113 = vpop.f32.mrf.mxu0
    %2114 = vmatprep.mubr.f32.mxu0 0.0
    %2115 = vmatmul.mubr.f32.gmra.mxu0 %v1902
    %v2116 = vpop.f32.mrf.mxu0
    %v2117 = vadd.f32 0.0, %v2116
    %v2118 = vpop.f32.mrf.mxu0
    %2119 = vmatprep.mubr.f32.mxu0 0.0
    %2120 = vmatmul.mubr.f32.gmra.mxu0 %v1905
    %v2121 = vpop.f32.mrf.mxu0
    %v2122 = vadd.f32 0.0, %v2121
    %v2123 = vpop.f32.mrf.mxu0
    %2124 = vmatprep.mubr.f32.mxu0 0.0
    %2125 = vmatmul.mubr.f32.gmra.mxu0 %v1908
    %v2126 = vpop.f32.mrf.mxu0
    %v2127 = vadd.f32 0.0, %v2126
    %v2128 = vpop.f32.mrf.mxu0
    %2129 = vmatprep.mubr.f32.mxu0 0.0
    %2130 = vmatmul.mubr.f32.gmra.mxu0 %v1911
    %v2131 = vpop.f32.mrf.mxu0
    %v2132 = vadd.f32 0.0, %v2131
    %v2133 = vpop.f32.mrf.mxu0
    %2134 = vmatprep.mubr.f32.mxu0 0.0
    %2135 = vmatmul.mubr.f32.gmra.mxu0 %v1914
    %v2136 = vpop.f32.mrf.mxu0
    %v2137 = vadd.f32 0.0, %v2136
    %v2138 = vpop.f32.mrf.mxu0
    %2139 = vmatprep.mubr.f32.mxu0 0.0
    %2140 = vmatmul.mubr.f32.gmra.mxu0 %v1917
    %v2141 = vpop.f32.mrf.mxu0
    %v2142 = vadd.f32 0.0, %v2141
    %v2143 = vpop.f32.mrf.mxu0
    %2144 = vmatprep.mubr.f32.mxu0 0.0
    %2145 = vmatmul.mubr.f32.gmra.mxu0 %v1920
    %v2146 = vpop.f32.mrf.mxu0
    %v2147 = vadd.f32 0.0, %v2146
    %v2148 = vpop.f32.mrf.mxu0
    %2149 = vdwg.mxu0
    %v2150 = vadd.f32 %v1760, %v1992
    %v2151 = vadd.f32 %v1761, %v1997
    %v2152 = vadd.f32 %v1762, %v2002
    %v2153 = vadd.f32 %v1763, %v2007
    %v2154 = vadd.f32 %v1764, %v2012
    %v2155 = vadd.f32 %v1765, %v2017
    %v2156 = vadd.f32 %v1766, %v2022
    %v2157 = vadd.f32 %v1767, %v2027
    %v2158 = vadd.f32 %v1768, %v2032
    %v2159 = vadd.f32 %v1769, %v2037
    %v2160 = vadd.f32 %v1770, %v2042
    %v2161 = vadd.f32 %v1771, %v2047
    %v2162 = vadd.f32 %v1772, %v2052
    %v2163 = vadd.f32 %v1773, %v2057
    %v2164 = vadd.f32 %v1774, %v2062
    %v2165 = vadd.f32 %v1775, %v2067
    %v2166 = vadd.f32 %v1776, %v2072
    %v2167 = vadd.f32 %v1777, %v2077
    %v2168 = vadd.f32 %v1778, %v2082
    %v2169 = vadd.f32 %v1779, %v2087
    %v2170 = vadd.f32 %v1780, %v2092
    %v2171 = vadd.f32 %v1781, %v2097
    %v2172 = vadd.f32 %v1782, %v2102
    %v2173 = vadd.f32 %v1783, %v2107
    %v2174 = vadd.f32 %v1784, %v2112
    %v2175 = vadd.f32 %v1785, %v2117
    %v2176 = vadd.f32 %v1786, %v2122
    %v2177 = vadd.f32 %v1787, %v2127
    %v2178 = vadd.f32 %v1788, %v2132
    %v2179 = vadd.f32 %v1789, %v2137
    %v2180 = vadd.f32 %v1790, %v2142
    %v2181 = vadd.f32 %v1791, %v2147
    %v2182 = vld [vmem:[%s197 + $0x2] sm:$0xff]
    %v2183 = vld [vmem:[%s197 + $0xa] sm:$0xff]
    %v2184 = vld [vmem:[%s197 + $0x1a] sm:$0xff]
    %v2185 = vld [vmem:[%s197 + $0x22] sm:$0xff]
    %v2186 = vld [vmem:[%s197 + $0x32] sm:$0xff]
    %v2187 = vld [vmem:[%s197 + $0x3a] sm:$0xff]
    %v2188 = vld [vmem:[%s197 + $0x4a] sm:$0xff]
    %v2189 = vld [vmem:[%s197 + $0x52] sm:$0xff]
    %v2190 = vld [vmem:[%s197 + $0x62] sm:$0xff]
    %v2191 = vld [vmem:[%s197 + $0x6a] sm:$0xff]
    %v2192 = vld [vmem:[%s197 + $0x7a] sm:$0xff]
    %v2193 = vld [vmem:[%s197 + $0x82] sm:$0xff]
    %v2194 = vld [vmem:[%s197 + $0x92] sm:$0xff]
    %v2195 = vld [vmem:[%s197 + $0x9a] sm:$0xff]
    %v2196 = vld [vmem:[%s197 + $0xaa] sm:$0xff]
    %v2197 = vld [vmem:[%s197 + $0xb2] sm:$0xff]
    %v2198 = vld [vmem:[%s197 + $0xc2] sm:$0xff]
    %v2199 = vld [vmem:[%s197 + $0xca] sm:$0xff]
    %v2200 = vld [vmem:[%s197 + $0xda] sm:$0xff]
    %v2201 = vld [vmem:[%s197 + $0xe2] sm:$0xff]
    %v2202 = vld [vmem:[%s197 + $0xf2] sm:$0xff]
    %v2203 = vld [vmem:[%s197 + $0xfa] sm:$0xff]
    %v2204 = vld [vmem:[%s197 + $0x10a] sm:$0xff]
    %v2205 = vld [vmem:[%s197 + $0x112] sm:$0xff]
    %v2206 = vld [vmem:[%s197 + $0x122] sm:$0xff]
    %v2207 = vld [vmem:[%s197 + $0x12a] sm:$0xff]
    %v2208 = vld [vmem:[%s197 + $0x13a] sm:$0xff]
    %v2209 = vld [vmem:[%s197 + $0x142] sm:$0xff]
    %v2210 = vld [vmem:[%s197 + $0x152] sm:$0xff]
    %v2211 = vld [vmem:[%s197 + $0x15a] sm:$0xff]
    %v2212 = vld [vmem:[%s197 + $0x16a] sm:$0xff]
    %v2213 = vld [vmem:[%s197 + $0x172] sm:$0xff]
    %s2214 = scalar_lea.vmem %s1, 20
    %v2215 = vld [vmem:[%s2214] sm:$0xf]
    %v2217 = vsel %vm33, %v2182, 0
    %v2220 = vsel %vm33, %v2183, 0
    %v2223 = vsel %vm33, %v2184, 0
    %v2226 = vsel %vm33, %v2185, 0
    %v2229 = vsel %vm33, %v2186, 0
    %v2232 = vsel %vm33, %v2187, 0
    %v2235 = vsel %vm33, %v2188, 0
    %v2238 = vsel %vm33, %v2189, 0
    %v2241 = vsel %vm33, %v2190, 0
    %v2244 = vsel %vm33, %v2191, 0
    %v2247 = vsel %vm33, %v2192, 0
    %v2250 = vsel %vm33, %v2193, 0
    %v2253 = vsel %vm33, %v2194, 0
    %v2256 = vsel %vm33, %v2195, 0
    %v2259 = vsel %vm33, %v2196, 0
    %v2262 = vsel %vm33, %v2197, 0
    %v2265 = vsel %vm33, %v2198, 0
    %v2268 = vsel %vm33, %v2199, 0
    %v2271 = vsel %vm33, %v2200, 0
    %v2274 = vsel %vm33, %v2201, 0
    %v2277 = vsel %vm33, %v2202, 0
    %v2280 = vsel %vm33, %v2203, 0
    %v2283 = vsel %vm33, %v2204, 0
    %v2286 = vsel %vm33, %v2205, 0
    %v2289 = vsel %vm33, %v2206, 0
    %v2292 = vsel %vm33, %v2207, 0
    %v2295 = vsel %vm33, %v2208, 0
    %v2298 = vsel %vm33, %v2209, 0
    %v2301 = vsel %vm33, %v2210, 0
    %v2304 = vsel %vm33, %v2211, 0
    %v2307 = vsel %vm33, %v2212, 0
    %v2310 = vsel %vm33, %v2213, 0
    %v2313 = vsel %vm459, %v2215, 0
    %2315 = vmatprep.subr.mxu0 0.0
    %2316 = vmatpush1.msra.mxu0 0.0
    %2317 = vmatprep.subr.mxu0 0.0
    %2318 = vmatpush1.msra.mxu0 0.0
    %2319 = vmatprep.subr.mxu0 0.0
    %2320 = vmatpush1.msra.mxu0 0.0
    %2321 = vmatprep.subr.mxu0 0.0
    %2322 = vmatpush1.msra.mxu0 0.0
    %2323 = vmatprep.subr.mxu0 0.0
    %2324 = vmatpush1.msra.mxu0 0.0
    %2325 = vmatprep.subr.mxu0 0.0
    %2326 = vmatpush1.msra.mxu0 0.0
    %2327 = vmatprep.subr.mxu0 0.0
    %2328 = vmatpush1.msra.mxu0 0.0
    %2329 = vmatprep.subr.mxu0 0.0
    %2330 = vmatpush1.msra.mxu0 0.0
    %2331 = vmatprep.subr.mxu0 0.0
    %2332 = vmatpush1.msra.mxu0 0.0
    %2333 = vmatprep.subr.mxu0 0.0
    %2334 = vmatpush1.msra.mxu0 0.0
    %2335 = vmatprep.subr.mxu0 0.0
    %2336 = vmatpush1.msra.mxu0 0.0
    %2337 = vmatprep.subr.mxu0 0.0
    %2338 = vmatpush1.msra.mxu0 0.0
    %2339 = vmatprep.subr.mxu0 0.0
    %2340 = vmatpush1.msra.mxu0 0.0
    %2341 = vmatprep.subr.mxu0 0.0
    %2342 = vmatpush1.msra.mxu0 0.0
    %2343 = vmatprep.subr.mxu0 0.0
    %2344 = vmatpush1.msra.mxu0 0.0
    %2345 = vmatprep.subr.mxu0 0.0
    %2346 = vmatpush1.msra.mxu0 %v2313
    %2347 = vmatprep.subr.mxu0 0.0
    %2348 = vmatpush2.msra.mxu0 0.0
    %2349 = vmatprep.subr.mxu0 0.0
    %2350 = vmatpush2.msra.mxu0 0.0
    %2351 = vmatprep.subr.mxu0 0.0
    %2352 = vmatpush2.msra.mxu0 0.0
    %2353 = vmatprep.subr.mxu0 0.0
    %2354 = vmatpush2.msra.mxu0 0.0
    %2355 = vmatprep.subr.mxu0 0.0
    %2356 = vmatpush2.msra.mxu0 0.0
    %2357 = vmatprep.subr.mxu0 0.0
    %2358 = vmatpush2.msra.mxu0 0.0
    %2359 = vmatprep.subr.mxu0 0.0
    %2360 = vmatpush2.msra.mxu0 0.0
    %2361 = vmatprep.subr.mxu0 0.0
    %2362 = vmatpush2.msra.mxu0 0.0
    %2363 = vmatprep.subr.mxu0 0.0
    %2364 = vmatpush2.msra.mxu0 0.0
    %2365 = vmatprep.subr.mxu0 0.0
    %2366 = vmatpush2.msra.mxu0 0.0
    %2367 = vmatprep.subr.mxu0 0.0
    %2368 = vmatpush2.msra.mxu0 0.0
    %2369 = vmatprep.subr.mxu0 0.0
    %2370 = vmatpush2.msra.mxu0 0.0
    %2371 = vmatprep.subr.mxu0 0.0
    %2372 = vmatpush2.msra.mxu0 0.0
    %2373 = vmatprep.subr.mxu0 0.0
    %2374 = vmatpush2.msra.mxu0 0.0
    %2375 = vmatprep.subr.mxu0 0.0
    %2376 = vmatpush2.msra.mxu0 0.0
    %2377 = vmatprep.subr.mxu0 0.0
    %2378 = vmatpush2.msra.mxu0 0.0
    %2379 = vmatprep.mubr.f32.mxu0 0.0
    %2380 = vmatmul.mubr.f32.gmra.mxu0 %v2217
    %v2381 = vpop.f32.mrf.mxu0
    %v2382 = vadd.f32 0.0, %v2381
    %v2383 = vpop.f32.mrf.mxu0
    %2384 = vmatprep.mubr.f32.mxu0 0.0
    %2385 = vmatmul.mubr.f32.gmra.mxu0 %v2220
    %v2386 = vpop.f32.mrf.mxu0
    %v2387 = vadd.f32 0.0, %v2386
    %v2388 = vpop.f32.mrf.mxu0
    %2389 = vmatprep.mubr.f32.mxu0 0.0
    %2390 = vmatmul.mubr.f32.gmra.mxu0 %v2223
    %v2391 = vpop.f32.mrf.mxu0
    %v2392 = vadd.f32 0.0, %v2391
    %v2393 = vpop.f32.mrf.mxu0
    %2394 = vmatprep.mubr.f32.mxu0 0.0
    %2395 = vmatmul.mubr.f32.gmra.mxu0 %v2226
    %v2396 = vpop.f32.mrf.mxu0
    %v2397 = vadd.f32 0.0, %v2396
    %v2398 = vpop.f32.mrf.mxu0
    %2399 = vmatprep.mubr.f32.mxu0 0.0
    %2400 = vmatmul.mubr.f32.gmra.mxu0 %v2229
    %v2401 = vpop.f32.mrf.mxu0
    %v2402 = vadd.f32 0.0, %v2401
    %v2403 = vpop.f32.mrf.mxu0
    %2404 = vmatprep.mubr.f32.mxu0 0.0
    %2405 = vmatmul.mubr.f32.gmra.mxu0 %v2232
    %v2406 = vpop.f32.mrf.mxu0
    %v2407 = vadd.f32 0.0, %v2406
    %v2408 = vpop.f32.mrf.mxu0
    %2409 = vmatprep.mubr.f32.mxu0 0.0
    %2410 = vmatmul.mubr.f32.gmra.mxu0 %v2235
    %v2411 = vpop.f32.mrf.mxu0
    %v2412 = vadd.f32 0.0, %v2411
    %v2413 = vpop.f32.mrf.mxu0
    %2414 = vmatprep.mubr.f32.mxu0 0.0
    %2415 = vmatmul.mubr.f32.gmra.mxu0 %v2238
    %v2416 = vpop.f32.mrf.mxu0
    %v2417 = vadd.f32 0.0, %v2416
    %v2418 = vpop.f32.mrf.mxu0
    %2419 = vmatprep.mubr.f32.mxu0 0.0
    %2420 = vmatmul.mubr.f32.gmra.mxu0 %v2241
    %v2421 = vpop.f32.mrf.mxu0
    %v2422 = vadd.f32 0.0, %v2421
    %v2423 = vpop.f32.mrf.mxu0
    %2424 = vmatprep.mubr.f32.mxu0 0.0
    %2425 = vmatmul.mubr.f32.gmra.mxu0 %v2244
    %v2426 = vpop.f32.mrf.mxu0
    %v2427 = vadd.f32 0.0, %v2426
    %v2428 = vpop.f32.mrf.mxu0
    %2429 = vmatprep.mubr.f32.mxu0 0.0
    %2430 = vmatmul.mubr.f32.gmra.mxu0 %v2247
    %v2431 = vpop.f32.mrf.mxu0
    %v2432 = vadd.f32 0.0, %v2431
    %v2433 = vpop.f32.mrf.mxu0
    %2434 = vmatprep.mubr.f32.mxu0 0.0
    %2435 = vmatmul.mubr.f32.gmra.mxu0 %v2250
    %v2436 = vpop.f32.mrf.mxu0
    %v2437 = vadd.f32 0.0, %v2436
    %v2438 = vpop.f32.mrf.mxu0
    %2439 = vmatprep.mubr.f32.mxu0 0.0
    %2440 = vmatmul.mubr.f32.gmra.mxu0 %v2253
    %v2441 = vpop.f32.mrf.mxu0
    %v2442 = vadd.f32 0.0, %v2441
    %v2443 = vpop.f32.mrf.mxu0
    %2444 = vmatprep.mubr.f32.mxu0 0.0
    %2445 = vmatmul.mubr.f32.gmra.mxu0 %v2256
    %v2446 = vpop.f32.mrf.mxu0
    %v2447 = vadd.f32 0.0, %v2446
    %v2448 = vpop.f32.mrf.mxu0
    %2449 = vmatprep.mubr.f32.mxu0 0.0
    %2450 = vmatmul.mubr.f32.gmra.mxu0 %v2259
    %v2451 = vpop.f32.mrf.mxu0
    %v2452 = vadd.f32 0.0, %v2451
    %v2453 = vpop.f32.mrf.mxu0
    %2454 = vmatprep.mubr.f32.mxu0 0.0
    %2455 = vmatmul.mubr.f32.gmra.mxu0 %v2262
    %v2456 = vpop.f32.mrf.mxu0
    %v2457 = vadd.f32 0.0, %v2456
    %v2458 = vpop.f32.mrf.mxu0
    %2459 = vmatprep.mubr.f32.mxu0 0.0
    %2460 = vmatmul.mubr.f32.gmra.mxu0 %v2265
    %v2461 = vpop.f32.mrf.mxu0
    %v2462 = vadd.f32 0.0, %v2461
    %v2463 = vpop.f32.mrf.mxu0
    %2464 = vmatprep.mubr.f32.mxu0 0.0
    %2465 = vmatmul.mubr.f32.gmra.mxu0 %v2268
    %v2466 = vpop.f32.mrf.mxu0
    %v2467 = vadd.f32 0.0, %v2466
    %v2468 = vpop.f32.mrf.mxu0
    %2469 = vmatprep.mubr.f32.mxu0 0.0
    %2470 = vmatmul.mubr.f32.gmra.mxu0 %v2271
    %v2471 = vpop.f32.mrf.mxu0
    %v2472 = vadd.f32 0.0, %v2471
    %v2473 = vpop.f32.mrf.mxu0
    %2474 = vmatprep.mubr.f32.mxu0 0.0
    %2475 = vmatmul.mubr.f32.gmra.mxu0 %v2274
    %v2476 = vpop.f32.mrf.mxu0
    %v2477 = vadd.f32 0.0, %v2476
    %v2478 = vpop.f32.mrf.mxu0
    %2479 = vmatprep.mubr.f32.mxu0 0.0
    %2480 = vmatmul.mubr.f32.gmra.mxu0 %v2277
    %v2481 = vpop.f32.mrf.mxu0
    %v2482 = vadd.f32 0.0, %v2481
    %v2483 = vpop.f32.mrf.mxu0
    %2484 = vmatprep.mubr.f32.mxu0 0.0
    %2485 = vmatmul.mubr.f32.gmra.mxu0 %v2280
    %v2486 = vpop.f32.mrf.mxu0
    %v2487 = vadd.f32 0.0, %v2486
    %v2488 = vpop.f32.mrf.mxu0
    %2489 = vmatprep.mubr.f32.mxu0 0.0
    %2490 = vmatmul.mubr.f32.gmra.mxu0 %v2283
    %v2491 = vpop.f32.mrf.mxu0
    %v2492 = vadd.f32 0.0, %v2491
    %v2493 = vpop.f32.mrf.mxu0
    %2494 = vmatprep.mubr.f32.mxu0 0.0
    %2495 = vmatmul.mubr.f32.gmra.mxu0 %v2286
    %v2496 = vpop.f32.mrf.mxu0
    %v2497 = vadd.f32 0.0, %v2496
    %v2498 = vpop.f32.mrf.mxu0
    %2499 = vmatprep.mubr.f32.mxu0 0.0
    %2500 = vmatmul.mubr.f32.gmra.mxu0 %v2289
    %v2501 = vpop.f32.mrf.mxu0
    %v2502 = vadd.f32 0.0, %v2501
    %v2503 = vpop.f32.mrf.mxu0
    %2504 = vmatprep.mubr.f32.mxu0 0.0
    %2505 = vmatmul.mubr.f32.gmra.mxu0 %v2292
    %v2506 = vpop.f32.mrf.mxu0
    %v2507 = vadd.f32 0.0, %v2506
    %v2508 = vpop.f32.mrf.mxu0
    %2509 = vmatprep.mubr.f32.mxu0 0.0
    %2510 = vmatmul.mubr.f32.gmra.mxu0 %v2295
    %v2511 = vpop.f32.mrf.mxu0
    %v2512 = vadd.f32 0.0, %v2511
    %v2513 = vpop.f32.mrf.mxu0
    %2514 = vmatprep.mubr.f32.mxu0 0.0
    %2515 = vmatmul.mubr.f32.gmra.mxu0 %v2298
    %v2516 = vpop.f32.mrf.mxu0
    %v2517 = vadd.f32 0.0, %v2516
    %v2518 = vpop.f32.mrf.mxu0
    %2519 = vmatprep.mubr.f32.mxu0 0.0
    %2520 = vmatmul.mubr.f32.gmra.mxu0 %v2301
    %v2521 = vpop.f32.mrf.mxu0
    %v2522 = vadd.f32 0.0, %v2521
    %v2523 = vpop.f32.mrf.mxu0
    %2524 = vmatprep.mubr.f32.mxu0 0.0
    %2525 = vmatmul.mubr.f32.gmra.mxu0 %v2304
    %v2526 = vpop.f32.mrf.mxu0
    %v2527 = vadd.f32 0.0, %v2526
    %v2528 = vpop.f32.mrf.mxu0
    %2529 = vmatprep.mubr.f32.mxu0 0.0
    %2530 = vmatmul.mubr.f32.gmra.mxu0 %v2307
    %v2531 = vpop.f32.mrf.mxu0
    %v2532 = vadd.f32 0.0, %v2531
    %v2533 = vpop.f32.mrf.mxu0
    %2534 = vmatprep.mubr.f32.mxu0 0.0
    %2535 = vmatmul.mubr.f32.gmra.mxu0 %v2310
    %v2536 = vpop.f32.mrf.mxu0
    %v2537 = vadd.f32 0.0, %v2536
    %v2538 = vpop.f32.mrf.mxu0
    %2539 = vdwg.mxu0
    %v2540 = vadd.f32 %v2150, %v2382
    %v2541 = vadd.f32 %v2151, %v2387
    %v2542 = vadd.f32 %v2152, %v2392
    %v2543 = vadd.f32 %v2153, %v2397
    %v2544 = vadd.f32 %v2154, %v2402
    %v2545 = vadd.f32 %v2155, %v2407
    %v2546 = vadd.f32 %v2156, %v2412
    %v2547 = vadd.f32 %v2157, %v2417
    %v2548 = vadd.f32 %v2158, %v2422
    %v2549 = vadd.f32 %v2159, %v2427
    %v2550 = vadd.f32 %v2160, %v2432
    %v2551 = vadd.f32 %v2161, %v2437
    %v2552 = vadd.f32 %v2162, %v2442
    %v2553 = vadd.f32 %v2163, %v2447
    %v2554 = vadd.f32 %v2164, %v2452
    %v2555 = vadd.f32 %v2165, %v2457
    %v2556 = vadd.f32 %v2166, %v2462
    %v2557 = vadd.f32 %v2167, %v2467
    %v2558 = vadd.f32 %v2168, %v2472
    %v2559 = vadd.f32 %v2169, %v2477
    %v2560 = vadd.f32 %v2170, %v2482
    %v2561 = vadd.f32 %v2171, %v2487
    %v2562 = vadd.f32 %v2172, %v2492
    %v2563 = vadd.f32 %v2173, %v2497
    %v2564 = vadd.f32 %v2174, %v2502
    %v2565 = vadd.f32 %v2175, %v2507
    %v2566 = vadd.f32 %v2176, %v2512
    %v2567 = vadd.f32 %v2177, %v2517
    %v2568 = vadd.f32 %v2178, %v2522
    %v2569 = vadd.f32 %v2179, %v2527
    %v2570 = vadd.f32 %v2180, %v2532
    %v2571 = vadd.f32 %v2181, %v2537
    %s2572 = scalar_lea.vmem [#allocation2], 48
    %v2573 = vld [vmem:[%s2572] sm:$0xff]
    %v2574 = vld [vmem:[%s2572 + $0x8] sm:$0xff]
    %v2575 = vld [vmem:[%s2572 + $0x18] sm:$0xff]
    %v2576 = vld [vmem:[%s2572 + $0x20] sm:$0xff]
    %v2577 = vld [vmem:[%s2572 + $0x30] sm:$0xff]
    %v2578 = vld [vmem:[%s2572 + $0x38] sm:$0xff]
    %v2579 = vld [vmem:[%s2572 + $0x48] sm:$0xff]
    %v2580 = vld [vmem:[%s2572 + $0x50] sm:$0xff]
    %v2581 = vld [vmem:[%s2572 + $0x60] sm:$0xff]
    %v2582 = vld [vmem:[%s2572 + $0x68] sm:$0xff]
    %v2583 = vld [vmem:[%s2572 + $0x78] sm:$0xff]
    %v2584 = vld [vmem:[%s2572 + $0x80] sm:$0xff]
    %v2585 = vld [vmem:[%s2572 + $0x90] sm:$0xff]
    %v2586 = vld [vmem:[%s2572 + $0x98] sm:$0xff]
    %v2587 = vld [vmem:[%s2572 + $0xa8] sm:$0xff]
    %v2588 = vld [vmem:[%s2572 + $0xb0] sm:$0xff]
    %v2589 = vld [vmem:[%s2572 + $0xc0] sm:$0xff]
    %v2590 = vld [vmem:[%s2572 + $0xc8] sm:$0xff]
    %v2591 = vld [vmem:[%s2572 + $0xd8] sm:$0xff]
    %v2592 = vld [vmem:[%s2572 + $0xe0] sm:$0xff]
    %v2593 = vld [vmem:[%s2572 + $0xf0] sm:$0xff]
    %v2594 = vld [vmem:[%s2572 + $0xf8] sm:$0xff]
    %v2595 = vld [vmem:[%s2572 + $0x108] sm:$0xff]
    %v2596 = vld [vmem:[%s2572 + $0x110] sm:$0xff]
    %v2597 = vld [vmem:[%s2572 + $0x120] sm:$0xff]
    %v2598 = vld [vmem:[%s2572 + $0x128] sm:$0xff]
    %v2599 = vld [vmem:[%s2572 + $0x138] sm:$0xff]
    %v2600 = vld [vmem:[%s2572 + $0x140] sm:$0xff]
    %v2601 = vld [vmem:[%s2572 + $0x150] sm:$0xff]
    %v2602 = vld [vmem:[%s2572 + $0x158] sm:$0xff]
    %v2603 = vld [vmem:[%s2572 + $0x168] sm:$0xff]
    %v2604 = vld [vmem:[%s2572 + $0x170] sm:$0xff]
    %s2605 = scalar_lea.vmem %s1, 24
    %v2606 = vld [vmem:[%s2605] sm:$0xf]
    %v2608 = vsel %vm33, %v2573, 0
    %v2611 = vsel %vm33, %v2574, 0
    %v2614 = vsel %vm33, %v2575, 0
    %v2617 = vsel %vm33, %v2576, 0
    %v2620 = vsel %vm33, %v2577, 0
    %v2623 = vsel %vm33, %v2578, 0
    %v2626 = vsel %vm33, %v2579, 0
    %v2629 = vsel %vm33, %v2580, 0
    %v2632 = vsel %vm33, %v2581, 0
    %v2635 = vsel %vm33, %v2582, 0
    %v2638 = vsel %vm33, %v2583, 0
    %v2641 = vsel %vm33, %v2584, 0
    %v2644 = vsel %vm33, %v2585, 0
    %v2647 = vsel %vm33, %v2586, 0
    %v2650 = vsel %vm33, %v2587, 0
    %v2653 = vsel %vm33, %v2588, 0
    %v2656 = vsel %vm33, %v2589, 0
    %v2659 = vsel %vm33, %v2590, 0
    %v2662 = vsel %vm33, %v2591, 0
    %v2665 = vsel %vm33, %v2592, 0
    %v2668 = vsel %vm33, %v2593, 0
    %v2671 = vsel %vm33, %v2594, 0
    %v2674 = vsel %vm33, %v2595, 0
    %v2677 = vsel %vm33, %v2596, 0
    %v2680 = vsel %vm33, %v2597, 0
    %v2683 = vsel %vm33, %v2598, 0
    %v2686 = vsel %vm33, %v2599, 0
    %v2689 = vsel %vm33, %v2600, 0
    %v2692 = vsel %vm33, %v2601, 0
    %v2695 = vsel %vm33, %v2602, 0
    %v2698 = vsel %vm33, %v2603, 0
    %v2701 = vsel %vm33, %v2604, 0
    %v2704 = vsel %vm459, %v2606, 0
    %2706 = vmatprep.subr.mxu0 0.0
    %2707 = vmatpush1.msra.mxu0 0.0
    %2708 = vmatprep.subr.mxu0 0.0
    %2709 = vmatpush1.msra.mxu0 0.0
    %2710 = vmatprep.subr.mxu0 0.0
    %2711 = vmatpush1.msra.mxu0 0.0
    %2712 = vmatprep.subr.mxu0 0.0
    %2713 = vmatpush1.msra.mxu0 0.0
    %2714 = vmatprep.subr.mxu0 0.0
    %2715 = vmatpush1.msra.mxu0 0.0
    %2716 = vmatprep.subr.mxu0 0.0
    %2717 = vmatpush1.msra.mxu0 0.0
    %2718 = vmatprep.subr.mxu0 0.0
    %2719 = vmatpush1.msra.mxu0 0.0
    %2720 = vmatprep.subr.mxu0 0.0
    %2721 = vmatpush1.msra.mxu0 0.0
    %2722 = vmatprep.subr.mxu0 0.0
    %2723 = vmatpush1.msra.mxu0 0.0
    %2724 = vmatprep.subr.mxu0 0.0
    %2725 = vmatpush1.msra.mxu0 0.0
    %2726 = vmatprep.subr.mxu0 0.0
    %2727 = vmatpush1.msra.mxu0 0.0
    %2728 = vmatprep.subr.mxu0 0.0
    %2729 = vmatpush1.msra.mxu0 0.0
    %2730 = vmatprep.subr.mxu0 0.0
    %2731 = vmatpush1.msra.mxu0 0.0
    %2732 = vmatprep.subr.mxu0 0.0
    %2733 = vmatpush1.msra.mxu0 0.0
    %2734 = vmatprep.subr.mxu0 0.0
    %2735 = vmatpush1.msra.mxu0 0.0
    %2736 = vmatprep.subr.mxu0 0.0
    %2737 = vmatpush1.msra.mxu0 %v2704
    %2738 = vmatprep.subr.mxu0 0.0
    %2739 = vmatpush2.msra.mxu0 0.0
    %2740 = vmatprep.subr.mxu0 0.0
    %2741 = vmatpush2.msra.mxu0 0.0
    %2742 = vmatprep.subr.mxu0 0.0
    %2743 = vmatpush2.msra.mxu0 0.0
    %2744 = vmatprep.subr.mxu0 0.0
    %2745 = vmatpush2.msra.mxu0 0.0
    %2746 = vmatprep.subr.mxu0 0.0
    %2747 = vmatpush2.msra.mxu0 0.0
    %2748 = vmatprep.subr.mxu0 0.0
    %2749 = vmatpush2.msra.mxu0 0.0
    %2750 = vmatprep.subr.mxu0 0.0
    %2751 = vmatpush2.msra.mxu0 0.0
    %2752 = vmatprep.subr.mxu0 0.0
    %2753 = vmatpush2.msra.mxu0 0.0
    %2754 = vmatprep.subr.mxu0 0.0
    %2755 = vmatpush2.msra.mxu0 0.0
    %2756 = vmatprep.subr.mxu0 0.0
    %2757 = vmatpush2.msra.mxu0 0.0
    %2758 = vmatprep.subr.mxu0 0.0
    %2759 = vmatpush2.msra.mxu0 0.0
    %2760 = vmatprep.subr.mxu0 0.0
    %2761 = vmatpush2.msra.mxu0 0.0
    %2762 = vmatprep.subr.mxu0 0.0
    %2763 = vmatpush2.msra.mxu0 0.0
    %2764 = vmatprep.subr.mxu0 0.0
    %2765 = vmatpush2.msra.mxu0 0.0
    %2766 = vmatprep.subr.mxu0 0.0
    %2767 = vmatpush2.msra.mxu0 0.0
    %2768 = vmatprep.subr.mxu0 0.0
    %2769 = vmatpush2.msra.mxu0 0.0
    %2770 = vmatprep.mubr.f32.mxu0 0.0
    %2771 = vmatmul.mubr.f32.gmra.mxu0 %v2608
    %v2772 = vpop.f32.mrf.mxu0
    %v2773 = vadd.f32 0.0, %v2772
    %v2774 = vpop.f32.mrf.mxu0
    %2775 = vmatprep.mubr.f32.mxu0 0.0
    %2776 = vmatmul.mubr.f32.gmra.mxu0 %v2611
    %v2777 = vpop.f32.mrf.mxu0
    %v2778 = vadd.f32 0.0, %v2777
    %v2779 = vpop.f32.mrf.mxu0
    %2780 = vmatprep.mubr.f32.mxu0 0.0
    %2781 = vmatmul.mubr.f32.gmra.mxu0 %v2614
    %v2782 = vpop.f32.mrf.mxu0
    %v2783 = vadd.f32 0.0, %v2782
    %v2784 = vpop.f32.mrf.mxu0
    %2785 = vmatprep.mubr.f32.mxu0 0.0
    %2786 = vmatmul.mubr.f32.gmra.mxu0 %v2617
    %v2787 = vpop.f32.mrf.mxu0
    %v2788 = vadd.f32 0.0, %v2787
    %v2789 = vpop.f32.mrf.mxu0
    %2790 = vmatprep.mubr.f32.mxu0 0.0
    %2791 = vmatmul.mubr.f32.gmra.mxu0 %v2620
    %v2792 = vpop.f32.mrf.mxu0
    %v2793 = vadd.f32 0.0, %v2792
    %v2794 = vpop.f32.mrf.mxu0
    %2795 = vmatprep.mubr.f32.mxu0 0.0
    %2796 = vmatmul.mubr.f32.gmra.mxu0 %v2623
    %v2797 = vpop.f32.mrf.mxu0
    %v2798 = vadd.f32 0.0, %v2797
    %v2799 = vpop.f32.mrf.mxu0
    %2800 = vmatprep.mubr.f32.mxu0 0.0
    %2801 = vmatmul.mubr.f32.gmra.mxu0 %v2626
    %v2802 = vpop.f32.mrf.mxu0
    %v2803 = vadd.f32 0.0, %v2802
    %v2804 = vpop.f32.mrf.mxu0
    %2805 = vmatprep.mubr.f32.mxu0 0.0
    %2806 = vmatmul.mubr.f32.gmra.mxu0 %v2629
    %v2807 = vpop.f32.mrf.mxu0
    %v2808 = vadd.f32 0.0, %v2807
    %v2809 = vpop.f32.mrf.mxu0
    %2810 = vmatprep.mubr.f32.mxu0 0.0
    %2811 = vmatmul.mubr.f32.gmra.mxu0 %v2632
    %v2812 = vpop.f32.mrf.mxu0
    %v2813 = vadd.f32 0.0, %v2812
    %v2814 = vpop.f32.mrf.mxu0
    %2815 = vmatprep.mubr.f32.mxu0 0.0
    %2816 = vmatmul.mubr.f32.gmra.mxu0 %v2635
    %v2817 = vpop.f32.mrf.mxu0
    %v2818 = vadd.f32 0.0, %v2817
    %v2819 = vpop.f32.mrf.mxu0
    %2820 = vmatprep.mubr.f32.mxu0 0.0
    %2821 = vmatmul.mubr.f32.gmra.mxu0 %v2638
    %v2822 = vpop.f32.mrf.mxu0
    %v2823 = vadd.f32 0.0, %v2822
    %v2824 = vpop.f32.mrf.mxu0
    %2825 = vmatprep.mubr.f32.mxu0 0.0
    %2826 = vmatmul.mubr.f32.gmra.mxu0 %v2641
    %v2827 = vpop.f32.mrf.mxu0
    %v2828 = vadd.f32 0.0, %v2827
    %v2829 = vpop.f32.mrf.mxu0
    %2830 = vmatprep.mubr.f32.mxu0 0.0
    %2831 = vmatmul.mubr.f32.gmra.mxu0 %v2644
    %v2832 = vpop.f32.mrf.mxu0
    %v2833 = vadd.f32 0.0, %v2832
    %v2834 = vpop.f32.mrf.mxu0
    %2835 = vmatprep.mubr.f32.mxu0 0.0
    %2836 = vmatmul.mubr.f32.gmra.mxu0 %v2647
    %v2837 = vpop.f32.mrf.mxu0
    %v2838 = vadd.f32 0.0, %v2837
    %v2839 = vpop.f32.mrf.mxu0
    %2840 = vmatprep.mubr.f32.mxu0 0.0
    %2841 = vmatmul.mubr.f32.gmra.mxu0 %v2650
    %v2842 = vpop.f32.mrf.mxu0
    %v2843 = vadd.f32 0.0, %v2842
    %v2844 = vpop.f32.mrf.mxu0
    %2845 = vmatprep.mubr.f32.mxu0 0.0
    %2846 = vmatmul.mubr.f32.gmra.mxu0 %v2653
    %v2847 = vpop.f32.mrf.mxu0
    %v2848 = vadd.f32 0.0, %v2847
    %v2849 = vpop.f32.mrf.mxu0
    %2850 = vmatprep.mubr.f32.mxu0 0.0
    %2851 = vmatmul.mubr.f32.gmra.mxu0 %v2656
    %v2852 = vpop.f32.mrf.mxu0
    %v2853 = vadd.f32 0.0, %v2852
    %v2854 = vpop.f32.mrf.mxu0
    %2855 = vmatprep.mubr.f32.mxu0 0.0
    %2856 = vmatmul.mubr.f32.gmra.mxu0 %v2659
    %v2857 = vpop.f32.mrf.mxu0
    %v2858 = vadd.f32 0.0, %v2857
    %v2859 = vpop.f32.mrf.mxu0
    %2860 = vmatprep.mubr.f32.mxu0 0.0
    %2861 = vmatmul.mubr.f32.gmra.mxu0 %v2662
    %v2862 = vpop.f32.mrf.mxu0
    %v2863 = vadd.f32 0.0, %v2862
    %v2864 = vpop.f32.mrf.mxu0
    %2865 = vmatprep.mubr.f32.mxu0 0.0
    %2866 = vmatmul.mubr.f32.gmra.mxu0 %v2665
    %v2867 = vpop.f32.mrf.mxu0
    %v2868 = vadd.f32 0.0, %v2867
    %v2869 = vpop.f32.mrf.mxu0
    %2870 = vmatprep.mubr.f32.mxu0 0.0
    %2871 = vmatmul.mubr.f32.gmra.mxu0 %v2668
    %v2872 = vpop.f32.mrf.mxu0
    %v2873 = vadd.f32 0.0, %v2872
    %v2874 = vpop.f32.mrf.mxu0
    %2875 = vmatprep.mubr.f32.mxu0 0.0
    %2876 = vmatmul.mubr.f32.gmra.mxu0 %v2671
    %v2877 = vpop.f32.mrf.mxu0
    %v2878 = vadd.f32 0.0, %v2877
    %v2879 = vpop.f32.mrf.mxu0
    %2880 = vmatprep.mubr.f32.mxu0 0.0
    %2881 = vmatmul.mubr.f32.gmra.mxu0 %v2674
    %v2882 = vpop.f32.mrf.mxu0
    %v2883 = vadd.f32 0.0, %v2882
    %v2884 = vpop.f32.mrf.mxu0
    %2885 = vmatprep.mubr.f32.mxu0 0.0
    %2886 = vmatmul.mubr.f32.gmra.mxu0 %v2677
    %v2887 = vpop.f32.mrf.mxu0
    %v2888 = vadd.f32 0.0, %v2887
    %v2889 = vpop.f32.mrf.mxu0
    %2890 = vmatprep.mubr.f32.mxu0 0.0
    %2891 = vmatmul.mubr.f32.gmra.mxu0 %v2680
    %v2892 = vpop.f32.mrf.mxu0
    %v2893 = vadd.f32 0.0, %v2892
    %v2894 = vpop.f32.mrf.mxu0
    %2895 = vmatprep.mubr.f32.mxu0 0.0
    %2896 = vmatmul.mubr.f32.gmra.mxu0 %v2683
    %v2897 = vpop.f32.mrf.mxu0
    %v2898 = vadd.f32 0.0, %v2897
    %v2899 = vpop.f32.mrf.mxu0
    %2900 = vmatprep.mubr.f32.mxu0 0.0
    %2901 = vmatmul.mubr.f32.gmra.mxu0 %v2686
    %v2902 = vpop.f32.mrf.mxu0
    %v2903 = vadd.f32 0.0, %v2902
    %v2904 = vpop.f32.mrf.mxu0
    %2905 = vmatprep.mubr.f32.mxu0 0.0
    %2906 = vmatmul.mubr.f32.gmra.mxu0 %v2689
    %v2907 = vpop.f32.mrf.mxu0
    %v2908 = vadd.f32 0.0, %v2907
    %v2909 = vpop.f32.mrf.mxu0
    %2910 = vmatprep.mubr.f32.mxu0 0.0
    %2911 = vmatmul.mubr.f32.gmra.mxu0 %v2692
    %v2912 = vpop.f32.mrf.mxu0
    %v2913 = vadd.f32 0.0, %v2912
    %v2914 = vpop.f32.mrf.mxu0
    %2915 = vmatprep.mubr.f32.mxu0 0.0
    %2916 = vmatmul.mubr.f32.gmra.mxu0 %v2695
    %v2917 = vpop.f32.mrf.mxu0
    %v2918 = vadd.f32 0.0, %v2917
    %v2919 = vpop.f32.mrf.mxu0
    %2920 = vmatprep.mubr.f32.mxu0 0.0
    %2921 = vmatmul.mubr.f32.gmra.mxu0 %v2698
    %v2922 = vpop.f32.mrf.mxu0
    %v2923 = vadd.f32 0.0, %v2922
    %v2924 = vpop.f32.mrf.mxu0
    %2925 = vmatprep.mubr.f32.mxu0 0.0
    %2926 = vmatmul.mubr.f32.gmra.mxu0 %v2701
    %v2927 = vpop.f32.mrf.mxu0
    %v2928 = vadd.f32 0.0, %v2927
    %v2929 = vpop.f32.mrf.mxu0
    %2930 = vdwg.mxu0
    %v2931 = vadd.f32 %v2540, %v2773
    %v2932 = vadd.f32 %v2541, %v2778
    %v2933 = vadd.f32 %v2542, %v2783
    %v2934 = vadd.f32 %v2543, %v2788
    %v2935 = vadd.f32 %v2544, %v2793
    %v2936 = vadd.f32 %v2545, %v2798
    %v2937 = vadd.f32 %v2546, %v2803
    %v2938 = vadd.f32 %v2547, %v2808
    %v2939 = vadd.f32 %v2548, %v2813
    %v2940 = vadd.f32 %v2549, %v2818
    %v2941 = vadd.f32 %v2550, %v2823
    %v2942 = vadd.f32 %v2551, %v2828
    %v2943 = vadd.f32 %v2552, %v2833
    %v2944 = vadd.f32 %v2553, %v2838
    %v2945 = vadd.f32 %v2554, %v2843
    %v2946 = vadd.f32 %v2555, %v2848
    %v2947 = vadd.f32 %v2556, %v2853
    %v2948 = vadd.f32 %v2557, %v2858
    %v2949 = vadd.f32 %v2558, %v2863
    %v2950 = vadd.f32 %v2559, %v2868
    %v2951 = vadd.f32 %v2560, %v2873
    %v2952 = vadd.f32 %v2561, %v2878
    %v2953 = vadd.f32 %v2562, %v2883
    %v2954 = vadd.f32 %v2563, %v2888
    %v2955 = vadd.f32 %v2564, %v2893
    %v2956 = vadd.f32 %v2565, %v2898
    %v2957 = vadd.f32 %v2566, %v2903
    %v2958 = vadd.f32 %v2567, %v2908
    %v2959 = vadd.f32 %v2568, %v2913
    %v2960 = vadd.f32 %v2569, %v2918
    %v2961 = vadd.f32 %v2570, %v2923
    %v2962 = vadd.f32 %v2571, %v2928
    %v2963 = vld [vmem:[%s2572 + $0x1] sm:$0xff]
    %v2964 = vld [vmem:[%s2572 + $0x9] sm:$0xff]
    %v2965 = vld [vmem:[%s2572 + $0x19] sm:$0xff]
    %v2966 = vld [vmem:[%s2572 + $0x21] sm:$0xff]
    %v2967 = vld [vmem:[%s2572 + $0x31] sm:$0xff]
    %v2968 = vld [vmem:[%s2572 + $0x39] sm:$0xff]
    %v2969 = vld [vmem:[%s2572 + $0x49] sm:$0xff]
    %v2970 = vld [vmem:[%s2572 + $0x51] sm:$0xff]
    %v2971 = vld [vmem:[%s2572 + $0x61] sm:$0xff]
    %v2972 = vld [vmem:[%s2572 + $0x69] sm:$0xff]
    %v2973 = vld [vmem:[%s2572 + $0x79] sm:$0xff]
    %v2974 = vld [vmem:[%s2572 + $0x81] sm:$0xff]
    %v2975 = vld [vmem:[%s2572 + $0x91] sm:$0xff]
    %v2976 = vld [vmem:[%s2572 + $0x99] sm:$0xff]
    %v2977 = vld [vmem:[%s2572 + $0xa9] sm:$0xff]
    %v2978 = vld [vmem:[%s2572 + $0xb1] sm:$0xff]
    %v2979 = vld [vmem:[%s2572 + $0xc1] sm:$0xff]
    %v2980 = vld [vmem:[%s2572 + $0xc9] sm:$0xff]
    %v2981 = vld [vmem:[%s2572 + $0xd9] sm:$0xff]
    %v2982 = vld [vmem:[%s2572 + $0xe1] sm:$0xff]
    %v2983 = vld [vmem:[%s2572 + $0xf1] sm:$0xff]
    %v2984 = vld [vmem:[%s2572 + $0xf9] sm:$0xff]
    %v2985 = vld [vmem:[%s2572 + $0x109] sm:$0xff]
    %v2986 = vld [vmem:[%s2572 + $0x111] sm:$0xff]
    %v2987 = vld [vmem:[%s2572 + $0x121] sm:$0xff]
    %v2988 = vld [vmem:[%s2572 + $0x129] sm:$0xff]
    %v2989 = vld [vmem:[%s2572 + $0x139] sm:$0xff]
    %v2990 = vld [vmem:[%s2572 + $0x141] sm:$0xff]
    %v2991 = vld [vmem:[%s2572 + $0x151] sm:$0xff]
    %v2992 = vld [vmem:[%s2572 + $0x159] sm:$0xff]
    %v2993 = vld [vmem:[%s2572 + $0x169] sm:$0xff]
    %v2994 = vld [vmem:[%s2572 + $0x171] sm:$0xff]
    %s2995 = scalar_lea.vmem %s1, 28
    %v2996 = vld [vmem:[%s2995] sm:$0xf]
    %v2998 = vsel %vm33, %v2963, 0
    %v3001 = vsel %vm33, %v2964, 0
    %v3004 = vsel %vm33, %v2965, 0
    %v3007 = vsel %vm33, %v2966, 0
    %v3010 = vsel %vm33, %v2967, 0
    %v3013 = vsel %vm33, %v2968, 0
    %v3016 = vsel %vm33, %v2969, 0
    %v3019 = vsel %vm33, %v2970, 0
    %v3022 = vsel %vm33, %v2971, 0
    %v3025 = vsel %vm33, %v2972, 0
    %v3028 = vsel %vm33, %v2973, 0
    %v3031 = vsel %vm33, %v2974, 0
    %v3034 = vsel %vm33, %v2975, 0
    %v3037 = vsel %vm33, %v2976, 0
    %v3040 = vsel %vm33, %v2977, 0
    %v3043 = vsel %vm33, %v2978, 0
    %v3046 = vsel %vm33, %v2979, 0
    %v3049 = vsel %vm33, %v2980, 0
    %v3052 = vsel %vm33, %v2981, 0
    %v3055 = vsel %vm33, %v2982, 0
    %v3058 = vsel %vm33, %v2983, 0
    %v3061 = vsel %vm33, %v2984, 0
    %v3064 = vsel %vm33, %v2985, 0
    %v3067 = vsel %vm33, %v2986, 0
    %v3070 = vsel %vm33, %v2987, 0
    %v3073 = vsel %vm33, %v2988, 0
    %v3076 = vsel %vm33, %v2989, 0
    %v3079 = vsel %vm33, %v2990, 0
    %v3082 = vsel %vm33, %v2991, 0
    %v3085 = vsel %vm33, %v2992, 0
    %v3088 = vsel %vm33, %v2993, 0
    %v3091 = vsel %vm33, %v2994, 0
    %v3094 = vsel %vm459, %v2996, 0
    %3096 = vmatprep.subr.mxu0 0.0
    %3097 = vmatpush1.msra.mxu0 0.0
    %3098 = vmatprep.subr.mxu0 0.0
    %3099 = vmatpush1.msra.mxu0 0.0
    %3100 = vmatprep.subr.mxu0 0.0
    %3101 = vmatpush1.msra.mxu0 0.0
    %3102 = vmatprep.subr.mxu0 0.0
    %3103 = vmatpush1.msra.mxu0 0.0
    %3104 = vmatprep.subr.mxu0 0.0
    %3105 = vmatpush1.msra.mxu0 0.0
    %3106 = vmatprep.subr.mxu0 0.0
    %3107 = vmatpush1.msra.mxu0 0.0
    %3108 = vmatprep.subr.mxu0 0.0
    %3109 = vmatpush1.msra.mxu0 0.0
    %3110 = vmatprep.subr.mxu0 0.0
    %3111 = vmatpush1.msra.mxu0 0.0
    %3112 = vmatprep.subr.mxu0 0.0
    %3113 = vmatpush1.msra.mxu0 0.0
    %3114 = vmatprep.subr.mxu0 0.0
    %3115 = vmatpush1.msra.mxu0 0.0
    %3116 = vmatprep.subr.mxu0 0.0
    %3117 = vmatpush1.msra.mxu0 0.0
    %3118 = vmatprep.subr.mxu0 0.0
    %3119 = vmatpush1.msra.mxu0 0.0
    %3120 = vmatprep.subr.mxu0 0.0
    %3121 = vmatpush1.msra.mxu0 0.0
    %3122 = vmatprep.subr.mxu0 0.0
    %3123 = vmatpush1.msra.mxu0 0.0
    %3124 = vmatprep.subr.mxu0 0.0
    %3125 = vmatpush1.msra.mxu0 0.0
    %3126 = vmatprep.subr.mxu0 0.0
    %3127 = vmatpush1.msra.mxu0 %v3094
    %3128 = vmatprep.subr.mxu0 0.0
    %3129 = vmatpush2.msra.mxu0 0.0
    %3130 = vmatprep.subr.mxu0 0.0
    %3131 = vmatpush2.msra.mxu0 0.0
    %3132 = vmatprep.subr.mxu0 0.0
    %3133 = vmatpush2.msra.mxu0 0.0
    %3134 = vmatprep.subr.mxu0 0.0
    %3135 = vmatpush2.msra.mxu0 0.0
    %3136 = vmatprep.subr.mxu0 0.0
    %3137 = vmatpush2.msra.mxu0 0.0
    %3138 = vmatprep.subr.mxu0 0.0
    %3139 = vmatpush2.msra.mxu0 0.0
    %3140 = vmatprep.subr.mxu0 0.0
    %3141 = vmatpush2.msra.mxu0 0.0
    %3142 = vmatprep.subr.mxu0 0.0
    %3143 = vmatpush2.msra.mxu0 0.0
    %3144 = vmatprep.subr.mxu0 0.0
    %3145 = vmatpush2.msra.mxu0 0.0
    %3146 = vmatprep.subr.mxu0 0.0
    %3147 = vmatpush2.msra.mxu0 0.0
    %3148 = vmatprep.subr.mxu0 0.0
    %3149 = vmatpush2.msra.mxu0 0.0
    %3150 = vmatprep.subr.mxu0 0.0
    %3151 = vmatpush2.msra.mxu0 0.0
    %3152 = vmatprep.subr.mxu0 0.0
    %3153 = vmatpush2.msra.mxu0 0.0
    %3154 = vmatprep.subr.mxu0 0.0
    %3155 = vmatpush2.msra.mxu0 0.0
    %3156 = vmatprep.subr.mxu0 0.0
    %3157 = vmatpush2.msra.mxu0 0.0
    %3158 = vmatprep.subr.mxu0 0.0
    %3159 = vmatpush2.msra.mxu0 0.0
    %3160 = vmatprep.mubr.f32.mxu0 0.0
    %3161 = vmatmul.mubr.f32.gmra.mxu0 %v2998
    %v3162 = vpop.f32.mrf.mxu0
    %v3163 = vadd.f32 0.0, %v3162
    %v3164 = vpop.f32.mrf.mxu0
    %3165 = vmatprep.mubr.f32.mxu0 0.0
    %3166 = vmatmul.mubr.f32.gmra.mxu0 %v3001
    %v3167 = vpop.f32.mrf.mxu0
    %v3168 = vadd.f32 0.0, %v3167
    %v3169 = vpop.f32.mrf.mxu0
    %3170 = vmatprep.mubr.f32.mxu0 0.0
    %3171 = vmatmul.mubr.f32.gmra.mxu0 %v3004
    %v3172 = vpop.f32.mrf.mxu0
    %v3173 = vadd.f32 0.0, %v3172
    %v3174 = vpop.f32.mrf.mxu0
    %3175 = vmatprep.mubr.f32.mxu0 0.0
    %3176 = vmatmul.mubr.f32.gmra.mxu0 %v3007
    %v3177 = vpop.f32.mrf.mxu0
    %v3178 = vadd.f32 0.0, %v3177
    %v3179 = vpop.f32.mrf.mxu0
    %3180 = vmatprep.mubr.f32.mxu0 0.0
    %3181 = vmatmul.mubr.f32.gmra.mxu0 %v3010
    %v3182 = vpop.f32.mrf.mxu0
    %v3183 = vadd.f32 0.0, %v3182
    %v3184 = vpop.f32.mrf.mxu0
    %3185 = vmatprep.mubr.f32.mxu0 0.0
    %3186 = vmatmul.mubr.f32.gmra.mxu0 %v3013
    %v3187 = vpop.f32.mrf.mxu0
    %v3188 = vadd.f32 0.0, %v3187
    %v3189 = vpop.f32.mrf.mxu0
    %3190 = vmatprep.mubr.f32.mxu0 0.0
    %3191 = vmatmul.mubr.f32.gmra.mxu0 %v3016
    %v3192 = vpop.f32.mrf.mxu0
    %v3193 = vadd.f32 0.0, %v3192
    %v3194 = vpop.f32.mrf.mxu0
    %3195 = vmatprep.mubr.f32.mxu0 0.0
    %3196 = vmatmul.mubr.f32.gmra.mxu0 %v3019
    %v3197 = vpop.f32.mrf.mxu0
    %v3198 = vadd.f32 0.0, %v3197
    %v3199 = vpop.f32.mrf.mxu0
    %3200 = vmatprep.mubr.f32.mxu0 0.0
    %3201 = vmatmul.mubr.f32.gmra.mxu0 %v3022
    %v3202 = vpop.f32.mrf.mxu0
    %v3203 = vadd.f32 0.0, %v3202
    %v3204 = vpop.f32.mrf.mxu0
    %3205 = vmatprep.mubr.f32.mxu0 0.0
    %3206 = vmatmul.mubr.f32.gmra.mxu0 %v3025
    %v3207 = vpop.f32.mrf.mxu0
    %v3208 = vadd.f32 0.0, %v3207
    %v3209 = vpop.f32.mrf.mxu0
    %3210 = vmatprep.mubr.f32.mxu0 0.0
    %3211 = vmatmul.mubr.f32.gmra.mxu0 %v3028
    %v3212 = vpop.f32.mrf.mxu0
    %v3213 = vadd.f32 0.0, %v3212
    %v3214 = vpop.f32.mrf.mxu0
    %3215 = vmatprep.mubr.f32.mxu0 0.0
    %3216 = vmatmul.mubr.f32.gmra.mxu0 %v3031
    %v3217 = vpop.f32.mrf.mxu0
    %v3218 = vadd.f32 0.0, %v3217
    %v3219 = vpop.f32.mrf.mxu0
    %3220 = vmatprep.mubr.f32.mxu0 0.0
    %3221 = vmatmul.mubr.f32.gmra.mxu0 %v3034
    %v3222 = vpop.f32.mrf.mxu0
    %v3223 = vadd.f32 0.0, %v3222
    %v3224 = vpop.f32.mrf.mxu0
    %3225 = vmatprep.mubr.f32.mxu0 0.0
    %3226 = vmatmul.mubr.f32.gmra.mxu0 %v3037
    %v3227 = vpop.f32.mrf.mxu0
    %v3228 = vadd.f32 0.0, %v3227
    %v3229 = vpop.f32.mrf.mxu0
    %3230 = vmatprep.mubr.f32.mxu0 0.0
    %3231 = vmatmul.mubr.f32.gmra.mxu0 %v3040
    %v3232 = vpop.f32.mrf.mxu0
    %v3233 = vadd.f32 0.0, %v3232
    %v3234 = vpop.f32.mrf.mxu0
    %3235 = vmatprep.mubr.f32.mxu0 0.0
    %3236 = vmatmul.mubr.f32.gmra.mxu0 %v3043
    %v3237 = vpop.f32.mrf.mxu0
    %v3238 = vadd.f32 0.0, %v3237
    %v3239 = vpop.f32.mrf.mxu0
    %3240 = vmatprep.mubr.f32.mxu0 0.0
    %3241 = vmatmul.mubr.f32.gmra.mxu0 %v3046
    %v3242 = vpop.f32.mrf.mxu0
    %v3243 = vadd.f32 0.0, %v3242
    %v3244 = vpop.f32.mrf.mxu0
    %3245 = vmatprep.mubr.f32.mxu0 0.0
    %3246 = vmatmul.mubr.f32.gmra.mxu0 %v3049
    %v3247 = vpop.f32.mrf.mxu0
    %v3248 = vadd.f32 0.0, %v3247
    %v3249 = vpop.f32.mrf.mxu0
    %3250 = vmatprep.mubr.f32.mxu0 0.0
    %3251 = vmatmul.mubr.f32.gmra.mxu0 %v3052
    %v3252 = vpop.f32.mrf.mxu0
    %v3253 = vadd.f32 0.0, %v3252
    %v3254 = vpop.f32.mrf.mxu0
    %3255 = vmatprep.mubr.f32.mxu0 0.0
    %3256 = vmatmul.mubr.f32.gmra.mxu0 %v3055
    %v3257 = vpop.f32.mrf.mxu0
    %v3258 = vadd.f32 0.0, %v3257
    %v3259 = vpop.f32.mrf.mxu0
    %3260 = vmatprep.mubr.f32.mxu0 0.0
    %3261 = vmatmul.mubr.f32.gmra.mxu0 %v3058
    %v3262 = vpop.f32.mrf.mxu0
    %v3263 = vadd.f32 0.0, %v3262
    %v3264 = vpop.f32.mrf.mxu0
    %3265 = vmatprep.mubr.f32.mxu0 0.0
    %3266 = vmatmul.mubr.f32.gmra.mxu0 %v3061
    %v3267 = vpop.f32.mrf.mxu0
    %v3268 = vadd.f32 0.0, %v3267
    %v3269 = vpop.f32.mrf.mxu0
    %3270 = vmatprep.mubr.f32.mxu0 0.0
    %3271 = vmatmul.mubr.f32.gmra.mxu0 %v3064
    %v3272 = vpop.f32.mrf.mxu0
    %v3273 = vadd.f32 0.0, %v3272
    %v3274 = vpop.f32.mrf.mxu0
    %3275 = vmatprep.mubr.f32.mxu0 0.0
    %3276 = vmatmul.mubr.f32.gmra.mxu0 %v3067
    %v3277 = vpop.f32.mrf.mxu0
    %v3278 = vadd.f32 0.0, %v3277
    %v3279 = vpop.f32.mrf.mxu0
    %3280 = vmatprep.mubr.f32.mxu0 0.0
    %3281 = vmatmul.mubr.f32.gmra.mxu0 %v3070
    %v3282 = vpop.f32.mrf.mxu0
    %v3283 = vadd.f32 0.0, %v3282
    %v3284 = vpop.f32.mrf.mxu0
    %3285 = vmatprep.mubr.f32.mxu0 0.0
    %3286 = vmatmul.mubr.f32.gmra.mxu0 %v3073
    %v3287 = vpop.f32.mrf.mxu0
    %v3288 = vadd.f32 0.0, %v3287
    %v3289 = vpop.f32.mrf.mxu0
    %3290 = vmatprep.mubr.f32.mxu0 0.0
    %3291 = vmatmul.mubr.f32.gmra.mxu0 %v3076
    %v3292 = vpop.f32.mrf.mxu0
    %v3293 = vadd.f32 0.0, %v3292
    %v3294 = vpop.f32.mrf.mxu0
    %3295 = vmatprep.mubr.f32.mxu0 0.0
    %3296 = vmatmul.mubr.f32.gmra.mxu0 %v3079
    %v3297 = vpop.f32.mrf.mxu0
    %v3298 = vadd.f32 0.0, %v3297
    %v3299 = vpop.f32.mrf.mxu0
    %3300 = vmatprep.mubr.f32.mxu0 0.0
    %3301 = vmatmul.mubr.f32.gmra.mxu0 %v3082
    %v3302 = vpop.f32.mrf.mxu0
    %v3303 = vadd.f32 0.0, %v3302
    %v3304 = vpop.f32.mrf.mxu0
    %3305 = vmatprep.mubr.f32.mxu0 0.0
    %3306 = vmatmul.mubr.f32.gmra.mxu0 %v3085
    %v3307 = vpop.f32.mrf.mxu0
    %v3308 = vadd.f32 0.0, %v3307
    %v3309 = vpop.f32.mrf.mxu0
    %3310 = vmatprep.mubr.f32.mxu0 0.0
    %3311 = vmatmul.mubr.f32.gmra.mxu0 %v3088
    %v3312 = vpop.f32.mrf.mxu0
    %v3313 = vadd.f32 0.0, %v3312
    %v3314 = vpop.f32.mrf.mxu0
    %3315 = vmatprep.mubr.f32.mxu0 0.0
    %3316 = vmatmul.mubr.f32.gmra.mxu0 %v3091
    %v3317 = vpop.f32.mrf.mxu0
    %v3318 = vadd.f32 0.0, %v3317
    %v3319 = vpop.f32.mrf.mxu0
    %3320 = vdwg.mxu0
    %v3321 = vadd.f32 %v2931, %v3163
    %v3322 = vadd.f32 %v2932, %v3168
    %v3323 = vadd.f32 %v2933, %v3173
    %v3324 = vadd.f32 %v2934, %v3178
    %v3325 = vadd.f32 %v2935, %v3183
    %v3326 = vadd.f32 %v2936, %v3188
    %v3327 = vadd.f32 %v2937, %v3193
    %v3328 = vadd.f32 %v2938, %v3198
    %v3329 = vadd.f32 %v2939, %v3203
    %v3330 = vadd.f32 %v2940, %v3208
    %v3331 = vadd.f32 %v2941, %v3213
    %v3332 = vadd.f32 %v2942, %v3218
    %v3333 = vadd.f32 %v2943, %v3223
    %v3334 = vadd.f32 %v2944, %v3228
    %v3335 = vadd.f32 %v2945, %v3233
    %v3336 = vadd.f32 %v2946, %v3238
    %v3337 = vadd.f32 %v2947, %v3243
    %v3338 = vadd.f32 %v2948, %v3248
    %v3339 = vadd.f32 %v2949, %v3253
    %v3340 = vadd.f32 %v2950, %v3258
    %v3341 = vadd.f32 %v2951, %v3263
    %v3342 = vadd.f32 %v2952, %v3268
    %v3343 = vadd.f32 %v2953, %v3273
    %v3344 = vadd.f32 %v2954, %v3278
    %v3345 = vadd.f32 %v2955, %v3283
    %v3346 = vadd.f32 %v2956, %v3288
    %v3347 = vadd.f32 %v2957, %v3293
    %v3348 = vadd.f32 %v2958, %v3298
    %v3349 = vadd.f32 %v2959, %v3303
    %v3350 = vadd.f32 %v2960, %v3308
    %v3351 = vadd.f32 %v2961, %v3313
    %v3352 = vadd.f32 %v2962, %v3318
    %v3353 = vld [vmem:[%s2572 + $0x2] sm:$0xff]
    %v3354 = vld [vmem:[%s2572 + $0xa] sm:$0xff]
    %v3355 = vld [vmem:[%s2572 + $0x1a] sm:$0xff]
    %v3356 = vld [vmem:[%s2572 + $0x22] sm:$0xff]
    %v3357 = vld [vmem:[%s2572 + $0x32] sm:$0xff]
    %v3358 = vld [vmem:[%s2572 + $0x3a] sm:$0xff]
    %v3359 = vld [vmem:[%s2572 + $0x4a] sm:$0xff]
    %v3360 = vld [vmem:[%s2572 + $0x52] sm:$0xff]
    %v3361 = vld [vmem:[%s2572 + $0x62] sm:$0xff]
    %v3362 = vld [vmem:[%s2572 + $0x6a] sm:$0xff]
    %v3363 = vld [vmem:[%s2572 + $0x7a] sm:$0xff]
    %v3364 = vld [vmem:[%s2572 + $0x82] sm:$0xff]
    %v3365 = vld [vmem:[%s2572 + $0x92] sm:$0xff]
    %v3366 = vld [vmem:[%s2572 + $0x9a] sm:$0xff]
    %v3367 = vld [vmem:[%s2572 + $0xaa] sm:$0xff]
    %v3368 = vld [vmem:[%s2572 + $0xb2] sm:$0xff]
    %v3369 = vld [vmem:[%s2572 + $0xc2] sm:$0xff]
    %v3370 = vld [vmem:[%s2572 + $0xca] sm:$0xff]
    %v3371 = vld [vmem:[%s2572 + $0xda] sm:$0xff]
    %v3372 = vld [vmem:[%s2572 + $0xe2] sm:$0xff]
    %v3373 = vld [vmem:[%s2572 + $0xf2] sm:$0xff]
    %v3374 = vld [vmem:[%s2572 + $0xfa] sm:$0xff]
    %v3375 = vld [vmem:[%s2572 + $0x10a] sm:$0xff]
    %v3376 = vld [vmem:[%s2572 + $0x112] sm:$0xff]
    %v3377 = vld [vmem:[%s2572 + $0x122] sm:$0xff]
    %v3378 = vld [vmem:[%s2572 + $0x12a] sm:$0xff]
    %v3379 = vld [vmem:[%s2572 + $0x13a] sm:$0xff]
    %v3380 = vld [vmem:[%s2572 + $0x142] sm:$0xff]
    %v3381 = vld [vmem:[%s2572 + $0x152] sm:$0xff]
    %v3382 = vld [vmem:[%s2572 + $0x15a] sm:$0xff]
    %v3383 = vld [vmem:[%s2572 + $0x16a] sm:$0xff]
    %v3384 = vld [vmem:[%s2572 + $0x172] sm:$0xff]
    %s3385 = scalar_lea.vmem %s1, 32
    %v3386 = vld [vmem:[%s3385] sm:$0xf]
    %v3388 = vsel %vm33, %v3353, 0
    %v3391 = vsel %vm33, %v3354, 0
    %v3394 = vsel %vm33, %v3355, 0
    %v3397 = vsel %vm33, %v3356, 0
    %v3400 = vsel %vm33, %v3357, 0
    %v3403 = vsel %vm33, %v3358, 0
    %v3406 = vsel %vm33, %v3359, 0
    %v3409 = vsel %vm33, %v3360, 0
    %v3412 = vsel %vm33, %v3361, 0
    %v3415 = vsel %vm33, %v3362, 0
    %v3418 = vsel %vm33, %v3363, 0
    %v3421 = vsel %vm33, %v3364, 0
    %v3424 = vsel %vm33, %v3365, 0
    %v3427 = vsel %vm33, %v3366, 0
    %v3430 = vsel %vm33, %v3367, 0
    %v3433 = vsel %vm33, %v3368, 0
    %v3436 = vsel %vm33, %v3369, 0
    %v3439 = vsel %vm33, %v3370, 0
    %v3442 = vsel %vm33, %v3371, 0
    %v3445 = vsel %vm33, %v3372, 0
    %v3448 = vsel %vm33, %v3373, 0
    %v3451 = vsel %vm33, %v3374, 0
    %v3454 = vsel %vm33, %v3375, 0
    %v3457 = vsel %vm33, %v3376, 0
    %v3460 = vsel %vm33, %v3377, 0
    %v3463 = vsel %vm33, %v3378, 0
    %v3466 = vsel %vm33, %v3379, 0
    %v3469 = vsel %vm33, %v3380, 0
    %v3472 = vsel %vm33, %v3381, 0
    %v3475 = vsel %vm33, %v3382, 0
    %v3478 = vsel %vm33, %v3383, 0
    %v3481 = vsel %vm33, %v3384, 0
    %v3484 = vsel %vm459, %v3386, 0
    %3486 = vmatprep.subr.mxu0 0.0
    %3487 = vmatpush1.msra.mxu0 0.0
    %3488 = vmatprep.subr.mxu0 0.0
    %3489 = vmatpush1.msra.mxu0 0.0
    %3490 = vmatprep.subr.mxu0 0.0
    %3491 = vmatpush1.msra.mxu0 0.0
    %3492 = vmatprep.subr.mxu0 0.0
    %3493 = vmatpush1.msra.mxu0 0.0
    %3494 = vmatprep.subr.mxu0 0.0
    %3495 = vmatpush1.msra.mxu0 0.0
    %3496 = vmatprep.subr.mxu0 0.0
    %3497 = vmatpush1.msra.mxu0 0.0
    %3498 = vmatprep.subr.mxu0 0.0
    %3499 = vmatpush1.msra.mxu0 0.0
    %3500 = vmatprep.subr.mxu0 0.0
    %3501 = vmatpush1.msra.mxu0 0.0
    %3502 = vmatprep.subr.mxu0 0.0
    %3503 = vmatpush1.msra.mxu0 0.0
    %3504 = vmatprep.subr.mxu0 0.0
    %3505 = vmatpush1.msra.mxu0 0.0
    %3506 = vmatprep.subr.mxu0 0.0
    %3507 = vmatpush1.msra.mxu0 0.0
    %3508 = vmatprep.subr.mxu0 0.0
    %3509 = vmatpush1.msra.mxu0 0.0
    %3510 = vmatprep.subr.mxu0 0.0
    %3511 = vmatpush1.msra.mxu0 0.0
    %3512 = vmatprep.subr.mxu0 0.0
    %3513 = vmatpush1.msra.mxu0 0.0
    %3514 = vmatprep.subr.mxu0 0.0
    %3515 = vmatpush1.msra.mxu0 0.0
    %3516 = vmatprep.subr.mxu0 0.0
    %3517 = vmatpush1.msra.mxu0 %v3484
    %3518 = vmatprep.subr.mxu0 0.0
    %3519 = vmatpush2.msra.mxu0 0.0
    %3520 = vmatprep.subr.mxu0 0.0
    %3521 = vmatpush2.msra.mxu0 0.0
    %3522 = vmatprep.subr.mxu0 0.0
    %3523 = vmatpush2.msra.mxu0 0.0
    %3524 = vmatprep.subr.mxu0 0.0
    %3525 = vmatpush2.msra.mxu0 0.0
    %3526 = vmatprep.subr.mxu0 0.0
    %3527 = vmatpush2.msra.mxu0 0.0
    %3528 = vmatprep.subr.mxu0 0.0
    %3529 = vmatpush2.msra.mxu0 0.0
    %3530 = vmatprep.subr.mxu0 0.0
    %3531 = vmatpush2.msra.mxu0 0.0
    %3532 = vmatprep.subr.mxu0 0.0
    %3533 = vmatpush2.msra.mxu0 0.0
    %3534 = vmatprep.subr.mxu0 0.0
    %3535 = vmatpush2.msra.mxu0 0.0
    %3536 = vmatprep.subr.mxu0 0.0
    %3537 = vmatpush2.msra.mxu0 0.0
    %3538 = vmatprep.subr.mxu0 0.0
    %3539 = vmatpush2.msra.mxu0 0.0
    %3540 = vmatprep.subr.mxu0 0.0
    %3541 = vmatpush2.msra.mxu0 0.0
    %3542 = vmatprep.subr.mxu0 0.0
    %3543 = vmatpush2.msra.mxu0 0.0
    %3544 = vmatprep.subr.mxu0 0.0
    %3545 = vmatpush2.msra.mxu0 0.0
    %3546 = vmatprep.subr.mxu0 0.0
    %3547 = vmatpush2.msra.mxu0 0.0
    %3548 = vmatprep.subr.mxu0 0.0
    %3549 = vmatpush2.msra.mxu0 0.0
    %3550 = vmatprep.mubr.f32.mxu0 0.0
    %3551 = vmatmul.mubr.f32.gmra.mxu0 %v3388
    %v3552 = vpop.f32.mrf.mxu0
    %v3553 = vadd.f32 0.0, %v3552
    %v3554 = vpop.f32.mrf.mxu0
    %3555 = vmatprep.mubr.f32.mxu0 0.0
    %3556 = vmatmul.mubr.f32.gmra.mxu0 %v3391
    %v3557 = vpop.f32.mrf.mxu0
    %v3558 = vadd.f32 0.0, %v3557
    %v3559 = vpop.f32.mrf.mxu0
    %3560 = vmatprep.mubr.f32.mxu0 0.0
    %3561 = vmatmul.mubr.f32.gmra.mxu0 %v3394
    %v3562 = vpop.f32.mrf.mxu0
    %v3563 = vadd.f32 0.0, %v3562
    %v3564 = vpop.f32.mrf.mxu0
    %3565 = vmatprep.mubr.f32.mxu0 0.0
    %3566 = vmatmul.mubr.f32.gmra.mxu0 %v3397
    %v3567 = vpop.f32.mrf.mxu0
    %v3568 = vadd.f32 0.0, %v3567
    %v3569 = vpop.f32.mrf.mxu0
    %3570 = vmatprep.mubr.f32.mxu0 0.0
    %3571 = vmatmul.mubr.f32.gmra.mxu0 %v3400
    %v3572 = vpop.f32.mrf.mxu0
    %v3573 = vadd.f32 0.0, %v3572
    %v3574 = vpop.f32.mrf.mxu0
    %3575 = vmatprep.mubr.f32.mxu0 0.0
    %3576 = vmatmul.mubr.f32.gmra.mxu0 %v3403
    %v3577 = vpop.f32.mrf.mxu0
    %v3578 = vadd.f32 0.0, %v3577
    %v3579 = vpop.f32.mrf.mxu0
    %3580 = vmatprep.mubr.f32.mxu0 0.0
    %3581 = vmatmul.mubr.f32.gmra.mxu0 %v3406
    %v3582 = vpop.f32.mrf.mxu0
    %v3583 = vadd.f32 0.0, %v3582
    %v3584 = vpop.f32.mrf.mxu0
    %3585 = vmatprep.mubr.f32.mxu0 0.0
    %3586 = vmatmul.mubr.f32.gmra.mxu0 %v3409
    %v3587 = vpop.f32.mrf.mxu0
    %v3588 = vadd.f32 0.0, %v3587
    %v3589 = vpop.f32.mrf.mxu0
    %3590 = vmatprep.mubr.f32.mxu0 0.0
    %3591 = vmatmul.mubr.f32.gmra.mxu0 %v3412
    %v3592 = vpop.f32.mrf.mxu0
    %v3593 = vadd.f32 0.0, %v3592
    %v3594 = vpop.f32.mrf.mxu0
    %3595 = vmatprep.mubr.f32.mxu0 0.0
    %3596 = vmatmul.mubr.f32.gmra.mxu0 %v3415
    %v3597 = vpop.f32.mrf.mxu0
    %v3598 = vadd.f32 0.0, %v3597
    %v3599 = vpop.f32.mrf.mxu0
    %3600 = vmatprep.mubr.f32.mxu0 0.0
    %3601 = vmatmul.mubr.f32.gmra.mxu0 %v3418
    %v3602 = vpop.f32.mrf.mxu0
    %v3603 = vadd.f32 0.0, %v3602
    %v3604 = vpop.f32.mrf.mxu0
    %3605 = vmatprep.mubr.f32.mxu0 0.0
    %3606 = vmatmul.mubr.f32.gmra.mxu0 %v3421
    %v3607 = vpop.f32.mrf.mxu0
    %v3608 = vadd.f32 0.0, %v3607
    %v3609 = vpop.f32.mrf.mxu0
    %3610 = vmatprep.mubr.f32.mxu0 0.0
    %3611 = vmatmul.mubr.f32.gmra.mxu0 %v3424
    %v3612 = vpop.f32.mrf.mxu0
    %v3613 = vadd.f32 0.0, %v3612
    %v3614 = vpop.f32.mrf.mxu0
    %3615 = vmatprep.mubr.f32.mxu0 0.0
    %3616 = vmatmul.mubr.f32.gmra.mxu0 %v3427
    %v3617 = vpop.f32.mrf.mxu0
    %v3618 = vadd.f32 0.0, %v3617
    %v3619 = vpop.f32.mrf.mxu0
    %3620 = vmatprep.mubr.f32.mxu0 0.0
    %3621 = vmatmul.mubr.f32.gmra.mxu0 %v3430
    %v3622 = vpop.f32.mrf.mxu0
    %v3623 = vadd.f32 0.0, %v3622
    %v3624 = vpop.f32.mrf.mxu0
    %3625 = vmatprep.mubr.f32.mxu0 0.0
    %3626 = vmatmul.mubr.f32.gmra.mxu0 %v3433
    %v3627 = vpop.f32.mrf.mxu0
    %v3628 = vadd.f32 0.0, %v3627
    %v3629 = vpop.f32.mrf.mxu0
    %3630 = vmatprep.mubr.f32.mxu0 0.0
    %3631 = vmatmul.mubr.f32.gmra.mxu0 %v3436
    %v3632 = vpop.f32.mrf.mxu0
    %v3633 = vadd.f32 0.0, %v3632
    %v3634 = vpop.f32.mrf.mxu0
    %3635 = vmatprep.mubr.f32.mxu0 0.0
    %3636 = vmatmul.mubr.f32.gmra.mxu0 %v3439
    %v3637 = vpop.f32.mrf.mxu0
    %v3638 = vadd.f32 0.0, %v3637
    %v3639 = vpop.f32.mrf.mxu0
    %3640 = vmatprep.mubr.f32.mxu0 0.0
    %3641 = vmatmul.mubr.f32.gmra.mxu0 %v3442
    %v3642 = vpop.f32.mrf.mxu0
    %v3643 = vadd.f32 0.0, %v3642
    %v3644 = vpop.f32.mrf.mxu0
    %3645 = vmatprep.mubr.f32.mxu0 0.0
    %3646 = vmatmul.mubr.f32.gmra.mxu0 %v3445
    %v3647 = vpop.f32.mrf.mxu0
    %v3648 = vadd.f32 0.0, %v3647
    %v3649 = vpop.f32.mrf.mxu0
    %3650 = vmatprep.mubr.f32.mxu0 0.0
    %3651 = vmatmul.mubr.f32.gmra.mxu0 %v3448
    %v3652 = vpop.f32.mrf.mxu0
    %v3653 = vadd.f32 0.0, %v3652
    %v3654 = vpop.f32.mrf.mxu0
    %3655 = vmatprep.mubr.f32.mxu0 0.0
    %3656 = vmatmul.mubr.f32.gmra.mxu0 %v3451
    %v3657 = vpop.f32.mrf.mxu0
    %v3658 = vadd.f32 0.0, %v3657
    %v3659 = vpop.f32.mrf.mxu0
    %3660 = vmatprep.mubr.f32.mxu0 0.0
    %3661 = vmatmul.mubr.f32.gmra.mxu0 %v3454
    %v3662 = vpop.f32.mrf.mxu0
    %v3663 = vadd.f32 0.0, %v3662
    %v3664 = vpop.f32.mrf.mxu0
    %3665 = vmatprep.mubr.f32.mxu0 0.0
    %3666 = vmatmul.mubr.f32.gmra.mxu0 %v3457
    %v3667 = vpop.f32.mrf.mxu0
    %v3668 = vadd.f32 0.0, %v3667
    %v3669 = vpop.f32.mrf.mxu0
    %3670 = vmatprep.mubr.f32.mxu0 0.0
    %3671 = vmatmul.mubr.f32.gmra.mxu0 %v3460
    %v3672 = vpop.f32.mrf.mxu0
    %v3673 = vadd.f32 0.0, %v3672
    %v3674 = vpop.f32.mrf.mxu0
    %3675 = vmatprep.mubr.f32.mxu0 0.0
    %3676 = vmatmul.mubr.f32.gmra.mxu0 %v3463
    %v3677 = vpop.f32.mrf.mxu0
    %v3678 = vadd.f32 0.0, %v3677
    %v3679 = vpop.f32.mrf.mxu0
    %3680 = vmatprep.mubr.f32.mxu0 0.0
    %3681 = vmatmul.mubr.f32.gmra.mxu0 %v3466
    %v3682 = vpop.f32.mrf.mxu0
    %v3683 = vadd.f32 0.0, %v3682
    %v3684 = vpop.f32.mrf.mxu0
    %3685 = vmatprep.mubr.f32.mxu0 0.0
    %3686 = vmatmul.mubr.f32.gmra.mxu0 %v3469
    %v3687 = vpop.f32.mrf.mxu0
    %v3688 = vadd.f32 0.0, %v3687
    %v3689 = vpop.f32.mrf.mxu0
    %3690 = vmatprep.mubr.f32.mxu0 0.0
    %3691 = vmatmul.mubr.f32.gmra.mxu0 %v3472
    %v3692 = vpop.f32.mrf.mxu0
    %v3693 = vadd.f32 0.0, %v3692
    %v3694 = vpop.f32.mrf.mxu0
    %3695 = vmatprep.mubr.f32.mxu0 0.0
    %3696 = vmatmul.mubr.f32.gmra.mxu0 %v3475
    %v3697 = vpop.f32.mrf.mxu0
    %v3698 = vadd.f32 0.0, %v3697
    %v3699 = vpop.f32.mrf.mxu0
    %3700 = vmatprep.mubr.f32.mxu0 0.0
    %3701 = vmatmul.mubr.f32.gmra.mxu0 %v3478
    %v3702 = vpop.f32.mrf.mxu0
    %v3703 = vadd.f32 0.0, %v3702
    %v3704 = vpop.f32.mrf.mxu0
    %3705 = vmatprep.mubr.f32.mxu0 0.0
    %3706 = vmatmul.mubr.f32.gmra.mxu0 %v3481
    %v3707 = vpop.f32.mrf.mxu0
    %v3708 = vadd.f32 0.0, %v3707
    %v3709 = vpop.f32.mrf.mxu0
    %3710 = vdwg.mxu0
    %v3711 = vadd.f32 %v3321, %v3553
    %v3712 = vadd.f32 %v3322, %v3558
    %v3713 = vadd.f32 %v3323, %v3563
    %v3714 = vadd.f32 %v3324, %v3568
    %v3715 = vadd.f32 %v3325, %v3573
    %v3716 = vadd.f32 %v3326, %v3578
    %v3717 = vadd.f32 %v3327, %v3583
    %v3718 = vadd.f32 %v3328, %v3588
    %v3719 = vadd.f32 %v3329, %v3593
    %v3720 = vadd.f32 %v3330, %v3598
    %v3721 = vadd.f32 %v3331, %v3603
    %v3722 = vadd.f32 %v3332, %v3608
    %v3723 = vadd.f32 %v3333, %v3613
    %v3724 = vadd.f32 %v3334, %v3618
    %v3725 = vadd.f32 %v3335, %v3623
    %v3726 = vadd.f32 %v3336, %v3628
    %v3727 = vadd.f32 %v3337, %v3633
    %v3728 = vadd.f32 %v3338, %v3638
    %v3729 = vadd.f32 %v3339, %v3643
    %v3730 = vadd.f32 %v3340, %v3648
    %v3731 = vadd.f32 %v3341, %v3653
    %v3732 = vadd.f32 %v3342, %v3658
    %v3733 = vadd.f32 %v3343, %v3663
    %v3734 = vadd.f32 %v3344, %v3668
    %v3735 = vadd.f32 %v3345, %v3673
    %v3736 = vadd.f32 %v3346, %v3678
    %v3737 = vadd.f32 %v3347, %v3683
    %v3738 = vadd.f32 %v3348, %v3688
    %v3739 = vadd.f32 %v3349, %v3693
    %v3740 = vadd.f32 %v3350, %v3698
    %v3741 = vadd.f32 %v3351, %v3703
    %v3742 = vadd.f32 %v3352, %v3708
    %v3743 = vld [vmem:[%s2] sm:$0x1]
    %v3745 = vlaneseq
    %v3746 = vshrl.u32 %v3745, 7
    %v3747 = vsub.s32 0, %v3746
    %v3748 = vrot.slane %v3743, %v3747
    %v3750 = vadd.f32 %v3711, %v3748
    %v3751 = vadd.f32 %v3712, %v3748
    %v3752 = vadd.f32 %v3713, %v3748
    %v3753 = vadd.f32 %v3714, %v3748
    %v3754 = vadd.f32 %v3715, %v3748
    %v3755 = vadd.f32 %v3716, %v3748
    %v3756 = vadd.f32 %v3717, %v3748
    %v3757 = vadd.f32 %v3718, %v3748
    %v3758 = vadd.f32 %v3719, %v3748
    %v3759 = vadd.f32 %v3720, %v3748
    %v3760 = vadd.f32 %v3721, %v3748
    %v3761 = vadd.f32 %v3722, %v3748
    %v3762 = vadd.f32 %v3723, %v3748
    %v3763 = vadd.f32 %v3724, %v3748
    %v3764 = vadd.f32 %v3725, %v3748
    %v3765 = vadd.f32 %v3726, %v3748
    %v3766 = vadd.f32 %v3727, %v3748
    %v3767 = vadd.f32 %v3728, %v3748
    %v3768 = vadd.f32 %v3729, %v3748
    %v3769 = vadd.f32 %v3730, %v3748
    %v3770 = vadd.f32 %v3731, %v3748
    %v3771 = vadd.f32 %v3732, %v3748
    %v3772 = vadd.f32 %v3733, %v3748
    %v3773 = vadd.f32 %v3734, %v3748
    %v3774 = vadd.f32 %v3735, %v3748
    %v3775 = vadd.f32 %v3736, %v3748
    %v3776 = vadd.f32 %v3737, %v3748
    %v3777 = vadd.f32 %v3738, %v3748
    %v3778 = vadd.f32 %v3739, %v3748
    %v3779 = vadd.f32 %v3740, %v3748
    %v3780 = vadd.f32 %v3741, %v3748
    %v3781 = vadd.f32 %v3742, %v3748
    %v3782 = vmax.f32 %v3750, 0.0
    %v3783 = vmax.f32 %v3751, 0.0
    %v3784 = vmax.f32 %v3752, 0.0
    %v3785 = vmax.f32 %v3753, 0.0
    %v3786 = vmax.f32 %v3754, 0.0
    %v3787 = vmax.f32 %v3755, 0.0
    %v3788 = vmax.f32 %v3756, 0.0
    %v3789 = vmax.f32 %v3757, 0.0
    %v3790 = vmax.f32 %v3758, 0.0
    %v3791 = vmax.f32 %v3759, 0.0
    %v3792 = vmax.f32 %v3760, 0.0
    %v3793 = vmax.f32 %v3761, 0.0
    %v3794 = vmax.f32 %v3762, 0.0
    %v3795 = vmax.f32 %v3763, 0.0
    %v3796 = vmax.f32 %v3764, 0.0
    %v3797 = vmax.f32 %v3765, 0.0
    %v3798 = vmax.f32 %v3766, 0.0
    %v3799 = vmax.f32 %v3767, 0.0
    %v3800 = vmax.f32 %v3768, 0.0
    %v3801 = vmax.f32 %v3769, 0.0
    %v3802 = vmax.f32 %v3770, 0.0
    %v3803 = vmax.f32 %v3771, 0.0
    %v3804 = vmax.f32 %v3772, 0.0
    %v3805 = vmax.f32 %v3773, 0.0
    %v3806 = vmax.f32 %v3774, 0.0
    %v3807 = vmax.f32 %v3775, 0.0
    %v3808 = vmax.f32 %v3776, 0.0
    %v3809 = vmax.f32 %v3777, 0.0
    %v3810 = vmax.f32 %v3778, 0.0
    %v3811 = vmax.f32 %v3779, 0.0
    %v3812 = vmax.f32 %v3780, 0.0
    %v3813 = vmax.f32 %v3781, 0.0
    %3814 = vst.msk [vmem:[#allocation3] sm:$0xff] %vm143, %v3782
    %3815 = vst.msk [vmem:[#allocation3 + $0x8] sm:$0xff] %vm143, %v3783
    %3816 = vst.msk [vmem:[#allocation3 + $0x10] sm:$0xff] %vm143, %v3784
    %3817 = vst.msk [vmem:[#allocation3 + $0x18] sm:$0xff] %vm143, %v3785
    %3818 = vst.msk [vmem:[#allocation3 + $0x20] sm:$0xff] %vm143, %v3786
    %3819 = vst.msk [vmem:[#allocation3 + $0x28] sm:$0xff] %vm143, %v3787
    %3820 = vst.msk [vmem:[#allocation3 + $0x30] sm:$0xff] %vm143, %v3788
    %3821 = vst.msk [vmem:[#allocation3 + $0x38] sm:$0xff] %vm143, %v3789
    %3822 = vst.msk [vmem:[#allocation3 + $0x40] sm:$0xff] %vm143, %v3790
    %3823 = vst.msk [vmem:[#allocation3 + $0x48] sm:$0xff] %vm143, %v3791
    %3824 = vst.msk [vmem:[#allocation3 + $0x50] sm:$0xff] %vm143, %v3792
    %3825 = vst.msk [vmem:[#allocation3 + $0x58] sm:$0xff] %vm143, %v3793
    %3826 = vst.msk [vmem:[#allocation3 + $0x60] sm:$0xff] %vm143, %v3794
    %3827 = vst.msk [vmem:[#allocation3 + $0x68] sm:$0xff] %vm143, %v3795
    %3828 = vst.msk [vmem:[#allocation3 + $0x70] sm:$0xff] %vm143, %v3796
    %3829 = vst.msk [vmem:[#allocation3 + $0x78] sm:$0xff] %vm143, %v3797
    %3830 = vst.msk [vmem:[#allocation3 + $0x80] sm:$0xff] %vm143, %v3798
    %3831 = vst.msk [vmem:[#allocation3 + $0x88] sm:$0xff] %vm143, %v3799
    %3832 = vst.msk [vmem:[#allocation3 + $0x90] sm:$0xff] %vm143, %v3800
    %3833 = vst.msk [vmem:[#allocation3 + $0x98] sm:$0xff] %vm143, %v3801
    %3834 = vst.msk [vmem:[#allocation3 + $0xa0] sm:$0xff] %vm143, %v3802
    %3835 = vst.msk [vmem:[#allocation3 + $0xa8] sm:$0xff] %vm143, %v3803
    %3836 = vst.msk [vmem:[#allocation3 + $0xb0] sm:$0xff] %vm143, %v3804
    %3837 = vst.msk [vmem:[#allocation3 + $0xb8] sm:$0xff] %vm143, %v3805
    %3838 = vst.msk [vmem:[#allocation3 + $0xc0] sm:$0xff] %vm143, %v3806
    %3839 = vst.msk [vmem:[#allocation3 + $0xc8] sm:$0xff] %vm143, %v3807
    %3840 = vst.msk [vmem:[#allocation3 + $0xd0] sm:$0xff] %vm143, %v3808
    %3841 = vst.msk [vmem:[#allocation3 + $0xd8] sm:$0xff] %vm143, %v3809
    %3842 = vst.msk [vmem:[#allocation3 + $0xe0] sm:$0xff] %vm143, %v3810
    %3843 = vst.msk [vmem:[#allocation3 + $0xe8] sm:$0xff] %vm143, %v3811
    %3844 = vst.msk [vmem:[#allocation3 + $0xf0] sm:$0xff] %vm143, %v3812
    %3845 = vst.msk [vmem:[#allocation3 + $0xf8] sm:$0xff] %vm143, %v3813
    %v3846 = vld [vmem:[#allocation3] sm:$0xff]
    %v3847 = vld [vmem:[#allocation3 + $0x8] sm:$0xff]
    %v3848 = vld [vmem:[#allocation3 + $0x20] sm:$0xff]
    %v3849 = vld [vmem:[#allocation3 + $0x28] sm:$0xff]
    %v3850 = vld [vmem:[#allocation3 + $0x40] sm:$0xff]
    %v3851 = vld [vmem:[#allocation3 + $0x48] sm:$0xff]
    %v3852 = vld [vmem:[#allocation3 + $0x60] sm:$0xff]
    %v3853 = vld [vmem:[#allocation3 + $0x68] sm:$0xff]
    %v3854 = vld [vmem:[#allocation3 + $0x80] sm:$0xff]
    %v3855 = vld [vmem:[#allocation3 + $0x88] sm:$0xff]
    %v3856 = vld [vmem:[#allocation3 + $0xa0] sm:$0xff]
    %v3857 = vld [vmem:[#allocation3 + $0xa8] sm:$0xff]
    %v3858 = vld [vmem:[#allocation3 + $0xc0] sm:$0xff]
    %v3859 = vld [vmem:[#allocation3 + $0xc8] sm:$0xff]
    %v3860 = vld [vmem:[#allocation3 + $0xe0] sm:$0xff]
    %v3861 = vld [vmem:[#allocation3 + $0xe8] sm:$0xff]
    %s3862 = scalar_lea.vmem [#allocation3], 16
    %v3863 = vld [vmem:[%s3862] sm:$0xff]
    %v3864 = vld [vmem:[%s3862 + $0x8] sm:$0xff]
    %v3865 = vld [vmem:[%s3862 + $0x20] sm:$0xff]
    %v3866 = vld [vmem:[%s3862 + $0x28] sm:$0xff]
    %v3867 = vld [vmem:[%s3862 + $0x40] sm:$0xff]
    %v3868 = vld [vmem:[%s3862 + $0x48] sm:$0xff]
    %v3869 = vld [vmem:[%s3862 + $0x60] sm:$0xff]
    %v3870 = vld [vmem:[%s3862 + $0x68] sm:$0xff]
    %v3871 = vld [vmem:[%s3862 + $0x80] sm:$0xff]
    %v3872 = vld [vmem:[%s3862 + $0x88] sm:$0xff]
    %v3873 = vld [vmem:[%s3862 + $0xa0] sm:$0xff]
    %v3874 = vld [vmem:[%s3862 + $0xa8] sm:$0xff]
    %v3875 = vld [vmem:[%s3862 + $0xc0] sm:$0xff]
    %v3876 = vld [vmem:[%s3862 + $0xc8] sm:$0xff]
    %v3877 = vld [vmem:[%s3862 + $0xe0] sm:$0xff]
    %v3878 = vld [vmem:[%s3862 + $0xe8] sm:$0xff]
    %v3879 = vmax.f32 %v3846, %v3863
    %v3880 = vmax.f32 %v3847, %v3864
    %v3881 = vmax.f32 %v3848, %v3865
    %v3882 = vmax.f32 %v3849, %v3866
    %v3883 = vmax.f32 %v3850, %v3867
    %v3884 = vmax.f32 %v3851, %v3868
    %v3885 = vmax.f32 %v3852, %v3869
    %v3886 = vmax.f32 %v3853, %v3870
    %v3887 = vmax.f32 %v3854, %v3871
    %v3888 = vmax.f32 %v3855, %v3872
    %v3889 = vmax.f32 %v3856, %v3873
    %v3890 = vmax.f32 %v3857, %v3874
    %v3891 = vmax.f32 %v3858, %v3875
    %v3892 = vmax.f32 %v3859, %v3876
    %v3893 = vmax.f32 %v3860, %v3877
    %v3894 = vmax.f32 %v3861, %v3878
    %3895 = vst.msk [vmem:[#allocation4] sm:$0xff] %vm143, %v3879
    %3896 = vst.msk [vmem:[#allocation4 + $0x8] sm:$0xff] %vm143, %v3880
    %3897 = vst.msk [vmem:[#allocation4 + $0x10] sm:$0xff] %vm143, %v3881
    %3898 = vst.msk [vmem:[#allocation4 + $0x18] sm:$0xff] %vm143, %v3882
    %3899 = vst.msk [vmem:[#allocation4 + $0x20] sm:$0xff] %vm143, %v3883
    %3900 = vst.msk [vmem:[#allocation4 + $0x28] sm:$0xff] %vm143, %v3884
    %3901 = vst.msk [vmem:[#allocation4 + $0x30] sm:$0xff] %vm143, %v3885
    %3902 = vst.msk [vmem:[#allocation4 + $0x38] sm:$0xff] %vm143, %v3886
    %3903 = vst.msk [vmem:[#allocation4 + $0x40] sm:$0xff] %vm143, %v3887
    %3904 = vst.msk [vmem:[#allocation4 + $0x48] sm:$0xff] %vm143, %v3888
    %3905 = vst.msk [vmem:[#allocation4 + $0x50] sm:$0xff] %vm143, %v3889
    %3906 = vst.msk [vmem:[#allocation4 + $0x58] sm:$0xff] %vm143, %v3890
    %3907 = vst.msk [vmem:[#allocation4 + $0x60] sm:$0xff] %vm143, %v3891
    %3908 = vst.msk [vmem:[#allocation4 + $0x68] sm:$0xff] %vm143, %v3892
    %3909 = vst.msk [vmem:[#allocation4 + $0x70] sm:$0xff] %vm143, %v3893
    %3910 = vst.msk [vmem:[#allocation4 + $0x78] sm:$0xff] %vm143, %v3894
    %v3911 = vld [vmem:[#allocation4] ss:$2 sm:$0xff]
    %s3912 = scalar_lea.vmem [#allocation4], 16
    %v3913 = vld [vmem:[%s3912] ss:$2 sm:$0xff]
    %s3914 = scalar_lea.vmem [#allocation4], 32
    %v3915 = vld [vmem:[%s3914] ss:$2 sm:$0xff]
    %s3916 = scalar_lea.vmem [#allocation4], 48
    %v3917 = vld [vmem:[%s3916] ss:$2 sm:$0xff]
    %s3918 = scalar_lea.vmem [#allocation4], 64
    %v3919 = vld [vmem:[%s3918] ss:$2 sm:$0xff]
    %s3920 = scalar_lea.vmem [#allocation4], 80
    %v3921 = vld [vmem:[%s3920] ss:$2 sm:$0xff]
    %s3922 = scalar_lea.vmem [#allocation4], 96
    %v3923 = vld [vmem:[%s3922] ss:$2 sm:$0xff]
    %s3924 = scalar_lea.vmem [#allocation4], 112
    %v3925 = vld [vmem:[%s3924] ss:$2 sm:$0xff]
    %s3926 = scalar_lea.vmem [#allocation4], 1
    %v3927 = vld [vmem:[%s3926] ss:$2 sm:$0xff]
    %s3928 = scalar_lea.vmem [#allocation4], 17
    %v3929 = vld [vmem:[%s3928] ss:$2 sm:$0xff]
    %s3930 = scalar_lea.vmem [#allocation4], 33
    %v3931 = vld [vmem:[%s3930] ss:$2 sm:$0xff]
    %s3932 = scalar_lea.vmem [#allocation4], 49
    %v3933 = vld [vmem:[%s3932] ss:$2 sm:$0xff]
    %s3934 = scalar_lea.vmem [#allocation4], 65
    %v3935 = vld [vmem:[%s3934] ss:$2 sm:$0xff]
    %s3936 = scalar_lea.vmem [#allocation4], 81
    %v3937 = vld [vmem:[%s3936] ss:$2 sm:$0xff]
    %s3938 = scalar_lea.vmem [#allocation4], 97
    %v3939 = vld [vmem:[%s3938] ss:$2 sm:$0xff]
    %s3940 = scalar_lea.vmem [#allocation4], 113
    %v3941 = vld [vmem:[%s3940] ss:$2 sm:$0xff]
    %v3942 = vmax.f32 %v3911, %v3927
    %v3943 = vmax.f32 %v3913, %v3929
    %v3944 = vmax.f32 %v3915, %v3931
    %v3945 = vmax.f32 %v3917, %v3933
    %v3946 = vmax.f32 %v3919, %v3935
    %v3947 = vmax.f32 %v3921, %v3937
    %v3948 = vmax.f32 %v3923, %v3939
    %v3949 = vmax.f32 %v3925, %v3941
    %s3950 = scalar_lea.vmem [#allocation5], 16
    %3951 = vst.msk [vmem:[%s3950 + $0x1] sm:$0xff] %vm143, %v3942
    %3952 = vst.msk [vmem:[%s3950 + $0x11] sm:$0xff] %vm143, %v3943
    %3953 = vst.msk [vmem:[%s3950 + $0x21] sm:$0xff] %vm143, %v3944
    %3954 = vst.msk [vmem:[%s3950 + $0x31] sm:$0xff] %vm143, %v3945
    %3955 = vst.msk [vmem:[%s3950 + $0x41] sm:$0xff] %vm143, %v3946
    %3956 = vst.msk [vmem:[%s3950 + $0x51] sm:$0xff] %vm143, %v3947
    %3957 = vst.msk [vmem:[%s3950 + $0x61] sm:$0xff] %vm143, %v3948
    %3958 = vst.msk [vmem:[%s3950 + $0x71] sm:$0xff] %vm143, %v3949
    %v3959 = vld [vmem:[#allocation5] sm:$0xff]
    %v3960 = vld [vmem:[#allocation5 + $0x10] sm:$0xff]
    %v3961 = vld [vmem:[#allocation5 + $0x20] sm:$0xff]
    %v3962 = vld [vmem:[#allocation5 + $0x30] sm:$0xff]
    %v3963 = vld [vmem:[#allocation5 + $0x40] sm:$0xff]
    %v3964 = vld [vmem:[#allocation5 + $0x50] sm:$0xff]
    %v3965 = vld [vmem:[#allocation5 + $0x60] sm:$0xff]
    %v3966 = vld [vmem:[#allocation5 + $0x70] sm:$0xff]
    %v3967 = vld [vmem:[%s3] sm:$0xff]
    %v3968 = vld [vmem:[#allocation5 + $0x1] sm:$0xff]
    %v3969 = vld [vmem:[#allocation5 + $0x11] sm:$0xff]
    %v3970 = vld [vmem:[#allocation5 + $0x21] sm:$0xff]
    %v3971 = vld [vmem:[#allocation5 + $0x31] sm:$0xff]
    %v3972 = vld [vmem:[#allocation5 + $0x41] sm:$0xff]
    %v3973 = vld [vmem:[#allocation5 + $0x51] sm:$0xff]
    %v3974 = vld [vmem:[#allocation5 + $0x61] sm:$0xff]
    %v3975 = vld [vmem:[#allocation5 + $0x71] sm:$0xff]
    %s3976 = scalar_lea.vmem %s3, 8
    %v3977 = vld [vmem:[%s3976] sm:$0xff]
    %v3979 = vsel %vm143, %v3968, 0
    %v3982 = vsel %vm143, %v3969, 0
    %v3985 = vsel %vm143, %v3970, 0
    %v3988 = vsel %vm143, %v3971, 0
    %v3991 = vsel %vm143, %v3972, 0
    %v3994 = vsel %vm143, %v3973, 0
    %v3997 = vsel %vm143, %v3974, 0
    %v4000 = vsel %vm143, %v3975, 0
    %4002 = vmatprep.subr.mxu0 0.0
    %4003 = vmatpush1.msra.mxu0 0.0
    %4004 = vmatprep.subr.mxu0 0.0
    %4005 = vmatpush1.msra.mxu0 0.0
    %4006 = vmatprep.subr.mxu0 0.0
    %4007 = vmatpush1.msra.mxu0 0.0
    %4008 = vmatprep.subr.mxu0 0.0
    %4009 = vmatpush1.msra.mxu0 0.0
    %4010 = vmatprep.subr.mxu0 0.0
    %4011 = vmatpush1.msra.mxu0 0.0
    %4012 = vmatprep.subr.mxu0 0.0
    %4013 = vmatpush1.msra.mxu0 0.0
    %4014 = vmatprep.subr.mxu0 0.0
    %4015 = vmatpush1.msra.mxu0 0.0
    %4016 = vmatprep.subr.mxu0 0.0
    %4017 = vmatpush1.msra.mxu0 0.0
    %4018 = vmatprep.subr.mxu0 0.0
    %4019 = vmatpush1.msra.mxu0 0.0
    %4020 = vmatprep.subr.mxu0 0.0
    %4021 = vmatpush1.msra.mxu0 0.0
    %4022 = vmatprep.subr.mxu0 0.0
    %4023 = vmatpush1.msra.mxu0 0.0
    %4024 = vmatprep.subr.mxu0 0.0
    %4025 = vmatpush1.msra.mxu0 0.0
    %4026 = vmatprep.subr.mxu0 0.0
    %4027 = vmatpush1.msra.mxu0 0.0
    %4028 = vmatprep.subr.mxu0 0.0
    %4029 = vmatpush1.msra.mxu0 0.0
    %4030 = vmatprep.subr.mxu0 0.0
    %4031 = vmatpush1.msra.mxu0 0.0
    %4032 = vmatprep.subr.mxu0 0.0
    %4033 = vmatpush1.msra.mxu0 %v3977
    %4034 = vmatprep.subr.mxu0 0.0
    %4035 = vmatpush2.msra.mxu0 0.0
    %4036 = vmatprep.subr.mxu0 0.0
    %4037 = vmatpush2.msra.mxu0 0.0
    %4038 = vmatprep.subr.mxu0 0.0
    %4039 = vmatpush2.msra.mxu0 0.0
    %4040 = vmatprep.subr.mxu0 0.0
    %4041 = vmatpush2.msra.mxu0 0.0
    %4042 = vmatprep.subr.mxu0 0.0
    %4043 = vmatpush2.msra.mxu0 0.0
    %4044 = vmatprep.subr.mxu0 0.0
    %4045 = vmatpush2.msra.mxu0 0.0
    %4046 = vmatprep.subr.mxu0 0.0
    %4047 = vmatpush2.msra.mxu0 0.0
    %4048 = vmatprep.subr.mxu0 0.0
    %4049 = vmatpush2.msra.mxu0 0.0
    %4050 = vmatprep.subr.mxu0 0.0
    %4051 = vmatpush2.msra.mxu0 0.0
    %4052 = vmatprep.subr.mxu0 0.0
    %4053 = vmatpush2.msra.mxu0 0.0
    %4054 = vmatprep.subr.mxu0 0.0
    %4055 = vmatpush2.msra.mxu0 0.0
    %4056 = vmatprep.subr.mxu0 0.0
    %4057 = vmatpush2.msra.mxu0 0.0
    %4058 = vmatprep.subr.mxu0 0.0
    %4059 = vmatpush2.msra.mxu0 0.0
    %4060 = vmatprep.subr.mxu0 0.0
    %4061 = vmatpush2.msra.mxu0 0.0
    %4062 = vmatprep.subr.mxu0 0.0
    %4063 = vmatpush2.msra.mxu0 0.0
    %4064 = vmatprep.subr.mxu0 0.0
    %4065 = vmatpush2.msra.mxu0 0.0
    %4066 = vmatprep.mubr.f32.mxu0 0.0
    %4067 = vmatmul.mubr.f32.gmra.mxu0 %v3979
    %v4068 = vpop.f32.mrf.mxu0
    %v4069 = vadd.f32 0.0, %v4068
    %v4070 = vpop.f32.mrf.mxu0
    %4071 = vmatprep.mubr.f32.mxu0 0.0
    %4072 = vmatmul.mubr.f32.gmra.mxu0 %v3982
    %v4073 = vpop.f32.mrf.mxu0
    %v4074 = vadd.f32 0.0, %v4073
    %v4075 = vpop.f32.mrf.mxu0
    %4076 = vmatprep.mubr.f32.mxu0 0.0
    %4077 = vmatmul.mubr.f32.gmra.mxu0 %v3985
    %v4078 = vpop.f32.mrf.mxu0
    %v4079 = vadd.f32 0.0, %v4078
    %v4080 = vpop.f32.mrf.mxu0
    %4081 = vmatprep.mubr.f32.mxu0 0.0
    %4082 = vmatmul.mubr.f32.gmra.mxu0 %v3988
    %v4083 = vpop.f32.mrf.mxu0
    %v4084 = vadd.f32 0.0, %v4083
    %v4085 = vpop.f32.mrf.mxu0
    %4086 = vmatprep.mubr.f32.mxu0 0.0
    %4087 = vmatmul.mubr.f32.gmra.mxu0 %v3991
    %v4088 = vpop.f32.mrf.mxu0
    %v4089 = vadd.f32 0.0, %v4088
    %v4090 = vpop.f32.mrf.mxu0
    %4091 = vmatprep.mubr.f32.mxu0 0.0
    %4092 = vmatmul.mubr.f32.gmra.mxu0 %v3994
    %v4093 = vpop.f32.mrf.mxu0
    %v4094 = vadd.f32 0.0, %v4093
    %v4095 = vpop.f32.mrf.mxu0
    %4096 = vmatprep.mubr.f32.mxu0 0.0
    %4097 = vmatmul.mubr.f32.gmra.mxu0 %v3997
    %v4098 = vpop.f32.mrf.mxu0
    %v4099 = vadd.f32 0.0, %v4098
    %v4100 = vpop.f32.mrf.mxu0
    %4101 = vmatprep.mubr.f32.mxu0 0.0
    %4102 = vmatmul.mubr.f32.gmra.mxu0 %v4000
    %v4103 = vpop.f32.mrf.mxu0
    %v4104 = vadd.f32 0.0, %v4103
    %v4105 = vpop.f32.mrf.mxu0
    %4106 = vdwg.mxu0
    %v4108 = vsel %vm143, %v3959, 0
    %v4111 = vsel %vm143, %v3960, 0
    %v4114 = vsel %vm143, %v3961, 0
    %v4117 = vsel %vm143, %v3962, 0
    %v4120 = vsel %vm143, %v3963, 0
    %v4123 = vsel %vm143, %v3964, 0
    %v4126 = vsel %vm143, %v3965, 0
    %v4129 = vsel %vm143, %v3966, 0
    %4131 = vmatprep.subr.mxu0 0.0
    %4132 = vmatpush1.msra.mxu0 0.0
    %4133 = vmatprep.subr.mxu0 0.0
    %4134 = vmatpush1.msra.mxu0 0.0
    %4135 = vmatprep.subr.mxu0 0.0
    %4136 = vmatpush1.msra.mxu0 0.0
    %4137 = vmatprep.subr.mxu0 0.0
    %4138 = vmatpush1.msra.mxu0 0.0
    %4139 = vmatprep.subr.mxu0 0.0
    %4140 = vmatpush1.msra.mxu0 0.0
    %4141 = vmatprep.subr.mxu0 0.0
    %4142 = vmatpush1.msra.mxu0 0.0
    %4143 = vmatprep.subr.mxu0 0.0
    %4144 = vmatpush1.msra.mxu0 0.0
    %4145 = vmatprep.subr.mxu0 0.0
    %4146 = vmatpush1.msra.mxu0 0.0
    %4147 = vmatprep.subr.mxu0 0.0
    %4148 = vmatpush1.msra.mxu0 0.0
    %4149 = vmatprep.subr.mxu0 0.0
    %4150 = vmatpush1.msra.mxu0 0.0
    %4151 = vmatprep.subr.mxu0 0.0
    %4152 = vmatpush1.msra.mxu0 0.0
    %4153 = vmatprep.subr.mxu0 0.0
    %4154 = vmatpush1.msra.mxu0 0.0
    %4155 = vmatprep.subr.mxu0 0.0
    %4156 = vmatpush1.msra.mxu0 0.0
    %4157 = vmatprep.subr.mxu0 0.0
    %4158 = vmatpush1.msra.mxu0 0.0
    %4159 = vmatprep.subr.mxu0 0.0
    %4160 = vmatpush1.msra.mxu0 0.0
    %4161 = vmatprep.subr.mxu0 0.0
    %4162 = vmatpush1.msra.mxu0 %v3967
    %4163 = vmatprep.subr.mxu0 0.0
    %4164 = vmatpush2.msra.mxu0 0.0
    %4165 = vmatprep.subr.mxu0 0.0
    %4166 = vmatpush2.msra.mxu0 0.0
    %4167 = vmatprep.subr.mxu0 0.0
    %4168 = vmatpush2.msra.mxu0 0.0
    %4169 = vmatprep.subr.mxu0 0.0
    %4170 = vmatpush2.msra.mxu0 0.0
    %4171 = vmatprep.subr.mxu0 0.0
    %4172 = vmatpush2.msra.mxu0 0.0
    %4173 = vmatprep.subr.mxu0 0.0
    %4174 = vmatpush2.msra.mxu0 0.0
    %4175 = vmatprep.subr.mxu0 0.0
    %4176 = vmatpush2.msra.mxu0 0.0
    %4177 = vmatprep.subr.mxu0 0.0
    %4178 = vmatpush2.msra.mxu0 0.0
    %4179 = vmatprep.subr.mxu0 0.0
    %4180 = vmatpush2.msra.mxu0 0.0
    %4181 = vmatprep.subr.mxu0 0.0
    %4182 = vmatpush2.msra.mxu0 0.0
    %4183 = vmatprep.subr.mxu0 0.0
    %4184 = vmatpush2.msra.mxu0 0.0
    %4185 = vmatprep.subr.mxu0 0.0
    %4186 = vmatpush2.msra.mxu0 0.0
    %4187 = vmatprep.subr.mxu0 0.0
    %4188 = vmatpush2.msra.mxu0 0.0
    %4189 = vmatprep.subr.mxu0 0.0
    %4190 = vmatpush2.msra.mxu0 0.0
    %4191 = vmatprep.subr.mxu0 0.0
    %4192 = vmatpush2.msra.mxu0 0.0
    %4193 = vmatprep.subr.mxu0 0.0
    %4194 = vmatpush2.msra.mxu0 0.0
    %4195 = vmatprep.mubr.f32.mxu0 0.0
    %4196 = vmatmul.mubr.f32.gmra.mxu0 %v4108
    %v4197 = vpop.f32.mrf.mxu0
    %v4198 = vadd.f32 %v4069, %v4197
    %v4199 = vpop.f32.mrf.mxu0
    %4200 = vmatprep.mubr.f32.mxu0 0.0
    %4201 = vmatmul.mubr.f32.gmra.mxu0 %v4111
    %v4202 = vpop.f32.mrf.mxu0
    %v4203 = vadd.f32 %v4074, %v4202
    %v4204 = vpop.f32.mrf.mxu0
    %4205 = vmatprep.mubr.f32.mxu0 0.0
    %4206 = vmatmul.mubr.f32.gmra.mxu0 %v4114
    %v4207 = vpop.f32.mrf.mxu0
    %v4208 = vadd.f32 %v4079, %v4207
    %v4209 = vpop.f32.mrf.mxu0
    %4210 = vmatprep.mubr.f32.mxu0 0.0
    %4211 = vmatmul.mubr.f32.gmra.mxu0 %v4117
    %v4212 = vpop.f32.mrf.mxu0
    %v4213 = vadd.f32 %v4084, %v4212
    %v4214 = vpop.f32.mrf.mxu0
    %4215 = vmatprep.mubr.f32.mxu0 0.0
    %4216 = vmatmul.mubr.f32.gmra.mxu0 %v4120
    %v4217 = vpop.f32.mrf.mxu0
    %v4218 = vadd.f32 %v4089, %v4217
    %v4219 = vpop.f32.mrf.mxu0
    %4220 = vmatprep.mubr.f32.mxu0 0.0
    %4221 = vmatmul.mubr.f32.gmra.mxu0 %v4123
    %v4222 = vpop.f32.mrf.mxu0
    %v4223 = vadd.f32 %v4094, %v4222
    %v4224 = vpop.f32.mrf.mxu0
    %4225 = vmatprep.mubr.f32.mxu0 0.0
    %4226 = vmatmul.mubr.f32.gmra.mxu0 %v4126
    %v4227 = vpop.f32.mrf.mxu0
    %v4228 = vadd.f32 %v4099, %v4227
    %v4229 = vpop.f32.mrf.mxu0
    %4230 = vmatprep.mubr.f32.mxu0 0.0
    %4231 = vmatmul.mubr.f32.gmra.mxu0 %v4129
    %v4232 = vpop.f32.mrf.mxu0
    %v4233 = vadd.f32 %v4104, %v4232
    %v4234 = vpop.f32.mrf.mxu0
    %4235 = vdwg.mxu0
    %v4236 = vld [vmem:[#allocation5 + $0x2] sm:$0xff]
    %v4237 = vld [vmem:[#allocation5 + $0x12] sm:$0xff]
    %v4238 = vld [vmem:[#allocation5 + $0x22] sm:$0xff]
    %v4239 = vld [vmem:[#allocation5 + $0x32] sm:$0xff]
    %v4240 = vld [vmem:[#allocation5 + $0x42] sm:$0xff]
    %v4241 = vld [vmem:[#allocation5 + $0x52] sm:$0xff]
    %v4242 = vld [vmem:[#allocation5 + $0x62] sm:$0xff]
    %v4243 = vld [vmem:[#allocation5 + $0x72] sm:$0xff]
    %s4244 = scalar_lea.vmem %s3, 16
    %v4245 = vld [vmem:[%s4244] sm:$0xff]
    %v4247 = vsel %vm143, %v4236, 0
    %v4250 = vsel %vm143, %v4237, 0
    %v4253 = vsel %vm143, %v4238, 0
    %v4256 = vsel %vm143, %v4239, 0
    %v4259 = vsel %vm143, %v4240, 0
    %v4262 = vsel %vm143, %v4241, 0
    %v4265 = vsel %vm143, %v4242, 0
    %v4268 = vsel %vm143, %v4243, 0
    %4270 = vmatprep.subr.mxu0 0.0
    %4271 = vmatpush1.msra.mxu0 0.0
    %4272 = vmatprep.subr.mxu0 0.0
    %4273 = vmatpush1.msra.mxu0 0.0
    %4274 = vmatprep.subr.mxu0 0.0
    %4275 = vmatpush1.msra.mxu0 0.0
    %4276 = vmatprep.subr.mxu0 0.0
    %4277 = vmatpush1.msra.mxu0 0.0
    %4278 = vmatprep.subr.mxu0 0.0
    %4279 = vmatpush1.msra.mxu0 0.0
    %4280 = vmatprep.subr.mxu0 0.0
    %4281 = vmatpush1.msra.mxu0 0.0
    %4282 = vmatprep.subr.mxu0 0.0
    %4283 = vmatpush1.msra.mxu0 0.0
    %4284 = vmatprep.subr.mxu0 0.0
    %4285 = vmatpush1.msra.mxu0 0.0
    %4286 = vmatprep.subr.mxu0 0.0
    %4287 = vmatpush1.msra.mxu0 0.0
    %4288 = vmatprep.subr.mxu0 0.0
    %4289 = vmatpush1.msra.mxu0 0.0
    %4290 = vmatprep.subr.mxu0 0.0
    %4291 = vmatpush1.msra.mxu0 0.0
    %4292 = vmatprep.subr.mxu0 0.0
    %4293 = vmatpush1.msra.mxu0 0.0
    %4294 = vmatprep.subr.mxu0 0.0
    %4295 = vmatpush1.msra.mxu0 0.0
    %4296 = vmatprep.subr.mxu0 0.0
    %4297 = vmatpush1.msra.mxu0 0.0
    %4298 = vmatprep.subr.mxu0 0.0
    %4299 = vmatpush1.msra.mxu0 0.0
    %4300 = vmatprep.subr.mxu0 0.0
    %4301 = vmatpush1.msra.mxu0 %v4245
    %4302 = vmatprep.subr.mxu0 0.0
    %4303 = vmatpush2.msra.mxu0 0.0
    %4304 = vmatprep.subr.mxu0 0.0
    %4305 = vmatpush2.msra.mxu0 0.0
    %4306 = vmatprep.subr.mxu0 0.0
    %4307 = vmatpush2.msra.mxu0 0.0
    %4308 = vmatprep.subr.mxu0 0.0
    %4309 = vmatpush2.msra.mxu0 0.0
    %4310 = vmatprep.subr.mxu0 0.0
    %4311 = vmatpush2.msra.mxu0 0.0
    %4312 = vmatprep.subr.mxu0 0.0
    %4313 = vmatpush2.msra.mxu0 0.0
    %4314 = vmatprep.subr.mxu0 0.0
    %4315 = vmatpush2.msra.mxu0 0.0
    %4316 = vmatprep.subr.mxu0 0.0
    %4317 = vmatpush2.msra.mxu0 0.0
    %4318 = vmatprep.subr.mxu0 0.0
    %4319 = vmatpush2.msra.mxu0 0.0
    %4320 = vmatprep.subr.mxu0 0.0
    %4321 = vmatpush2.msra.mxu0 0.0
    %4322 = vmatprep.subr.mxu0 0.0
    %4323 = vmatpush2.msra.mxu0 0.0
    %4324 = vmatprep.subr.mxu0 0.0
    %4325 = vmatpush2.msra.mxu0 0.0
    %4326 = vmatprep.subr.mxu0 0.0
    %4327 = vmatpush2.msra.mxu0 0.0
    %4328 = vmatprep.subr.mxu0 0.0
    %4329 = vmatpush2.msra.mxu0 0.0
    %4330 = vmatprep.subr.mxu0 0.0
    %4331 = vmatpush2.msra.mxu0 0.0
    %4332 = vmatprep.subr.mxu0 0.0
    %4333 = vmatpush2.msra.mxu0 0.0
    %4334 = vmatprep.mubr.f32.mxu0 0.0
    %4335 = vmatmul.mubr.f32.gmra.mxu0 %v4247
    %v4336 = vpop.f32.mrf.mxu0
    %v4337 = vadd.f32 0.0, %v4336
    %v4338 = vpop.f32.mrf.mxu0
    %4339 = vmatprep.mubr.f32.mxu0 0.0
    %4340 = vmatmul.mubr.f32.gmra.mxu0 %v4250
    %v4341 = vpop.f32.mrf.mxu0
    %v4342 = vadd.f32 0.0, %v4341
    %v4343 = vpop.f32.mrf.mxu0
    %4344 = vmatprep.mubr.f32.mxu0 0.0
    %4345 = vmatmul.mubr.f32.gmra.mxu0 %v4253
    %v4346 = vpop.f32.mrf.mxu0
    %v4347 = vadd.f32 0.0, %v4346
    %v4348 = vpop.f32.mrf.mxu0
    %4349 = vmatprep.mubr.f32.mxu0 0.0
    %4350 = vmatmul.mubr.f32.gmra.mxu0 %v4256
    %v4351 = vpop.f32.mrf.mxu0
    %v4352 = vadd.f32 0.0, %v4351
    %v4353 = vpop.f32.mrf.mxu0
    %4354 = vmatprep.mubr.f32.mxu0 0.0
    %4355 = vmatmul.mubr.f32.gmra.mxu0 %v4259
    %v4356 = vpop.f32.mrf.mxu0
    %v4357 = vadd.f32 0.0, %v4356
    %v4358 = vpop.f32.mrf.mxu0
    %4359 = vmatprep.mubr.f32.mxu0 0.0
    %4360 = vmatmul.mubr.f32.gmra.mxu0 %v4262
    %v4361 = vpop.f32.mrf.mxu0
    %v4362 = vadd.f32 0.0, %v4361
    %v4363 = vpop.f32.mrf.mxu0
    %4364 = vmatprep.mubr.f32.mxu0 0.0
    %4365 = vmatmul.mubr.f32.gmra.mxu0 %v4265
    %v4366 = vpop.f32.mrf.mxu0
    %v4367 = vadd.f32 0.0, %v4366
    %v4368 = vpop.f32.mrf.mxu0
    %4369 = vmatprep.mubr.f32.mxu0 0.0
    %4370 = vmatmul.mubr.f32.gmra.mxu0 %v4268
    %v4371 = vpop.f32.mrf.mxu0
    %v4372 = vadd.f32 0.0, %v4371
    %v4373 = vpop.f32.mrf.mxu0
    %4374 = vdwg.mxu0
    %v4375 = vadd.f32 %v4198, %v4337
    %v4376 = vadd.f32 %v4203, %v4342
    %v4377 = vadd.f32 %v4208, %v4347
    %v4378 = vadd.f32 %v4213, %v4352
    %v4379 = vadd.f32 %v4218, %v4357
    %v4380 = vadd.f32 %v4223, %v4362
    %v4381 = vadd.f32 %v4228, %v4367
    %v4382 = vadd.f32 %v4233, %v4372
    %v4383 = vld [vmem:[%s3950] sm:$0xff]
    %v4384 = vld [vmem:[%s3950 + $0x10] sm:$0xff]
    %v4385 = vld [vmem:[%s3950 + $0x20] sm:$0xff]
    %v4386 = vld [vmem:[%s3950 + $0x30] sm:$0xff]
    %v4387 = vld [vmem:[%s3950 + $0x40] sm:$0xff]
    %v4388 = vld [vmem:[%s3950 + $0x50] sm:$0xff]
    %v4389 = vld [vmem:[%s3950 + $0x60] sm:$0xff]
    %v4390 = vld [vmem:[%s3950 + $0x70] sm:$0xff]
    %s4391 = scalar_lea.vmem %s3, 24
    %v4392 = vld [vmem:[%s4391] sm:$0xff]
    %v4394 = vsel %vm143, %v4383, 0
    %v4397 = vsel %vm143, %v4384, 0
    %v4400 = vsel %vm143, %v4385, 0
    %v4403 = vsel %vm143, %v4386, 0
    %v4406 = vsel %vm143, %v4387, 0
    %v4409 = vsel %vm143, %v4388, 0
    %v4412 = vsel %vm143, %v4389, 0
    %v4415 = vsel %vm143, %v4390, 0
    %4417 = vmatprep.subr.mxu0 0.0
    %4418 = vmatpush1.msra.mxu0 0.0
    %4419 = vmatprep.subr.mxu0 0.0
    %4420 = vmatpush1.msra.mxu0 0.0
    %4421 = vmatprep.subr.mxu0 0.0
    %4422 = vmatpush1.msra.mxu0 0.0
    %4423 = vmatprep.subr.mxu0 0.0
    %4424 = vmatpush1.msra.mxu0 0.0
    %4425 = vmatprep.subr.mxu0 0.0
    %4426 = vmatpush1.msra.mxu0 0.0
    %4427 = vmatprep.subr.mxu0 0.0
    %4428 = vmatpush1.msra.mxu0 0.0
    %4429 = vmatprep.subr.mxu0 0.0
    %4430 = vmatpush1.msra.mxu0 0.0
    %4431 = vmatprep.subr.mxu0 0.0
    %4432 = vmatpush1.msra.mxu0 0.0
    %4433 = vmatprep.subr.mxu0 0.0
    %4434 = vmatpush1.msra.mxu0 0.0
    %4435 = vmatprep.subr.mxu0 0.0
    %4436 = vmatpush1.msra.mxu0 0.0
    %4437 = vmatprep.subr.mxu0 0.0
    %4438 = vmatpush1.msra.mxu0 0.0
    %4439 = vmatprep.subr.mxu0 0.0
    %4440 = vmatpush1.msra.mxu0 0.0
    %4441 = vmatprep.subr.mxu0 0.0
    %4442 = vmatpush1.msra.mxu0 0.0
    %4443 = vmatprep.subr.mxu0 0.0
    %4444 = vmatpush1.msra.mxu0 0.0
    %4445 = vmatprep.subr.mxu0 0.0
    %4446 = vmatpush1.msra.mxu0 0.0
    %4447 = vmatprep.subr.mxu0 0.0
    %4448 = vmatpush1.msra.mxu0 %v4392
    %4449 = vmatprep.subr.mxu0 0.0
    %4450 = vmatpush2.msra.mxu0 0.0
    %4451 = vmatprep.subr.mxu0 0.0
    %4452 = vmatpush2.msra.mxu0 0.0
    %4453 = vmatprep.subr.mxu0 0.0
    %4454 = vmatpush2.msra.mxu0 0.0
    %4455 = vmatprep.subr.mxu0 0.0
    %4456 = vmatpush2.msra.mxu0 0.0
    %4457 = vmatprep.subr.mxu0 0.0
    %4458 = vmatpush2.msra.mxu0 0.0
    %4459 = vmatprep.subr.mxu0 0.0
    %4460 = vmatpush2.msra.mxu0 0.0
    %4461 = vmatprep.subr.mxu0 0.0
    %4462 = vmatpush2.msra.mxu0 0.0
    %4463 = vmatprep.subr.mxu0 0.0
    %4464 = vmatpush2.msra.mxu0 0.0
    %4465 = vmatprep.subr.mxu0 0.0
    %4466 = vmatpush2.msra.mxu0 0.0
    %4467 = vmatprep.subr.mxu0 0.0
    %4468 = vmatpush2.msra.mxu0 0.0
    %4469 = vmatprep.subr.mxu0 0.0
    %4470 = vmatpush2.msra.mxu0 0.0
    %4471 = vmatprep.subr.mxu0 0.0
    %4472 = vmatpush2.msra.mxu0 0.0
    %4473 = vmatprep.subr.mxu0 0.0
    %4474 = vmatpush2.msra.mxu0 0.0
    %4475 = vmatprep.subr.mxu0 0.0
    %4476 = vmatpush2.msra.mxu0 0.0
    %4477 = vmatprep.subr.mxu0 0.0
    %4478 = vmatpush2.msra.mxu0 0.0
    %4479 = vmatprep.subr.mxu0 0.0
    %4480 = vmatpush2.msra.mxu0 0.0
    %4481 = vmatprep.mubr.f32.mxu0 0.0
    %4482 = vmatmul.mubr.f32.gmra.mxu0 %v4394
    %v4483 = vpop.f32.mrf.mxu0
    %v4484 = vadd.f32 0.0, %v4483
    %v4485 = vpop.f32.mrf.mxu0
    %4486 = vmatprep.mubr.f32.mxu0 0.0
    %4487 = vmatmul.mubr.f32.gmra.mxu0 %v4397
    %v4488 = vpop.f32.mrf.mxu0
    %v4489 = vadd.f32 0.0, %v4488
    %v4490 = vpop.f32.mrf.mxu0
    %4491 = vmatprep.mubr.f32.mxu0 0.0
    %4492 = vmatmul.mubr.f32.gmra.mxu0 %v4400
    %v4493 = vpop.f32.mrf.mxu0
    %v4494 = vadd.f32 0.0, %v4493
    %v4495 = vpop.f32.mrf.mxu0
    %4496 = vmatprep.mubr.f32.mxu0 0.0
    %4497 = vmatmul.mubr.f32.gmra.mxu0 %v4403
    %v4498 = vpop.f32.mrf.mxu0
    %v4499 = vadd.f32 0.0, %v4498
    %v4500 = vpop.f32.mrf.mxu0
    %4501 = vmatprep.mubr.f32.mxu0 0.0
    %4502 = vmatmul.mubr.f32.gmra.mxu0 %v4406
    %v4503 = vpop.f32.mrf.mxu0
    %v4504 = vadd.f32 0.0, %v4503
    %v4505 = vpop.f32.mrf.mxu0
    %4506 = vmatprep.mubr.f32.mxu0 0.0
    %4507 = vmatmul.mubr.f32.gmra.mxu0 %v4409
    %v4508 = vpop.f32.mrf.mxu0
    %v4509 = vadd.f32 0.0, %v4508
    %v4510 = vpop.f32.mrf.mxu0
    %4511 = vmatprep.mubr.f32.mxu0 0.0
    %4512 = vmatmul.mubr.f32.gmra.mxu0 %v4412
    %v4513 = vpop.f32.mrf.mxu0
    %v4514 = vadd.f32 0.0, %v4513
    %v4515 = vpop.f32.mrf.mxu0
    %4516 = vmatprep.mubr.f32.mxu0 0.0
    %4517 = vmatmul.mubr.f32.gmra.mxu0 %v4415
    %v4518 = vpop.f32.mrf.mxu0
    %v4519 = vadd.f32 0.0, %v4518
    %v4520 = vpop.f32.mrf.mxu0
    %4521 = vdwg.mxu0
    %v4522 = vadd.f32 %v4375, %v4484
    %v4523 = vadd.f32 %v4376, %v4489
    %v4524 = vadd.f32 %v4377, %v4494
    %v4525 = vadd.f32 %v4378, %v4499
    %v4526 = vadd.f32 %v4379, %v4504
    %v4527 = vadd.f32 %v4380, %v4509
    %v4528 = vadd.f32 %v4381, %v4514
    %v4529 = vadd.f32 %v4382, %v4519
    %v4530 = vld [vmem:[%s3950 + $0x1] sm:$0xff]
    %v4531 = vld [vmem:[%s3950 + $0x11] sm:$0xff]
    %v4532 = vld [vmem:[%s3950 + $0x21] sm:$0xff]
    %v4533 = vld [vmem:[%s3950 + $0x31] sm:$0xff]
    %v4534 = vld [vmem:[%s3950 + $0x41] sm:$0xff]
    %v4535 = vld [vmem:[%s3950 + $0x51] sm:$0xff]
    %v4536 = vld [vmem:[%s3950 + $0x61] sm:$0xff]
    %v4537 = vld [vmem:[%s3950 + $0x71] sm:$0xff]
    %s4538 = scalar_lea.vmem %s3, 32
    %v4539 = vld [vmem:[%s4538] sm:$0xff]
    %v4541 = vsel %vm143, %v4530, 0
    %v4544 = vsel %vm143, %v4531, 0
    %v4547 = vsel %vm143, %v4532, 0
    %v4550 = vsel %vm143, %v4533, 0
    %v4553 = vsel %vm143, %v4534, 0
    %v4556 = vsel %vm143, %v4535, 0
    %v4559 = vsel %vm143, %v4536, 0
    %v4562 = vsel %vm143, %v4537, 0
    %4564 = vmatprep.subr.mxu0 0.0
    %4565 = vmatpush1.msra.mxu0 0.0
    %4566 = vmatprep.subr.mxu0 0.0
    %4567 = vmatpush1.msra.mxu0 0.0
    %4568 = vmatprep.subr.mxu0 0.0
    %4569 = vmatpush1.msra.mxu0 0.0
    %4570 = vmatprep.subr.mxu0 0.0
    %4571 = vmatpush1.msra.mxu0 0.0
    %4572 = vmatprep.subr.mxu0 0.0
    %4573 = vmatpush1.msra.mxu0 0.0
    %4574 = vmatprep.subr.mxu0 0.0
    %4575 = vmatpush1.msra.mxu0 0.0
    %4576 = vmatprep.subr.mxu0 0.0
    %4577 = vmatpush1.msra.mxu0 0.0
    %4578 = vmatprep.subr.mxu0 0.0
    %4579 = vmatpush1.msra.mxu0 0.0
    %4580 = vmatprep.subr.mxu0 0.0
    %4581 = vmatpush1.msra.mxu0 0.0
    %4582 = vmatprep.subr.mxu0 0.0
    %4583 = vmatpush1.msra.mxu0 0.0
    %4584 = vmatprep.subr.mxu0 0.0
    %4585 = vmatpush1.msra.mxu0 0.0
    %4586 = vmatprep.subr.mxu0 0.0
    %4587 = vmatpush1.msra.mxu0 0.0
    %4588 = vmatprep.subr.mxu0 0.0
    %4589 = vmatpush1.msra.mxu0 0.0
    %4590 = vmatprep.subr.mxu0 0.0
    %4591 = vmatpush1.msra.mxu0 0.0
    %4592 = vmatprep.subr.mxu0 0.0
    %4593 = vmatpush1.msra.mxu0 0.0
    %4594 = vmatprep.subr.mxu0 0.0
    %4595 = vmatpush1.msra.mxu0 %v4539
    %4596 = vmatprep.subr.mxu0 0.0
    %4597 = vmatpush2.msra.mxu0 0.0
    %4598 = vmatprep.subr.mxu0 0.0
    %4599 = vmatpush2.msra.mxu0 0.0
    %4600 = vmatprep.subr.mxu0 0.0
    %4601 = vmatpush2.msra.mxu0 0.0
    %4602 = vmatprep.subr.mxu0 0.0
    %4603 = vmatpush2.msra.mxu0 0.0
    %4604 = vmatprep.subr.mxu0 0.0
    %4605 = vmatpush2.msra.mxu0 0.0
    %4606 = vmatprep.subr.mxu0 0.0
    %4607 = vmatpush2.msra.mxu0 0.0
    %4608 = vmatprep.subr.mxu0 0.0
    %4609 = vmatpush2.msra.mxu0 0.0
    %4610 = vmatprep.subr.mxu0 0.0
    %4611 = vmatpush2.msra.mxu0 0.0
    %4612 = vmatprep.subr.mxu0 0.0
    %4613 = vmatpush2.msra.mxu0 0.0
    %4614 = vmatprep.subr.mxu0 0.0
    %4615 = vmatpush2.msra.mxu0 0.0
    %4616 = vmatprep.subr.mxu0 0.0
    %4617 = vmatpush2.msra.mxu0 0.0
    %4618 = vmatprep.subr.mxu0 0.0
    %4619 = vmatpush2.msra.mxu0 0.0
    %4620 = vmatprep.subr.mxu0 0.0
    %4621 = vmatpush2.msra.mxu0 0.0
    %4622 = vmatprep.subr.mxu0 0.0
    %4623 = vmatpush2.msra.mxu0 0.0
    %4624 = vmatprep.subr.mxu0 0.0
    %4625 = vmatpush2.msra.mxu0 0.0
    %4626 = vmatprep.subr.mxu0 0.0
    %4627 = vmatpush2.msra.mxu0 0.0
    %4628 = vmatprep.mubr.f32.mxu0 0.0
    %4629 = vmatmul.mubr.f32.gmra.mxu0 %v4541
    %v4630 = vpop.f32.mrf.mxu0
    %v4631 = vadd.f32 0.0, %v4630
    %v4632 = vpop.f32.mrf.mxu0
    %4633 = vmatprep.mubr.f32.mxu0 0.0
    %4634 = vmatmul.mubr.f32.gmra.mxu0 %v4544
    %v4635 = vpop.f32.mrf.mxu0
    %v4636 = vadd.f32 0.0, %v4635
    %v4637 = vpop.f32.mrf.mxu0
    %4638 = vmatprep.mubr.f32.mxu0 0.0
    %4639 = vmatmul.mubr.f32.gmra.mxu0 %v4547
    %v4640 = vpop.f32.mrf.mxu0
    %v4641 = vadd.f32 0.0, %v4640
    %v4642 = vpop.f32.mrf.mxu0
    %4643 = vmatprep.mubr.f32.mxu0 0.0
    %4644 = vmatmul.mubr.f32.gmra.mxu0 %v4550
    %v4645 = vpop.f32.mrf.mxu0
    %v4646 = vadd.f32 0.0, %v4645
    %v4647 = vpop.f32.mrf.mxu0
    %4648 = vmatprep.mubr.f32.mxu0 0.0
    %4649 = vmatmul.mubr.f32.gmra.mxu0 %v4553
    %v4650 = vpop.f32.mrf.mxu0
    %v4651 = vadd.f32 0.0, %v4650
    %v4652 = vpop.f32.mrf.mxu0
    %4653 = vmatprep.mubr.f32.mxu0 0.0
    %4654 = vmatmul.mubr.f32.gmra.mxu0 %v4556
    %v4655 = vpop.f32.mrf.mxu0
    %v4656 = vadd.f32 0.0, %v4655
    %v4657 = vpop.f32.mrf.mxu0
    %4658 = vmatprep.mubr.f32.mxu0 0.0
    %4659 = vmatmul.mubr.f32.gmra.mxu0 %v4559
    %v4660 = vpop.f32.mrf.mxu0
    %v4661 = vadd.f32 0.0, %v4660
    %v4662 = vpop.f32.mrf.mxu0
    %4663 = vmatprep.mubr.f32.mxu0 0.0
    %4664 = vmatmul.mubr.f32.gmra.mxu0 %v4562
    %v4665 = vpop.f32.mrf.mxu0
    %v4666 = vadd.f32 0.0, %v4665
    %v4667 = vpop.f32.mrf.mxu0
    %4668 = vdwg.mxu0
    %v4669 = vadd.f32 %v4522, %v4631
    %v4670 = vadd.f32 %v4523, %v4636
    %v4671 = vadd.f32 %v4524, %v4641
    %v4672 = vadd.f32 %v4525, %v4646
    %v4673 = vadd.f32 %v4526, %v4651
    %v4674 = vadd.f32 %v4527, %v4656
    %v4675 = vadd.f32 %v4528, %v4661
    %v4676 = vadd.f32 %v4529, %v4666
    %v4677 = vld [vmem:[%s3950 + $0x2] sm:$0xff]
    %v4678 = vld [vmem:[%s3950 + $0x12] sm:$0xff]
    %v4679 = vld [vmem:[%s3950 + $0x22] sm:$0xff]
    %v4680 = vld [vmem:[%s3950 + $0x32] sm:$0xff]
    %v4681 = vld [vmem:[%s3950 + $0x42] sm:$0xff]
    %v4682 = vld [vmem:[%s3950 + $0x52] sm:$0xff]
    %v4683 = vld [vmem:[%s3950 + $0x62] sm:$0xff]
    %v4684 = vld [vmem:[%s3950 + $0x72] sm:$0xff]
    %s4685 = scalar_lea.vmem %s3, 40
    %v4686 = vld [vmem:[%s4685] sm:$0xff]
    %v4688 = vsel %vm143, %v4677, 0
    %v4691 = vsel %vm143, %v4678, 0
    %v4694 = vsel %vm143, %v4679, 0
    %v4697 = vsel %vm143, %v4680, 0
    %v4700 = vsel %vm143, %v4681, 0
    %v4703 = vsel %vm143, %v4682, 0
    %v4706 = vsel %vm143, %v4683, 0
    %v4709 = vsel %vm143, %v4684, 0
    %4711 = vmatprep.subr.mxu0 0.0
    %4712 = vmatpush1.msra.mxu0 0.0
    %4713 = vmatprep.subr.mxu0 0.0
    %4714 = vmatpush1.msra.mxu0 0.0
    %4715 = vmatprep.subr.mxu0 0.0
    %4716 = vmatpush1.msra.mxu0 0.0
    %4717 = vmatprep.subr.mxu0 0.0
    %4718 = vmatpush1.msra.mxu0 0.0
    %4719 = vmatprep.subr.mxu0 0.0
    %4720 = vmatpush1.msra.mxu0 0.0
    %4721 = vmatprep.subr.mxu0 0.0
    %4722 = vmatpush1.msra.mxu0 0.0
    %4723 = vmatprep.subr.mxu0 0.0
    %4724 = vmatpush1.msra.mxu0 0.0
    %4725 = vmatprep.subr.mxu0 0.0
    %4726 = vmatpush1.msra.mxu0 0.0
    %4727 = vmatprep.subr.mxu0 0.0
    %4728 = vmatpush1.msra.mxu0 0.0
    %4729 = vmatprep.subr.mxu0 0.0
    %4730 = vmatpush1.msra.mxu0 0.0
    %4731 = vmatprep.subr.mxu0 0.0
    %4732 = vmatpush1.msra.mxu0 0.0
    %4733 = vmatprep.subr.mxu0 0.0
    %4734 = vmatpush1.msra.mxu0 0.0
    %4735 = vmatprep.subr.mxu0 0.0
    %4736 = vmatpush1.msra.mxu0 0.0
    %4737 = vmatprep.subr.mxu0 0.0
    %4738 = vmatpush1.msra.mxu0 0.0
    %4739 = vmatprep.subr.mxu0 0.0
    %4740 = vmatpush1.msra.mxu0 0.0
    %4741 = vmatprep.subr.mxu0 0.0
    %4742 = vmatpush1.msra.mxu0 %v4686
    %4743 = vmatprep.subr.mxu0 0.0
    %4744 = vmatpush2.msra.mxu0 0.0
    %4745 = vmatprep.subr.mxu0 0.0
    %4746 = vmatpush2.msra.mxu0 0.0
    %4747 = vmatprep.subr.mxu0 0.0
    %4748 = vmatpush2.msra.mxu0 0.0
    %4749 = vmatprep.subr.mxu0 0.0
    %4750 = vmatpush2.msra.mxu0 0.0
    %4751 = vmatprep.subr.mxu0 0.0
    %4752 = vmatpush2.msra.mxu0 0.0
    %4753 = vmatprep.subr.mxu0 0.0
    %4754 = vmatpush2.msra.mxu0 0.0
    %4755 = vmatprep.subr.mxu0 0.0
    %4756 = vmatpush2.msra.mxu0 0.0
    %4757 = vmatprep.subr.mxu0 0.0
    %4758 = vmatpush2.msra.mxu0 0.0
    %4759 = vmatprep.subr.mxu0 0.0
    %4760 = vmatpush2.msra.mxu0 0.0
    %4761 = vmatprep.subr.mxu0 0.0
    %4762 = vmatpush2.msra.mxu0 0.0
    %4763 = vmatprep.subr.mxu0 0.0
    %4764 = vmatpush2.msra.mxu0 0.0
    %4765 = vmatprep.subr.mxu0 0.0
    %4766 = vmatpush2.msra.mxu0 0.0
    %4767 = vmatprep.subr.mxu0 0.0
    %4768 = vmatpush2.msra.mxu0 0.0
    %4769 = vmatprep.subr.mxu0 0.0
    %4770 = vmatpush2.msra.mxu0 0.0
    %4771 = vmatprep.subr.mxu0 0.0
    %4772 = vmatpush2.msra.mxu0 0.0
    %4773 = vmatprep.subr.mxu0 0.0
    %4774 = vmatpush2.msra.mxu0 0.0
    %4775 = vmatprep.mubr.f32.mxu0 0.0
    %4776 = vmatmul.mubr.f32.gmra.mxu0 %v4688
    %v4777 = vpop.f32.mrf.mxu0
    %v4778 = vadd.f32 0.0, %v4777
    %v4779 = vpop.f32.mrf.mxu0
    %4780 = vmatprep.mubr.f32.mxu0 0.0
    %4781 = vmatmul.mubr.f32.gmra.mxu0 %v4691
    %v4782 = vpop.f32.mrf.mxu0
    %v4783 = vadd.f32 0.0, %v4782
    %v4784 = vpop.f32.mrf.mxu0
    %4785 = vmatprep.mubr.f32.mxu0 0.0
    %4786 = vmatmul.mubr.f32.gmra.mxu0 %v4694
    %v4787 = vpop.f32.mrf.mxu0
    %v4788 = vadd.f32 0.0, %v4787
    %v4789 = vpop.f32.mrf.mxu0
    %4790 = vmatprep.mubr.f32.mxu0 0.0
    %4791 = vmatmul.mubr.f32.gmra.mxu0 %v4697
    %v4792 = vpop.f32.mrf.mxu0
    %v4793 = vadd.f32 0.0, %v4792
    %v4794 = vpop.f32.mrf.mxu0
    %4795 = vmatprep.mubr.f32.mxu0 0.0
    %4796 = vmatmul.mubr.f32.gmra.mxu0 %v4700
    %v4797 = vpop.f32.mrf.mxu0
    %v4798 = vadd.f32 0.0, %v4797
    %v4799 = vpop.f32.mrf.mxu0
    %4800 = vmatprep.mubr.f32.mxu0 0.0
    %4801 = vmatmul.mubr.f32.gmra.mxu0 %v4703
    %v4802 = vpop.f32.mrf.mxu0
    %v4803 = vadd.f32 0.0, %v4802
    %v4804 = vpop.f32.mrf.mxu0
    %4805 = vmatprep.mubr.f32.mxu0 0.0
    %4806 = vmatmul.mubr.f32.gmra.mxu0 %v4706
    %v4807 = vpop.f32.mrf.mxu0
    %v4808 = vadd.f32 0.0, %v4807
    %v4809 = vpop.f32.mrf.mxu0
    %4810 = vmatprep.mubr.f32.mxu0 0.0
    %4811 = vmatmul.mubr.f32.gmra.mxu0 %v4709
    %v4812 = vpop.f32.mrf.mxu0
    %v4813 = vadd.f32 0.0, %v4812
    %v4814 = vpop.f32.mrf.mxu0
    %4815 = vdwg.mxu0
    %v4816 = vadd.f32 %v4669, %v4778
    %v4817 = vadd.f32 %v4670, %v4783
    %v4818 = vadd.f32 %v4671, %v4788
    %v4819 = vadd.f32 %v4672, %v4793
    %v4820 = vadd.f32 %v4673, %v4798
    %v4821 = vadd.f32 %v4674, %v4803
    %v4822 = vadd.f32 %v4675, %v4808
    %v4823 = vadd.f32 %v4676, %v4813
    %s4824 = scalar_lea.vmem [#allocation5], 32
    %v4825 = vld [vmem:[%s4824] sm:$0xff]
    %v4826 = vld [vmem:[%s4824 + $0x10] sm:$0xff]
    %v4827 = vld [vmem:[%s4824 + $0x20] sm:$0xff]
    %v4828 = vld [vmem:[%s4824 + $0x30] sm:$0xff]
    %v4829 = vld [vmem:[%s4824 + $0x40] sm:$0xff]
    %v4830 = vld [vmem:[%s4824 + $0x50] sm:$0xff]
    %v4831 = vld [vmem:[%s4824 + $0x60] sm:$0xff]
    %v4832 = vld [vmem:[%s4824 + $0x70] sm:$0xff]
    %s4833 = scalar_lea.vmem %s3, 48
    %v4834 = vld [vmem:[%s4833] sm:$0xff]
    %v4836 = vsel %vm143, %v4825, 0
    %v4839 = vsel %vm143, %v4826, 0
    %v4842 = vsel %vm143, %v4827, 0
    %v4845 = vsel %vm143, %v4828, 0
    %v4848 = vsel %vm143, %v4829, 0
    %v4851 = vsel %vm143, %v4830, 0
    %v4854 = vsel %vm143, %v4831, 0
    %v4857 = vsel %vm143, %v4832, 0
    %4859 = vmatprep.subr.mxu0 0.0
    %4860 = vmatpush1.msra.mxu0 0.0
    %4861 = vmatprep.subr.mxu0 0.0
    %4862 = vmatpush1.msra.mxu0 0.0
    %4863 = vmatprep.subr.mxu0 0.0
    %4864 = vmatpush1.msra.mxu0 0.0
    %4865 = vmatprep.subr.mxu0 0.0
    %4866 = vmatpush1.msra.mxu0 0.0
    %4867 = vmatprep.subr.mxu0 0.0
    %4868 = vmatpush1.msra.mxu0 0.0
    %4869 = vmatprep.subr.mxu0 0.0
    %4870 = vmatpush1.msra.mxu0 0.0
    %4871 = vmatprep.subr.mxu0 0.0
    %4872 = vmatpush1.msra.mxu0 0.0
    %4873 = vmatprep.subr.mxu0 0.0
    %4874 = vmatpush1.msra.mxu0 0.0
    %4875 = vmatprep.subr.mxu0 0.0
    %4876 = vmatpush1.msra.mxu0 0.0
    %4877 = vmatprep.subr.mxu0 0.0
    %4878 = vmatpush1.msra.mxu0 0.0
    %4879 = vmatprep.subr.mxu0 0.0
    %4880 = vmatpush1.msra.mxu0 0.0
    %4881 = vmatprep.subr.mxu0 0.0
    %4882 = vmatpush1.msra.mxu0 0.0
    %4883 = vmatprep.subr.mxu0 0.0
    %4884 = vmatpush1.msra.mxu0 0.0
    %4885 = vmatprep.subr.mxu0 0.0
    %4886 = vmatpush1.msra.mxu0 0.0
    %4887 = vmatprep.subr.mxu0 0.0
    %4888 = vmatpush1.msra.mxu0 0.0
    %4889 = vmatprep.subr.mxu0 0.0
    %4890 = vmatpush1.msra.mxu0 %v4834
    %4891 = vmatprep.subr.mxu0 0.0
    %4892 = vmatpush2.msra.mxu0 0.0
    %4893 = vmatprep.subr.mxu0 0.0
    %4894 = vmatpush2.msra.mxu0 0.0
    %4895 = vmatprep.subr.mxu0 0.0
    %4896 = vmatpush2.msra.mxu0 0.0
    %4897 = vmatprep.subr.mxu0 0.0
    %4898 = vmatpush2.msra.mxu0 0.0
    %4899 = vmatprep.subr.mxu0 0.0
    %4900 = vmatpush2.msra.mxu0 0.0
    %4901 = vmatprep.subr.mxu0 0.0
    %4902 = vmatpush2.msra.mxu0 0.0
    %4903 = vmatprep.subr.mxu0 0.0
    %4904 = vmatpush2.msra.mxu0 0.0
    %4905 = vmatprep.subr.mxu0 0.0
    %4906 = vmatpush2.msra.mxu0 0.0
    %4907 = vmatprep.subr.mxu0 0.0
    %4908 = vmatpush2.msra.mxu0 0.0
    %4909 = vmatprep.subr.mxu0 0.0
    %4910 = vmatpush2.msra.mxu0 0.0
    %4911 = vmatprep.subr.mxu0 0.0
    %4912 = vmatpush2.msra.mxu0 0.0
    %4913 = vmatprep.subr.mxu0 0.0
    %4914 = vmatpush2.msra.mxu0 0.0
    %4915 = vmatprep.subr.mxu0 0.0
    %4916 = vmatpush2.msra.mxu0 0.0
    %4917 = vmatprep.subr.mxu0 0.0
    %4918 = vmatpush2.msra.mxu0 0.0
    %4919 = vmatprep.subr.mxu0 0.0
    %4920 = vmatpush2.msra.mxu0 0.0
    %4921 = vmatprep.subr.mxu0 0.0
    %4922 = vmatpush2.msra.mxu0 0.0
    %4923 = vmatprep.mubr.f32.mxu0 0.0
    %4924 = vmatmul.mubr.f32.gmra.mxu0 %v4836
    %v4925 = vpop.f32.mrf.mxu0
    %v4926 = vadd.f32 0.0, %v4925
    %v4927 = vpop.f32.mrf.mxu0
    %4928 = vmatprep.mubr.f32.mxu0 0.0
    %4929 = vmatmul.mubr.f32.gmra.mxu0 %v4839
    %v4930 = vpop.f32.mrf.mxu0
    %v4931 = vadd.f32 0.0, %v4930
    %v4932 = vpop.f32.mrf.mxu0
    %4933 = vmatprep.mubr.f32.mxu0 0.0
    %4934 = vmatmul.mubr.f32.gmra.mxu0 %v4842
    %v4935 = vpop.f32.mrf.mxu0
    %v4936 = vadd.f32 0.0, %v4935
    %v4937 = vpop.f32.mrf.mxu0
    %4938 = vmatprep.mubr.f32.mxu0 0.0
    %4939 = vmatmul.mubr.f32.gmra.mxu0 %v4845
    %v4940 = vpop.f32.mrf.mxu0
    %v4941 = vadd.f32 0.0, %v4940
    %v4942 = vpop.f32.mrf.mxu0
    %4943 = vmatprep.mubr.f32.mxu0 0.0
    %4944 = vmatmul.mubr.f32.gmra.mxu0 %v4848
    %v4945 = vpop.f32.mrf.mxu0
    %v4946 = vadd.f32 0.0, %v4945
    %v4947 = vpop.f32.mrf.mxu0
    %4948 = vmatprep.mubr.f32.mxu0 0.0
    %4949 = vmatmul.mubr.f32.gmra.mxu0 %v4851
    %v4950 = vpop.f32.mrf.mxu0
    %v4951 = vadd.f32 0.0, %v4950
    %v4952 = vpop.f32.mrf.mxu0
    %4953 = vmatprep.mubr.f32.mxu0 0.0
    %4954 = vmatmul.mubr.f32.gmra.mxu0 %v4854
    %v4955 = vpop.f32.mrf.mxu0
    %v4956 = vadd.f32 0.0, %v4955
    %v4957 = vpop.f32.mrf.mxu0
    %4958 = vmatprep.mubr.f32.mxu0 0.0
    %4959 = vmatmul.mubr.f32.gmra.mxu0 %v4857
    %v4960 = vpop.f32.mrf.mxu0
    %v4961 = vadd.f32 0.0, %v4960
    %v4962 = vpop.f32.mrf.mxu0
    %4963 = vdwg.mxu0
    %v4964 = vadd.f32 %v4816, %v4926
    %v4965 = vadd.f32 %v4817, %v4931
    %v4966 = vadd.f32 %v4818, %v4936
    %v4967 = vadd.f32 %v4819, %v4941
    %v4968 = vadd.f32 %v4820, %v4946
    %v4969 = vadd.f32 %v4821, %v4951
    %v4970 = vadd.f32 %v4822, %v4956
    %v4971 = vadd.f32 %v4823, %v4961
    %v4972 = vld [vmem:[%s4824 + $0x1] sm:$0xff]
    %v4973 = vld [vmem:[%s4824 + $0x11] sm:$0xff]
    %v4974 = vld [vmem:[%s4824 + $0x21] sm:$0xff]
    %v4975 = vld [vmem:[%s4824 + $0x31] sm:$0xff]
    %v4976 = vld [vmem:[%s4824 + $0x41] sm:$0xff]
    %v4977 = vld [vmem:[%s4824 + $0x51] sm:$0xff]
    %v4978 = vld [vmem:[%s4824 + $0x61] sm:$0xff]
    %v4979 = vld [vmem:[%s4824 + $0x71] sm:$0xff]
    %s4980 = scalar_lea.vmem %s3, 56
    %v4981 = vld [vmem:[%s4980] sm:$0xff]
    %v4983 = vsel %vm143, %v4972, 0
    %v4986 = vsel %vm143, %v4973, 0
    %v4989 = vsel %vm143, %v4974, 0
    %v4992 = vsel %vm143, %v4975, 0
    %v4995 = vsel %vm143, %v4976, 0
    %v4998 = vsel %vm143, %v4977, 0
    %v5001 = vsel %vm143, %v4978, 0
    %v5004 = vsel %vm143, %v4979, 0
    %5006 = vmatprep.subr.mxu0 0.0
    %5007 = vmatpush1.msra.mxu0 0.0
    %5008 = vmatprep.subr.mxu0 0.0
    %5009 = vmatpush1.msra.mxu0 0.0
    %5010 = vmatprep.subr.mxu0 0.0
    %5011 = vmatpush1.msra.mxu0 0.0
    %5012 = vmatprep.subr.mxu0 0.0
    %5013 = vmatpush1.msra.mxu0 0.0
    %5014 = vmatprep.subr.mxu0 0.0
    %5015 = vmatpush1.msra.mxu0 0.0
    %5016 = vmatprep.subr.mxu0 0.0
    %5017 = vmatpush1.msra.mxu0 0.0
    %5018 = vmatprep.subr.mxu0 0.0
    %5019 = vmatpush1.msra.mxu0 0.0
    %5020 = vmatprep.subr.mxu0 0.0
    %5021 = vmatpush1.msra.mxu0 0.0
    %5022 = vmatprep.subr.mxu0 0.0
    %5023 = vmatpush1.msra.mxu0 0.0
    %5024 = vmatprep.subr.mxu0 0.0
    %5025 = vmatpush1.msra.mxu0 0.0
    %5026 = vmatprep.subr.mxu0 0.0
    %5027 = vmatpush1.msra.mxu0 0.0
    %5028 = vmatprep.subr.mxu0 0.0
    %5029 = vmatpush1.msra.mxu0 0.0
    %5030 = vmatprep.subr.mxu0 0.0
    %5031 = vmatpush1.msra.mxu0 0.0
    %5032 = vmatprep.subr.mxu0 0.0
    %5033 = vmatpush1.msra.mxu0 0.0
    %5034 = vmatprep.subr.mxu0 0.0
    %5035 = vmatpush1.msra.mxu0 0.0
    %5036 = vmatprep.subr.mxu0 0.0
    %5037 = vmatpush1.msra.mxu0 %v4981
    %5038 = vmatprep.subr.mxu0 0.0
    %5039 = vmatpush2.msra.mxu0 0.0
    %5040 = vmatprep.subr.mxu0 0.0
    %5041 = vmatpush2.msra.mxu0 0.0
    %5042 = vmatprep.subr.mxu0 0.0
    %5043 = vmatpush2.msra.mxu0 0.0
    %5044 = vmatprep.subr.mxu0 0.0
    %5045 = vmatpush2.msra.mxu0 0.0
    %5046 = vmatprep.subr.mxu0 0.0
    %5047 = vmatpush2.msra.mxu0 0.0
    %5048 = vmatprep.subr.mxu0 0.0
    %5049 = vmatpush2.msra.mxu0 0.0
    %5050 = vmatprep.subr.mxu0 0.0
    %5051 = vmatpush2.msra.mxu0 0.0
    %5052 = vmatprep.subr.mxu0 0.0
    %5053 = vmatpush2.msra.mxu0 0.0
    %5054 = vmatprep.subr.mxu0 0.0
    %5055 = vmatpush2.msra.mxu0 0.0
    %5056 = vmatprep.subr.mxu0 0.0
    %5057 = vmatpush2.msra.mxu0 0.0
    %5058 = vmatprep.subr.mxu0 0.0
    %5059 = vmatpush2.msra.mxu0 0.0
    %5060 = vmatprep.subr.mxu0 0.0
    %5061 = vmatpush2.msra.mxu0 0.0
    %5062 = vmatprep.subr.mxu0 0.0
    %5063 = vmatpush2.msra.mxu0 0.0
    %5064 = vmatprep.subr.mxu0 0.0
    %5065 = vmatpush2.msra.mxu0 0.0
    %5066 = vmatprep.subr.mxu0 0.0
    %5067 = vmatpush2.msra.mxu0 0.0
    %5068 = vmatprep.subr.mxu0 0.0
    %5069 = vmatpush2.msra.mxu0 0.0
    %5070 = vmatprep.mubr.f32.mxu0 0.0
    %5071 = vmatmul.mubr.f32.gmra.mxu0 %v4983
    %v5072 = vpop.f32.mrf.mxu0
    %v5073 = vadd.f32 0.0, %v5072
    %v5074 = vpop.f32.mrf.mxu0
    %5075 = vmatprep.mubr.f32.mxu0 0.0
    %5076 = vmatmul.mubr.f32.gmra.mxu0 %v4986
    %v5077 = vpop.f32.mrf.mxu0
    %v5078 = vadd.f32 0.0, %v5077
    %v5079 = vpop.f32.mrf.mxu0
    %5080 = vmatprep.mubr.f32.mxu0 0.0
    %5081 = vmatmul.mubr.f32.gmra.mxu0 %v4989
    %v5082 = vpop.f32.mrf.mxu0
    %v5083 = vadd.f32 0.0, %v5082
    %v5084 = vpop.f32.mrf.mxu0
    %5085 = vmatprep.mubr.f32.mxu0 0.0
    %5086 = vmatmul.mubr.f32.gmra.mxu0 %v4992
    %v5087 = vpop.f32.mrf.mxu0
    %v5088 = vadd.f32 0.0, %v5087
    %v5089 = vpop.f32.mrf.mxu0
    %5090 = vmatprep.mubr.f32.mxu0 0.0
    %5091 = vmatmul.mubr.f32.gmra.mxu0 %v4995
    %v5092 = vpop.f32.mrf.mxu0
    %v5093 = vadd.f32 0.0, %v5092
    %v5094 = vpop.f32.mrf.mxu0
    %5095 = vmatprep.mubr.f32.mxu0 0.0
    %5096 = vmatmul.mubr.f32.gmra.mxu0 %v4998
    %v5097 = vpop.f32.mrf.mxu0
    %v5098 = vadd.f32 0.0, %v5097
    %v5099 = vpop.f32.mrf.mxu0
    %5100 = vmatprep.mubr.f32.mxu0 0.0
    %5101 = vmatmul.mubr.f32.gmra.mxu0 %v5001
    %v5102 = vpop.f32.mrf.mxu0
    %v5103 = vadd.f32 0.0, %v5102
    %v5104 = vpop.f32.mrf.mxu0
    %5105 = vmatprep.mubr.f32.mxu0 0.0
    %5106 = vmatmul.mubr.f32.gmra.mxu0 %v5004
    %v5107 = vpop.f32.mrf.mxu0
    %v5108 = vadd.f32 0.0, %v5107
    %v5109 = vpop.f32.mrf.mxu0
    %5110 = vdwg.mxu0
    %v5111 = vadd.f32 %v4964, %v5073
    %v5112 = vadd.f32 %v4965, %v5078
    %v5113 = vadd.f32 %v4966, %v5083
    %v5114 = vadd.f32 %v4967, %v5088
    %v5115 = vadd.f32 %v4968, %v5093
    %v5116 = vadd.f32 %v4969, %v5098
    %v5117 = vadd.f32 %v4970, %v5103
    %v5118 = vadd.f32 %v4971, %v5108
    %v5119 = vld [vmem:[%s4824 + $0x2] sm:$0xff]
    %v5120 = vld [vmem:[%s4824 + $0x12] sm:$0xff]
    %v5121 = vld [vmem:[%s4824 + $0x22] sm:$0xff]
    %v5122 = vld [vmem:[%s4824 + $0x32] sm:$0xff]
    %v5123 = vld [vmem:[%s4824 + $0x42] sm:$0xff]
    %v5124 = vld [vmem:[%s4824 + $0x52] sm:$0xff]
    %v5125 = vld [vmem:[%s4824 + $0x62] sm:$0xff]
    %v5126 = vld [vmem:[%s4824 + $0x72] sm:$0xff]
    %s5127 = scalar_lea.vmem %s3, 64
    %v5128 = vld [vmem:[%s5127] sm:$0xff]
    %v5130 = vsel %vm143, %v5119, 0
    %v5133 = vsel %vm143, %v5120, 0
    %v5136 = vsel %vm143, %v5121, 0
    %v5139 = vsel %vm143, %v5122, 0
    %v5142 = vsel %vm143, %v5123, 0
    %v5145 = vsel %vm143, %v5124, 0
    %v5148 = vsel %vm143, %v5125, 0
    %v5151 = vsel %vm143, %v5126, 0
    %5153 = vmatprep.subr.mxu0 0.0
    %5154 = vmatpush1.msra.mxu0 0.0
    %5155 = vmatprep.subr.mxu0 0.0
    %5156 = vmatpush1.msra.mxu0 0.0
    %5157 = vmatprep.subr.mxu0 0.0
    %5158 = vmatpush1.msra.mxu0 0.0
    %5159 = vmatprep.subr.mxu0 0.0
    %5160 = vmatpush1.msra.mxu0 0.0
    %5161 = vmatprep.subr.mxu0 0.0
    %5162 = vmatpush1.msra.mxu0 0.0
    %5163 = vmatprep.subr.mxu0 0.0
    %5164 = vmatpush1.msra.mxu0 0.0
    %5165 = vmatprep.subr.mxu0 0.0
    %5166 = vmatpush1.msra.mxu0 0.0
    %5167 = vmatprep.subr.mxu0 0.0
    %5168 = vmatpush1.msra.mxu0 0.0
    %5169 = vmatprep.subr.mxu0 0.0
    %5170 = vmatpush1.msra.mxu0 0.0
    %5171 = vmatprep.subr.mxu0 0.0
    %5172 = vmatpush1.msra.mxu0 0.0
    %5173 = vmatprep.subr.mxu0 0.0
    %5174 = vmatpush1.msra.mxu0 0.0
    %5175 = vmatprep.subr.mxu0 0.0
    %5176 = vmatpush1.msra.mxu0 0.0
    %5177 = vmatprep.subr.mxu0 0.0
    %5178 = vmatpush1.msra.mxu0 0.0
    %5179 = vmatprep.subr.mxu0 0.0
    %5180 = vmatpush1.msra.mxu0 0.0
    %5181 = vmatprep.subr.mxu0 0.0
    %5182 = vmatpush1.msra.mxu0 0.0
    %5183 = vmatprep.subr.mxu0 0.0
    %5184 = vmatpush1.msra.mxu0 %v5128
    %5185 = vmatprep.subr.mxu0 0.0
    %5186 = vmatpush2.msra.mxu0 0.0
    %5187 = vmatprep.subr.mxu0 0.0
    %5188 = vmatpush2.msra.mxu0 0.0
    %5189 = vmatprep.subr.mxu0 0.0
    %5190 = vmatpush2.msra.mxu0 0.0
    %5191 = vmatprep.subr.mxu0 0.0
    %5192 = vmatpush2.msra.mxu0 0.0
    %5193 = vmatprep.subr.mxu0 0.0
    %5194 = vmatpush2.msra.mxu0 0.0
    %5195 = vmatprep.subr.mxu0 0.0
    %5196 = vmatpush2.msra.mxu0 0.0
    %5197 = vmatprep.subr.mxu0 0.0
    %5198 = vmatpush2.msra.mxu0 0.0
    %5199 = vmatprep.subr.mxu0 0.0
    %5200 = vmatpush2.msra.mxu0 0.0
    %5201 = vmatprep.subr.mxu0 0.0
    %5202 = vmatpush2.msra.mxu0 0.0
    %5203 = vmatprep.subr.mxu0 0.0
    %5204 = vmatpush2.msra.mxu0 0.0
    %5205 = vmatprep.subr.mxu0 0.0
    %5206 = vmatpush2.msra.mxu0 0.0
    %5207 = vmatprep.subr.mxu0 0.0
    %5208 = vmatpush2.msra.mxu0 0.0
    %5209 = vmatprep.subr.mxu0 0.0
    %5210 = vmatpush2.msra.mxu0 0.0
    %5211 = vmatprep.subr.mxu0 0.0
    %5212 = vmatpush2.msra.mxu0 0.0
    %5213 = vmatprep.subr.mxu0 0.0
    %5214 = vmatpush2.msra.mxu0 0.0
    %5215 = vmatprep.subr.mxu0 0.0
    %5216 = vmatpush2.msra.mxu0 0.0
    %5217 = vmatprep.mubr.f32.mxu0 0.0
    %5218 = vmatmul.mubr.f32.gmra.mxu0 %v5130
    %v5219 = vpop.f32.mrf.mxu0
    %v5220 = vadd.f32 0.0, %v5219
    %v5221 = vpop.f32.mrf.mxu0
    %5222 = vmatprep.mubr.f32.mxu0 0.0
    %5223 = vmatmul.mubr.f32.gmra.mxu0 %v5133
    %v5224 = vpop.f32.mrf.mxu0
    %v5225 = vadd.f32 0.0, %v5224
    %v5226 = vpop.f32.mrf.mxu0
    %5227 = vmatprep.mubr.f32.mxu0 0.0
    %5228 = vmatmul.mubr.f32.gmra.mxu0 %v5136
    %v5229 = vpop.f32.mrf.mxu0
    %v5230 = vadd.f32 0.0, %v5229
    %v5231 = vpop.f32.mrf.mxu0
    %5232 = vmatprep.mubr.f32.mxu0 0.0
    %5233 = vmatmul.mubr.f32.gmra.mxu0 %v5139
    %v5234 = vpop.f32.mrf.mxu0
    %v5235 = vadd.f32 0.0, %v5234
    %v5236 = vpop.f32.mrf.mxu0
    %5237 = vmatprep.mubr.f32.mxu0 0.0
    %5238 = vmatmul.mubr.f32.gmra.mxu0 %v5142
    %v5239 = vpop.f32.mrf.mxu0
    %v5240 = vadd.f32 0.0, %v5239
    %v5241 = vpop.f32.mrf.mxu0
    %5242 = vmatprep.mubr.f32.mxu0 0.0
    %5243 = vmatmul.mubr.f32.gmra.mxu0 %v5145
    %v5244 = vpop.f32.mrf.mxu0
    %v5245 = vadd.f32 0.0, %v5244
    %v5246 = vpop.f32.mrf.mxu0
    %5247 = vmatprep.mubr.f32.mxu0 0.0
    %5248 = vmatmul.mubr.f32.gmra.mxu0 %v5148
    %v5249 = vpop.f32.mrf.mxu0
    %v5250 = vadd.f32 0.0, %v5249
    %v5251 = vpop.f32.mrf.mxu0
    %5252 = vmatprep.mubr.f32.mxu0 0.0
    %5253 = vmatmul.mubr.f32.gmra.mxu0 %v5151
    %v5254 = vpop.f32.mrf.mxu0
    %v5255 = vadd.f32 0.0, %v5254
    %v5256 = vpop.f32.mrf.mxu0
    %5257 = vdwg.mxu0
    %v5258 = vadd.f32 %v5111, %v5220
    %v5259 = vadd.f32 %v5112, %v5225
    %v5260 = vadd.f32 %v5113, %v5230
    %v5261 = vadd.f32 %v5114, %v5235
    %v5262 = vadd.f32 %v5115, %v5240
    %v5263 = vadd.f32 %v5116, %v5245
    %v5264 = vadd.f32 %v5117, %v5250
    %v5265 = vadd.f32 %v5118, %v5255
    %v5266 = vld [vmem:[%s4] sm:$0x1]
    %v5268 = vlaneseq
    %v5269 = vshrl.u32 %v5268, 7
    %v5270 = vsub.s32 0, %v5269
    %v5271 = vrot.slane %v5266, %v5270
    %v5273 = vadd.f32 %v5258, %v5271
    %v5274 = vadd.f32 %v5259, %v5271
    %v5275 = vadd.f32 %v5260, %v5271
    %v5276 = vadd.f32 %v5261, %v5271
    %v5277 = vadd.f32 %v5262, %v5271
    %v5278 = vadd.f32 %v5263, %v5271
    %v5279 = vadd.f32 %v5264, %v5271
    %v5280 = vadd.f32 %v5265, %v5271
    %v5281 = vmax.f32 %v5273, 0.0
    %v5282 = vmax.f32 %v5274, 0.0
    %v5283 = vmax.f32 %v5275, 0.0
    %v5284 = vmax.f32 %v5276, 0.0
    %v5285 = vmax.f32 %v5277, 0.0
    %v5286 = vmax.f32 %v5278, 0.0
    %v5287 = vmax.f32 %v5279, 0.0
    %v5288 = vmax.f32 %v5280, 0.0
    %vm5289 = vcmask 130048
    %5290 = vst.msk [vmem:[#allocation6] sm:$0xff] %vm5289, %v5281
    %5291 = vst.msk [vmem:[#allocation6 + $0x8] sm:$0xff] %vm5289, %v5282
    %5292 = vst.msk [vmem:[#allocation6 + $0x10] sm:$0xff] %vm5289, %v5283
    %5293 = vst.msk [vmem:[#allocation6 + $0x18] sm:$0xff] %vm5289, %v5284
    %5294 = vst.msk [vmem:[#allocation6 + $0x20] sm:$0xff] %vm5289, %v5285
    %5295 = vst.msk [vmem:[#allocation6 + $0x28] sm:$0xff] %vm5289, %v5286
    %5296 = vst.msk [vmem:[#allocation6 + $0x30] sm:$0xff] %vm5289, %v5287
    %5297 = vst.msk [vmem:[#allocation6 + $0x38] sm:$0xff] %vm5289, %v5288
    %v5298 = vld [vmem:[#allocation6] sm:$0xff]
    %v5299 = vld [vmem:[#allocation6 + $0x10] sm:$0xff]
    %v5300 = vld [vmem:[#allocation6 + $0x20] sm:$0xff]
    %v5301 = vld [vmem:[#allocation6 + $0x30] sm:$0xff]
    %s5302 = scalar_lea.vmem [#allocation6], 8
    %v5303 = vld [vmem:[%s5302] sm:$0xff]
    %v5304 = vld [vmem:[%s5302 + $0x10] sm:$0xff]
    %v5305 = vld [vmem:[%s5302 + $0x20] sm:$0xff]
    %v5306 = vld [vmem:[%s5302 + $0x30] sm:$0xff]
    %v5307 = vmax.f32 %v5298, %v5303
    %v5308 = vmax.f32 %v5299, %v5304
    %v5309 = vmax.f32 %v5300, %v5305
    %v5310 = vmax.f32 %v5301, %v5306
    %5311 = vst.msk [vmem:[#allocation7] sm:$0xff] %vm5289, %v5307
    %5312 = vst.msk [vmem:[#allocation7 + $0x8] sm:$0xff] %vm5289, %v5308
    %5313 = vst.msk [vmem:[#allocation7 + $0x10] sm:$0xff] %vm5289, %v5309
    %5314 = vst.msk [vmem:[#allocation7 + $0x18] sm:$0xff] %vm5289, %v5310
    %v5315 = vld [vmem:[#allocation7] ss:$2 sm:$0xf]
    %s5316 = scalar_lea.vmem [#allocation7], 8
    %v5317 = vld [vmem:[%s5316] ss:$2 sm:$0xf]
    %s5318 = scalar_lea.vmem [#allocation7], 16
    %v5319 = vld [vmem:[%s5318] ss:$2 sm:$0xf]
    %s5320 = scalar_lea.vmem [#allocation7], 24
    %v5321 = vld [vmem:[%s5320] ss:$2 sm:$0xf]
    %s5322 = scalar_lea.vmem [#allocation7], 1
    %v5323 = vld [vmem:[%s5322] ss:$2 sm:$0xf]
    %s5324 = scalar_lea.vmem [#allocation7], 9
    %v5325 = vld [vmem:[%s5324] ss:$2 sm:$0xf]
    %s5326 = scalar_lea.vmem [#allocation7], 17
    %v5327 = vld [vmem:[%s5326] ss:$2 sm:$0xf]
    %s5328 = scalar_lea.vmem [#allocation7], 25
    %v5329 = vld [vmem:[%s5328] ss:$2 sm:$0xf]
    %v5330 = vmax.f32 %v5315, %v5323
    %v5331 = vmax.f32 %v5317, %v5325
    %v5332 = vmax.f32 %v5319, %v5327
    %v5333 = vmax.f32 %v5321, %v5329
    %vm5334 = vcmask 122880
    %5335 = vst.msk [vmem:[#allocation8] sm:$0x1] %vm5334, %v5330
    %v5338 = vunpack.c.l.s4 1983009808
    %v5339 = vunpack.c.0.s8 %v5338
    %v5340 = vlaneseq
    %v5341 = vshrl.u32 %v5340, 7
    %v5342 = vsub.s32 %v5339, %v5341
    %v5343 = vrot.slane %v5330, %v5342
    %v5344 = vrot.slane %v5343, 7
    %v5345 = vrot.slane %v5344, 2
    %5346 = vrot.lane.b32.xlu0 %v5345, 16
    %v5347 = vpop.permute.xlu0 %5346
    %vm5349 = vcmask 254080
    %5350 = vst.msk [vmem:[#allocation8] sm:$0x1] %vm5349, %v5347
    %v5351 = vcombine.high %v5343, %v5343
    %5352 = vrot.lane.b32.xlu0 %v5351, 32
    %v5353 = vpop.permute.xlu0 %5352
    %vm5355 = vcmask 385280
    %5356 = vst.msk [vmem:[#allocation8] sm:$0x1] %vm5355, %v5353
    %v5357 = vrot.slane %v5351, 7
    %v5358 = vrot.slane %v5357, 2
    %5359 = vrot.lane.b32.xlu0 %v5358, 48
    %v5360 = vpop.permute.xlu0 %5359
    %vm5362 = vcmask 516480
    %5363 = vst.msk [vmem:[#allocation8] sm:$0x1] %vm5362, %v5360
    %v5366 = vunpack.c.l.s4 1983009808
    %v5367 = vunpack.c.0.s8 %v5366
    %v5368 = vlaneseq
    %v5369 = vshrl.u32 %v5368, 7
    %v5370 = vsub.s32 %v5367, %v5369
    %v5371 = vrot.slane %v5331, %v5370
    %5372 = vrot.lane.b32.xlu0 %v5371, 64
    %v5373 = vpop.permute.xlu0 %5372
    %vm5375 = vcmask 647680
    %5376 = vst.msk [vmem:[#allocation8] sm:$0x1] %vm5375, %v5373
    %v5377 = vrot.slane %v5371, 7
    %v5378 = vrot.slane %v5377, 2
    %5379 = vrot.lane.b32.xlu0 %v5378, 80
    %v5380 = vpop.permute.xlu0 %5379
    %vm5382 = vcmask 778880
    %5383 = vst.msk [vmem:[#allocation8] sm:$0x1] %vm5382, %v5380
    %v5384 = vcombine.high %v5371, %v5371
    %5385 = vrot.lane.b32.xlu0 %v5384, 96
    %v5386 = vpop.permute.xlu0 %5385
    %vm5388 = vcmask 910080
    %5389 = vst.msk [vmem:[#allocation8] sm:$0x1] %vm5388, %v5386
    %v5390 = vrot.slane %v5384, 7
    %v5391 = vrot.slane %v5390, 2
    %5392 = vrot.lane.b32.xlu0 %v5391, 112
    %v5393 = vpop.permute.xlu0 %5392
    %vm5395 = vcmask 1041280
    %5396 = vst.msk [vmem:[#allocation8] sm:$0x1] %vm5395, %v5393
    %5397 = vst.msk [vmem:[#allocation8 + $0x2] sm:$0x1] %vm5334, %v5332
    %v5400 = vunpack.c.l.s4 1983009808
    %v5401 = vunpack.c.0.s8 %v5400
    %v5402 = vlaneseq
    %v5403 = vshrl.u32 %v5402, 7
    %v5404 = vsub.s32 %v5401, %v5403
    %v5405 = vrot.slane %v5332, %v5404
    %v5406 = vrot.slane %v5405, 7
    %v5407 = vrot.slane %v5406, 2
    %5408 = vrot.lane.b32.xlu0 %v5407, 16
    %v5409 = vpop.permute.xlu0 %5408
    %5411 = vst.msk [vmem:[#allocation8 + $0x2] sm:$0x1] %vm5349, %v5409
    %v5412 = vcombine.high %v5405, %v5405
    %5413 = vrot.lane.b32.xlu0 %v5412, 32
    %v5414 = vpop.permute.xlu0 %5413
    %5416 = vst.msk [vmem:[#allocation8 + $0x2] sm:$0x1] %vm5355, %v5414
    %v5417 = vrot.slane %v5412, 7
    %v5418 = vrot.slane %v5417, 2
    %5419 = vrot.lane.b32.xlu0 %v5418, 48
    %v5420 = vpop.permute.xlu0 %5419
    %5422 = vst.msk [vmem:[#allocation8 + $0x2] sm:$0x1] %vm5362, %v5420
    %v5425 = vunpack.c.l.s4 1983009808
    %v5426 = vunpack.c.0.s8 %v5425
    %v5427 = vlaneseq
    %v5428 = vshrl.u32 %v5427, 7
    %v5429 = vsub.s32 %v5426, %v5428
    %v5430 = vrot.slane %v5333, %v5429
    %5431 = vrot.lane.b32.xlu0 %v5430, 64
    %v5432 = vpop.permute.xlu0 %5431
    %5434 = vst.msk [vmem:[#allocation8 + $0x2] sm:$0x1] %vm5375, %v5432
    %v5435 = vrot.slane %v5430, 7
    %v5436 = vrot.slane %v5435, 2
    %5437 = vrot.lane.b32.xlu0 %v5436, 80
    %v5438 = vpop.permute.xlu0 %5437
    %5440 = vst.msk [vmem:[#allocation8 + $0x2] sm:$0x1] %vm5382, %v5438
    %v5441 = vcombine.high %v5430, %v5430
    %5442 = vrot.lane.b32.xlu0 %v5441, 96
    %v5443 = vpop.permute.xlu0 %5442
    %5445 = vst.msk [vmem:[#allocation8 + $0x2] sm:$0x1] %vm5388, %v5443
    %v5446 = vrot.slane %v5441, 7
    %v5447 = vrot.slane %v5446, 2
    %5448 = vrot.lane.b32.xlu0 %v5447, 112
    %v5449 = vpop.permute.xlu0 %5448
    %5451 = vst.msk [vmem:[#allocation8 + $0x2] sm:$0x1] %vm5395, %v5449
    %s5452 = scalar_lea.vmem [#allocation2], 432
    %v5453 = vld [vmem:[%s5452] sm:$0xff]
    %v5454 = vld [vmem:[%s5452 + $0x8] sm:$0xff]
    %v5455 = vld [vmem:[%s5452 + $0x18] sm:$0xff]
    %v5456 = vld [vmem:[%s5452 + $0x20] sm:$0xff]
    %v5457 = vld [vmem:[%s5452 + $0x30] sm:$0xff]
    %v5458 = vld [vmem:[%s5452 + $0x38] sm:$0xff]
    %v5459 = vld [vmem:[%s5452 + $0x48] sm:$0xff]
    %v5460 = vld [vmem:[%s5452 + $0x50] sm:$0xff]
    %v5461 = vld [vmem:[%s5452 + $0x60] sm:$0xff]
    %v5462 = vld [vmem:[%s5452 + $0x68] sm:$0xff]
    %v5463 = vld [vmem:[%s5452 + $0x78] sm:$0xff]
    %v5464 = vld [vmem:[%s5452 + $0x80] sm:$0xff]
    %v5465 = vld [vmem:[%s5452 + $0x90] sm:$0xff]
    %v5466 = vld [vmem:[%s5452 + $0x98] sm:$0xff]
    %v5467 = vld [vmem:[%s5452 + $0xa8] sm:$0xff]
    %v5468 = vld [vmem:[%s5452 + $0xb0] sm:$0xff]
    %v5469 = vld [vmem:[%s5452 + $0xc0] sm:$0xff]
    %v5470 = vld [vmem:[%s5452 + $0xc8] sm:$0xff]
    %v5471 = vld [vmem:[%s5452 + $0xd8] sm:$0xff]
    %v5472 = vld [vmem:[%s5452 + $0xe0] sm:$0xff]
    %v5473 = vld [vmem:[%s5452 + $0xf0] sm:$0xff]
    %v5474 = vld [vmem:[%s5452 + $0xf8] sm:$0xff]
    %v5475 = vld [vmem:[%s5452 + $0x108] sm:$0xff]
    %v5476 = vld [vmem:[%s5452 + $0x110] sm:$0xff]
    %v5477 = vld [vmem:[%s5452 + $0x120] sm:$0xff]
    %v5478 = vld [vmem:[%s5452 + $0x128] sm:$0xff]
    %v5479 = vld [vmem:[%s5452 + $0x138] sm:$0xff]
    %v5480 = vld [vmem:[%s5452 + $0x140] sm:$0xff]
    %v5481 = vld [vmem:[%s5452 + $0x150] sm:$0xff]
    %v5482 = vld [vmem:[%s5452 + $0x158] sm:$0xff]
    %v5483 = vld [vmem:[%s5452 + $0x168] sm:$0xff]
    %v5484 = vld [vmem:[%s5452 + $0x170] sm:$0xff]
    %v5485 = vld [vmem:[%s1] sm:$0xf]
    %v5486 = vld [vmem:[%s5452 + $0x1] sm:$0xff]
    %v5487 = vld [vmem:[%s5452 + $0x9] sm:$0xff]
    %v5488 = vld [vmem:[%s5452 + $0x19] sm:$0xff]
    %v5489 = vld [vmem:[%s5452 + $0x21] sm:$0xff]
    %v5490 = vld [vmem:[%s5452 + $0x31] sm:$0xff]
    %v5491 = vld [vmem:[%s5452 + $0x39] sm:$0xff]
    %v5492 = vld [vmem:[%s5452 + $0x49] sm:$0xff]
    %v5493 = vld [vmem:[%s5452 + $0x51] sm:$0xff]
    %v5494 = vld [vmem:[%s5452 + $0x61] sm:$0xff]
    %v5495 = vld [vmem:[%s5452 + $0x69] sm:$0xff]
    %v5496 = vld [vmem:[%s5452 + $0x79] sm:$0xff]
    %v5497 = vld [vmem:[%s5452 + $0x81] sm:$0xff]
    %v5498 = vld [vmem:[%s5452 + $0x91] sm:$0xff]
    %v5499 = vld [vmem:[%s5452 + $0x99] sm:$0xff]
    %v5500 = vld [vmem:[%s5452 + $0xa9] sm:$0xff]
    %v5501 = vld [vmem:[%s5452 + $0xb1] sm:$0xff]
    %v5502 = vld [vmem:[%s5452 + $0xc1] sm:$0xff]
    %v5503 = vld [vmem:[%s5452 + $0xc9] sm:$0xff]
    %v5504 = vld [vmem:[%s5452 + $0xd9] sm:$0xff]
    %v5505 = vld [vmem:[%s5452 + $0xe1] sm:$0xff]
    %v5506 = vld [vmem:[%s5452 + $0xf1] sm:$0xff]
    %v5507 = vld [vmem:[%s5452 + $0xf9] sm:$0xff]
    %v5508 = vld [vmem:[%s5452 + $0x109] sm:$0xff]
    %v5509 = vld [vmem:[%s5452 + $0x111] sm:$0xff]
    %v5510 = vld [vmem:[%s5452 + $0x121] sm:$0xff]
    %v5511 = vld [vmem:[%s5452 + $0x129] sm:$0xff]
    %v5512 = vld [vmem:[%s5452 + $0x139] sm:$0xff]
    %v5513 = vld [vmem:[%s5452 + $0x141] sm:$0xff]
    %v5514 = vld [vmem:[%s5452 + $0x151] sm:$0xff]
    %v5515 = vld [vmem:[%s5452 + $0x159] sm:$0xff]
    %v5516 = vld [vmem:[%s5452 + $0x169] sm:$0xff]
    %v5517 = vld [vmem:[%s5452 + $0x171] sm:$0xff]
    %v5518 = vld [vmem:[%s361] sm:$0xf]
    %v5520 = vsel %vm33, %v5486, 0
    %v5523 = vsel %vm33, %v5487, 0
    %v5526 = vsel %vm33, %v5488, 0
    %v5529 = vsel %vm33, %v5489, 0
    %v5532 = vsel %vm33, %v5490, 0
    %v5535 = vsel %vm33, %v5491, 0
    %v5538 = vsel %vm33, %v5492, 0
    %v5541 = vsel %vm33, %v5493, 0
    %v5544 = vsel %vm33, %v5494, 0
    %v5547 = vsel %vm33, %v5495, 0
    %v5550 = vsel %vm33, %v5496, 0
    %v5553 = vsel %vm33, %v5497, 0
    %v5556 = vsel %vm33, %v5498, 0
    %v5559 = vsel %vm33, %v5499, 0
    %v5562 = vsel %vm33, %v5500, 0
    %v5565 = vsel %vm33, %v5501, 0
    %v5568 = vsel %vm33, %v5502, 0
    %v5571 = vsel %vm33, %v5503, 0
    %v5574 = vsel %vm33, %v5504, 0
    %v5577 = vsel %vm33, %v5505, 0
    %v5580 = vsel %vm33, %v5506, 0
    %v5583 = vsel %vm33, %v5507, 0
    %v5586 = vsel %vm33, %v5508, 0
    %v5589 = vsel %vm33, %v5509, 0
    %v5592 = vsel %vm33, %v5510, 0
    %v5595 = vsel %vm33, %v5511, 0
    %v5598 = vsel %vm33, %v5512, 0
    %v5601 = vsel %vm33, %v5513, 0
    %v5604 = vsel %vm33, %v5514, 0
    %v5607 = vsel %vm33, %v5515, 0
    %v5610 = vsel %vm33, %v5516, 0
    %v5613 = vsel %vm33, %v5517, 0
    %v5616 = vsel %vm459, %v5518, 0
    %5618 = vmatprep.subr.mxu0 0.0
    %5619 = vmatpush1.msra.mxu0 0.0
    %5620 = vmatprep.subr.mxu0 0.0
    %5621 = vmatpush1.msra.mxu0 0.0
    %5622 = vmatprep.subr.mxu0 0.0
    %5623 = vmatpush1.msra.mxu0 0.0
    %5624 = vmatprep.subr.mxu0 0.0
    %5625 = vmatpush1.msra.mxu0 0.0
    %5626 = vmatprep.subr.mxu0 0.0
    %5627 = vmatpush1.msra.mxu0 0.0
    %5628 = vmatprep.subr.mxu0 0.0
    %5629 = vmatpush1.msra.mxu0 0.0
    %5630 = vmatprep.subr.mxu0 0.0
    %5631 = vmatpush1.msra.mxu0 0.0
    %5632 = vmatprep.subr.mxu0 0.0
    %5633 = vmatpush1.msra.mxu0 0.0
    %5634 = vmatprep.subr.mxu0 0.0
    %5635 = vmatpush1.msra.mxu0 0.0
    %5636 = vmatprep.subr.mxu0 0.0
    %5637 = vmatpush1.msra.mxu0 0.0
    %5638 = vmatprep.subr.mxu0 0.0
    %5639 = vmatpush1.msra.mxu0 0.0
    %5640 = vmatprep.subr.mxu0 0.0
    %5641 = vmatpush1.msra.mxu0 0.0
    %5642 = vmatprep.subr.mxu0 0.0
    %5643 = vmatpush1.msra.mxu0 0.0
    %5644 = vmatprep.subr.mxu0 0.0
    %5645 = vmatpush1.msra.mxu0 0.0
    %5646 = vmatprep.subr.mxu0 0.0
    %5647 = vmatpush1.msra.mxu0 0.0
    %5648 = vmatprep.subr.mxu0 0.0
    %5649 = vmatpush1.msra.mxu0 %v5616
    %5650 = vmatprep.subr.mxu0 0.0
    %5651 = vmatpush2.msra.mxu0 0.0
    %5652 = vmatprep.subr.mxu0 0.0
    %5653 = vmatpush2.msra.mxu0 0.0
    %5654 = vmatprep.subr.mxu0 0.0
    %5655 = vmatpush2.msra.mxu0 0.0
    %5656 = vmatprep.subr.mxu0 0.0
    %5657 = vmatpush2.msra.mxu0 0.0
    %5658 = vmatprep.subr.mxu0 0.0
    %5659 = vmatpush2.msra.mxu0 0.0
    %5660 = vmatprep.subr.mxu0 0.0
    %5661 = vmatpush2.msra.mxu0 0.0
    %5662 = vmatprep.subr.mxu0 0.0
    %5663 = vmatpush2.msra.mxu0 0.0
    %5664 = vmatprep.subr.mxu0 0.0
    %5665 = vmatpush2.msra.mxu0 0.0
    %5666 = vmatprep.subr.mxu0 0.0
    %5667 = vmatpush2.msra.mxu0 0.0
    %5668 = vmatprep.subr.mxu0 0.0
    %5669 = vmatpush2.msra.mxu0 0.0
    %5670 = vmatprep.subr.mxu0 0.0
    %5671 = vmatpush2.msra.mxu0 0.0
    %5672 = vmatprep.subr.mxu0 0.0
    %5673 = vmatpush2.msra.mxu0 0.0
    %5674 = vmatprep.subr.mxu0 0.0
    %5675 = vmatpush2.msra.mxu0 0.0
    %5676 = vmatprep.subr.mxu0 0.0
    %5677 = vmatpush2.msra.mxu0 0.0
    %5678 = vmatprep.subr.mxu0 0.0
    %5679 = vmatpush2.msra.mxu0 0.0
    %5680 = vmatprep.subr.mxu0 0.0
    %5681 = vmatpush2.msra.mxu0 0.0
    %5682 = vmatprep.mubr.f32.mxu0 0.0
    %5683 = vmatmul.mubr.f32.gmra.mxu0 %v5520
    %v5684 = vpop.f32.mrf.mxu0
    %v5685 = vadd.f32 0.0, %v5684
    %v5686 = vpop.f32.mrf.mxu0
    %5687 = vmatprep.mubr.f32.mxu0 0.0
    %5688 = vmatmul.mubr.f32.gmra.mxu0 %v5523
    %v5689 = vpop.f32.mrf.mxu0
    %v5690 = vadd.f32 0.0, %v5689
    %v5691 = vpop.f32.mrf.mxu0
    %5692 = vmatprep.mubr.f32.mxu0 0.0
    %5693 = vmatmul.mubr.f32.gmra.mxu0 %v5526
    %v5694 = vpop.f32.mrf.mxu0
    %v5695 = vadd.f32 0.0, %v5694
    %v5696 = vpop.f32.mrf.mxu0
    %5697 = vmatprep.mubr.f32.mxu0 0.0
    %5698 = vmatmul.mubr.f32.gmra.mxu0 %v5529
    %v5699 = vpop.f32.mrf.mxu0
    %v5700 = vadd.f32 0.0, %v5699
    %v5701 = vpop.f32.mrf.mxu0
    %5702 = vmatprep.mubr.f32.mxu0 0.0
    %5703 = vmatmul.mubr.f32.gmra.mxu0 %v5532
    %v5704 = vpop.f32.mrf.mxu0
    %v5705 = vadd.f32 0.0, %v5704
    %v5706 = vpop.f32.mrf.mxu0
    %5707 = vmatprep.mubr.f32.mxu0 0.0
    %5708 = vmatmul.mubr.f32.gmra.mxu0 %v5535
    %v5709 = vpop.f32.mrf.mxu0
    %v5710 = vadd.f32 0.0, %v5709
    %v5711 = vpop.f32.mrf.mxu0
    %5712 = vmatprep.mubr.f32.mxu0 0.0
    %5713 = vmatmul.mubr.f32.gmra.mxu0 %v5538
    %v5714 = vpop.f32.mrf.mxu0
    %v5715 = vadd.f32 0.0, %v5714
    %v5716 = vpop.f32.mrf.mxu0
    %5717 = vmatprep.mubr.f32.mxu0 0.0
    %5718 = vmatmul.mubr.f32.gmra.mxu0 %v5541
    %v5719 = vpop.f32.mrf.mxu0
    %v5720 = vadd.f32 0.0, %v5719
    %v5721 = vpop.f32.mrf.mxu0
    %5722 = vmatprep.mubr.f32.mxu0 0.0
    %5723 = vmatmul.mubr.f32.gmra.mxu0 %v5544
    %v5724 = vpop.f32.mrf.mxu0
    %v5725 = vadd.f32 0.0, %v5724
    %v5726 = vpop.f32.mrf.mxu0
    %5727 = vmatprep.mubr.f32.mxu0 0.0
    %5728 = vmatmul.mubr.f32.gmra.mxu0 %v5547
    %v5729 = vpop.f32.mrf.mxu0
    %v5730 = vadd.f32 0.0, %v5729
    %v5731 = vpop.f32.mrf.mxu0
    %5732 = vmatprep.mubr.f32.mxu0 0.0
    %5733 = vmatmul.mubr.f32.gmra.mxu0 %v5550
    %v5734 = vpop.f32.mrf.mxu0
    %v5735 = vadd.f32 0.0, %v5734
    %v5736 = vpop.f32.mrf.mxu0
    %5737 = vmatprep.mubr.f32.mxu0 0.0
    %5738 = vmatmul.mubr.f32.gmra.mxu0 %v5553
    %v5739 = vpop.f32.mrf.mxu0
    %v5740 = vadd.f32 0.0, %v5739
    %v5741 = vpop.f32.mrf.mxu0
    %5742 = vmatprep.mubr.f32.mxu0 0.0
    %5743 = vmatmul.mubr.f32.gmra.mxu0 %v5556
    %v5744 = vpop.f32.mrf.mxu0
    %v5745 = vadd.f32 0.0, %v5744
    %v5746 = vpop.f32.mrf.mxu0
    %5747 = vmatprep.mubr.f32.mxu0 0.0
    %5748 = vmatmul.mubr.f32.gmra.mxu0 %v5559
    %v5749 = vpop.f32.mrf.mxu0
    %v5750 = vadd.f32 0.0, %v5749
    %v5751 = vpop.f32.mrf.mxu0
    %5752 = vmatprep.mubr.f32.mxu0 0.0
    %5753 = vmatmul.mubr.f32.gmra.mxu0 %v5562
    %v5754 = vpop.f32.mrf.mxu0
    %v5755 = vadd.f32 0.0, %v5754
    %v5756 = vpop.f32.mrf.mxu0
    %5757 = vmatprep.mubr.f32.mxu0 0.0
    %5758 = vmatmul.mubr.f32.gmra.mxu0 %v5565
    %v5759 = vpop.f32.mrf.mxu0
    %v5760 = vadd.f32 0.0, %v5759
    %v5761 = vpop.f32.mrf.mxu0
    %5762 = vmatprep.mubr.f32.mxu0 0.0
    %5763 = vmatmul.mubr.f32.gmra.mxu0 %v5568
    %v5764 = vpop.f32.mrf.mxu0
    %v5765 = vadd.f32 0.0, %v5764
    %v5766 = vpop.f32.mrf.mxu0
    %5767 = vmatprep.mubr.f32.mxu0 0.0
    %5768 = vmatmul.mubr.f32.gmra.mxu0 %v5571
    %v5769 = vpop.f32.mrf.mxu0
    %v5770 = vadd.f32 0.0, %v5769
    %v5771 = vpop.f32.mrf.mxu0
    %5772 = vmatprep.mubr.f32.mxu0 0.0
    %5773 = vmatmul.mubr.f32.gmra.mxu0 %v5574
    %v5774 = vpop.f32.mrf.mxu0
    %v5775 = vadd.f32 0.0, %v5774
    %v5776 = vpop.f32.mrf.mxu0
    %5777 = vmatprep.mubr.f32.mxu0 0.0
    %5778 = vmatmul.mubr.f32.gmra.mxu0 %v5577
    %v5779 = vpop.f32.mrf.mxu0
    %v5780 = vadd.f32 0.0, %v5779
    %v5781 = vpop.f32.mrf.mxu0
    %5782 = vmatprep.mubr.f32.mxu0 0.0
    %5783 = vmatmul.mubr.f32.gmra.mxu0 %v5580
    %v5784 = vpop.f32.mrf.mxu0
    %v5785 = vadd.f32 0.0, %v5784
    %v5786 = vpop.f32.mrf.mxu0
    %5787 = vmatprep.mubr.f32.mxu0 0.0
    %5788 = vmatmul.mubr.f32.gmra.mxu0 %v5583
    %v5789 = vpop.f32.mrf.mxu0
    %v5790 = vadd.f32 0.0, %v5789
    %v5791 = vpop.f32.mrf.mxu0
    %5792 = vmatprep.mubr.f32.mxu0 0.0
    %5793 = vmatmul.mubr.f32.gmra.mxu0 %v5586
    %v5794 = vpop.f32.mrf.mxu0
    %v5795 = vadd.f32 0.0, %v5794
    %v5796 = vpop.f32.mrf.mxu0
    %5797 = vmatprep.mubr.f32.mxu0 0.0
    %5798 = vmatmul.mubr.f32.gmra.mxu0 %v5589
    %v5799 = vpop.f32.mrf.mxu0
    %v5800 = vadd.f32 0.0, %v5799
    %v5801 = vpop.f32.mrf.mxu0
    %5802 = vmatprep.mubr.f32.mxu0 0.0
    %5803 = vmatmul.mubr.f32.gmra.mxu0 %v5592
    %v5804 = vpop.f32.mrf.mxu0
    %v5805 = vadd.f32 0.0, %v5804
    %v5806 = vpop.f32.mrf.mxu0
    %5807 = vmatprep.mubr.f32.mxu0 0.0
    %5808 = vmatmul.mubr.f32.gmra.mxu0 %v5595
    %v5809 = vpop.f32.mrf.mxu0
    %v5810 = vadd.f32 0.0, %v5809
    %v5811 = vpop.f32.mrf.mxu0
    %5812 = vmatprep.mubr.f32.mxu0 0.0
    %5813 = vmatmul.mubr.f32.gmra.mxu0 %v5598
    %v5814 = vpop.f32.mrf.mxu0
    %v5815 = vadd.f32 0.0, %v5814
    %v5816 = vpop.f32.mrf.mxu0
    %5817 = vmatprep.mubr.f32.mxu0 0.0
    %5818 = vmatmul.mubr.f32.gmra.mxu0 %v5601
    %v5819 = vpop.f32.mrf.mxu0
    %v5820 = vadd.f32 0.0, %v5819
    %v5821 = vpop.f32.mrf.mxu0
    %5822 = vmatprep.mubr.f32.mxu0 0.0
    %5823 = vmatmul.mubr.f32.gmra.mxu0 %v5604
    %v5824 = vpop.f32.mrf.mxu0
    %v5825 = vadd.f32 0.0, %v5824
    %v5826 = vpop.f32.mrf.mxu0
    %5827 = vmatprep.mubr.f32.mxu0 0.0
    %5828 = vmatmul.mubr.f32.gmra.mxu0 %v5607
    %v5829 = vpop.f32.mrf.mxu0
    %v5830 = vadd.f32 0.0, %v5829
    %v5831 = vpop.f32.mrf.mxu0
    %5832 = vmatprep.mubr.f32.mxu0 0.0
    %5833 = vmatmul.mubr.f32.gmra.mxu0 %v5610
    %v5834 = vpop.f32.mrf.mxu0
    %v5835 = vadd.f32 0.0, %v5834
    %v5836 = vpop.f32.mrf.mxu0
    %5837 = vmatprep.mubr.f32.mxu0 0.0
    %5838 = vmatmul.mubr.f32.gmra.mxu0 %v5613
    %v5839 = vpop.f32.mrf.mxu0
    %v5840 = vadd.f32 0.0, %v5839
    %v5841 = vpop.f32.mrf.mxu0
    %5842 = vdwg.mxu0
    %v5844 = vsel %vm33, %v5453, 0
    %v5847 = vsel %vm33, %v5454, 0
    %v5850 = vsel %vm33, %v5455, 0
    %v5853 = vsel %vm33, %v5456, 0
    %v5856 = vsel %vm33, %v5457, 0
    %v5859 = vsel %vm33, %v5458, 0
    %v5862 = vsel %vm33, %v5459, 0
    %v5865 = vsel %vm33, %v5460, 0
    %v5868 = vsel %vm33, %v5461, 0
    %v5871 = vsel %vm33, %v5462, 0
    %v5874 = vsel %vm33, %v5463, 0
    %v5877 = vsel %vm33, %v5464, 0
    %v5880 = vsel %vm33, %v5465, 0
    %v5883 = vsel %vm33, %v5466, 0
    %v5886 = vsel %vm33, %v5467, 0
    %v5889 = vsel %vm33, %v5468, 0
    %v5892 = vsel %vm33, %v5469, 0
    %v5895 = vsel %vm33, %v5470, 0
    %v5898 = vsel %vm33, %v5471, 0
    %v5901 = vsel %vm33, %v5472, 0
    %v5904 = vsel %vm33, %v5473, 0
    %v5907 = vsel %vm33, %v5474, 0
    %v5910 = vsel %vm33, %v5475, 0
    %v5913 = vsel %vm33, %v5476, 0
    %v5916 = vsel %vm33, %v5477, 0
    %v5919 = vsel %vm33, %v5478, 0
    %v5922 = vsel %vm33, %v5479, 0
    %v5925 = vsel %vm33, %v5480, 0
    %v5928 = vsel %vm33, %v5481, 0
    %v5931 = vsel %vm33, %v5482, 0
    %v5934 = vsel %vm33, %v5483, 0
    %v5937 = vsel %vm33, %v5484, 0
    %v5940 = vsel %vm459, %v5485, 0
    %5942 = vmatprep.subr.mxu0 0.0
    %5943 = vmatpush1.msra.mxu0 0.0
    %5944 = vmatprep.subr.mxu0 0.0
    %5945 = vmatpush1.msra.mxu0 0.0
    %5946 = vmatprep.subr.mxu0 0.0
    %5947 = vmatpush1.msra.mxu0 0.0
    %5948 = vmatprep.subr.mxu0 0.0
    %5949 = vmatpush1.msra.mxu0 0.0
    %5950 = vmatprep.subr.mxu0 0.0
    %5951 = vmatpush1.msra.mxu0 0.0
    %5952 = vmatprep.subr.mxu0 0.0
    %5953 = vmatpush1.msra.mxu0 0.0
    %5954 = vmatprep.subr.mxu0 0.0
    %5955 = vmatpush1.msra.mxu0 0.0
    %5956 = vmatprep.subr.mxu0 0.0
    %5957 = vmatpush1.msra.mxu0 0.0
    %5958 = vmatprep.subr.mxu0 0.0
    %5959 = vmatpush1.msra.mxu0 0.0
    %5960 = vmatprep.subr.mxu0 0.0
    %5961 = vmatpush1.msra.mxu0 0.0
    %5962 = vmatprep.subr.mxu0 0.0
    %5963 = vmatpush1.msra.mxu0 0.0
    %5964 = vmatprep.subr.mxu0 0.0
    %5965 = vmatpush1.msra.mxu0 0.0
    %5966 = vmatprep.subr.mxu0 0.0
    %5967 = vmatpush1.msra.mxu0 0.0
    %5968 = vmatprep.subr.mxu0 0.0
    %5969 = vmatpush1.msra.mxu0 0.0
    %5970 = vmatprep.subr.mxu0 0.0
    %5971 = vmatpush1.msra.mxu0 0.0
    %5972 = vmatprep.subr.mxu0 0.0
    %5973 = vmatpush1.msra.mxu0 %v5940
    %5974 = vmatprep.subr.mxu0 0.0
    %5975 = vmatpush2.msra.mxu0 0.0
    %5976 = vmatprep.subr.mxu0 0.0
    %5977 = vmatpush2.msra.mxu0 0.0
    %5978 = vmatprep.subr.mxu0 0.0
    %5979 = vmatpush2.msra.mxu0 0.0
    %5980 = vmatprep.subr.mxu0 0.0
    %5981 = vmatpush2.msra.mxu0 0.0
    %5982 = vmatprep.subr.mxu0 0.0
    %5983 = vmatpush2.msra.mxu0 0.0
    %5984 = vmatprep.subr.mxu0 0.0
    %5985 = vmatpush2.msra.mxu0 0.0
    %5986 = vmatprep.subr.mxu0 0.0
    %5987 = vmatpush2.msra.mxu0 0.0
    %5988 = vmatprep.subr.mxu0 0.0
    %5989 = vmatpush2.msra.mxu0 0.0
    %5990 = vmatprep.subr.mxu0 0.0
    %5991 = vmatpush2.msra.mxu0 0.0
    %5992 = vmatprep.subr.mxu0 0.0
    %5993 = vmatpush2.msra.mxu0 0.0
    %5994 = vmatprep.subr.mxu0 0.0
    %5995 = vmatpush2.msra.mxu0 0.0
    %5996 = vmatprep.subr.mxu0 0.0
    %5997 = vmatpush2.msra.mxu0 0.0
    %5998 = vmatprep.subr.mxu0 0.0
    %5999 = vmatpush2.msra.mxu0 0.0
    %6000 = vmatprep.subr.mxu0 0.0
    %6001 = vmatpush2.msra.mxu0 0.0
    %6002 = vmatprep.subr.mxu0 0.0
    %6003 = vmatpush2.msra.mxu0 0.0
    %6004 = vmatprep.subr.mxu0 0.0
    %6005 = vmatpush2.msra.mxu0 0.0
    %6006 = vmatprep.mubr.f32.mxu0 0.0
    %6007 = vmatmul.mubr.f32.gmra.mxu0 %v5844
    %v6008 = vpop.f32.mrf.mxu0
    %v6009 = vadd.f32 %v5685, %v6008
    %v6010 = vpop.f32.mrf.mxu0
    %6011 = vmatprep.mubr.f32.mxu0 0.0
    %6012 = vmatmul.mubr.f32.gmra.mxu0 %v5847
    %v6013 = vpop.f32.mrf.mxu0
    %v6014 = vadd.f32 %v5690, %v6013
    %v6015 = vpop.f32.mrf.mxu0
    %6016 = vmatprep.mubr.f32.mxu0 0.0
    %6017 = vmatmul.mubr.f32.gmra.mxu0 %v5850
    %v6018 = vpop.f32.mrf.mxu0
    %v6019 = vadd.f32 %v5695, %v6018
    %v6020 = vpop.f32.mrf.mxu0
    %6021 = vmatprep.mubr.f32.mxu0 0.0
    %6022 = vmatmul.mubr.f32.gmra.mxu0 %v5853
    %v6023 = vpop.f32.mrf.mxu0
    %v6024 = vadd.f32 %v5700, %v6023
    %v6025 = vpop.f32.mrf.mxu0
    %6026 = vmatprep.mubr.f32.mxu0 0.0
    %6027 = vmatmul.mubr.f32.gmra.mxu0 %v5856
    %v6028 = vpop.f32.mrf.mxu0
    %v6029 = vadd.f32 %v5705, %v6028
    %v6030 = vpop.f32.mrf.mxu0
    %6031 = vmatprep.mubr.f32.mxu0 0.0
    %6032 = vmatmul.mubr.f32.gmra.mxu0 %v5859
    %v6033 = vpop.f32.mrf.mxu0
    %v6034 = vadd.f32 %v5710, %v6033
    %v6035 = vpop.f32.mrf.mxu0
    %6036 = vmatprep.mubr.f32.mxu0 0.0
    %6037 = vmatmul.mubr.f32.gmra.mxu0 %v5862
    %v6038 = vpop.f32.mrf.mxu0
    %v6039 = vadd.f32 %v5715, %v6038
    %v6040 = vpop.f32.mrf.mxu0
    %6041 = vmatprep.mubr.f32.mxu0 0.0
    %6042 = vmatmul.mubr.f32.gmra.mxu0 %v5865
    %v6043 = vpop.f32.mrf.mxu0
    %v6044 = vadd.f32 %v5720, %v6043
    %v6045 = vpop.f32.mrf.mxu0
    %6046 = vmatprep.mubr.f32.mxu0 0.0
    %6047 = vmatmul.mubr.f32.gmra.mxu0 %v5868
    %v6048 = vpop.f32.mrf.mxu0
    %v6049 = vadd.f32 %v5725, %v6048
    %v6050 = vpop.f32.mrf.mxu0
    %6051 = vmatprep.mubr.f32.mxu0 0.0
    %6052 = vmatmul.mubr.f32.gmra.mxu0 %v5871
    %v6053 = vpop.f32.mrf.mxu0
    %v6054 = vadd.f32 %v5730, %v6053
    %v6055 = vpop.f32.mrf.mxu0
    %6056 = vmatprep.mubr.f32.mxu0 0.0
    %6057 = vmatmul.mubr.f32.gmra.mxu0 %v5874
    %v6058 = vpop.f32.mrf.mxu0
    %v6059 = vadd.f32 %v5735, %v6058
    %v6060 = vpop.f32.mrf.mxu0
    %6061 = vmatprep.mubr.f32.mxu0 0.0
    %6062 = vmatmul.mubr.f32.gmra.mxu0 %v5877
    %v6063 = vpop.f32.mrf.mxu0
    %v6064 = vadd.f32 %v5740, %v6063
    %v6065 = vpop.f32.mrf.mxu0
    %6066 = vmatprep.mubr.f32.mxu0 0.0
    %6067 = vmatmul.mubr.f32.gmra.mxu0 %v5880
    %v6068 = vpop.f32.mrf.mxu0
    %v6069 = vadd.f32 %v5745, %v6068
    %v6070 = vpop.f32.mrf.mxu0
    %6071 = vmatprep.mubr.f32.mxu0 0.0
    %6072 = vmatmul.mubr.f32.gmra.mxu0 %v5883
    %v6073 = vpop.f32.mrf.mxu0
    %v6074 = vadd.f32 %v5750, %v6073
    %v6075 = vpop.f32.mrf.mxu0
    %6076 = vmatprep.mubr.f32.mxu0 0.0
    %6077 = vmatmul.mubr.f32.gmra.mxu0 %v5886
    %v6078 = vpop.f32.mrf.mxu0
    %v6079 = vadd.f32 %v5755, %v6078
    %v6080 = vpop.f32.mrf.mxu0
    %6081 = vmatprep.mubr.f32.mxu0 0.0
    %6082 = vmatmul.mubr.f32.gmra.mxu0 %v5889
    %v6083 = vpop.f32.mrf.mxu0
    %v6084 = vadd.f32 %v5760, %v6083
    %v6085 = vpop.f32.mrf.mxu0
    %6086 = vmatprep.mubr.f32.mxu0 0.0
    %6087 = vmatmul.mubr.f32.gmra.mxu0 %v5892
    %v6088 = vpop.f32.mrf.mxu0
    %v6089 = vadd.f32 %v5765, %v6088
    %v6090 = vpop.f32.mrf.mxu0
    %6091 = vmatprep.mubr.f32.mxu0 0.0
    %6092 = vmatmul.mubr.f32.gmra.mxu0 %v5895
    %v6093 = vpop.f32.mrf.mxu0
    %v6094 = vadd.f32 %v5770, %v6093
    %v6095 = vpop.f32.mrf.mxu0
    %6096 = vmatprep.mubr.f32.mxu0 0.0
    %6097 = vmatmul.mubr.f32.gmra.mxu0 %v5898
    %v6098 = vpop.f32.mrf.mxu0
    %v6099 = vadd.f32 %v5775, %v6098
    %v6100 = vpop.f32.mrf.mxu0
    %6101 = vmatprep.mubr.f32.mxu0 0.0
    %6102 = vmatmul.mubr.f32.gmra.mxu0 %v5901
    %v6103 = vpop.f32.mrf.mxu0
    %v6104 = vadd.f32 %v5780, %v6103
    %v6105 = vpop.f32.mrf.mxu0
    %6106 = vmatprep.mubr.f32.mxu0 0.0
    %6107 = vmatmul.mubr.f32.gmra.mxu0 %v5904
    %v6108 = vpop.f32.mrf.mxu0
    %v6109 = vadd.f32 %v5785, %v6108
    %v6110 = vpop.f32.mrf.mxu0
    %6111 = vmatprep.mubr.f32.mxu0 0.0
    %6112 = vmatmul.mubr.f32.gmra.mxu0 %v5907
    %v6113 = vpop.f32.mrf.mxu0
    %v6114 = vadd.f32 %v5790, %v6113
    %v6115 = vpop.f32.mrf.mxu0
    %6116 = vmatprep.mubr.f32.mxu0 0.0
    %6117 = vmatmul.mubr.f32.gmra.mxu0 %v5910
    %v6118 = vpop.f32.mrf.mxu0
    %v6119 = vadd.f32 %v5795, %v6118
    %v6120 = vpop.f32.mrf.mxu0
    %6121 = vmatprep.mubr.f32.mxu0 0.0
    %6122 = vmatmul.mubr.f32.gmra.mxu0 %v5913
    %v6123 = vpop.f32.mrf.mxu0
    %v6124 = vadd.f32 %v5800, %v6123
    %v6125 = vpop.f32.mrf.mxu0
    %6126 = vmatprep.mubr.f32.mxu0 0.0
    %6127 = vmatmul.mubr.f32.gmra.mxu0 %v5916
    %v6128 = vpop.f32.mrf.mxu0
    %v6129 = vadd.f32 %v5805, %v6128
    %v6130 = vpop.f32.mrf.mxu0
    %6131 = vmatprep.mubr.f32.mxu0 0.0
    %6132 = vmatmul.mubr.f32.gmra.mxu0 %v5919
    %v6133 = vpop.f32.mrf.mxu0
    %v6134 = vadd.f32 %v5810, %v6133
    %v6135 = vpop.f32.mrf.mxu0
    %6136 = vmatprep.mubr.f32.mxu0 0.0
    %6137 = vmatmul.mubr.f32.gmra.mxu0 %v5922
    %v6138 = vpop.f32.mrf.mxu0
    %v6139 = vadd.f32 %v5815, %v6138
    %v6140 = vpop.f32.mrf.mxu0
    %6141 = vmatprep.mubr.f32.mxu0 0.0
    %6142 = vmatmul.mubr.f32.gmra.mxu0 %v5925
    %v6143 = vpop.f32.mrf.mxu0
    %v6144 = vadd.f32 %v5820, %v6143
    %v6145 = vpop.f32.mrf.mxu0
    %6146 = vmatprep.mubr.f32.mxu0 0.0
    %6147 = vmatmul.mubr.f32.gmra.mxu0 %v5928
    %v6148 = vpop.f32.mrf.mxu0
    %v6149 = vadd.f32 %v5825, %v6148
    %v6150 = vpop.f32.mrf.mxu0
    %6151 = vmatprep.mubr.f32.mxu0 0.0
    %6152 = vmatmul.mubr.f32.gmra.mxu0 %v5931
    %v6153 = vpop.f32.mrf.mxu0
    %v6154 = vadd.f32 %v5830, %v6153
    %v6155 = vpop.f32.mrf.mxu0
    %6156 = vmatprep.mubr.f32.mxu0 0.0
    %6157 = vmatmul.mubr.f32.gmra.mxu0 %v5934
    %v6158 = vpop.f32.mrf.mxu0
    %v6159 = vadd.f32 %v5835, %v6158
    %v6160 = vpop.f32.mrf.mxu0
    %6161 = vmatprep.mubr.f32.mxu0 0.0
    %6162 = vmatmul.mubr.f32.gmra.mxu0 %v5937
    %v6163 = vpop.f32.mrf.mxu0
    %v6164 = vadd.f32 %v5840, %v6163
    %v6165 = vpop.f32.mrf.mxu0
    %6166 = vdwg.mxu0
    %v6167 = vld [vmem:[%s5452 + $0x2] sm:$0xff]
    %v6168 = vld [vmem:[%s5452 + $0xa] sm:$0xff]
    %v6169 = vld [vmem:[%s5452 + $0x1a] sm:$0xff]
    %v6170 = vld [vmem:[%s5452 + $0x22] sm:$0xff]
    %v6171 = vld [vmem:[%s5452 + $0x32] sm:$0xff]
    %v6172 = vld [vmem:[%s5452 + $0x3a] sm:$0xff]
    %v6173 = vld [vmem:[%s5452 + $0x4a] sm:$0xff]
    %v6174 = vld [vmem:[%s5452 + $0x52] sm:$0xff]
    %v6175 = vld [vmem:[%s5452 + $0x62] sm:$0xff]
    %v6176 = vld [vmem:[%s5452 + $0x6a] sm:$0xff]
    %v6177 = vld [vmem:[%s5452 + $0x7a] sm:$0xff]
    %v6178 = vld [vmem:[%s5452 + $0x82] sm:$0xff]
    %v6179 = vld [vmem:[%s5452 + $0x92] sm:$0xff]
    %v6180 = vld [vmem:[%s5452 + $0x9a] sm:$0xff]
    %v6181 = vld [vmem:[%s5452 + $0xaa] sm:$0xff]
    %v6182 = vld [vmem:[%s5452 + $0xb2] sm:$0xff]
    %v6183 = vld [vmem:[%s5452 + $0xc2] sm:$0xff]
    %v6184 = vld [vmem:[%s5452 + $0xca] sm:$0xff]
    %v6185 = vld [vmem:[%s5452 + $0xda] sm:$0xff]
    %v6186 = vld [vmem:[%s5452 + $0xe2] sm:$0xff]
    %v6187 = vld [vmem:[%s5452 + $0xf2] sm:$0xff]
    %v6188 = vld [vmem:[%s5452 + $0xfa] sm:$0xff]
    %v6189 = vld [vmem:[%s5452 + $0x10a] sm:$0xff]
    %v6190 = vld [vmem:[%s5452 + $0x112] sm:$0xff]
    %v6191 = vld [vmem:[%s5452 + $0x122] sm:$0xff]
    %v6192 = vld [vmem:[%s5452 + $0x12a] sm:$0xff]
    %v6193 = vld [vmem:[%s5452 + $0x13a] sm:$0xff]
    %v6194 = vld [vmem:[%s5452 + $0x142] sm:$0xff]
    %v6195 = vld [vmem:[%s5452 + $0x152] sm:$0xff]
    %v6196 = vld [vmem:[%s5452 + $0x15a] sm:$0xff]
    %v6197 = vld [vmem:[%s5452 + $0x16a] sm:$0xff]
    %v6198 = vld [vmem:[%s5452 + $0x172] sm:$0xff]
    %v6199 = vld [vmem:[%s1044] sm:$0xf]
    %v6201 = vsel %vm33, %v6167, 0
    %v6204 = vsel %vm33, %v6168, 0
    %v6207 = vsel %vm33, %v6169, 0
    %v6210 = vsel %vm33, %v6170, 0
    %v6213 = vsel %vm33, %v6171, 0
    %v6216 = vsel %vm33, %v6172, 0
    %v6219 = vsel %vm33, %v6173, 0
    %v6222 = vsel %vm33, %v6174, 0
    %v6225 = vsel %vm33, %v6175, 0
    %v6228 = vsel %vm33, %v6176, 0
    %v6231 = vsel %vm33, %v6177, 0
    %v6234 = vsel %vm33, %v6178, 0
    %v6237 = vsel %vm33, %v6179, 0
    %v6240 = vsel %vm33, %v6180, 0
    %v6243 = vsel %vm33, %v6181, 0
    %v6246 = vsel %vm33, %v6182, 0
    %v6249 = vsel %vm33, %v6183, 0
    %v6252 = vsel %vm33, %v6184, 0
    %v6255 = vsel %vm33, %v6185, 0
    %v6258 = vsel %vm33, %v6186, 0
    %v6261 = vsel %vm33, %v6187, 0
    %v6264 = vsel %vm33, %v6188, 0
    %v6267 = vsel %vm33, %v6189, 0
    %v6270 = vsel %vm33, %v6190, 0
    %v6273 = vsel %vm33, %v6191, 0
    %v6276 = vsel %vm33, %v6192, 0
    %v6279 = vsel %vm33, %v6193, 0
    %v6282 = vsel %vm33, %v6194, 0
    %v6285 = vsel %vm33, %v6195, 0
    %v6288 = vsel %vm33, %v6196, 0
    %v6291 = vsel %vm33, %v6197, 0
    %v6294 = vsel %vm33, %v6198, 0
    %v6297 = vsel %vm459, %v6199, 0
    %6299 = vmatprep.subr.mxu0 0.0
    %6300 = vmatpush1.msra.mxu0 0.0
    %6301 = vmatprep.subr.mxu0 0.0
    %6302 = vmatpush1.msra.mxu0 0.0
    %6303 = vmatprep.subr.mxu0 0.0
    %6304 = vmatpush1.msra.mxu0 0.0
    %6305 = vmatprep.subr.mxu0 0.0
    %6306 = vmatpush1.msra.mxu0 0.0
    %6307 = vmatprep.subr.mxu0 0.0
    %6308 = vmatpush1.msra.mxu0 0.0
    %6309 = vmatprep.subr.mxu0 0.0
    %6310 = vmatpush1.msra.mxu0 0.0
    %6311 = vmatprep.subr.mxu0 0.0
    %6312 = vmatpush1.msra.mxu0 0.0
    %6313 = vmatprep.subr.mxu0 0.0
    %6314 = vmatpush1.msra.mxu0 0.0
    %6315 = vmatprep.subr.mxu0 0.0
    %6316 = vmatpush1.msra.mxu0 0.0
    %6317 = vmatprep.subr.mxu0 0.0
    %6318 = vmatpush1.msra.mxu0 0.0
    %6319 = vmatprep.subr.mxu0 0.0
    %6320 = vmatpush1.msra.mxu0 0.0
    %6321 = vmatprep.subr.mxu0 0.0
    %6322 = vmatpush1.msra.mxu0 0.0
    %6323 = vmatprep.subr.mxu0 0.0
    %6324 = vmatpush1.msra.mxu0 0.0
    %6325 = vmatprep.subr.mxu0 0.0
    %6326 = vmatpush1.msra.mxu0 0.0
    %6327 = vmatprep.subr.mxu0 0.0
    %6328 = vmatpush1.msra.mxu0 0.0
    %6329 = vmatprep.subr.mxu0 0.0
    %6330 = vmatpush1.msra.mxu0 %v6297
    %6331 = vmatprep.subr.mxu0 0.0
    %6332 = vmatpush2.msra.mxu0 0.0
    %6333 = vmatprep.subr.mxu0 0.0
    %6334 = vmatpush2.msra.mxu0 0.0
    %6335 = vmatprep.subr.mxu0 0.0
    %6336 = vmatpush2.msra.mxu0 0.0
    %6337 = vmatprep.subr.mxu0 0.0
    %6338 = vmatpush2.msra.mxu0 0.0
    %6339 = vmatprep.subr.mxu0 0.0
    %6340 = vmatpush2.msra.mxu0 0.0
    %6341 = vmatprep.subr.mxu0 0.0
    %6342 = vmatpush2.msra.mxu0 0.0
    %6343 = vmatprep.subr.mxu0 0.0
    %6344 = vmatpush2.msra.mxu0 0.0
    %6345 = vmatprep.subr.mxu0 0.0
    %6346 = vmatpush2.msra.mxu0 0.0
    %6347 = vmatprep.subr.mxu0 0.0
    %6348 = vmatpush2.msra.mxu0 0.0
    %6349 = vmatprep.subr.mxu0 0.0
    %6350 = vmatpush2.msra.mxu0 0.0
    %6351 = vmatprep.subr.mxu0 0.0
    %6352 = vmatpush2.msra.mxu0 0.0
    %6353 = vmatprep.subr.mxu0 0.0
    %6354 = vmatpush2.msra.mxu0 0.0
    %6355 = vmatprep.subr.mxu0 0.0
    %6356 = vmatpush2.msra.mxu0 0.0
    %6357 = vmatprep.subr.mxu0 0.0
    %6358 = vmatpush2.msra.mxu0 0.0
    %6359 = vmatprep.subr.mxu0 0.0
    %6360 = vmatpush2.msra.mxu0 0.0
    %6361 = vmatprep.subr.mxu0 0.0
    %6362 = vmatpush2.msra.mxu0 0.0
    %6363 = vmatprep.mubr.f32.mxu0 0.0
    %6364 = vmatmul.mubr.f32.gmra.mxu0 %v6201
    %v6365 = vpop.f32.mrf.mxu0
    %v6366 = vadd.f32 0.0, %v6365
    %v6367 = vpop.f32.mrf.mxu0
    %6368 = vmatprep.mubr.f32.mxu0 0.0
    %6369 = vmatmul.mubr.f32.gmra.mxu0 %v6204
    %v6370 = vpop.f32.mrf.mxu0
    %v6371 = vadd.f32 0.0, %v6370
    %v6372 = vpop.f32.mrf.mxu0
    %6373 = vmatprep.mubr.f32.mxu0 0.0
    %6374 = vmatmul.mubr.f32.gmra.mxu0 %v6207
    %v6375 = vpop.f32.mrf.mxu0
    %v6376 = vadd.f32 0.0, %v6375
    %v6377 = vpop.f32.mrf.mxu0
    %6378 = vmatprep.mubr.f32.mxu0 0.0
    %6379 = vmatmul.mubr.f32.gmra.mxu0 %v6210
    %v6380 = vpop.f32.mrf.mxu0
    %v6381 = vadd.f32 0.0, %v6380
    %v6382 = vpop.f32.mrf.mxu0
    %6383 = vmatprep.mubr.f32.mxu0 0.0
    %6384 = vmatmul.mubr.f32.gmra.mxu0 %v6213
    %v6385 = vpop.f32.mrf.mxu0
    %v6386 = vadd.f32 0.0, %v6385
    %v6387 = vpop.f32.mrf.mxu0
    %6388 = vmatprep.mubr.f32.mxu0 0.0
    %6389 = vmatmul.mubr.f32.gmra.mxu0 %v6216
    %v6390 = vpop.f32.mrf.mxu0
    %v6391 = vadd.f32 0.0, %v6390
    %v6392 = vpop.f32.mrf.mxu0
    %6393 = vmatprep.mubr.f32.mxu0 0.0
    %6394 = vmatmul.mubr.f32.gmra.mxu0 %v6219
    %v6395 = vpop.f32.mrf.mxu0
    %v6396 = vadd.f32 0.0, %v6395
    %v6397 = vpop.f32.mrf.mxu0
    %6398 = vmatprep.mubr.f32.mxu0 0.0
    %6399 = vmatmul.mubr.f32.gmra.mxu0 %v6222
    %v6400 = vpop.f32.mrf.mxu0
    %v6401 = vadd.f32 0.0, %v6400
    %v6402 = vpop.f32.mrf.mxu0
    %6403 = vmatprep.mubr.f32.mxu0 0.0
    %6404 = vmatmul.mubr.f32.gmra.mxu0 %v6225
    %v6405 = vpop.f32.mrf.mxu0
    %v6406 = vadd.f32 0.0, %v6405
    %v6407 = vpop.f32.mrf.mxu0
    %6408 = vmatprep.mubr.f32.mxu0 0.0
    %6409 = vmatmul.mubr.f32.gmra.mxu0 %v6228
    %v6410 = vpop.f32.mrf.mxu0
    %v6411 = vadd.f32 0.0, %v6410
    %v6412 = vpop.f32.mrf.mxu0
    %6413 = vmatprep.mubr.f32.mxu0 0.0
    %6414 = vmatmul.mubr.f32.gmra.mxu0 %v6231
    %v6415 = vpop.f32.mrf.mxu0
    %v6416 = vadd.f32 0.0, %v6415
    %v6417 = vpop.f32.mrf.mxu0
    %6418 = vmatprep.mubr.f32.mxu0 0.0
    %6419 = vmatmul.mubr.f32.gmra.mxu0 %v6234
    %v6420 = vpop.f32.mrf.mxu0
    %v6421 = vadd.f32 0.0, %v6420
    %v6422 = vpop.f32.mrf.mxu0
    %6423 = vmatprep.mubr.f32.mxu0 0.0
    %6424 = vmatmul.mubr.f32.gmra.mxu0 %v6237
    %v6425 = vpop.f32.mrf.mxu0
    %v6426 = vadd.f32 0.0, %v6425
    %v6427 = vpop.f32.mrf.mxu0
    %6428 = vmatprep.mubr.f32.mxu0 0.0
    %6429 = vmatmul.mubr.f32.gmra.mxu0 %v6240
    %v6430 = vpop.f32.mrf.mxu0
    %v6431 = vadd.f32 0.0, %v6430
    %v6432 = vpop.f32.mrf.mxu0
    %6433 = vmatprep.mubr.f32.mxu0 0.0
    %6434 = vmatmul.mubr.f32.gmra.mxu0 %v6243
    %v6435 = vpop.f32.mrf.mxu0
    %v6436 = vadd.f32 0.0, %v6435
    %v6437 = vpop.f32.mrf.mxu0
    %6438 = vmatprep.mubr.f32.mxu0 0.0
    %6439 = vmatmul.mubr.f32.gmra.mxu0 %v6246
    %v6440 = vpop.f32.mrf.mxu0
    %v6441 = vadd.f32 0.0, %v6440
    %v6442 = vpop.f32.mrf.mxu0
    %6443 = vmatprep.mubr.f32.mxu0 0.0
    %6444 = vmatmul.mubr.f32.gmra.mxu0 %v6249
    %v6445 = vpop.f32.mrf.mxu0
    %v6446 = vadd.f32 0.0, %v6445
    %v6447 = vpop.f32.mrf.mxu0
    %6448 = vmatprep.mubr.f32.mxu0 0.0
    %6449 = vmatmul.mubr.f32.gmra.mxu0 %v6252
    %v6450 = vpop.f32.mrf.mxu0
    %v6451 = vadd.f32 0.0, %v6450
    %v6452 = vpop.f32.mrf.mxu0
    %6453 = vmatprep.mubr.f32.mxu0 0.0
    %6454 = vmatmul.mubr.f32.gmra.mxu0 %v6255
    %v6455 = vpop.f32.mrf.mxu0
    %v6456 = vadd.f32 0.0, %v6455
    %v6457 = vpop.f32.mrf.mxu0
    %6458 = vmatprep.mubr.f32.mxu0 0.0
    %6459 = vmatmul.mubr.f32.gmra.mxu0 %v6258
    %v6460 = vpop.f32.mrf.mxu0
    %v6461 = vadd.f32 0.0, %v6460
    %v6462 = vpop.f32.mrf.mxu0
    %6463 = vmatprep.mubr.f32.mxu0 0.0
    %6464 = vmatmul.mubr.f32.gmra.mxu0 %v6261
    %v6465 = vpop.f32.mrf.mxu0
    %v6466 = vadd.f32 0.0, %v6465
    %v6467 = vpop.f32.mrf.mxu0
    %6468 = vmatprep.mubr.f32.mxu0 0.0
    %6469 = vmatmul.mubr.f32.gmra.mxu0 %v6264
    %v6470 = vpop.f32.mrf.mxu0
    %v6471 = vadd.f32 0.0, %v6470
    %v6472 = vpop.f32.mrf.mxu0
    %6473 = vmatprep.mubr.f32.mxu0 0.0
    %6474 = vmatmul.mubr.f32.gmra.mxu0 %v6267
    %v6475 = vpop.f32.mrf.mxu0
    %v6476 = vadd.f32 0.0, %v6475
    %v6477 = vpop.f32.mrf.mxu0
    %6478 = vmatprep.mubr.f32.mxu0 0.0
    %6479 = vmatmul.mubr.f32.gmra.mxu0 %v6270
    %v6480 = vpop.f32.mrf.mxu0
    %v6481 = vadd.f32 0.0, %v6480
    %v6482 = vpop.f32.mrf.mxu0
    %6483 = vmatprep.mubr.f32.mxu0 0.0
    %6484 = vmatmul.mubr.f32.gmra.mxu0 %v6273
    %v6485 = vpop.f32.mrf.mxu0
    %v6486 = vadd.f32 0.0, %v6485
    %v6487 = vpop.f32.mrf.mxu0
    %6488 = vmatprep.mubr.f32.mxu0 0.0
    %6489 = vmatmul.mubr.f32.gmra.mxu0 %v6276
    %v6490 = vpop.f32.mrf.mxu0
    %v6491 = vadd.f32 0.0, %v6490
    %v6492 = vpop.f32.mrf.mxu0
    %6493 = vmatprep.mubr.f32.mxu0 0.0
    %6494 = vmatmul.mubr.f32.gmra.mxu0 %v6279
    %v6495 = vpop.f32.mrf.mxu0
    %v6496 = vadd.f32 0.0, %v6495
    %v6497 = vpop.f32.mrf.mxu0
    %6498 = vmatprep.mubr.f32.mxu0 0.0
    %6499 = vmatmul.mubr.f32.gmra.mxu0 %v6282
    %v6500 = vpop.f32.mrf.mxu0
    %v6501 = vadd.f32 0.0, %v6500
    %v6502 = vpop.f32.mrf.mxu0
    %6503 = vmatprep.mubr.f32.mxu0 0.0
    %6504 = vmatmul.mubr.f32.gmra.mxu0 %v6285
    %v6505 = vpop.f32.mrf.mxu0
    %v6506 = vadd.f32 0.0, %v6505
    %v6507 = vpop.f32.mrf.mxu0
    %6508 = vmatprep.mubr.f32.mxu0 0.0
    %6509 = vmatmul.mubr.f32.gmra.mxu0 %v6288
    %v6510 = vpop.f32.mrf.mxu0
    %v6511 = vadd.f32 0.0, %v6510
    %v6512 = vpop.f32.mrf.mxu0
    %6513 = vmatprep.mubr.f32.mxu0 0.0
    %6514 = vmatmul.mubr.f32.gmra.mxu0 %v6291
    %v6515 = vpop.f32.mrf.mxu0
    %v6516 = vadd.f32 0.0, %v6515
    %v6517 = vpop.f32.mrf.mxu0
    %6518 = vmatprep.mubr.f32.mxu0 0.0
    %6519 = vmatmul.mubr.f32.gmra.mxu0 %v6294
    %v6520 = vpop.f32.mrf.mxu0
    %v6521 = vadd.f32 0.0, %v6520
    %v6522 = vpop.f32.mrf.mxu0
    %6523 = vdwg.mxu0
    %v6524 = vadd.f32 %v6009, %v6366
    %v6525 = vadd.f32 %v6014, %v6371
    %v6526 = vadd.f32 %v6019, %v6376
    %v6527 = vadd.f32 %v6024, %v6381
    %v6528 = vadd.f32 %v6029, %v6386
    %v6529 = vadd.f32 %v6034, %v6391
    %v6530 = vadd.f32 %v6039, %v6396
    %v6531 = vadd.f32 %v6044, %v6401
    %v6532 = vadd.f32 %v6049, %v6406
    %v6533 = vadd.f32 %v6054, %v6411
    %v6534 = vadd.f32 %v6059, %v6416
    %v6535 = vadd.f32 %v6064, %v6421
    %v6536 = vadd.f32 %v6069, %v6426
    %v6537 = vadd.f32 %v6074, %v6431
    %v6538 = vadd.f32 %v6079, %v6436
    %v6539 = vadd.f32 %v6084, %v6441
    %v6540 = vadd.f32 %v6089, %v6446
    %v6541 = vadd.f32 %v6094, %v6451
    %v6542 = vadd.f32 %v6099, %v6456
    %v6543 = vadd.f32 %v6104, %v6461
    %v6544 = vadd.f32 %v6109, %v6466
    %v6545 = vadd.f32 %v6114, %v6471
    %v6546 = vadd.f32 %v6119, %v6476
    %v6547 = vadd.f32 %v6124, %v6481
    %v6548 = vadd.f32 %v6129, %v6486
    %v6549 = vadd.f32 %v6134, %v6491
    %v6550 = vadd.f32 %v6139, %v6496
    %v6551 = vadd.f32 %v6144, %v6501
    %v6552 = vadd.f32 %v6149, %v6506
    %v6553 = vadd.f32 %v6154, %v6511
    %v6554 = vadd.f32 %v6159, %v6516
    %v6555 = vadd.f32 %v6164, %v6521
    %v6556 = vld [vmem:[%s263] sm:$0xff]
    %v6557 = vld [vmem:[%s263 + $0x8] sm:$0xff]
    %v6558 = vld [vmem:[%s263 + $0x18] sm:$0xff]
    %v6559 = vld [vmem:[%s263 + $0x20] sm:$0xff]
    %v6560 = vld [vmem:[%s263 + $0x30] sm:$0xff]
    %v6561 = vld [vmem:[%s263 + $0x38] sm:$0xff]
    %v6562 = vld [vmem:[%s263 + $0x48] sm:$0xff]
    %v6563 = vld [vmem:[%s263 + $0x50] sm:$0xff]
    %v6564 = vld [vmem:[%s263 + $0x60] sm:$0xff]
    %v6565 = vld [vmem:[%s263 + $0x68] sm:$0xff]
    %v6566 = vld [vmem:[%s263 + $0x78] sm:$0xff]
    %v6567 = vld [vmem:[%s263 + $0x80] sm:$0xff]
    %v6568 = vld [vmem:[%s263 + $0x90] sm:$0xff]
    %v6569 = vld [vmem:[%s263 + $0x98] sm:$0xff]
    %v6570 = vld [vmem:[%s263 + $0xa8] sm:$0xff]
    %v6571 = vld [vmem:[%s263 + $0xb0] sm:$0xff]
    %v6572 = vld [vmem:[%s263 + $0xc0] sm:$0xff]
    %v6573 = vld [vmem:[%s263 + $0xc8] sm:$0xff]
    %v6574 = vld [vmem:[%s263 + $0xd8] sm:$0xff]
    %v6575 = vld [vmem:[%s263 + $0xe0] sm:$0xff]
    %v6576 = vld [vmem:[%s263 + $0xf0] sm:$0xff]
    %v6577 = vld [vmem:[%s263 + $0xf8] sm:$0xff]
    %v6578 = vld [vmem:[%s263 + $0x108] sm:$0xff]
    %v6579 = vld [vmem:[%s263 + $0x110] sm:$0xff]
    %v6580 = vld [vmem:[%s263 + $0x120] sm:$0xff]
    %v6581 = vld [vmem:[%s263 + $0x128] sm:$0xff]
    %v6582 = vld [vmem:[%s263 + $0x138] sm:$0xff]
    %v6583 = vld [vmem:[%s263 + $0x140] sm:$0xff]
    %v6584 = vld [vmem:[%s263 + $0x150] sm:$0xff]
    %v6585 = vld [vmem:[%s263 + $0x158] sm:$0xff]
    %v6586 = vld [vmem:[%s263 + $0x168] sm:$0xff]
    %v6587 = vld [vmem:[%s263 + $0x170] sm:$0xff]
    %v6588 = vld [vmem:[%s1434] sm:$0xf]
    %v6590 = vsel %vm33, %v6556, 0
    %v6593 = vsel %vm33, %v6557, 0
    %v6596 = vsel %vm33, %v6558, 0
    %v6599 = vsel %vm33, %v6559, 0
    %v6602 = vsel %vm33, %v6560, 0
    %v6605 = vsel %vm33, %v6561, 0
    %v6608 = vsel %vm33, %v6562, 0
    %v6611 = vsel %vm33, %v6563, 0
    %v6614 = vsel %vm33, %v6564, 0
    %v6617 = vsel %vm33, %v6565, 0
    %v6620 = vsel %vm33, %v6566, 0
    %v6623 = vsel %vm33, %v6567, 0
    %v6626 = vsel %vm33, %v6568, 0
    %v6629 = vsel %vm33, %v6569, 0
    %v6632 = vsel %vm33, %v6570, 0
    %v6635 = vsel %vm33, %v6571, 0
    %v6638 = vsel %vm33, %v6572, 0
    %v6641 = vsel %vm33, %v6573, 0
    %v6644 = vsel %vm33, %v6574, 0
    %v6647 = vsel %vm33, %v6575, 0
    %v6650 = vsel %vm33, %v6576, 0
    %v6653 = vsel %vm33, %v6577, 0
    %v6656 = vsel %vm33, %v6578, 0
    %v6659 = vsel %vm33, %v6579, 0
    %v6662 = vsel %vm33, %v6580, 0
    %v6665 = vsel %vm33, %v6581, 0
    %v6668 = vsel %vm33, %v6582, 0
    %v6671 = vsel %vm33, %v6583, 0
    %v6674 = vsel %vm33, %v6584, 0
    %v6677 = vsel %vm33, %v6585, 0
    %v6680 = vsel %vm33, %v6586, 0
    %v6683 = vsel %vm33, %v6587, 0
    %v6686 = vsel %vm459, %v6588, 0
    %6688 = vmatprep.subr.mxu0 0.0
    %6689 = vmatpush1.msra.mxu0 0.0
    %6690 = vmatprep.subr.mxu0 0.0
    %6691 = vmatpush1.msra.mxu0 0.0
    %6692 = vmatprep.subr.mxu0 0.0
    %6693 = vmatpush1.msra.mxu0 0.0
    %6694 = vmatprep.subr.mxu0 0.0
    %6695 = vmatpush1.msra.mxu0 0.0
    %6696 = vmatprep.subr.mxu0 0.0
    %6697 = vmatpush1.msra.mxu0 0.0
    %6698 = vmatprep.subr.mxu0 0.0
    %6699 = vmatpush1.msra.mxu0 0.0
    %6700 = vmatprep.subr.mxu0 0.0
    %6701 = vmatpush1.msra.mxu0 0.0
    %6702 = vmatprep.subr.mxu0 0.0
    %6703 = vmatpush1.msra.mxu0 0.0
    %6704 = vmatprep.subr.mxu0 0.0
    %6705 = vmatpush1.msra.mxu0 0.0
    %6706 = vmatprep.subr.mxu0 0.0
    %6707 = vmatpush1.msra.mxu0 0.0
    %6708 = vmatprep.subr.mxu0 0.0
    %6709 = vmatpush1.msra.mxu0 0.0
    %6710 = vmatprep.subr.mxu0 0.0
    %6711 = vmatpush1.msra.mxu0 0.0
    %6712 = vmatprep.subr.mxu0 0.0
    %6713 = vmatpush1.msra.mxu0 0.0
    %6714 = vmatprep.subr.mxu0 0.0
    %6715 = vmatpush1.msra.mxu0 0.0
    %6716 = vmatprep.subr.mxu0 0.0
    %6717 = vmatpush1.msra.mxu0 0.0
    %6718 = vmatprep.subr.mxu0 0.0
    %6719 = vmatpush1.msra.mxu0 %v6686
    %6720 = vmatprep.subr.mxu0 0.0
    %6721 = vmatpush2.msra.mxu0 0.0
    %6722 = vmatprep.subr.mxu0 0.0
    %6723 = vmatpush2.msra.mxu0 0.0
    %6724 = vmatprep.subr.mxu0 0.0
    %6725 = vmatpush2.msra.mxu0 0.0
    %6726 = vmatprep.subr.mxu0 0.0
    %6727 = vmatpush2.msra.mxu0 0.0
    %6728 = vmatprep.subr.mxu0 0.0
    %6729 = vmatpush2.msra.mxu0 0.0
    %6730 = vmatprep.subr.mxu0 0.0
    %6731 = vmatpush2.msra.mxu0 0.0
    %6732 = vmatprep.subr.mxu0 0.0
    %6733 = vmatpush2.msra.mxu0 0.0
    %6734 = vmatprep.subr.mxu0 0.0
    %6735 = vmatpush2.msra.mxu0 0.0
    %6736 = vmatprep.subr.mxu0 0.0
    %6737 = vmatpush2.msra.mxu0 0.0
    %6738 = vmatprep.subr.mxu0 0.0
    %6739 = vmatpush2.msra.mxu0 0.0
    %6740 = vmatprep.subr.mxu0 0.0
    %6741 = vmatpush2.msra.mxu0 0.0
    %6742 = vmatprep.subr.mxu0 0.0
    %6743 = vmatpush2.msra.mxu0 0.0
    %6744 = vmatprep.subr.mxu0 0.0
    %6745 = vmatpush2.msra.mxu0 0.0
    %6746 = vmatprep.subr.mxu0 0.0
    %6747 = vmatpush2.msra.mxu0 0.0
    %6748 = vmatprep.subr.mxu0 0.0
    %6749 = vmatpush2.msra.mxu0 0.0
    %6750 = vmatprep.subr.mxu0 0.0
    %6751 = vmatpush2.msra.mxu0 0.0
    %6752 = vmatprep.mubr.f32.mxu0 0.0
    %6753 = vmatmul.mubr.f32.gmra.mxu0 %v6590
    %v6754 = vpop.f32.mrf.mxu0
    %v6755 = vadd.f32 0.0, %v6754
    %v6756 = vpop.f32.mrf.mxu0
    %6757 = vmatprep.mubr.f32.mxu0 0.0
    %6758 = vmatmul.mubr.f32.gmra.mxu0 %v6593
    %v6759 = vpop.f32.mrf.mxu0
    %v6760 = vadd.f32 0.0, %v6759
    %v6761 = vpop.f32.mrf.mxu0
    %6762 = vmatprep.mubr.f32.mxu0 0.0
    %6763 = vmatmul.mubr.f32.gmra.mxu0 %v6596
    %v6764 = vpop.f32.mrf.mxu0
    %v6765 = vadd.f32 0.0, %v6764
    %v6766 = vpop.f32.mrf.mxu0
    %6767 = vmatprep.mubr.f32.mxu0 0.0
    %6768 = vmatmul.mubr.f32.gmra.mxu0 %v6599
    %v6769 = vpop.f32.mrf.mxu0
    %v6770 = vadd.f32 0.0, %v6769
    %v6771 = vpop.f32.mrf.mxu0
    %6772 = vmatprep.mubr.f32.mxu0 0.0
    %6773 = vmatmul.mubr.f32.gmra.mxu0 %v6602
    %v6774 = vpop.f32.mrf.mxu0
    %v6775 = vadd.f32 0.0, %v6774
    %v6776 = vpop.f32.mrf.mxu0
    %6777 = vmatprep.mubr.f32.mxu0 0.0
    %6778 = vmatmul.mubr.f32.gmra.mxu0 %v6605
    %v6779 = vpop.f32.mrf.mxu0
    %v6780 = vadd.f32 0.0, %v6779
    %v6781 = vpop.f32.mrf.mxu0
    %6782 = vmatprep.mubr.f32.mxu0 0.0
    %6783 = vmatmul.mubr.f32.gmra.mxu0 %v6608
    %v6784 = vpop.f32.mrf.mxu0
    %v6785 = vadd.f32 0.0, %v6784
    %v6786 = vpop.f32.mrf.mxu0
    %6787 = vmatprep.mubr.f32.mxu0 0.0
    %6788 = vmatmul.mubr.f32.gmra.mxu0 %v6611
    %v6789 = vpop.f32.mrf.mxu0
    %v6790 = vadd.f32 0.0, %v6789
    %v6791 = vpop.f32.mrf.mxu0
    %6792 = vmatprep.mubr.f32.mxu0 0.0
    %6793 = vmatmul.mubr.f32.gmra.mxu0 %v6614
    %v6794 = vpop.f32.mrf.mxu0
    %v6795 = vadd.f32 0.0, %v6794
    %v6796 = vpop.f32.mrf.mxu0
    %6797 = vmatprep.mubr.f32.mxu0 0.0
    %6798 = vmatmul.mubr.f32.gmra.mxu0 %v6617
    %v6799 = vpop.f32.mrf.mxu0
    %v6800 = vadd.f32 0.0, %v6799
    %v6801 = vpop.f32.mrf.mxu0
    %6802 = vmatprep.mubr.f32.mxu0 0.0
    %6803 = vmatmul.mubr.f32.gmra.mxu0 %v6620
    %v6804 = vpop.f32.mrf.mxu0
    %v6805 = vadd.f32 0.0, %v6804
    %v6806 = vpop.f32.mrf.mxu0
    %6807 = vmatprep.mubr.f32.mxu0 0.0
    %6808 = vmatmul.mubr.f32.gmra.mxu0 %v6623
    %v6809 = vpop.f32.mrf.mxu0
    %v6810 = vadd.f32 0.0, %v6809
    %v6811 = vpop.f32.mrf.mxu0
    %6812 = vmatprep.mubr.f32.mxu0 0.0
    %6813 = vmatmul.mubr.f32.gmra.mxu0 %v6626
    %v6814 = vpop.f32.mrf.mxu0
    %v6815 = vadd.f32 0.0, %v6814
    %v6816 = vpop.f32.mrf.mxu0
    %6817 = vmatprep.mubr.f32.mxu0 0.0
    %6818 = vmatmul.mubr.f32.gmra.mxu0 %v6629
    %v6819 = vpop.f32.mrf.mxu0
    %v6820 = vadd.f32 0.0, %v6819
    %v6821 = vpop.f32.mrf.mxu0
    %6822 = vmatprep.mubr.f32.mxu0 0.0
    %6823 = vmatmul.mubr.f32.gmra.mxu0 %v6632
    %v6824 = vpop.f32.mrf.mxu0
    %v6825 = vadd.f32 0.0, %v6824
    %v6826 = vpop.f32.mrf.mxu0
    %6827 = vmatprep.mubr.f32.mxu0 0.0
    %6828 = vmatmul.mubr.f32.gmra.mxu0 %v6635
    %v6829 = vpop.f32.mrf.mxu0
    %v6830 = vadd.f32 0.0, %v6829
    %v6831 = vpop.f32.mrf.mxu0
    %6832 = vmatprep.mubr.f32.mxu0 0.0
    %6833 = vmatmul.mubr.f32.gmra.mxu0 %v6638
    %v6834 = vpop.f32.mrf.mxu0
    %v6835 = vadd.f32 0.0, %v6834
    %v6836 = vpop.f32.mrf.mxu0
    %6837 = vmatprep.mubr.f32.mxu0 0.0
    %6838 = vmatmul.mubr.f32.gmra.mxu0 %v6641
    %v6839 = vpop.f32.mrf.mxu0
    %v6840 = vadd.f32 0.0, %v6839
    %v6841 = vpop.f32.mrf.mxu0
    %6842 = vmatprep.mubr.f32.mxu0 0.0
    %6843 = vmatmul.mubr.f32.gmra.mxu0 %v6644
    %v6844 = vpop.f32.mrf.mxu0
    %v6845 = vadd.f32 0.0, %v6844
    %v6846 = vpop.f32.mrf.mxu0
    %6847 = vmatprep.mubr.f32.mxu0 0.0
    %6848 = vmatmul.mubr.f32.gmra.mxu0 %v6647
    %v6849 = vpop.f32.mrf.mxu0
    %v6850 = vadd.f32 0.0, %v6849
    %v6851 = vpop.f32.mrf.mxu0
    %6852 = vmatprep.mubr.f32.mxu0 0.0
    %6853 = vmatmul.mubr.f32.gmra.mxu0 %v6650
    %v6854 = vpop.f32.mrf.mxu0
    %v6855 = vadd.f32 0.0, %v6854
    %v6856 = vpop.f32.mrf.mxu0
    %6857 = vmatprep.mubr.f32.mxu0 0.0
    %6858 = vmatmul.mubr.f32.gmra.mxu0 %v6653
    %v6859 = vpop.f32.mrf.mxu0
    %v6860 = vadd.f32 0.0, %v6859
    %v6861 = vpop.f32.mrf.mxu0
    %6862 = vmatprep.mubr.f32.mxu0 0.0
    %6863 = vmatmul.mubr.f32.gmra.mxu0 %v6656
    %v6864 = vpop.f32.mrf.mxu0
    %v6865 = vadd.f32 0.0, %v6864
    %v6866 = vpop.f32.mrf.mxu0
    %6867 = vmatprep.mubr.f32.mxu0 0.0
    %6868 = vmatmul.mubr.f32.gmra.mxu0 %v6659
    %v6869 = vpop.f32.mrf.mxu0
    %v6870 = vadd.f32 0.0, %v6869
    %v6871 = vpop.f32.mrf.mxu0
    %6872 = vmatprep.mubr.f32.mxu0 0.0
    %6873 = vmatmul.mubr.f32.gmra.mxu0 %v6662
    %v6874 = vpop.f32.mrf.mxu0
    %v6875 = vadd.f32 0.0, %v6874
    %v6876 = vpop.f32.mrf.mxu0
    %6877 = vmatprep.mubr.f32.mxu0 0.0
    %6878 = vmatmul.mubr.f32.gmra.mxu0 %v6665
    %v6879 = vpop.f32.mrf.mxu0
    %v6880 = vadd.f32 0.0, %v6879
    %v6881 = vpop.f32.mrf.mxu0
    %6882 = vmatprep.mubr.f32.mxu0 0.0
    %6883 = vmatmul.mubr.f32.gmra.mxu0 %v6668
    %v6884 = vpop.f32.mrf.mxu0
    %v6885 = vadd.f32 0.0, %v6884
    %v6886 = vpop.f32.mrf.mxu0
    %6887 = vmatprep.mubr.f32.mxu0 0.0
    %6888 = vmatmul.mubr.f32.gmra.mxu0 %v6671
    %v6889 = vpop.f32.mrf.mxu0
    %v6890 = vadd.f32 0.0, %v6889
    %v6891 = vpop.f32.mrf.mxu0
    %6892 = vmatprep.mubr.f32.mxu0 0.0
    %6893 = vmatmul.mubr.f32.gmra.mxu0 %v6674
    %v6894 = vpop.f32.mrf.mxu0
    %v6895 = vadd.f32 0.0, %v6894
    %v6896 = vpop.f32.mrf.mxu0
    %6897 = vmatprep.mubr.f32.mxu0 0.0
    %6898 = vmatmul.mubr.f32.gmra.mxu0 %v6677
    %v6899 = vpop.f32.mrf.mxu0
    %v6900 = vadd.f32 0.0, %v6899
    %v6901 = vpop.f32.mrf.mxu0
    %6902 = vmatprep.mubr.f32.mxu0 0.0
    %6903 = vmatmul.mubr.f32.gmra.mxu0 %v6680
    %v6904 = vpop.f32.mrf.mxu0
    %v6905 = vadd.f32 0.0, %v6904
    %v6906 = vpop.f32.mrf.mxu0
    %6907 = vmatprep.mubr.f32.mxu0 0.0
    %6908 = vmatmul.mubr.f32.gmra.mxu0 %v6683
    %v6909 = vpop.f32.mrf.mxu0
    %v6910 = vadd.f32 0.0, %v6909
    %v6911 = vpop.f32.mrf.mxu0
    %6912 = vdwg.mxu0
    %v6913 = vadd.f32 %v6524, %v6755
    %v6914 = vadd.f32 %v6525, %v6760
    %v6915 = vadd.f32 %v6526, %v6765
    %v6916 = vadd.f32 %v6527, %v6770
    %v6917 = vadd.f32 %v6528, %v6775
    %v6918 = vadd.f32 %v6529, %v6780
    %v6919 = vadd.f32 %v6530, %v6785
    %v6920 = vadd.f32 %v6531, %v6790
    %v6921 = vadd.f32 %v6532, %v6795
    %v6922 = vadd.f32 %v6533, %v6800
    %v6923 = vadd.f32 %v6534, %v6805
    %v6924 = vadd.f32 %v6535, %v6810
    %v6925 = vadd.f32 %v6536, %v6815
    %v6926 = vadd.f32 %v6537, %v6820
    %v6927 = vadd.f32 %v6538, %v6825
    %v6928 = vadd.f32 %v6539, %v6830
    %v6929 = vadd.f32 %v6540, %v6835
    %v6930 = vadd.f32 %v6541, %v6840
    %v6931 = vadd.f32 %v6542, %v6845
    %v6932 = vadd.f32 %v6543, %v6850
    %v6933 = vadd.f32 %v6544, %v6855
    %v6934 = vadd.f32 %v6545, %v6860
    %v6935 = vadd.f32 %v6546, %v6865
    %v6936 = vadd.f32 %v6547, %v6870
    %v6937 = vadd.f32 %v6548, %v6875
    %v6938 = vadd.f32 %v6549, %v6880
    %v6939 = vadd.f32 %v6550, %v6885
    %v6940 = vadd.f32 %v6551, %v6890
    %v6941 = vadd.f32 %v6552, %v6895
    %v6942 = vadd.f32 %v6553, %v6900
    %v6943 = vadd.f32 %v6554, %v6905
    %v6944 = vadd.f32 %v6555, %v6910
    %v6945 = vld [vmem:[%s263 + $0x1] sm:$0xff]
    %v6946 = vld [vmem:[%s263 + $0x9] sm:$0xff]
    %v6947 = vld [vmem:[%s263 + $0x19] sm:$0xff]
    %v6948 = vld [vmem:[%s263 + $0x21] sm:$0xff]
    %v6949 = vld [vmem:[%s263 + $0x31] sm:$0xff]
    %v6950 = vld [vmem:[%s263 + $0x39] sm:$0xff]
    %v6951 = vld [vmem:[%s263 + $0x49] sm:$0xff]
    %v6952 = vld [vmem:[%s263 + $0x51] sm:$0xff]
    %v6953 = vld [vmem:[%s263 + $0x61] sm:$0xff]
    %v6954 = vld [vmem:[%s263 + $0x69] sm:$0xff]
    %v6955 = vld [vmem:[%s263 + $0x79] sm:$0xff]
    %v6956 = vld [vmem:[%s263 + $0x81] sm:$0xff]
    %v6957 = vld [vmem:[%s263 + $0x91] sm:$0xff]
    %v6958 = vld [vmem:[%s263 + $0x99] sm:$0xff]
    %v6959 = vld [vmem:[%s263 + $0xa9] sm:$0xff]
    %v6960 = vld [vmem:[%s263 + $0xb1] sm:$0xff]
    %v6961 = vld [vmem:[%s263 + $0xc1] sm:$0xff]
    %v6962 = vld [vmem:[%s263 + $0xc9] sm:$0xff]
    %v6963 = vld [vmem:[%s263 + $0xd9] sm:$0xff]
    %v6964 = vld [vmem:[%s263 + $0xe1] sm:$0xff]
    %v6965 = vld [vmem:[%s263 + $0xf1] sm:$0xff]
    %v6966 = vld [vmem:[%s263 + $0xf9] sm:$0xff]
    %v6967 = vld [vmem:[%s263 + $0x109] sm:$0xff]
    %v6968 = vld [vmem:[%s263 + $0x111] sm:$0xff]
    %v6969 = vld [vmem:[%s263 + $0x121] sm:$0xff]
    %v6970 = vld [vmem:[%s263 + $0x129] sm:$0xff]
    %v6971 = vld [vmem:[%s263 + $0x139] sm:$0xff]
    %v6972 = vld [vmem:[%s263 + $0x141] sm:$0xff]
    %v6973 = vld [vmem:[%s263 + $0x151] sm:$0xff]
    %v6974 = vld [vmem:[%s263 + $0x159] sm:$0xff]
    %v6975 = vld [vmem:[%s263 + $0x169] sm:$0xff]
    %v6976 = vld [vmem:[%s263 + $0x171] sm:$0xff]
    %v6977 = vld [vmem:[%s1824] sm:$0xf]
    %v6979 = vsel %vm33, %v6945, 0
    %v6982 = vsel %vm33, %v6946, 0
    %v6985 = vsel %vm33, %v6947, 0
    %v6988 = vsel %vm33, %v6948, 0
    %v6991 = vsel %vm33, %v6949, 0
    %v6994 = vsel %vm33, %v6950, 0
    %v6997 = vsel %vm33, %v6951, 0
    %v7000 = vsel %vm33, %v6952, 0
    %v7003 = vsel %vm33, %v6953, 0
    %v7006 = vsel %vm33, %v6954, 0
    %v7009 = vsel %vm33, %v6955, 0
    %v7012 = vsel %vm33, %v6956, 0
    %v7015 = vsel %vm33, %v6957, 0
    %v7018 = vsel %vm33, %v6958, 0
    %v7021 = vsel %vm33, %v6959, 0
    %v7024 = vsel %vm33, %v6960, 0
    %v7027 = vsel %vm33, %v6961, 0
    %v7030 = vsel %vm33, %v6962, 0
    %v7033 = vsel %vm33, %v6963, 0
    %v7036 = vsel %vm33, %v6964, 0
    %v7039 = vsel %vm33, %v6965, 0
    %v7042 = vsel %vm33, %v6966, 0
    %v7045 = vsel %vm33, %v6967, 0
    %v7048 = vsel %vm33, %v6968, 0
    %v7051 = vsel %vm33, %v6969, 0
    %v7054 = vsel %vm33, %v6970, 0
    %v7057 = vsel %vm33, %v6971, 0
    %v7060 = vsel %vm33, %v6972, 0
    %v7063 = vsel %vm33, %v6973, 0
    %v7066 = vsel %vm33, %v6974, 0
    %v7069 = vsel %vm33, %v6975, 0
    %v7072 = vsel %vm33, %v6976, 0
    %v7075 = vsel %vm459, %v6977, 0
    %7077 = vmatprep.subr.mxu0 0.0
    %7078 = vmatpush1.msra.mxu0 0.0
    %7079 = vmatprep.subr.mxu0 0.0
    %7080 = vmatpush1.msra.mxu0 0.0
    %7081 = vmatprep.subr.mxu0 0.0
    %7082 = vmatpush1.msra.mxu0 0.0
    %7083 = vmatprep.subr.mxu0 0.0
    %7084 = vmatpush1.msra.mxu0 0.0
    %7085 = vmatprep.subr.mxu0 0.0
    %7086 = vmatpush1.msra.mxu0 0.0
    %7087 = vmatprep.subr.mxu0 0.0
    %7088 = vmatpush1.msra.mxu0 0.0
    %7089 = vmatprep.subr.mxu0 0.0
    %7090 = vmatpush1.msra.mxu0 0.0
    %7091 = vmatprep.subr.mxu0 0.0
    %7092 = vmatpush1.msra.mxu0 0.0
    %7093 = vmatprep.subr.mxu0 0.0
    %7094 = vmatpush1.msra.mxu0 0.0
    %7095 = vmatprep.subr.mxu0 0.0
    %7096 = vmatpush1.msra.mxu0 0.0
    %7097 = vmatprep.subr.mxu0 0.0
    %7098 = vmatpush1.msra.mxu0 0.0
    %7099 = vmatprep.subr.mxu0 0.0
    %7100 = vmatpush1.msra.mxu0 0.0
    %7101 = vmatprep.subr.mxu0 0.0
    %7102 = vmatpush1.msra.mxu0 0.0
    %7103 = vmatprep.subr.mxu0 0.0
    %7104 = vmatpush1.msra.mxu0 0.0
    %7105 = vmatprep.subr.mxu0 0.0
    %7106 = vmatpush1.msra.mxu0 0.0
    %7107 = vmatprep.subr.mxu0 0.0
    %7108 = vmatpush1.msra.mxu0 %v7075
    %7109 = vmatprep.subr.mxu0 0.0
    %7110 = vmatpush2.msra.mxu0 0.0
    %7111 = vmatprep.subr.mxu0 0.0
    %7112 = vmatpush2.msra.mxu0 0.0
    %7113 = vmatprep.subr.mxu0 0.0
    %7114 = vmatpush2.msra.mxu0 0.0
    %7115 = vmatprep.subr.mxu0 0.0
    %7116 = vmatpush2.msra.mxu0 0.0
    %7117 = vmatprep.subr.mxu0 0.0
    %7118 = vmatpush2.msra.mxu0 0.0
    %7119 = vmatprep.subr.mxu0 0.0
    %7120 = vmatpush2.msra.mxu0 0.0
    %7121 = vmatprep.subr.mxu0 0.0
    %7122 = vmatpush2.msra.mxu0 0.0
    %7123 = vmatprep.subr.mxu0 0.0
    %7124 = vmatpush2.msra.mxu0 0.0
    %7125 = vmatprep.subr.mxu0 0.0
    %7126 = vmatpush2.msra.mxu0 0.0
    %7127 = vmatprep.subr.mxu0 0.0
    %7128 = vmatpush2.msra.mxu0 0.0
    %7129 = vmatprep.subr.mxu0 0.0
    %7130 = vmatpush2.msra.mxu0 0.0
    %7131 = vmatprep.subr.mxu0 0.0
    %7132 = vmatpush2.msra.mxu0 0.0
    %7133 = vmatprep.subr.mxu0 0.0
    %7134 = vmatpush2.msra.mxu0 0.0
    %7135 = vmatprep.subr.mxu0 0.0
    %7136 = vmatpush2.msra.mxu0 0.0
    %7137 = vmatprep.subr.mxu0 0.0
    %7138 = vmatpush2.msra.mxu0 0.0
    %7139 = vmatprep.subr.mxu0 0.0
    %7140 = vmatpush2.msra.mxu0 0.0
    %7141 = vmatprep.mubr.f32.mxu0 0.0
    %7142 = vmatmul.mubr.f32.gmra.mxu0 %v6979
    %v7143 = vpop.f32.mrf.mxu0
    %v7144 = vadd.f32 0.0, %v7143
    %v7145 = vpop.f32.mrf.mxu0
    %7146 = vmatprep.mubr.f32.mxu0 0.0
    %7147 = vmatmul.mubr.f32.gmra.mxu0 %v6982
    %v7148 = vpop.f32.mrf.mxu0
    %v7149 = vadd.f32 0.0, %v7148
    %v7150 = vpop.f32.mrf.mxu0
    %7151 = vmatprep.mubr.f32.mxu0 0.0
    %7152 = vmatmul.mubr.f32.gmra.mxu0 %v6985
    %v7153 = vpop.f32.mrf.mxu0
    %v7154 = vadd.f32 0.0, %v7153
    %v7155 = vpop.f32.mrf.mxu0
    %7156 = vmatprep.mubr.f32.mxu0 0.0
    %7157 = vmatmul.mubr.f32.gmra.mxu0 %v6988
    %v7158 = vpop.f32.mrf.mxu0
    %v7159 = vadd.f32 0.0, %v7158
    %v7160 = vpop.f32.mrf.mxu0
    %7161 = vmatprep.mubr.f32.mxu0 0.0
    %7162 = vmatmul.mubr.f32.gmra.mxu0 %v6991
    %v7163 = vpop.f32.mrf.mxu0
    %v7164 = vadd.f32 0.0, %v7163
    %v7165 = vpop.f32.mrf.mxu0
    %7166 = vmatprep.mubr.f32.mxu0 0.0
    %7167 = vmatmul.mubr.f32.gmra.mxu0 %v6994
    %v7168 = vpop.f32.mrf.mxu0
    %v7169 = vadd.f32 0.0, %v7168
    %v7170 = vpop.f32.mrf.mxu0
    %7171 = vmatprep.mubr.f32.mxu0 0.0
    %7172 = vmatmul.mubr.f32.gmra.mxu0 %v6997
    %v7173 = vpop.f32.mrf.mxu0
    %v7174 = vadd.f32 0.0, %v7173
    %v7175 = vpop.f32.mrf.mxu0
    %7176 = vmatprep.mubr.f32.mxu0 0.0
    %7177 = vmatmul.mubr.f32.gmra.mxu0 %v7000
    %v7178 = vpop.f32.mrf.mxu0
    %v7179 = vadd.f32 0.0, %v7178
    %v7180 = vpop.f32.mrf.mxu0
    %7181 = vmatprep.mubr.f32.mxu0 0.0
    %7182 = vmatmul.mubr.f32.gmra.mxu0 %v7003
    %v7183 = vpop.f32.mrf.mxu0
    %v7184 = vadd.f32 0.0, %v7183
    %v7185 = vpop.f32.mrf.mxu0
    %7186 = vmatprep.mubr.f32.mxu0 0.0
    %7187 = vmatmul.mubr.f32.gmra.mxu0 %v7006
    %v7188 = vpop.f32.mrf.mxu0
    %v7189 = vadd.f32 0.0, %v7188
    %v7190 = vpop.f32.mrf.mxu0
    %7191 = vmatprep.mubr.f32.mxu0 0.0
    %7192 = vmatmul.mubr.f32.gmra.mxu0 %v7009
    %v7193 = vpop.f32.mrf.mxu0
    %v7194 = vadd.f32 0.0, %v7193
    %v7195 = vpop.f32.mrf.mxu0
    %7196 = vmatprep.mubr.f32.mxu0 0.0
    %7197 = vmatmul.mubr.f32.gmra.mxu0 %v7012
    %v7198 = vpop.f32.mrf.mxu0
    %v7199 = vadd.f32 0.0, %v7198
    %v7200 = vpop.f32.mrf.mxu0
    %7201 = vmatprep.mubr.f32.mxu0 0.0
    %7202 = vmatmul.mubr.f32.gmra.mxu0 %v7015
    %v7203 = vpop.f32.mrf.mxu0
    %v7204 = vadd.f32 0.0, %v7203
    %v7205 = vpop.f32.mrf.mxu0
    %7206 = vmatprep.mubr.f32.mxu0 0.0
    %7207 = vmatmul.mubr.f32.gmra.mxu0 %v7018
    %v7208 = vpop.f32.mrf.mxu0
    %v7209 = vadd.f32 0.0, %v7208
    %v7210 = vpop.f32.mrf.mxu0
    %7211 = vmatprep.mubr.f32.mxu0 0.0
    %7212 = vmatmul.mubr.f32.gmra.mxu0 %v7021
    %v7213 = vpop.f32.mrf.mxu0
    %v7214 = vadd.f32 0.0, %v7213
    %v7215 = vpop.f32.mrf.mxu0
    %7216 = vmatprep.mubr.f32.mxu0 0.0
    %7217 = vmatmul.mubr.f32.gmra.mxu0 %v7024
    %v7218 = vpop.f32.mrf.mxu0
    %v7219 = vadd.f32 0.0, %v7218
    %v7220 = vpop.f32.mrf.mxu0
    %7221 = vmatprep.mubr.f32.mxu0 0.0
    %7222 = vmatmul.mubr.f32.gmra.mxu0 %v7027
    %v7223 = vpop.f32.mrf.mxu0
    %v7224 = vadd.f32 0.0, %v7223
    %v7225 = vpop.f32.mrf.mxu0
    %7226 = vmatprep.mubr.f32.mxu0 0.0
    %7227 = vmatmul.mubr.f32.gmra.mxu0 %v7030
    %v7228 = vpop.f32.mrf.mxu0
    %v7229 = vadd.f32 0.0, %v7228
    %v7230 = vpop.f32.mrf.mxu0
    %7231 = vmatprep.mubr.f32.mxu0 0.0
    %7232 = vmatmul.mubr.f32.gmra.mxu0 %v7033
    %v7233 = vpop.f32.mrf.mxu0
    %v7234 = vadd.f32 0.0, %v7233
    %v7235 = vpop.f32.mrf.mxu0
    %7236 = vmatprep.mubr.f32.mxu0 0.0
    %7237 = vmatmul.mubr.f32.gmra.mxu0 %v7036
    %v7238 = vpop.f32.mrf.mxu0
    %v7239 = vadd.f32 0.0, %v7238
    %v7240 = vpop.f32.mrf.mxu0
    %7241 = vmatprep.mubr.f32.mxu0 0.0
    %7242 = vmatmul.mubr.f32.gmra.mxu0 %v7039
    %v7243 = vpop.f32.mrf.mxu0
    %v7244 = vadd.f32 0.0, %v7243
    %v7245 = vpop.f32.mrf.mxu0
    %7246 = vmatprep.mubr.f32.mxu0 0.0
    %7247 = vmatmul.mubr.f32.gmra.mxu0 %v7042
    %v7248 = vpop.f32.mrf.mxu0
    %v7249 = vadd.f32 0.0, %v7248
    %v7250 = vpop.f32.mrf.mxu0
    %7251 = vmatprep.mubr.f32.mxu0 0.0
    %7252 = vmatmul.mubr.f32.gmra.mxu0 %v7045
    %v7253 = vpop.f32.mrf.mxu0
    %v7254 = vadd.f32 0.0, %v7253
    %v7255 = vpop.f32.mrf.mxu0
    %7256 = vmatprep.mubr.f32.mxu0 0.0
    %7257 = vmatmul.mubr.f32.gmra.mxu0 %v7048
    %v7258 = vpop.f32.mrf.mxu0
    %v7259 = vadd.f32 0.0, %v7258
    %v7260 = vpop.f32.mrf.mxu0
    %7261 = vmatprep.mubr.f32.mxu0 0.0
    %7262 = vmatmul.mubr.f32.gmra.mxu0 %v7051
    %v7263 = vpop.f32.mrf.mxu0
    %v7264 = vadd.f32 0.0, %v7263
    %v7265 = vpop.f32.mrf.mxu0
    %7266 = vmatprep.mubr.f32.mxu0 0.0
    %7267 = vmatmul.mubr.f32.gmra.mxu0 %v7054
    %v7268 = vpop.f32.mrf.mxu0
    %v7269 = vadd.f32 0.0, %v7268
    %v7270 = vpop.f32.mrf.mxu0
    %7271 = vmatprep.mubr.f32.mxu0 0.0
    %7272 = vmatmul.mubr.f32.gmra.mxu0 %v7057
    %v7273 = vpop.f32.mrf.mxu0
    %v7274 = vadd.f32 0.0, %v7273
    %v7275 = vpop.f32.mrf.mxu0
    %7276 = vmatprep.mubr.f32.mxu0 0.0
    %7277 = vmatmul.mubr.f32.gmra.mxu0 %v7060
    %v7278 = vpop.f32.mrf.mxu0
    %v7279 = vadd.f32 0.0, %v7278
    %v7280 = vpop.f32.mrf.mxu0
    %7281 = vmatprep.mubr.f32.mxu0 0.0
    %7282 = vmatmul.mubr.f32.gmra.mxu0 %v7063
    %v7283 = vpop.f32.mrf.mxu0
    %v7284 = vadd.f32 0.0, %v7283
    %v7285 = vpop.f32.mrf.mxu0
    %7286 = vmatprep.mubr.f32.mxu0 0.0
    %7287 = vmatmul.mubr.f32.gmra.mxu0 %v7066
    %v7288 = vpop.f32.mrf.mxu0
    %v7289 = vadd.f32 0.0, %v7288
    %v7290 = vpop.f32.mrf.mxu0
    %7291 = vmatprep.mubr.f32.mxu0 0.0
    %7292 = vmatmul.mubr.f32.gmra.mxu0 %v7069
    %v7293 = vpop.f32.mrf.mxu0
    %v7294 = vadd.f32 0.0, %v7293
    %v7295 = vpop.f32.mrf.mxu0
    %7296 = vmatprep.mubr.f32.mxu0 0.0
    %7297 = vmatmul.mubr.f32.gmra.mxu0 %v7072
    %v7298 = vpop.f32.mrf.mxu0
    %v7299 = vadd.f32 0.0, %v7298
    %v7300 = vpop.f32.mrf.mxu0
    %7301 = vdwg.mxu0
    %v7302 = vadd.f32 %v6913, %v7144
    %v7303 = vadd.f32 %v6914, %v7149
    %v7304 = vadd.f32 %v6915, %v7154
    %v7305 = vadd.f32 %v6916, %v7159
    %v7306 = vadd.f32 %v6917, %v7164
    %v7307 = vadd.f32 %v6918, %v7169
    %v7308 = vadd.f32 %v6919, %v7174
    %v7309 = vadd.f32 %v6920, %v7179
    %v7310 = vadd.f32 %v6921, %v7184
    %v7311 = vadd.f32 %v6922, %v7189
    %v7312 = vadd.f32 %v6923, %v7194
    %v7313 = vadd.f32 %v6924, %v7199
    %v7314 = vadd.f32 %v6925, %v7204
    %v7315 = vadd.f32 %v6926, %v7209
    %v7316 = vadd.f32 %v6927, %v7214
    %v7317 = vadd.f32 %v6928, %v7219
    %v7318 = vadd.f32 %v6929, %v7224
    %v7319 = vadd.f32 %v6930, %v7229
    %v7320 = vadd.f32 %v6931, %v7234
    %v7321 = vadd.f32 %v6932, %v7239
    %v7322 = vadd.f32 %v6933, %v7244
    %v7323 = vadd.f32 %v6934, %v7249
    %v7324 = vadd.f32 %v6935, %v7254
    %v7325 = vadd.f32 %v6936, %v7259
    %v7326 = vadd.f32 %v6937, %v7264
    %v7327 = vadd.f32 %v6938, %v7269
    %v7328 = vadd.f32 %v6939, %v7274
    %v7329 = vadd.f32 %v6940, %v7279
    %v7330 = vadd.f32 %v6941, %v7284
    %v7331 = vadd.f32 %v6942, %v7289
    %v7332 = vadd.f32 %v6943, %v7294
    %v7333 = vadd.f32 %v6944, %v7299
    %v7334 = vld [vmem:[%s263 + $0x2] sm:$0xff]
    %v7335 = vld [vmem:[%s263 + $0xa] sm:$0xff]
    %v7336 = vld [vmem:[%s263 + $0x1a] sm:$0xff]
    %v7337 = vld [vmem:[%s263 + $0x22] sm:$0xff]
    %v7338 = vld [vmem:[%s263 + $0x32] sm:$0xff]
    %v7339 = vld [vmem:[%s263 + $0x3a] sm:$0xff]
    %v7340 = vld [vmem:[%s263 + $0x4a] sm:$0xff]
    %v7341 = vld [vmem:[%s263 + $0x52] sm:$0xff]
    %v7342 = vld [vmem:[%s263 + $0x62] sm:$0xff]
    %v7343 = vld [vmem:[%s263 + $0x6a] sm:$0xff]
    %v7344 = vld [vmem:[%s263 + $0x7a] sm:$0xff]
    %v7345 = vld [vmem:[%s263 + $0x82] sm:$0xff]
    %v7346 = vld [vmem:[%s263 + $0x92] sm:$0xff]
    %v7347 = vld [vmem:[%s263 + $0x9a] sm:$0xff]
    %v7348 = vld [vmem:[%s263 + $0xaa] sm:$0xff]
    %v7349 = vld [vmem:[%s263 + $0xb2] sm:$0xff]
    %v7350 = vld [vmem:[%s263 + $0xc2] sm:$0xff]
    %v7351 = vld [vmem:[%s263 + $0xca] sm:$0xff]
    %v7352 = vld [vmem:[%s263 + $0xda] sm:$0xff]
    %v7353 = vld [vmem:[%s263 + $0xe2] sm:$0xff]
    %v7354 = vld [vmem:[%s263 + $0xf2] sm:$0xff]
    %v7355 = vld [vmem:[%s263 + $0xfa] sm:$0xff]
    %v7356 = vld [vmem:[%s263 + $0x10a] sm:$0xff]
    %v7357 = vld [vmem:[%s263 + $0x112] sm:$0xff]
    %v7358 = vld [vmem:[%s263 + $0x122] sm:$0xff]
    %v7359 = vld [vmem:[%s263 + $0x12a] sm:$0xff]
    %v7360 = vld [vmem:[%s263 + $0x13a] sm:$0xff]
    %v7361 = vld [vmem:[%s263 + $0x142] sm:$0xff]
    %v7362 = vld [vmem:[%s263 + $0x152] sm:$0xff]
    %v7363 = vld [vmem:[%s263 + $0x15a] sm:$0xff]
    %v7364 = vld [vmem:[%s263 + $0x16a] sm:$0xff]
    %v7365 = vld [vmem:[%s263 + $0x172] sm:$0xff]
    %v7366 = vld [vmem:[%s2214] sm:$0xf]
    %v7368 = vsel %vm33, %v7334, 0
    %v7371 = vsel %vm33, %v7335, 0
    %v7374 = vsel %vm33, %v7336, 0
    %v7377 = vsel %vm33, %v7337, 0
    %v7380 = vsel %vm33, %v7338, 0
    %v7383 = vsel %vm33, %v7339, 0
    %v7386 = vsel %vm33, %v7340, 0
    %v7389 = vsel %vm33, %v7341, 0
    %v7392 = vsel %vm33, %v7342, 0
    %v7395 = vsel %vm33, %v7343, 0
    %v7398 = vsel %vm33, %v7344, 0
    %v7401 = vsel %vm33, %v7345, 0
    %v7404 = vsel %vm33, %v7346, 0
    %v7407 = vsel %vm33, %v7347, 0
    %v7410 = vsel %vm33, %v7348, 0
    %v7413 = vsel %vm33, %v7349, 0
    %v7416 = vsel %vm33, %v7350, 0
    %v7419 = vsel %vm33, %v7351, 0
    %v7422 = vsel %vm33, %v7352, 0
    %v7425 = vsel %vm33, %v7353, 0
    %v7428 = vsel %vm33, %v7354, 0
    %v7431 = vsel %vm33, %v7355, 0
    %v7434 = vsel %vm33, %v7356, 0
    %v7437 = vsel %vm33, %v7357, 0
    %v7440 = vsel %vm33, %v7358, 0
    %v7443 = vsel %vm33, %v7359, 0
    %v7446 = vsel %vm33, %v7360, 0
    %v7449 = vsel %vm33, %v7361, 0
    %v7452 = vsel %vm33, %v7362, 0
    %v7455 = vsel %vm33, %v7363, 0
    %v7458 = vsel %vm33, %v7364, 0
    %v7461 = vsel %vm33, %v7365, 0
    %v7464 = vsel %vm459, %v7366, 0
    %7466 = vmatprep.subr.mxu0 0.0
    %7467 = vmatpush1.msra.mxu0 0.0
    %7468 = vmatprep.subr.mxu0 0.0
    %7469 = vmatpush1.msra.mxu0 0.0
    %7470 = vmatprep.subr.mxu0 0.0
    %7471 = vmatpush1.msra.mxu0 0.0
    %7472 = vmatprep.subr.mxu0 0.0
    %7473 = vmatpush1.msra.mxu0 0.0
    %7474 = vmatprep.subr.mxu0 0.0
    %7475 = vmatpush1.msra.mxu0 0.0
    %7476 = vmatprep.subr.mxu0 0.0
    %7477 = vmatpush1.msra.mxu0 0.0
    %7478 = vmatprep.subr.mxu0 0.0
    %7479 = vmatpush1.msra.mxu0 0.0
    %7480 = vmatprep.subr.mxu0 0.0
    %7481 = vmatpush1.msra.mxu0 0.0
    %7482 = vmatprep.subr.mxu0 0.0
    %7483 = vmatpush1.msra.mxu0 0.0
    %7484 = vmatprep.subr.mxu0 0.0
    %7485 = vmatpush1.msra.mxu0 0.0
    %7486 = vmatprep.subr.mxu0 0.0
    %7487 = vmatpush1.msra.mxu0 0.0
    %7488 = vmatprep.subr.mxu0 0.0
    %7489 = vmatpush1.msra.mxu0 0.0
    %7490 = vmatprep.subr.mxu0 0.0
    %7491 = vmatpush1.msra.mxu0 0.0
    %7492 = vmatprep.subr.mxu0 0.0
    %7493 = vmatpush1.msra.mxu0 0.0
    %7494 = vmatprep.subr.mxu0 0.0
    %7495 = vmatpush1.msra.mxu0 0.0
    %7496 = vmatprep.subr.mxu0 0.0
    %7497 = vmatpush1.msra.mxu0 %v7464
    %7498 = vmatprep.subr.mxu0 0.0
    %7499 = vmatpush2.msra.mxu0 0.0
    %7500 = vmatprep.subr.mxu0 0.0
    %7501 = vmatpush2.msra.mxu0 0.0
    %7502 = vmatprep.subr.mxu0 0.0
    %7503 = vmatpush2.msra.mxu0 0.0
    %7504 = vmatprep.subr.mxu0 0.0
    %7505 = vmatpush2.msra.mxu0 0.0
    %7506 = vmatprep.subr.mxu0 0.0
    %7507 = vmatpush2.msra.mxu0 0.0
    %7508 = vmatprep.subr.mxu0 0.0
    %7509 = vmatpush2.msra.mxu0 0.0
    %7510 = vmatprep.subr.mxu0 0.0
    %7511 = vmatpush2.msra.mxu0 0.0
    %7512 = vmatprep.subr.mxu0 0.0
    %7513 = vmatpush2.msra.mxu0 0.0
    %7514 = vmatprep.subr.mxu0 0.0
    %7515 = vmatpush2.msra.mxu0 0.0
    %7516 = vmatprep.subr.mxu0 0.0
    %7517 = vmatpush2.msra.mxu0 0.0
    %7518 = vmatprep.subr.mxu0 0.0
    %7519 = vmatpush2.msra.mxu0 0.0
    %7520 = vmatprep.subr.mxu0 0.0
    %7521 = vmatpush2.msra.mxu0 0.0
    %7522 = vmatprep.subr.mxu0 0.0
    %7523 = vmatpush2.msra.mxu0 0.0
    %7524 = vmatprep.subr.mxu0 0.0
    %7525 = vmatpush2.msra.mxu0 0.0
    %7526 = vmatprep.subr.mxu0 0.0
    %7527 = vmatpush2.msra.mxu0 0.0
    %7528 = vmatprep.subr.mxu0 0.0
    %7529 = vmatpush2.msra.mxu0 0.0
    %7530 = vmatprep.mubr.f32.mxu0 0.0
    %7531 = vmatmul.mubr.f32.gmra.mxu0 %v7368
    %v7532 = vpop.f32.mrf.mxu0
    %v7533 = vadd.f32 0.0, %v7532
    %v7534 = vpop.f32.mrf.mxu0
    %7535 = vmatprep.mubr.f32.mxu0 0.0
    %7536 = vmatmul.mubr.f32.gmra.mxu0 %v7371
    %v7537 = vpop.f32.mrf.mxu0
    %v7538 = vadd.f32 0.0, %v7537
    %v7539 = vpop.f32.mrf.mxu0
    %7540 = vmatprep.mubr.f32.mxu0 0.0
    %7541 = vmatmul.mubr.f32.gmra.mxu0 %v7374
    %v7542 = vpop.f32.mrf.mxu0
    %v7543 = vadd.f32 0.0, %v7542
    %v7544 = vpop.f32.mrf.mxu0
    %7545 = vmatprep.mubr.f32.mxu0 0.0
    %7546 = vmatmul.mubr.f32.gmra.mxu0 %v7377
    %v7547 = vpop.f32.mrf.mxu0
    %v7548 = vadd.f32 0.0, %v7547
    %v7549 = vpop.f32.mrf.mxu0
    %7550 = vmatprep.mubr.f32.mxu0 0.0
    %7551 = vmatmul.mubr.f32.gmra.mxu0 %v7380
    %v7552 = vpop.f32.mrf.mxu0
    %v7553 = vadd.f32 0.0, %v7552
    %v7554 = vpop.f32.mrf.mxu0
    %7555 = vmatprep.mubr.f32.mxu0 0.0
    %7556 = vmatmul.mubr.f32.gmra.mxu0 %v7383
    %v7557 = vpop.f32.mrf.mxu0
    %v7558 = vadd.f32 0.0, %v7557
    %v7559 = vpop.f32.mrf.mxu0
    %7560 = vmatprep.mubr.f32.mxu0 0.0
    %7561 = vmatmul.mubr.f32.gmra.mxu0 %v7386
    %v7562 = vpop.f32.mrf.mxu0
    %v7563 = vadd.f32 0.0, %v7562
    %v7564 = vpop.f32.mrf.mxu0
    %7565 = vmatprep.mubr.f32.mxu0 0.0
    %7566 = vmatmul.mubr.f32.gmra.mxu0 %v7389
    %v7567 = vpop.f32.mrf.mxu0
    %v7568 = vadd.f32 0.0, %v7567
    %v7569 = vpop.f32.mrf.mxu0
    %7570 = vmatprep.mubr.f32.mxu0 0.0
    %7571 = vmatmul.mubr.f32.gmra.mxu0 %v7392
    %v7572 = vpop.f32.mrf.mxu0
    %v7573 = vadd.f32 0.0, %v7572
    %v7574 = vpop.f32.mrf.mxu0
    %7575 = vmatprep.mubr.f32.mxu0 0.0
    %7576 = vmatmul.mubr.f32.gmra.mxu0 %v7395
    %v7577 = vpop.f32.mrf.mxu0
    %v7578 = vadd.f32 0.0, %v7577
    %v7579 = vpop.f32.mrf.mxu0
    %7580 = vmatprep.mubr.f32.mxu0 0.0
    %7581 = vmatmul.mubr.f32.gmra.mxu0 %v7398
    %v7582 = vpop.f32.mrf.mxu0
    %v7583 = vadd.f32 0.0, %v7582
    %v7584 = vpop.f32.mrf.mxu0
    %7585 = vmatprep.mubr.f32.mxu0 0.0
    %7586 = vmatmul.mubr.f32.gmra.mxu0 %v7401
    %v7587 = vpop.f32.mrf.mxu0
    %v7588 = vadd.f32 0.0, %v7587
    %v7589 = vpop.f32.mrf.mxu0
    %7590 = vmatprep.mubr.f32.mxu0 0.0
    %7591 = vmatmul.mubr.f32.gmra.mxu0 %v7404
    %v7592 = vpop.f32.mrf.mxu0
    %v7593 = vadd.f32 0.0, %v7592
    %v7594 = vpop.f32.mrf.mxu0
    %7595 = vmatprep.mubr.f32.mxu0 0.0
    %7596 = vmatmul.mubr.f32.gmra.mxu0 %v7407
    %v7597 = vpop.f32.mrf.mxu0
    %v7598 = vadd.f32 0.0, %v7597
    %v7599 = vpop.f32.mrf.mxu0
    %7600 = vmatprep.mubr.f32.mxu0 0.0
    %7601 = vmatmul.mubr.f32.gmra.mxu0 %v7410
    %v7602 = vpop.f32.mrf.mxu0
    %v7603 = vadd.f32 0.0, %v7602
    %v7604 = vpop.f32.mrf.mxu0
    %7605 = vmatprep.mubr.f32.mxu0 0.0
    %7606 = vmatmul.mubr.f32.gmra.mxu0 %v7413
    %v7607 = vpop.f32.mrf.mxu0
    %v7608 = vadd.f32 0.0, %v7607
    %v7609 = vpop.f32.mrf.mxu0
    %7610 = vmatprep.mubr.f32.mxu0 0.0
    %7611 = vmatmul.mubr.f32.gmra.mxu0 %v7416
    %v7612 = vpop.f32.mrf.mxu0
    %v7613 = vadd.f32 0.0, %v7612
    %v7614 = vpop.f32.mrf.mxu0
    %7615 = vmatprep.mubr.f32.mxu0 0.0
    %7616 = vmatmul.mubr.f32.gmra.mxu0 %v7419
    %v7617 = vpop.f32.mrf.mxu0
    %v7618 = vadd.f32 0.0, %v7617
    %v7619 = vpop.f32.mrf.mxu0
    %7620 = vmatprep.mubr.f32.mxu0 0.0
    %7621 = vmatmul.mubr.f32.gmra.mxu0 %v7422
    %v7622 = vpop.f32.mrf.mxu0
    %v7623 = vadd.f32 0.0, %v7622
    %v7624 = vpop.f32.mrf.mxu0
    %7625 = vmatprep.mubr.f32.mxu0 0.0
    %7626 = vmatmul.mubr.f32.gmra.mxu0 %v7425
    %v7627 = vpop.f32.mrf.mxu0
    %v7628 = vadd.f32 0.0, %v7627
    %v7629 = vpop.f32.mrf.mxu0
    %7630 = vmatprep.mubr.f32.mxu0 0.0
    %7631 = vmatmul.mubr.f32.gmra.mxu0 %v7428
    %v7632 = vpop.f32.mrf.mxu0
    %v7633 = vadd.f32 0.0, %v7632
    %v7634 = vpop.f32.mrf.mxu0
    %7635 = vmatprep.mubr.f32.mxu0 0.0
    %7636 = vmatmul.mubr.f32.gmra.mxu0 %v7431
    %v7637 = vpop.f32.mrf.mxu0
    %v7638 = vadd.f32 0.0, %v7637
    %v7639 = vpop.f32.mrf.mxu0
    %7640 = vmatprep.mubr.f32.mxu0 0.0
    %7641 = vmatmul.mubr.f32.gmra.mxu0 %v7434
    %v7642 = vpop.f32.mrf.mxu0
    %v7643 = vadd.f32 0.0, %v7642
    %v7644 = vpop.f32.mrf.mxu0
    %7645 = vmatprep.mubr.f32.mxu0 0.0
    %7646 = vmatmul.mubr.f32.gmra.mxu0 %v7437
    %v7647 = vpop.f32.mrf.mxu0
    %v7648 = vadd.f32 0.0, %v7647
    %v7649 = vpop.f32.mrf.mxu0
    %7650 = vmatprep.mubr.f32.mxu0 0.0
    %7651 = vmatmul.mubr.f32.gmra.mxu0 %v7440
    %v7652 = vpop.f32.mrf.mxu0
    %v7653 = vadd.f32 0.0, %v7652
    %v7654 = vpop.f32.mrf.mxu0
    %7655 = vmatprep.mubr.f32.mxu0 0.0
    %7656 = vmatmul.mubr.f32.gmra.mxu0 %v7443
    %v7657 = vpop.f32.mrf.mxu0
    %v7658 = vadd.f32 0.0, %v7657
    %v7659 = vpop.f32.mrf.mxu0
    %7660 = vmatprep.mubr.f32.mxu0 0.0
    %7661 = vmatmul.mubr.f32.gmra.mxu0 %v7446
    %v7662 = vpop.f32.mrf.mxu0
    %v7663 = vadd.f32 0.0, %v7662
    %v7664 = vpop.f32.mrf.mxu0
    %7665 = vmatprep.mubr.f32.mxu0 0.0
    %7666 = vmatmul.mubr.f32.gmra.mxu0 %v7449
    %v7667 = vpop.f32.mrf.mxu0
    %v7668 = vadd.f32 0.0, %v7667
    %v7669 = vpop.f32.mrf.mxu0
    %7670 = vmatprep.mubr.f32.mxu0 0.0
    %7671 = vmatmul.mubr.f32.gmra.mxu0 %v7452
    %v7672 = vpop.f32.mrf.mxu0
    %v7673 = vadd.f32 0.0, %v7672
    %v7674 = vpop.f32.mrf.mxu0
    %7675 = vmatprep.mubr.f32.mxu0 0.0
    %7676 = vmatmul.mubr.f32.gmra.mxu0 %v7455
    %v7677 = vpop.f32.mrf.mxu0
    %v7678 = vadd.f32 0.0, %v7677
    %v7679 = vpop.f32.mrf.mxu0
    %7680 = vmatprep.mubr.f32.mxu0 0.0
    %7681 = vmatmul.mubr.f32.gmra.mxu0 %v7458
    %v7682 = vpop.f32.mrf.mxu0
    %v7683 = vadd.f32 0.0, %v7682
    %v7684 = vpop.f32.mrf.mxu0
    %7685 = vmatprep.mubr.f32.mxu0 0.0
    %7686 = vmatmul.mubr.f32.gmra.mxu0 %v7461
    %v7687 = vpop.f32.mrf.mxu0
    %v7688 = vadd.f32 0.0, %v7687
    %v7689 = vpop.f32.mrf.mxu0
    %7690 = vdwg.mxu0
    %v7691 = vadd.f32 %v7302, %v7533
    %v7692 = vadd.f32 %v7303, %v7538
    %v7693 = vadd.f32 %v7304, %v7543
    %v7694 = vadd.f32 %v7305, %v7548
    %v7695 = vadd.f32 %v7306, %v7553
    %v7696 = vadd.f32 %v7307, %v7558
    %v7697 = vadd.f32 %v7308, %v7563
    %v7698 = vadd.f32 %v7309, %v7568
    %v7699 = vadd.f32 %v7310, %v7573
    %v7700 = vadd.f32 %v7311, %v7578
    %v7701 = vadd.f32 %v7312, %v7583
    %v7702 = vadd.f32 %v7313, %v7588
    %v7703 = vadd.f32 %v7314, %v7593
    %v7704 = vadd.f32 %v7315, %v7598
    %v7705 = vadd.f32 %v7316, %v7603
    %v7706 = vadd.f32 %v7317, %v7608
    %v7707 = vadd.f32 %v7318, %v7613
    %v7708 = vadd.f32 %v7319, %v7618
    %v7709 = vadd.f32 %v7320, %v7623
    %v7710 = vadd.f32 %v7321, %v7628
    %v7711 = vadd.f32 %v7322, %v7633
    %v7712 = vadd.f32 %v7323, %v7638
    %v7713 = vadd.f32 %v7324, %v7643
    %v7714 = vadd.f32 %v7325, %v7648
    %v7715 = vadd.f32 %v7326, %v7653
    %v7716 = vadd.f32 %v7327, %v7658
    %v7717 = vadd.f32 %v7328, %v7663
    %v7718 = vadd.f32 %v7329, %v7668
    %v7719 = vadd.f32 %v7330, %v7673
    %v7720 = vadd.f32 %v7331, %v7678
    %v7721 = vadd.f32 %v7332, %v7683
    %v7722 = vadd.f32 %v7333, %v7688
    %s7723 = scalar_lea.vmem [#allocation2], 480
    %v7724 = vld [vmem:[%s7723] sm:$0xff]
    %v7725 = vld [vmem:[%s7723 + $0x8] sm:$0xff]
    %v7726 = vld [vmem:[%s7723 + $0x18] sm:$0xff]
    %v7727 = vld [vmem:[%s7723 + $0x20] sm:$0xff]
    %v7728 = vld [vmem:[%s7723 + $0x30] sm:$0xff]
    %v7729 = vld [vmem:[%s7723 + $0x38] sm:$0xff]
    %v7730 = vld [vmem:[%s7723 + $0x48] sm:$0xff]
    %v7731 = vld [vmem:[%s7723 + $0x50] sm:$0xff]
    %v7732 = vld [vmem:[%s7723 + $0x60] sm:$0xff]
    %v7733 = vld [vmem:[%s7723 + $0x68] sm:$0xff]
    %v7734 = vld [vmem:[%s7723 + $0x78] sm:$0xff]
    %v7735 = vld [vmem:[%s7723 + $0x80] sm:$0xff]
    %v7736 = vld [vmem:[%s7723 + $0x90] sm:$0xff]
    %v7737 = vld [vmem:[%s7723 + $0x98] sm:$0xff]
    %v7738 = vld [vmem:[%s7723 + $0xa8] sm:$0xff]
    %v7739 = vld [vmem:[%s7723 + $0xb0] sm:$0xff]
    %v7740 = vld [vmem:[%s7723 + $0xc0] sm:$0xff]
    %v7741 = vld [vmem:[%s7723 + $0xc8] sm:$0xff]
    %v7742 = vld [vmem:[%s7723 + $0xd8] sm:$0xff]
    %v7743 = vld [vmem:[%s7723 + $0xe0] sm:$0xff]
    %v7744 = vld [vmem:[%s7723 + $0xf0] sm:$0xff]
    %v7745 = vld [vmem:[%s7723 + $0xf8] sm:$0xff]
    %v7746 = vld [vmem:[%s7723 + $0x108] sm:$0xff]
    %v7747 = vld [vmem:[%s7723 + $0x110] sm:$0xff]
    %v7748 = vld [vmem:[%s7723 + $0x120] sm:$0xff]
    %v7749 = vld [vmem:[%s7723 + $0x128] sm:$0xff]
    %v7750 = vld [vmem:[%s7723 + $0x138] sm:$0xff]
    %v7751 = vld [vmem:[%s7723 + $0x140] sm:$0xff]
    %v7752 = vld [vmem:[%s7723 + $0x150] sm:$0xff]
    %v7753 = vld [vmem:[%s7723 + $0x158] sm:$0xff]
    %v7754 = vld [vmem:[%s7723 + $0x168] sm:$0xff]
    %v7755 = vld [vmem:[%s7723 + $0x170] sm:$0xff]
    %v7756 = vld [vmem:[%s2605] sm:$0xf]
    %v7758 = vsel %vm33, %v7724, 0
    %v7761 = vsel %vm33, %v7725, 0
    %v7764 = vsel %vm33, %v7726, 0
    %v7767 = vsel %vm33, %v7727, 0
    %v7770 = vsel %vm33, %v7728, 0
    %v7773 = vsel %vm33, %v7729, 0
    %v7776 = vsel %vm33, %v7730, 0
    %v7779 = vsel %vm33, %v7731, 0
    %v7782 = vsel %vm33, %v7732, 0
    %v7785 = vsel %vm33, %v7733, 0
    %v7788 = vsel %vm33, %v7734, 0
    %v7791 = vsel %vm33, %v7735, 0
    %v7794 = vsel %vm33, %v7736, 0
    %v7797 = vsel %vm33, %v7737, 0
    %v7800 = vsel %vm33, %v7738, 0
    %v7803 = vsel %vm33, %v7739, 0
    %v7806 = vsel %vm33, %v7740, 0
    %v7809 = vsel %vm33, %v7741, 0
    %v7812 = vsel %vm33, %v7742, 0
    %v7815 = vsel %vm33, %v7743, 0
    %v7818 = vsel %vm33, %v7744, 0
    %v7821 = vsel %vm33, %v7745, 0
    %v7824 = vsel %vm33, %v7746, 0
    %v7827 = vsel %vm33, %v7747, 0
    %v7830 = vsel %vm33, %v7748, 0
    %v7833 = vsel %vm33, %v7749, 0
    %v7836 = vsel %vm33, %v7750, 0
    %v7839 = vsel %vm33, %v7751, 0
    %v7842 = vsel %vm33, %v7752, 0
    %v7845 = vsel %vm33, %v7753, 0
    %v7848 = vsel %vm33, %v7754, 0
    %v7851 = vsel %vm33, %v7755, 0
    %v7854 = vsel %vm459, %v7756, 0
    %7856 = vmatprep.subr.mxu0 0.0
    %7857 = vmatpush1.msra.mxu0 0.0
    %7858 = vmatprep.subr.mxu0 0.0
    %7859 = vmatpush1.msra.mxu0 0.0
    %7860 = vmatprep.subr.mxu0 0.0
    %7861 = vmatpush1.msra.mxu0 0.0
    %7862 = vmatprep.subr.mxu0 0.0
    %7863 = vmatpush1.msra.mxu0 0.0
    %7864 = vmatprep.subr.mxu0 0.0
    %7865 = vmatpush1.msra.mxu0 0.0
    %7866 = vmatprep.subr.mxu0 0.0
    %7867 = vmatpush1.msra.mxu0 0.0
    %7868 = vmatprep.subr.mxu0 0.0
    %7869 = vmatpush1.msra.mxu0 0.0
    %7870 = vmatprep.subr.mxu0 0.0
    %7871 = vmatpush1.msra.mxu0 0.0
    %7872 = vmatprep.subr.mxu0 0.0
    %7873 = vmatpush1.msra.mxu0 0.0
    %7874 = vmatprep.subr.mxu0 0.0
    %7875 = vmatpush1.msra.mxu0 0.0
    %7876 = vmatprep.subr.mxu0 0.0
    %7877 = vmatpush1.msra.mxu0 0.0
    %7878 = vmatprep.subr.mxu0 0.0
    %7879 = vmatpush1.msra.mxu0 0.0
    %7880 = vmatprep.subr.mxu0 0.0
    %7881 = vmatpush1.msra.mxu0 0.0
    %7882 = vmatprep.subr.mxu0 0.0
    %7883 = vmatpush1.msra.mxu0 0.0
    %7884 = vmatprep.subr.mxu0 0.0
    %7885 = vmatpush1.msra.mxu0 0.0
    %7886 = vmatprep.subr.mxu0 0.0
    %7887 = vmatpush1.msra.mxu0 %v7854
    %7888 = vmatprep.subr.mxu0 0.0
    %7889 = vmatpush2.msra.mxu0 0.0
    %7890 = vmatprep.subr.mxu0 0.0
    %7891 = vmatpush2.msra.mxu0 0.0
    %7892 = vmatprep.subr.mxu0 0.0
    %7893 = vmatpush2.msra.mxu0 0.0
    %7894 = vmatprep.subr.mxu0 0.0
    %7895 = vmatpush2.msra.mxu0 0.0
    %7896 = vmatprep.subr.mxu0 0.0
    %7897 = vmatpush2.msra.mxu0 0.0
    %7898 = vmatprep.subr.mxu0 0.0
    %7899 = vmatpush2.msra.mxu0 0.0
    %7900 = vmatprep.subr.mxu0 0.0
    %7901 = vmatpush2.msra.mxu0 0.0
    %7902 = vmatprep.subr.mxu0 0.0
    %7903 = vmatpush2.msra.mxu0 0.0
    %7904 = vmatprep.subr.mxu0 0.0
    %7905 = vmatpush2.msra.mxu0 0.0
    %7906 = vmatprep.subr.mxu0 0.0
    %7907 = vmatpush2.msra.mxu0 0.0
    %7908 = vmatprep.subr.mxu0 0.0
    %7909 = vmatpush2.msra.mxu0 0.0
    %7910 = vmatprep.subr.mxu0 0.0
    %7911 = vmatpush2.msra.mxu0 0.0
    %7912 = vmatprep.subr.mxu0 0.0
    %7913 = vmatpush2.msra.mxu0 0.0
    %7914 = vmatprep.subr.mxu0 0.0
    %7915 = vmatpush2.msra.mxu0 0.0
    %7916 = vmatprep.subr.mxu0 0.0
    %7917 = vmatpush2.msra.mxu0 0.0
    %7918 = vmatprep.subr.mxu0 0.0
    %7919 = vmatpush2.msra.mxu0 0.0
    %7920 = vmatprep.mubr.f32.mxu0 0.0
    %7921 = vmatmul.mubr.f32.gmra.mxu0 %v7758
    %v7922 = vpop.f32.mrf.mxu0
    %v7923 = vadd.f32 0.0, %v7922
    %v7924 = vpop.f32.mrf.mxu0
    %7925 = vmatprep.mubr.f32.mxu0 0.0
    %7926 = vmatmul.mubr.f32.gmra.mxu0 %v7761
    %v7927 = vpop.f32.mrf.mxu0
    %v7928 = vadd.f32 0.0, %v7927
    %v7929 = vpop.f32.mrf.mxu0
    %7930 = vmatprep.mubr.f32.mxu0 0.0
    %7931 = vmatmul.mubr.f32.gmra.mxu0 %v7764
    %v7932 = vpop.f32.mrf.mxu0
    %v7933 = vadd.f32 0.0, %v7932
    %v7934 = vpop.f32.mrf.mxu0
    %7935 = vmatprep.mubr.f32.mxu0 0.0
    %7936 = vmatmul.mubr.f32.gmra.mxu0 %v7767
    %v7937 = vpop.f32.mrf.mxu0
    %v7938 = vadd.f32 0.0, %v7937
    %v7939 = vpop.f32.mrf.mxu0
    %7940 = vmatprep.mubr.f32.mxu0 0.0
    %7941 = vmatmul.mubr.f32.gmra.mxu0 %v7770
    %v7942 = vpop.f32.mrf.mxu0
    %v7943 = vadd.f32 0.0, %v7942
    %v7944 = vpop.f32.mrf.mxu0
    %7945 = vmatprep.mubr.f32.mxu0 0.0
    %7946 = vmatmul.mubr.f32.gmra.mxu0 %v7773
    %v7947 = vpop.f32.mrf.mxu0
    %v7948 = vadd.f32 0.0, %v7947
    %v7949 = vpop.f32.mrf.mxu0
    %7950 = vmatprep.mubr.f32.mxu0 0.0
    %7951 = vmatmul.mubr.f32.gmra.mxu0 %v7776
    %v7952 = vpop.f32.mrf.mxu0
    %v7953 = vadd.f32 0.0, %v7952
    %v7954 = vpop.f32.mrf.mxu0
    %7955 = vmatprep.mubr.f32.mxu0 0.0
    %7956 = vmatmul.mubr.f32.gmra.mxu0 %v7779
    %v7957 = vpop.f32.mrf.mxu0
    %v7958 = vadd.f32 0.0, %v7957
    %v7959 = vpop.f32.mrf.mxu0
    %7960 = vmatprep.mubr.f32.mxu0 0.0
    %7961 = vmatmul.mubr.f32.gmra.mxu0 %v7782
    %v7962 = vpop.f32.mrf.mxu0
    %v7963 = vadd.f32 0.0, %v7962
    %v7964 = vpop.f32.mrf.mxu0
    %7965 = vmatprep.mubr.f32.mxu0 0.0
    %7966 = vmatmul.mubr.f32.gmra.mxu0 %v7785
    %v7967 = vpop.f32.mrf.mxu0
    %v7968 = vadd.f32 0.0, %v7967
    %v7969 = vpop.f32.mrf.mxu0
    %7970 = vmatprep.mubr.f32.mxu0 0.0
    %7971 = vmatmul.mubr.f32.gmra.mxu0 %v7788
    %v7972 = vpop.f32.mrf.mxu0
    %v7973 = vadd.f32 0.0, %v7972
    %v7974 = vpop.f32.mrf.mxu0
    %7975 = vmatprep.mubr.f32.mxu0 0.0
    %7976 = vmatmul.mubr.f32.gmra.mxu0 %v7791
    %v7977 = vpop.f32.mrf.mxu0
    %v7978 = vadd.f32 0.0, %v7977
    %v7979 = vpop.f32.mrf.mxu0
    %7980 = vmatprep.mubr.f32.mxu0 0.0
    %7981 = vmatmul.mubr.f32.gmra.mxu0 %v7794
    %v7982 = vpop.f32.mrf.mxu0
    %v7983 = vadd.f32 0.0, %v7982
    %v7984 = vpop.f32.mrf.mxu0
    %7985 = vmatprep.mubr.f32.mxu0 0.0
    %7986 = vmatmul.mubr.f32.gmra.mxu0 %v7797
    %v7987 = vpop.f32.mrf.mxu0
    %v7988 = vadd.f32 0.0, %v7987
    %v7989 = vpop.f32.mrf.mxu0
    %7990 = vmatprep.mubr.f32.mxu0 0.0
    %7991 = vmatmul.mubr.f32.gmra.mxu0 %v7800
    %v7992 = vpop.f32.mrf.mxu0
    %v7993 = vadd.f32 0.0, %v7992
    %v7994 = vpop.f32.mrf.mxu0
    %7995 = vmatprep.mubr.f32.mxu0 0.0
    %7996 = vmatmul.mubr.f32.gmra.mxu0 %v7803
    %v7997 = vpop.f32.mrf.mxu0
    %v7998 = vadd.f32 0.0, %v7997
    %v7999 = vpop.f32.mrf.mxu0
    %8000 = vmatprep.mubr.f32.mxu0 0.0
    %8001 = vmatmul.mubr.f32.gmra.mxu0 %v7806
    %v8002 = vpop.f32.mrf.mxu0
    %v8003 = vadd.f32 0.0, %v8002
    %v8004 = vpop.f32.mrf.mxu0
    %8005 = vmatprep.mubr.f32.mxu0 0.0
    %8006 = vmatmul.mubr.f32.gmra.mxu0 %v7809
    %v8007 = vpop.f32.mrf.mxu0
    %v8008 = vadd.f32 0.0, %v8007
    %v8009 = vpop.f32.mrf.mxu0
    %8010 = vmatprep.mubr.f32.mxu0 0.0
    %8011 = vmatmul.mubr.f32.gmra.mxu0 %v7812
    %v8012 = vpop.f32.mrf.mxu0
    %v8013 = vadd.f32 0.0, %v8012
    %v8014 = vpop.f32.mrf.mxu0
    %8015 = vmatprep.mubr.f32.mxu0 0.0
    %8016 = vmatmul.mubr.f32.gmra.mxu0 %v7815
    %v8017 = vpop.f32.mrf.mxu0
    %v8018 = vadd.f32 0.0, %v8017
    %v8019 = vpop.f32.mrf.mxu0
    %8020 = vmatprep.mubr.f32.mxu0 0.0
    %8021 = vmatmul.mubr.f32.gmra.mxu0 %v7818
    %v8022 = vpop.f32.mrf.mxu0
    %v8023 = vadd.f32 0.0, %v8022
    %v8024 = vpop.f32.mrf.mxu0
    %8025 = vmatprep.mubr.f32.mxu0 0.0
    %8026 = vmatmul.mubr.f32.gmra.mxu0 %v7821
    %v8027 = vpop.f32.mrf.mxu0
    %v8028 = vadd.f32 0.0, %v8027
    %v8029 = vpop.f32.mrf.mxu0
    %8030 = vmatprep.mubr.f32.mxu0 0.0
    %8031 = vmatmul.mubr.f32.gmra.mxu0 %v7824
    %v8032 = vpop.f32.mrf.mxu0
    %v8033 = vadd.f32 0.0, %v8032
    %v8034 = vpop.f32.mrf.mxu0
    %8035 = vmatprep.mubr.f32.mxu0 0.0
    %8036 = vmatmul.mubr.f32.gmra.mxu0 %v7827
    %v8037 = vpop.f32.mrf.mxu0
    %v8038 = vadd.f32 0.0, %v8037
    %v8039 = vpop.f32.mrf.mxu0
    %8040 = vmatprep.mubr.f32.mxu0 0.0
    %8041 = vmatmul.mubr.f32.gmra.mxu0 %v7830
    %v8042 = vpop.f32.mrf.mxu0
    %v8043 = vadd.f32 0.0, %v8042
    %v8044 = vpop.f32.mrf.mxu0
    %8045 = vmatprep.mubr.f32.mxu0 0.0
    %8046 = vmatmul.mubr.f32.gmra.mxu0 %v7833
    %v8047 = vpop.f32.mrf.mxu0
    %v8048 = vadd.f32 0.0, %v8047
    %v8049 = vpop.f32.mrf.mxu0
    %8050 = vmatprep.mubr.f32.mxu0 0.0
    %8051 = vmatmul.mubr.f32.gmra.mxu0 %v7836
    %v8052 = vpop.f32.mrf.mxu0
    %v8053 = vadd.f32 0.0, %v8052
    %v8054 = vpop.f32.mrf.mxu0
    %8055 = vmatprep.mubr.f32.mxu0 0.0
    %8056 = vmatmul.mubr.f32.gmra.mxu0 %v7839
    %v8057 = vpop.f32.mrf.mxu0
    %v8058 = vadd.f32 0.0, %v8057
    %v8059 = vpop.f32.mrf.mxu0
    %8060 = vmatprep.mubr.f32.mxu0 0.0
    %8061 = vmatmul.mubr.f32.gmra.mxu0 %v7842
    %v8062 = vpop.f32.mrf.mxu0
    %v8063 = vadd.f32 0.0, %v8062
    %v8064 = vpop.f32.mrf.mxu0
    %8065 = vmatprep.mubr.f32.mxu0 0.0
    %8066 = vmatmul.mubr.f32.gmra.mxu0 %v7845
    %v8067 = vpop.f32.mrf.mxu0
    %v8068 = vadd.f32 0.0, %v8067
    %v8069 = vpop.f32.mrf.mxu0
    %8070 = vmatprep.mubr.f32.mxu0 0.0
    %8071 = vmatmul.mubr.f32.gmra.mxu0 %v7848
    %v8072 = vpop.f32.mrf.mxu0
    %v8073 = vadd.f32 0.0, %v8072
    %v8074 = vpop.f32.mrf.mxu0
    %8075 = vmatprep.mubr.f32.mxu0 0.0
    %8076 = vmatmul.mubr.f32.gmra.mxu0 %v7851
    %v8077 = vpop.f32.mrf.mxu0
    %v8078 = vadd.f32 0.0, %v8077
    %v8079 = vpop.f32.mrf.mxu0
    %8080 = vdwg.mxu0
    %v8081 = vadd.f32 %v7691, %v7923
    %v8082 = vadd.f32 %v7692, %v7928
    %v8083 = vadd.f32 %v7693, %v7933
    %v8084 = vadd.f32 %v7694, %v7938
    %v8085 = vadd.f32 %v7695, %v7943
    %v8086 = vadd.f32 %v7696, %v7948
    %v8087 = vadd.f32 %v7697, %v7953
    %v8088 = vadd.f32 %v7698, %v7958
    %v8089 = vadd.f32 %v7699, %v7963
    %v8090 = vadd.f32 %v7700, %v7968
    %v8091 = vadd.f32 %v7701, %v7973
    %v8092 = vadd.f32 %v7702, %v7978
    %v8093 = vadd.f32 %v7703, %v7983
    %v8094 = vadd.f32 %v7704, %v7988
    %v8095 = vadd.f32 %v7705, %v7993
    %v8096 = vadd.f32 %v7706, %v7998
    %v8097 = vadd.f32 %v7707, %v8003
    %v8098 = vadd.f32 %v7708, %v8008
    %v8099 = vadd.f32 %v7709, %v8013
    %v8100 = vadd.f32 %v7710, %v8018
    %v8101 = vadd.f32 %v7711, %v8023
    %v8102 = vadd.f32 %v7712, %v8028
    %v8103 = vadd.f32 %v7713, %v8033
    %v8104 = vadd.f32 %v7714, %v8038
    %v8105 = vadd.f32 %v7715, %v8043
    %v8106 = vadd.f32 %v7716, %v8048
    %v8107 = vadd.f32 %v7717, %v8053
    %v8108 = vadd.f32 %v7718, %v8058
    %v8109 = vadd.f32 %v7719, %v8063
    %v8110 = vadd.f32 %v7720, %v8068
    %v8111 = vadd.f32 %v7721, %v8073
    %v8112 = vadd.f32 %v7722, %v8078
    %v8113 = vld [vmem:[%s7723 + $0x1] sm:$0xff]
    %v8114 = vld [vmem:[%s7723 + $0x9] sm:$0xff]
    %v8115 = vld [vmem:[%s7723 + $0x19] sm:$0xff]
    %v8116 = vld [vmem:[%s7723 + $0x21] sm:$0xff]
    %v8117 = vld [vmem:[%s7723 + $0x31] sm:$0xff]
    %v8118 = vld [vmem:[%s7723 + $0x39] sm:$0xff]
    %v8119 = vld [vmem:[%s7723 + $0x49] sm:$0xff]
    %v8120 = vld [vmem:[%s7723 + $0x51] sm:$0xff]
    %v8121 = vld [vmem:[%s7723 + $0x61] sm:$0xff]
    %v8122 = vld [vmem:[%s7723 + $0x69] sm:$0xff]
    %v8123 = vld [vmem:[%s7723 + $0x79] sm:$0xff]
    %v8124 = vld [vmem:[%s7723 + $0x81] sm:$0xff]
    %v8125 = vld [vmem:[%s7723 + $0x91] sm:$0xff]
    %v8126 = vld [vmem:[%s7723 + $0x99] sm:$0xff]
    %v8127 = vld [vmem:[%s7723 + $0xa9] sm:$0xff]
    %v8128 = vld [vmem:[%s7723 + $0xb1] sm:$0xff]
    %v8129 = vld [vmem:[%s7723 + $0xc1] sm:$0xff]
    %v8130 = vld [vmem:[%s7723 + $0xc9] sm:$0xff]
    %v8131 = vld [vmem:[%s7723 + $0xd9] sm:$0xff]
    %v8132 = vld [vmem:[%s7723 + $0xe1] sm:$0xff]
    %v8133 = vld [vmem:[%s7723 + $0xf1] sm:$0xff]
    %v8134 = vld [vmem:[%s7723 + $0xf9] sm:$0xff]
    %v8135 = vld [vmem:[%s7723 + $0x109] sm:$0xff]
    %v8136 = vld [vmem:[%s7723 + $0x111] sm:$0xff]
    %v8137 = vld [vmem:[%s7723 + $0x121] sm:$0xff]
    %v8138 = vld [vmem:[%s7723 + $0x129] sm:$0xff]
    %v8139 = vld [vmem:[%s7723 + $0x139] sm:$0xff]
    %v8140 = vld [vmem:[%s7723 + $0x141] sm:$0xff]
    %v8141 = vld [vmem:[%s7723 + $0x151] sm:$0xff]
    %v8142 = vld [vmem:[%s7723 + $0x159] sm:$0xff]
    %v8143 = vld [vmem:[%s7723 + $0x169] sm:$0xff]
    %v8144 = vld [vmem:[%s7723 + $0x171] sm:$0xff]
    %v8145 = vld [vmem:[%s2995] sm:$0xf]
    %v8147 = vsel %vm33, %v8113, 0
    %v8150 = vsel %vm33, %v8114, 0
    %v8153 = vsel %vm33, %v8115, 0
    %v8156 = vsel %vm33, %v8116, 0
    %v8159 = vsel %vm33, %v8117, 0
    %v8162 = vsel %vm33, %v8118, 0
    %v8165 = vsel %vm33, %v8119, 0
    %v8168 = vsel %vm33, %v8120, 0
    %v8171 = vsel %vm33, %v8121, 0
    %v8174 = vsel %vm33, %v8122, 0
    %v8177 = vsel %vm33, %v8123, 0
    %v8180 = vsel %vm33, %v8124, 0
    %v8183 = vsel %vm33, %v8125, 0
    %v8186 = vsel %vm33, %v8126, 0
    %v8189 = vsel %vm33, %v8127, 0
    %v8192 = vsel %vm33, %v8128, 0
    %v8195 = vsel %vm33, %v8129, 0
    %v8198 = vsel %vm33, %v8130, 0
    %v8201 = vsel %vm33, %v8131, 0
    %v8204 = vsel %vm33, %v8132, 0
    %v8207 = vsel %vm33, %v8133, 0
    %v8210 = vsel %vm33, %v8134, 0
    %v8213 = vsel %vm33, %v8135, 0
    %v8216 = vsel %vm33, %v8136, 0
    %v8219 = vsel %vm33, %v8137, 0
    %v8222 = vsel %vm33, %v8138, 0
    %v8225 = vsel %vm33, %v8139, 0
    %v8228 = vsel %vm33, %v8140, 0
    %v8231 = vsel %vm33, %v8141, 0
    %v8234 = vsel %vm33, %v8142, 0
    %v8237 = vsel %vm33, %v8143, 0
    %v8240 = vsel %vm33, %v8144, 0
    %v8243 = vsel %vm459, %v8145, 0
    %8245 = vmatprep.subr.mxu0 0.0
    %8246 = vmatpush1.msra.mxu0 0.0
    %8247 = vmatprep.subr.mxu0 0.0
    %8248 = vmatpush1.msra.mxu0 0.0
    %8249 = vmatprep.subr.mxu0 0.0
    %8250 = vmatpush1.msra.mxu0 0.0
    %8251 = vmatprep.subr.mxu0 0.0
    %8252 = vmatpush1.msra.mxu0 0.0
    %8253 = vmatprep.subr.mxu0 0.0
    %8254 = vmatpush1.msra.mxu0 0.0
    %8255 = vmatprep.subr.mxu0 0.0
    %8256 = vmatpush1.msra.mxu0 0.0
    %8257 = vmatprep.subr.mxu0 0.0
    %8258 = vmatpush1.msra.mxu0 0.0
    %8259 = vmatprep.subr.mxu0 0.0
    %8260 = vmatpush1.msra.mxu0 0.0
    %8261 = vmatprep.subr.mxu0 0.0
    %8262 = vmatpush1.msra.mxu0 0.0
    %8263 = vmatprep.subr.mxu0 0.0
    %8264 = vmatpush1.msra.mxu0 0.0
    %8265 = vmatprep.subr.mxu0 0.0
    %8266 = vmatpush1.msra.mxu0 0.0
    %8267 = vmatprep.subr.mxu0 0.0
    %8268 = vmatpush1.msra.mxu0 0.0
    %8269 = vmatprep.subr.mxu0 0.0
    %8270 = vmatpush1.msra.mxu0 0.0
    %8271 = vmatprep.subr.mxu0 0.0
    %8272 = vmatpush1.msra.mxu0 0.0
    %8273 = vmatprep.subr.mxu0 0.0
    %8274 = vmatpush1.msra.mxu0 0.0
    %8275 = vmatprep.subr.mxu0 0.0
    %8276 = vmatpush1.msra.mxu0 %v8243
    %8277 = vmatprep.subr.mxu0 0.0
    %8278 = vmatpush2.msra.mxu0 0.0
    %8279 = vmatprep.subr.mxu0 0.0
    %8280 = vmatpush2.msra.mxu0 0.0
    %8281 = vmatprep.subr.mxu0 0.0
    %8282 = vmatpush2.msra.mxu0 0.0
    %8283 = vmatprep.subr.mxu0 0.0
    %8284 = vmatpush2.msra.mxu0 0.0
    %8285 = vmatprep.subr.mxu0 0.0
    %8286 = vmatpush2.msra.mxu0 0.0
    %8287 = vmatprep.subr.mxu0 0.0
    %8288 = vmatpush2.msra.mxu0 0.0
    %8289 = vmatprep.subr.mxu0 0.0
    %8290 = vmatpush2.msra.mxu0 0.0
    %8291 = vmatprep.subr.mxu0 0.0
    %8292 = vmatpush2.msra.mxu0 0.0
    %8293 = vmatprep.subr.mxu0 0.0
    %8294 = vmatpush2.msra.mxu0 0.0
    %8295 = vmatprep.subr.mxu0 0.0
    %8296 = vmatpush2.msra.mxu0 0.0
    %8297 = vmatprep.subr.mxu0 0.0
    %8298 = vmatpush2.msra.mxu0 0.0
    %8299 = vmatprep.subr.mxu0 0.0
    %8300 = vmatpush2.msra.mxu0 0.0
    %8301 = vmatprep.subr.mxu0 0.0
    %8302 = vmatpush2.msra.mxu0 0.0
    %8303 = vmatprep.subr.mxu0 0.0
    %8304 = vmatpush2.msra.mxu0 0.0
    %8305 = vmatprep.subr.mxu0 0.0
    %8306 = vmatpush2.msra.mxu0 0.0
    %8307 = vmatprep.subr.mxu0 0.0
    %8308 = vmatpush2.msra.mxu0 0.0
    %8309 = vmatprep.mubr.f32.mxu0 0.0
    %8310 = vmatmul.mubr.f32.gmra.mxu0 %v8147
    %v8311 = vpop.f32.mrf.mxu0
    %v8312 = vadd.f32 0.0, %v8311
    %v8313 = vpop.f32.mrf.mxu0
    %8314 = vmatprep.mubr.f32.mxu0 0.0
    %8315 = vmatmul.mubr.f32.gmra.mxu0 %v8150
    %v8316 = vpop.f32.mrf.mxu0
    %v8317 = vadd.f32 0.0, %v8316
    %v8318 = vpop.f32.mrf.mxu0
    %8319 = vmatprep.mubr.f32.mxu0 0.0
    %8320 = vmatmul.mubr.f32.gmra.mxu0 %v8153
    %v8321 = vpop.f32.mrf.mxu0
    %v8322 = vadd.f32 0.0, %v8321
    %v8323 = vpop.f32.mrf.mxu0
    %8324 = vmatprep.mubr.f32.mxu0 0.0
    %8325 = vmatmul.mubr.f32.gmra.mxu0 %v8156
    %v8326 = vpop.f32.mrf.mxu0
    %v8327 = vadd.f32 0.0, %v8326
    %v8328 = vpop.f32.mrf.mxu0
    %8329 = vmatprep.mubr.f32.mxu0 0.0
    %8330 = vmatmul.mubr.f32.gmra.mxu0 %v8159
    %v8331 = vpop.f32.mrf.mxu0
    %v8332 = vadd.f32 0.0, %v8331
    %v8333 = vpop.f32.mrf.mxu0
    %8334 = vmatprep.mubr.f32.mxu0 0.0
    %8335 = vmatmul.mubr.f32.gmra.mxu0 %v8162
    %v8336 = vpop.f32.mrf.mxu0
    %v8337 = vadd.f32 0.0, %v8336
    %v8338 = vpop.f32.mrf.mxu0
    %8339 = vmatprep.mubr.f32.mxu0 0.0
    %8340 = vmatmul.mubr.f32.gmra.mxu0 %v8165
    %v8341 = vpop.f32.mrf.mxu0
    %v8342 = vadd.f32 0.0, %v8341
    %v8343 = vpop.f32.mrf.mxu0
    %8344 = vmatprep.mubr.f32.mxu0 0.0
    %8345 = vmatmul.mubr.f32.gmra.mxu0 %v8168
    %v8346 = vpop.f32.mrf.mxu0
    %v8347 = vadd.f32 0.0, %v8346
    %v8348 = vpop.f32.mrf.mxu0
    %8349 = vmatprep.mubr.f32.mxu0 0.0
    %8350 = vmatmul.mubr.f32.gmra.mxu0 %v8171
    %v8351 = vpop.f32.mrf.mxu0
    %v8352 = vadd.f32 0.0, %v8351
    %v8353 = vpop.f32.mrf.mxu0
    %8354 = vmatprep.mubr.f32.mxu0 0.0
    %8355 = vmatmul.mubr.f32.gmra.mxu0 %v8174
    %v8356 = vpop.f32.mrf.mxu0
    %v8357 = vadd.f32 0.0, %v8356
    %v8358 = vpop.f32.mrf.mxu0
    %8359 = vmatprep.mubr.f32.mxu0 0.0
    %8360 = vmatmul.mubr.f32.gmra.mxu0 %v8177
    %v8361 = vpop.f32.mrf.mxu0
    %v8362 = vadd.f32 0.0, %v8361
    %v8363 = vpop.f32.mrf.mxu0
    %8364 = vmatprep.mubr.f32.mxu0 0.0
    %8365 = vmatmul.mubr.f32.gmra.mxu0 %v8180
    %v8366 = vpop.f32.mrf.mxu0
    %v8367 = vadd.f32 0.0, %v8366
    %v8368 = vpop.f32.mrf.mxu0
    %8369 = vmatprep.mubr.f32.mxu0 0.0
    %8370 = vmatmul.mubr.f32.gmra.mxu0 %v8183
    %v8371 = vpop.f32.mrf.mxu0
    %v8372 = vadd.f32 0.0, %v8371
    %v8373 = vpop.f32.mrf.mxu0
    %8374 = vmatprep.mubr.f32.mxu0 0.0
    %8375 = vmatmul.mubr.f32.gmra.mxu0 %v8186
    %v8376 = vpop.f32.mrf.mxu0
    %v8377 = vadd.f32 0.0, %v8376
    %v8378 = vpop.f32.mrf.mxu0
    %8379 = vmatprep.mubr.f32.mxu0 0.0
    %8380 = vmatmul.mubr.f32.gmra.mxu0 %v8189
    %v8381 = vpop.f32.mrf.mxu0
    %v8382 = vadd.f32 0.0, %v8381
    %v8383 = vpop.f32.mrf.mxu0
    %8384 = vmatprep.mubr.f32.mxu0 0.0
    %8385 = vmatmul.mubr.f32.gmra.mxu0 %v8192
    %v8386 = vpop.f32.mrf.mxu0
    %v8387 = vadd.f32 0.0, %v8386
    %v8388 = vpop.f32.mrf.mxu0
    %8389 = vmatprep.mubr.f32.mxu0 0.0
    %8390 = vmatmul.mubr.f32.gmra.mxu0 %v8195
    %v8391 = vpop.f32.mrf.mxu0
    %v8392 = vadd.f32 0.0, %v8391
    %v8393 = vpop.f32.mrf.mxu0
    %8394 = vmatprep.mubr.f32.mxu0 0.0
    %8395 = vmatmul.mubr.f32.gmra.mxu0 %v8198
    %v8396 = vpop.f32.mrf.mxu0
    %v8397 = vadd.f32 0.0, %v8396
    %v8398 = vpop.f32.mrf.mxu0
    %8399 = vmatprep.mubr.f32.mxu0 0.0
    %8400 = vmatmul.mubr.f32.gmra.mxu0 %v8201
    %v8401 = vpop.f32.mrf.mxu0
    %v8402 = vadd.f32 0.0, %v8401
    %v8403 = vpop.f32.mrf.mxu0
    %8404 = vmatprep.mubr.f32.mxu0 0.0
    %8405 = vmatmul.mubr.f32.gmra.mxu0 %v8204
    %v8406 = vpop.f32.mrf.mxu0
    %v8407 = vadd.f32 0.0, %v8406
    %v8408 = vpop.f32.mrf.mxu0
    %8409 = vmatprep.mubr.f32.mxu0 0.0
    %8410 = vmatmul.mubr.f32.gmra.mxu0 %v8207
    %v8411 = vpop.f32.mrf.mxu0
    %v8412 = vadd.f32 0.0, %v8411
    %v8413 = vpop.f32.mrf.mxu0
    %8414 = vmatprep.mubr.f32.mxu0 0.0
    %8415 = vmatmul.mubr.f32.gmra.mxu0 %v8210
    %v8416 = vpop.f32.mrf.mxu0
    %v8417 = vadd.f32 0.0, %v8416
    %v8418 = vpop.f32.mrf.mxu0
    %8419 = vmatprep.mubr.f32.mxu0 0.0
    %8420 = vmatmul.mubr.f32.gmra.mxu0 %v8213
    %v8421 = vpop.f32.mrf.mxu0
    %v8422 = vadd.f32 0.0, %v8421
    %v8423 = vpop.f32.mrf.mxu0
    %8424 = vmatprep.mubr.f32.mxu0 0.0
    %8425 = vmatmul.mubr.f32.gmra.mxu0 %v8216
    %v8426 = vpop.f32.mrf.mxu0
    %v8427 = vadd.f32 0.0, %v8426
    %v8428 = vpop.f32.mrf.mxu0
    %8429 = vmatprep.mubr.f32.mxu0 0.0
    %8430 = vmatmul.mubr.f32.gmra.mxu0 %v8219
    %v8431 = vpop.f32.mrf.mxu0
    %v8432 = vadd.f32 0.0, %v8431
    %v8433 = vpop.f32.mrf.mxu0
    %8434 = vmatprep.mubr.f32.mxu0 0.0
    %8435 = vmatmul.mubr.f32.gmra.mxu0 %v8222
    %v8436 = vpop.f32.mrf.mxu0
    %v8437 = vadd.f32 0.0, %v8436
    %v8438 = vpop.f32.mrf.mxu0
    %8439 = vmatprep.mubr.f32.mxu0 0.0
    %8440 = vmatmul.mubr.f32.gmra.mxu0 %v8225
    %v8441 = vpop.f32.mrf.mxu0
    %v8442 = vadd.f32 0.0, %v8441
    %v8443 = vpop.f32.mrf.mxu0
    %8444 = vmatprep.mubr.f32.mxu0 0.0
    %8445 = vmatmul.mubr.f32.gmra.mxu0 %v8228
    %v8446 = vpop.f32.mrf.mxu0
    %v8447 = vadd.f32 0.0, %v8446
    %v8448 = vpop.f32.mrf.mxu0
    %8449 = vmatprep.mubr.f32.mxu0 0.0
    %8450 = vmatmul.mubr.f32.gmra.mxu0 %v8231
    %v8451 = vpop.f32.mrf.mxu0
    %v8452 = vadd.f32 0.0, %v8451
    %v8453 = vpop.f32.mrf.mxu0
    %8454 = vmatprep.mubr.f32.mxu0 0.0
    %8455 = vmatmul.mubr.f32.gmra.mxu0 %v8234
    %v8456 = vpop.f32.mrf.mxu0
    %v8457 = vadd.f32 0.0, %v8456
    %v8458 = vpop.f32.mrf.mxu0
    %8459 = vmatprep.mubr.f32.mxu0 0.0
    %8460 = vmatmul.mubr.f32.gmra.mxu0 %v8237
    %v8461 = vpop.f32.mrf.mxu0
    %v8462 = vadd.f32 0.0, %v8461
    %v8463 = vpop.f32.mrf.mxu0
    %8464 = vmatprep.mubr.f32.mxu0 0.0
    %8465 = vmatmul.mubr.f32.gmra.mxu0 %v8240
    %v8466 = vpop.f32.mrf.mxu0
    %v8467 = vadd.f32 0.0, %v8466
    %v8468 = vpop.f32.mrf.mxu0
    %8469 = vdwg.mxu0
    %v8470 = vadd.f32 %v8081, %v8312
    %v8471 = vadd.f32 %v8082, %v8317
    %v8472 = vadd.f32 %v8083, %v8322
    %v8473 = vadd.f32 %v8084, %v8327
    %v8474 = vadd.f32 %v8085, %v8332
    %v8475 = vadd.f32 %v8086, %v8337
    %v8476 = vadd.f32 %v8087, %v8342
    %v8477 = vadd.f32 %v8088, %v8347
    %v8478 = vadd.f32 %v8089, %v8352
    %v8479 = vadd.f32 %v8090, %v8357
    %v8480 = vadd.f32 %v8091, %v8362
    %v8481 = vadd.f32 %v8092, %v8367
    %v8482 = vadd.f32 %v8093, %v8372
    %v8483 = vadd.f32 %v8094, %v8377
    %v8484 = vadd.f32 %v8095, %v8382
    %v8485 = vadd.f32 %v8096, %v8387
    %v8486 = vadd.f32 %v8097, %v8392
    %v8487 = vadd.f32 %v8098, %v8397
    %v8488 = vadd.f32 %v8099, %v8402
    %v8489 = vadd.f32 %v8100, %v8407
    %v8490 = vadd.f32 %v8101, %v8412
    %v8491 = vadd.f32 %v8102, %v8417
    %v8492 = vadd.f32 %v8103, %v8422
    %v8493 = vadd.f32 %v8104, %v8427
    %v8494 = vadd.f32 %v8105, %v8432
    %v8495 = vadd.f32 %v8106, %v8437
    %v8496 = vadd.f32 %v8107, %v8442
    %v8497 = vadd.f32 %v8108, %v8447
    %v8498 = vadd.f32 %v8109, %v8452
    %v8499 = vadd.f32 %v8110, %v8457
    %v8500 = vadd.f32 %v8111, %v8462
    %v8501 = vadd.f32 %v8112, %v8467
    %v8502 = vld [vmem:[%s7723 + $0x2] sm:$0xff]
    %v8503 = vld [vmem:[%s7723 + $0xa] sm:$0xff]
    %v8504 = vld [vmem:[%s7723 + $0x1a] sm:$0xff]
    %v8505 = vld [vmem:[%s7723 + $0x22] sm:$0xff]
    %v8506 = vld [vmem:[%s7723 + $0x32] sm:$0xff]
    %v8507 = vld [vmem:[%s7723 + $0x3a] sm:$0xff]
    %v8508 = vld [vmem:[%s7723 + $0x4a] sm:$0xff]
    %v8509 = vld [vmem:[%s7723 + $0x52] sm:$0xff]
    %v8510 = vld [vmem:[%s7723 + $0x62] sm:$0xff]
    %v8511 = vld [vmem:[%s7723 + $0x6a] sm:$0xff]
    %v8512 = vld [vmem:[%s7723 + $0x7a] sm:$0xff]
    %v8513 = vld [vmem:[%s7723 + $0x82] sm:$0xff]
    %v8514 = vld [vmem:[%s7723 + $0x92] sm:$0xff]
    %v8515 = vld [vmem:[%s7723 + $0x9a] sm:$0xff]
    %v8516 = vld [vmem:[%s7723 + $0xaa] sm:$0xff]
    %v8517 = vld [vmem:[%s7723 + $0xb2] sm:$0xff]
    %v8518 = vld [vmem:[%s7723 + $0xc2] sm:$0xff]
    %v8519 = vld [vmem:[%s7723 + $0xca] sm:$0xff]
    %v8520 = vld [vmem:[%s7723 + $0xda] sm:$0xff]
    %v8521 = vld [vmem:[%s7723 + $0xe2] sm:$0xff]
    %v8522 = vld [vmem:[%s7723 + $0xf2] sm:$0xff]
    %v8523 = vld [vmem:[%s7723 + $0xfa] sm:$0xff]
    %v8524 = vld [vmem:[%s7723 + $0x10a] sm:$0xff]
    %v8525 = vld [vmem:[%s7723 + $0x112] sm:$0xff]
    %v8526 = vld [vmem:[%s7723 + $0x122] sm:$0xff]
    %v8527 = vld [vmem:[%s7723 + $0x12a] sm:$0xff]
    %v8528 = vld [vmem:[%s7723 + $0x13a] sm:$0xff]
    %v8529 = vld [vmem:[%s7723 + $0x142] sm:$0xff]
    %v8530 = vld [vmem:[%s7723 + $0x152] sm:$0xff]
    %v8531 = vld [vmem:[%s7723 + $0x15a] sm:$0xff]
    %v8532 = vld [vmem:[%s7723 + $0x16a] sm:$0xff]
    %v8533 = vld [vmem:[%s7723 + $0x172] sm:$0xff]
    %v8534 = vld [vmem:[%s3385] sm:$0xf]
    %v8536 = vsel %vm33, %v8502, 0
    %v8539 = vsel %vm33, %v8503, 0
    %v8542 = vsel %vm33, %v8504, 0
    %v8545 = vsel %vm33, %v8505, 0
    %v8548 = vsel %vm33, %v8506, 0
    %v8551 = vsel %vm33, %v8507, 0
    %v8554 = vsel %vm33, %v8508, 0
    %v8557 = vsel %vm33, %v8509, 0
    %v8560 = vsel %vm33, %v8510, 0
    %v8563 = vsel %vm33, %v8511, 0
    %v8566 = vsel %vm33, %v8512, 0
    %v8569 = vsel %vm33, %v8513, 0
    %v8572 = vsel %vm33, %v8514, 0
    %v8575 = vsel %vm33, %v8515, 0
    %v8578 = vsel %vm33, %v8516, 0
    %v8581 = vsel %vm33, %v8517, 0
    %v8584 = vsel %vm33, %v8518, 0
    %v8587 = vsel %vm33, %v8519, 0
    %v8590 = vsel %vm33, %v8520, 0
    %v8593 = vsel %vm33, %v8521, 0
    %v8596 = vsel %vm33, %v8522, 0
    %v8599 = vsel %vm33, %v8523, 0
    %v8602 = vsel %vm33, %v8524, 0
    %v8605 = vsel %vm33, %v8525, 0
    %v8608 = vsel %vm33, %v8526, 0
    %v8611 = vsel %vm33, %v8527, 0
    %v8614 = vsel %vm33, %v8528, 0
    %v8617 = vsel %vm33, %v8529, 0
    %v8620 = vsel %vm33, %v8530, 0
    %v8623 = vsel %vm33, %v8531, 0
    %v8626 = vsel %vm33, %v8532, 0
    %v8629 = vsel %vm33, %v8533, 0
    %v8632 = vsel %vm459, %v8534, 0
    %8634 = vmatprep.subr.mxu0 0.0
    %8635 = vmatpush1.msra.mxu0 0.0
    %8636 = vmatprep.subr.mxu0 0.0
    %8637 = vmatpush1.msra.mxu0 0.0
    %8638 = vmatprep.subr.mxu0 0.0
    %8639 = vmatpush1.msra.mxu0 0.0
    %8640 = vmatprep.subr.mxu0 0.0
    %8641 = vmatpush1.msra.mxu0 0.0
    %8642 = vmatprep.subr.mxu0 0.0
    %8643 = vmatpush1.msra.mxu0 0.0
    %8644 = vmatprep.subr.mxu0 0.0
    %8645 = vmatpush1.msra.mxu0 0.0
    %8646 = vmatprep.subr.mxu0 0.0
    %8647 = vmatpush1.msra.mxu0 0.0
    %8648 = vmatprep.subr.mxu0 0.0
    %8649 = vmatpush1.msra.mxu0 0.0
    %8650 = vmatprep.subr.mxu0 0.0
    %8651 = vmatpush1.msra.mxu0 0.0
    %8652 = vmatprep.subr.mxu0 0.0
    %8653 = vmatpush1.msra.mxu0 0.0
    %8654 = vmatprep.subr.mxu0 0.0
    %8655 = vmatpush1.msra.mxu0 0.0
    %8656 = vmatprep.subr.mxu0 0.0
    %8657 = vmatpush1.msra.mxu0 0.0
    %8658 = vmatprep.subr.mxu0 0.0
    %8659 = vmatpush1.msra.mxu0 0.0
    %8660 = vmatprep.subr.mxu0 0.0
    %8661 = vmatpush1.msra.mxu0 0.0
    %8662 = vmatprep.subr.mxu0 0.0
    %8663 = vmatpush1.msra.mxu0 0.0
    %8664 = vmatprep.subr.mxu0 0.0
    %8665 = vmatpush1.msra.mxu0 %v8632
    %8666 = vmatprep.subr.mxu0 0.0
    %8667 = vmatpush2.msra.mxu0 0.0
    %8668 = vmatprep.subr.mxu0 0.0
    %8669 = vmatpush2.msra.mxu0 0.0
    %8670 = vmatprep.subr.mxu0 0.0
    %8671 = vmatpush2.msra.mxu0 0.0
    %8672 = vmatprep.subr.mxu0 0.0
    %8673 = vmatpush2.msra.mxu0 0.0
    %8674 = vmatprep.subr.mxu0 0.0
    %8675 = vmatpush2.msra.mxu0 0.0
    %8676 = vmatprep.subr.mxu0 0.0
    %8677 = vmatpush2.msra.mxu0 0.0
    %8678 = vmatprep.subr.mxu0 0.0
    %8679 = vmatpush2.msra.mxu0 0.0
    %8680 = vmatprep.subr.mxu0 0.0
    %8681 = vmatpush2.msra.mxu0 0.0
    %8682 = vmatprep.subr.mxu0 0.0
    %8683 = vmatpush2.msra.mxu0 0.0
    %8684 = vmatprep.subr.mxu0 0.0
    %8685 = vmatpush2.msra.mxu0 0.0
    %8686 = vmatprep.subr.mxu0 0.0
    %8687 = vmatpush2.msra.mxu0 0.0
    %8688 = vmatprep.subr.mxu0 0.0
    %8689 = vmatpush2.msra.mxu0 0.0
    %8690 = vmatprep.subr.mxu0 0.0
    %8691 = vmatpush2.msra.mxu0 0.0
    %8692 = vmatprep.subr.mxu0 0.0
    %8693 = vmatpush2.msra.mxu0 0.0
    %8694 = vmatprep.subr.mxu0 0.0
    %8695 = vmatpush2.msra.mxu0 0.0
    %8696 = vmatprep.subr.mxu0 0.0
    %8697 = vmatpush2.msra.mxu0 0.0
    %8698 = vmatprep.mubr.f32.mxu0 0.0
    %8699 = vmatmul.mubr.f32.gmra.mxu0 %v8536
    %v8700 = vpop.f32.mrf.mxu0
    %v8701 = vadd.f32 0.0, %v8700
    %v8702 = vpop.f32.mrf.mxu0
    %8703 = vmatprep.mubr.f32.mxu0 0.0
    %8704 = vmatmul.mubr.f32.gmra.mxu0 %v8539
    %v8705 = vpop.f32.mrf.mxu0
    %v8706 = vadd.f32 0.0, %v8705
    %v8707 = vpop.f32.mrf.mxu0
    %8708 = vmatprep.mubr.f32.mxu0 0.0
    %8709 = vmatmul.mubr.f32.gmra.mxu0 %v8542
    %v8710 = vpop.f32.mrf.mxu0
    %v8711 = vadd.f32 0.0, %v8710
    %v8712 = vpop.f32.mrf.mxu0
    %8713 = vmatprep.mubr.f32.mxu0 0.0
    %8714 = vmatmul.mubr.f32.gmra.mxu0 %v8545
    %v8715 = vpop.f32.mrf.mxu0
    %v8716 = vadd.f32 0.0, %v8715
    %v8717 = vpop.f32.mrf.mxu0
    %8718 = vmatprep.mubr.f32.mxu0 0.0
    %8719 = vmatmul.mubr.f32.gmra.mxu0 %v8548
    %v8720 = vpop.f32.mrf.mxu0
    %v8721 = vadd.f32 0.0, %v8720
    %v8722 = vpop.f32.mrf.mxu0
    %8723 = vmatprep.mubr.f32.mxu0 0.0
    %8724 = vmatmul.mubr.f32.gmra.mxu0 %v8551
    %v8725 = vpop.f32.mrf.mxu0
    %v8726 = vadd.f32 0.0, %v8725
    %v8727 = vpop.f32.mrf.mxu0
    %8728 = vmatprep.mubr.f32.mxu0 0.0
    %8729 = vmatmul.mubr.f32.gmra.mxu0 %v8554
    %v8730 = vpop.f32.mrf.mxu0
    %v8731 = vadd.f32 0.0, %v8730
    %v8732 = vpop.f32.mrf.mxu0
    %8733 = vmatprep.mubr.f32.mxu0 0.0
    %8734 = vmatmul.mubr.f32.gmra.mxu0 %v8557
    %v8735 = vpop.f32.mrf.mxu0
    %v8736 = vadd.f32 0.0, %v8735
    %v8737 = vpop.f32.mrf.mxu0
    %8738 = vmatprep.mubr.f32.mxu0 0.0
    %8739 = vmatmul.mubr.f32.gmra.mxu0 %v8560
    %v8740 = vpop.f32.mrf.mxu0
    %v8741 = vadd.f32 0.0, %v8740
    %v8742 = vpop.f32.mrf.mxu0
    %8743 = vmatprep.mubr.f32.mxu0 0.0
    %8744 = vmatmul.mubr.f32.gmra.mxu0 %v8563
    %v8745 = vpop.f32.mrf.mxu0
    %v8746 = vadd.f32 0.0, %v8745
    %v8747 = vpop.f32.mrf.mxu0
    %8748 = vmatprep.mubr.f32.mxu0 0.0
    %8749 = vmatmul.mubr.f32.gmra.mxu0 %v8566
    %v8750 = vpop.f32.mrf.mxu0
    %v8751 = vadd.f32 0.0, %v8750
    %v8752 = vpop.f32.mrf.mxu0
    %8753 = vmatprep.mubr.f32.mxu0 0.0
    %8754 = vmatmul.mubr.f32.gmra.mxu0 %v8569
    %v8755 = vpop.f32.mrf.mxu0
    %v8756 = vadd.f32 0.0, %v8755
    %v8757 = vpop.f32.mrf.mxu0
    %8758 = vmatprep.mubr.f32.mxu0 0.0
    %8759 = vmatmul.mubr.f32.gmra.mxu0 %v8572
    %v8760 = vpop.f32.mrf.mxu0
    %v8761 = vadd.f32 0.0, %v8760
    %v8762 = vpop.f32.mrf.mxu0
    %8763 = vmatprep.mubr.f32.mxu0 0.0
    %8764 = vmatmul.mubr.f32.gmra.mxu0 %v8575
    %v8765 = vpop.f32.mrf.mxu0
    %v8766 = vadd.f32 0.0, %v8765
    %v8767 = vpop.f32.mrf.mxu0
    %8768 = vmatprep.mubr.f32.mxu0 0.0
    %8769 = vmatmul.mubr.f32.gmra.mxu0 %v8578
    %v8770 = vpop.f32.mrf.mxu0
    %v8771 = vadd.f32 0.0, %v8770
    %v8772 = vpop.f32.mrf.mxu0
    %8773 = vmatprep.mubr.f32.mxu0 0.0
    %8774 = vmatmul.mubr.f32.gmra.mxu0 %v8581
    %v8775 = vpop.f32.mrf.mxu0
    %v8776 = vadd.f32 0.0, %v8775
    %v8777 = vpop.f32.mrf.mxu0
    %8778 = vmatprep.mubr.f32.mxu0 0.0
    %8779 = vmatmul.mubr.f32.gmra.mxu0 %v8584
    %v8780 = vpop.f32.mrf.mxu0
    %v8781 = vadd.f32 0.0, %v8780
    %v8782 = vpop.f32.mrf.mxu0
    %8783 = vmatprep.mubr.f32.mxu0 0.0
    %8784 = vmatmul.mubr.f32.gmra.mxu0 %v8587
    %v8785 = vpop.f32.mrf.mxu0
    %v8786 = vadd.f32 0.0, %v8785
    %v8787 = vpop.f32.mrf.mxu0
    %8788 = vmatprep.mubr.f32.mxu0 0.0
    %8789 = vmatmul.mubr.f32.gmra.mxu0 %v8590
    %v8790 = vpop.f32.mrf.mxu0
    %v8791 = vadd.f32 0.0, %v8790
    %v8792 = vpop.f32.mrf.mxu0
    %8793 = vmatprep.mubr.f32.mxu0 0.0
    %8794 = vmatmul.mubr.f32.gmra.mxu0 %v8593
    %v8795 = vpop.f32.mrf.mxu0
    %v8796 = vadd.f32 0.0, %v8795
    %v8797 = vpop.f32.mrf.mxu0
    %8798 = vmatprep.mubr.f32.mxu0 0.0
    %8799 = vmatmul.mubr.f32.gmra.mxu0 %v8596
    %v8800 = vpop.f32.mrf.mxu0
    %v8801 = vadd.f32 0.0, %v8800
    %v8802 = vpop.f32.mrf.mxu0
    %8803 = vmatprep.mubr.f32.mxu0 0.0
    %8804 = vmatmul.mubr.f32.gmra.mxu0 %v8599
    %v8805 = vpop.f32.mrf.mxu0
    %v8806 = vadd.f32 0.0, %v8805
    %v8807 = vpop.f32.mrf.mxu0
    %8808 = vmatprep.mubr.f32.mxu0 0.0
    %8809 = vmatmul.mubr.f32.gmra.mxu0 %v8602
    %v8810 = vpop.f32.mrf.mxu0
    %v8811 = vadd.f32 0.0, %v8810
    %v8812 = vpop.f32.mrf.mxu0
    %8813 = vmatprep.mubr.f32.mxu0 0.0
    %8814 = vmatmul.mubr.f32.gmra.mxu0 %v8605
    %v8815 = vpop.f32.mrf.mxu0
    %v8816 = vadd.f32 0.0, %v8815
    %v8817 = vpop.f32.mrf.mxu0
    %8818 = vmatprep.mubr.f32.mxu0 0.0
    %8819 = vmatmul.mubr.f32.gmra.mxu0 %v8608
    %v8820 = vpop.f32.mrf.mxu0
    %v8821 = vadd.f32 0.0, %v8820
    %v8822 = vpop.f32.mrf.mxu0
    %8823 = vmatprep.mubr.f32.mxu0 0.0
    %8824 = vmatmul.mubr.f32.gmra.mxu0 %v8611
    %v8825 = vpop.f32.mrf.mxu0
    %v8826 = vadd.f32 0.0, %v8825
    %v8827 = vpop.f32.mrf.mxu0
    %8828 = vmatprep.mubr.f32.mxu0 0.0
    %8829 = vmatmul.mubr.f32.gmra.mxu0 %v8614
    %v8830 = vpop.f32.mrf.mxu0
    %v8831 = vadd.f32 0.0, %v8830
    %v8832 = vpop.f32.mrf.mxu0
    %8833 = vmatprep.mubr.f32.mxu0 0.0
    %8834 = vmatmul.mubr.f32.gmra.mxu0 %v8617
    %v8835 = vpop.f32.mrf.mxu0
    %v8836 = vadd.f32 0.0, %v8835
    %v8837 = vpop.f32.mrf.mxu0
    %8838 = vmatprep.mubr.f32.mxu0 0.0
    %8839 = vmatmul.mubr.f32.gmra.mxu0 %v8620
    %v8840 = vpop.f32.mrf.mxu0
    %v8841 = vadd.f32 0.0, %v8840
    %v8842 = vpop.f32.mrf.mxu0
    %8843 = vmatprep.mubr.f32.mxu0 0.0
    %8844 = vmatmul.mubr.f32.gmra.mxu0 %v8623
    %v8845 = vpop.f32.mrf.mxu0
    %v8846 = vadd.f32 0.0, %v8845
    %v8847 = vpop.f32.mrf.mxu0
    %8848 = vmatprep.mubr.f32.mxu0 0.0
    %8849 = vmatmul.mubr.f32.gmra.mxu0 %v8626
    %v8850 = vpop.f32.mrf.mxu0
    %v8851 = vadd.f32 0.0, %v8850
    %v8852 = vpop.f32.mrf.mxu0
    %8853 = vmatprep.mubr.f32.mxu0 0.0
    %8854 = vmatmul.mubr.f32.gmra.mxu0 %v8629
    %v8855 = vpop.f32.mrf.mxu0
    %v8856 = vadd.f32 0.0, %v8855
    %v8857 = vpop.f32.mrf.mxu0
    %8858 = vdwg.mxu0
    %v8859 = vadd.f32 %v8470, %v8701
    %v8860 = vadd.f32 %v8471, %v8706
    %v8861 = vadd.f32 %v8472, %v8711
    %v8862 = vadd.f32 %v8473, %v8716
    %v8863 = vadd.f32 %v8474, %v8721
    %v8864 = vadd.f32 %v8475, %v8726
    %v8865 = vadd.f32 %v8476, %v8731
    %v8866 = vadd.f32 %v8477, %v8736
    %v8867 = vadd.f32 %v8478, %v8741
    %v8868 = vadd.f32 %v8479, %v8746
    %v8869 = vadd.f32 %v8480, %v8751
    %v8870 = vadd.f32 %v8481, %v8756
    %v8871 = vadd.f32 %v8482, %v8761
    %v8872 = vadd.f32 %v8483, %v8766
    %v8873 = vadd.f32 %v8484, %v8771
    %v8874 = vadd.f32 %v8485, %v8776
    %v8875 = vadd.f32 %v8486, %v8781
    %v8876 = vadd.f32 %v8487, %v8786
    %v8877 = vadd.f32 %v8488, %v8791
    %v8878 = vadd.f32 %v8489, %v8796
    %v8879 = vadd.f32 %v8490, %v8801
    %v8880 = vadd.f32 %v8491, %v8806
    %v8881 = vadd.f32 %v8492, %v8811
    %v8882 = vadd.f32 %v8493, %v8816
    %v8883 = vadd.f32 %v8494, %v8821
    %v8884 = vadd.f32 %v8495, %v8826
    %v8885 = vadd.f32 %v8496, %v8831
    %v8886 = vadd.f32 %v8497, %v8836
    %v8887 = vadd.f32 %v8498, %v8841
    %v8888 = vadd.f32 %v8499, %v8846
    %v8889 = vadd.f32 %v8500, %v8851
    %v8890 = vadd.f32 %v8501, %v8856
    %v8891 = vld [vmem:[%s2] sm:$0x1]
    %v8893 = vlaneseq
    %v8894 = vshrl.u32 %v8893, 7
    %v8895 = vsub.s32 0, %v8894
    %v8896 = vrot.slane %v8891, %v8895
    %v8898 = vadd.f32 %v8859, %v8896
    %v8899 = vadd.f32 %v8860, %v8896
    %v8900 = vadd.f32 %v8861, %v8896
    %v8901 = vadd.f32 %v8862, %v8896
    %v8902 = vadd.f32 %v8863, %v8896
    %v8903 = vadd.f32 %v8864, %v8896
    %v8904 = vadd.f32 %v8865, %v8896
    %v8905 = vadd.f32 %v8866, %v8896
    %v8906 = vadd.f32 %v8867, %v8896
    %v8907 = vadd.f32 %v8868, %v8896
    %v8908 = vadd.f32 %v8869, %v8896
    %v8909 = vadd.f32 %v8870, %v8896
    %v8910 = vadd.f32 %v8871, %v8896
    %v8911 = vadd.f32 %v8872, %v8896
    %v8912 = vadd.f32 %v8873, %v8896
    %v8913 = vadd.f32 %v8874, %v8896
    %v8914 = vadd.f32 %v8875, %v8896
    %v8915 = vadd.f32 %v8876, %v8896
    %v8916 = vadd.f32 %v8877, %v8896
    %v8917 = vadd.f32 %v8878, %v8896
    %v8918 = vadd.f32 %v8879, %v8896
    %v8919 = vadd.f32 %v8880, %v8896
    %v8920 = vadd.f32 %v8881, %v8896
    %v8921 = vadd.f32 %v8882, %v8896
    %v8922 = vadd.f32 %v8883, %v8896
    %v8923 = vadd.f32 %v8884, %v8896
    %v8924 = vadd.f32 %v8885, %v8896
    %v8925 = vadd.f32 %v8886, %v8896
    %v8926 = vadd.f32 %v8887, %v8896
    %v8927 = vadd.f32 %v8888, %v8896
    %v8928 = vadd.f32 %v8889, %v8896
    %v8929 = vadd.f32 %v8890, %v8896
    %v8930 = vmax.f32 %v8898, 0.0
    %v8931 = vmax.f32 %v8899, 0.0
    %v8932 = vmax.f32 %v8900, 0.0
    %v8933 = vmax.f32 %v8901, 0.0
    %v8934 = vmax.f32 %v8902, 0.0
    %v8935 = vmax.f32 %v8903, 0.0
    %v8936 = vmax.f32 %v8904, 0.0
    %v8937 = vmax.f32 %v8905, 0.0
    %v8938 = vmax.f32 %v8906, 0.0
    %v8939 = vmax.f32 %v8907, 0.0
    %v8940 = vmax.f32 %v8908, 0.0
    %v8941 = vmax.f32 %v8909, 0.0
    %v8942 = vmax.f32 %v8910, 0.0
    %v8943 = vmax.f32 %v8911, 0.0
    %v8944 = vmax.f32 %v8912, 0.0
    %v8945 = vmax.f32 %v8913, 0.0
    %v8946 = vmax.f32 %v8914, 0.0
    %v8947 = vmax.f32 %v8915, 0.0
    %v8948 = vmax.f32 %v8916, 0.0
    %v8949 = vmax.f32 %v8917, 0.0
    %v8950 = vmax.f32 %v8918, 0.0
    %v8951 = vmax.f32 %v8919, 0.0
    %v8952 = vmax.f32 %v8920, 0.0
    %v8953 = vmax.f32 %v8921, 0.0
    %v8954 = vmax.f32 %v8922, 0.0
    %v8955 = vmax.f32 %v8923, 0.0
    %v8956 = vmax.f32 %v8924, 0.0
    %v8957 = vmax.f32 %v8925, 0.0
    %v8958 = vmax.f32 %v8926, 0.0
    %v8959 = vmax.f32 %v8927, 0.0
    %v8960 = vmax.f32 %v8928, 0.0
    %v8961 = vmax.f32 %v8929, 0.0
    %8962 = vst.msk [vmem:[#allocation3] sm:$0xff] %vm143, %v8930
    %8963 = vst.msk [vmem:[#allocation3 + $0x8] sm:$0xff] %vm143, %v8931
    %8964 = vst.msk [vmem:[#allocation3 + $0x10] sm:$0xff] %vm143, %v8932
    %8965 = vst.msk [vmem:[#allocation3 + $0x18] sm:$0xff] %vm143, %v8933
    %8966 = vst.msk [vmem:[#allocation3 + $0x20] sm:$0xff] %vm143, %v8934
    %8967 = vst.msk [vmem:[#allocation3 + $0x28] sm:$0xff] %vm143, %v8935
    %8968 = vst.msk [vmem:[#allocation3 + $0x30] sm:$0xff] %vm143, %v8936
    %8969 = vst.msk [vmem:[#allocation3 + $0x38] sm:$0xff] %vm143, %v8937
    %8970 = vst.msk [vmem:[#allocation3 + $0x40] sm:$0xff] %vm143, %v8938
    %8971 = vst.msk [vmem:[#allocation3 + $0x48] sm:$0xff] %vm143, %v8939
    %8972 = vst.msk [vmem:[#allocation3 + $0x50] sm:$0xff] %vm143, %v8940
    %8973 = vst.msk [vmem:[#allocation3 + $0x58] sm:$0xff] %vm143, %v8941
    %8974 = vst.msk [vmem:[#allocation3 + $0x60] sm:$0xff] %vm143, %v8942
    %8975 = vst.msk [vmem:[#allocation3 + $0x68] sm:$0xff] %vm143, %v8943
    %8976 = vst.msk [vmem:[#allocation3 + $0x70] sm:$0xff] %vm143, %v8944
    %8977 = vst.msk [vmem:[#allocation3 + $0x78] sm:$0xff] %vm143, %v8945
    %8978 = vst.msk [vmem:[#allocation3 + $0x80] sm:$0xff] %vm143, %v8946
    %8979 = vst.msk [vmem:[#allocation3 + $0x88] sm:$0xff] %vm143, %v8947
    %8980 = vst.msk [vmem:[#allocation3 + $0x90] sm:$0xff] %vm143, %v8948
    %8981 = vst.msk [vmem:[#allocation3 + $0x98] sm:$0xff] %vm143, %v8949
    %8982 = vst.msk [vmem:[#allocation3 + $0xa0] sm:$0xff] %vm143, %v8950
    %8983 = vst.msk [vmem:[#allocation3 + $0xa8] sm:$0xff] %vm143, %v8951
    %8984 = vst.msk [vmem:[#allocation3 + $0xb0] sm:$0xff] %vm143, %v8952
    %8985 = vst.msk [vmem:[#allocation3 + $0xb8] sm:$0xff] %vm143, %v8953
    %8986 = vst.msk [vmem:[#allocation3 + $0xc0] sm:$0xff] %vm143, %v8954
    %8987 = vst.msk [vmem:[#allocation3 + $0xc8] sm:$0xff] %vm143, %v8955
    %8988 = vst.msk [vmem:[#allocation3 + $0xd0] sm:$0xff] %vm143, %v8956
    %8989 = vst.msk [vmem:[#allocation3 + $0xd8] sm:$0xff] %vm143, %v8957
    %8990 = vst.msk [vmem:[#allocation3 + $0xe0] sm:$0xff] %vm143, %v8958
    %8991 = vst.msk [vmem:[#allocation3 + $0xe8] sm:$0xff] %vm143, %v8959
    %8992 = vst.msk [vmem:[#allocation3 + $0xf0] sm:$0xff] %vm143, %v8960
    %8993 = vst.msk [vmem:[#allocation3 + $0xf8] sm:$0xff] %vm143, %v8961
    %v8994 = vld [vmem:[#allocation3] sm:$0xff]
    %v8995 = vld [vmem:[#allocation3 + $0x8] sm:$0xff]
    %v8996 = vld [vmem:[#allocation3 + $0x20] sm:$0xff]
    %v8997 = vld [vmem:[#allocation3 + $0x28] sm:$0xff]
    %v8998 = vld [vmem:[#allocation3 + $0x40] sm:$0xff]
    %v8999 = vld [vmem:[#allocation3 + $0x48] sm:$0xff]
    %v9000 = vld [vmem:[#allocation3 + $0x60] sm:$0xff]
    %v9001 = vld [vmem:[#allocation3 + $0x68] sm:$0xff]
    %v9002 = vld [vmem:[#allocation3 + $0x80] sm:$0xff]
    %v9003 = vld [vmem:[#allocation3 + $0x88] sm:$0xff]
    %v9004 = vld [vmem:[#allocation3 + $0xa0] sm:$0xff]
    %v9005 = vld [vmem:[#allocation3 + $0xa8] sm:$0xff]
    %v9006 = vld [vmem:[#allocation3 + $0xc0] sm:$0xff]
    %v9007 = vld [vmem:[#allocation3 + $0xc8] sm:$0xff]
    %v9008 = vld [vmem:[#allocation3 + $0xe0] sm:$0xff]
    %v9009 = vld [vmem:[#allocation3 + $0xe8] sm:$0xff]
    %v9010 = vld [vmem:[%s3862] sm:$0xff]
    %v9011 = vld [vmem:[%s3862 + $0x8] sm:$0xff]
    %v9012 = vld [vmem:[%s3862 + $0x20] sm:$0xff]
    %v9013 = vld [vmem:[%s3862 + $0x28] sm:$0xff]
    %v9014 = vld [vmem:[%s3862 + $0x40] sm:$0xff]
    %v9015 = vld [vmem:[%s3862 + $0x48] sm:$0xff]
    %v9016 = vld [vmem:[%s3862 + $0x60] sm:$0xff]
    %v9017 = vld [vmem:[%s3862 + $0x68] sm:$0xff]
    %v9018 = vld [vmem:[%s3862 + $0x80] sm:$0xff]
    %v9019 = vld [vmem:[%s3862 + $0x88] sm:$0xff]
    %v9020 = vld [vmem:[%s3862 + $0xa0] sm:$0xff]
    %v9021 = vld [vmem:[%s3862 + $0xa8] sm:$0xff]
    %v9022 = vld [vmem:[%s3862 + $0xc0] sm:$0xff]
    %v9023 = vld [vmem:[%s3862 + $0xc8] sm:$0xff]
    %v9024 = vld [vmem:[%s3862 + $0xe0] sm:$0xff]
    %v9025 = vld [vmem:[%s3862 + $0xe8] sm:$0xff]
    %v9026 = vmax.f32 %v8994, %v9010
    %v9027 = vmax.f32 %v8995, %v9011
    %v9028 = vmax.f32 %v8996, %v9012
    %v9029 = vmax.f32 %v8997, %v9013
    %v9030 = vmax.f32 %v8998, %v9014
    %v9031 = vmax.f32 %v8999, %v9015
    %v9032 = vmax.f32 %v9000, %v9016
    %v9033 = vmax.f32 %v9001, %v9017
    %v9034 = vmax.f32 %v9002, %v9018
    %v9035 = vmax.f32 %v9003, %v9019
    %v9036 = vmax.f32 %v9004, %v9020
    %v9037 = vmax.f32 %v9005, %v9021
    %v9038 = vmax.f32 %v9006, %v9022
    %v9039 = vmax.f32 %v9007, %v9023
    %v9040 = vmax.f32 %v9008, %v9024
    %v9041 = vmax.f32 %v9009, %v9025
    %9042 = vst.msk [vmem:[#allocation4] sm:$0xff] %vm143, %v9026
    %9043 = vst.msk [vmem:[#allocation4 + $0x8] sm:$0xff] %vm143, %v9027
    %9044 = vst.msk [vmem:[#allocation4 + $0x10] sm:$0xff] %vm143, %v9028
    %9045 = vst.msk [vmem:[#allocation4 + $0x18] sm:$0xff] %vm143, %v9029
    %9046 = vst.msk [vmem:[#allocation4 + $0x20] sm:$0xff] %vm143, %v9030
    %9047 = vst.msk [vmem:[#allocation4 + $0x28] sm:$0xff] %vm143, %v9031
    %9048 = vst.msk [vmem:[#allocation4 + $0x30] sm:$0xff] %vm143, %v9032
    %9049 = vst.msk [vmem:[#allocation4 + $0x38] sm:$0xff] %vm143, %v9033
    %9050 = vst.msk [vmem:[#allocation4 + $0x40] sm:$0xff] %vm143, %v9034
    %9051 = vst.msk [vmem:[#allocation4 + $0x48] sm:$0xff] %vm143, %v9035
    %9052 = vst.msk [vmem:[#allocation4 + $0x50] sm:$0xff] %vm143, %v9036
    %9053 = vst.msk [vmem:[#allocation4 + $0x58] sm:$0xff] %vm143, %v9037
    %9054 = vst.msk [vmem:[#allocation4 + $0x60] sm:$0xff] %vm143, %v9038
    %9055 = vst.msk [vmem:[#allocation4 + $0x68] sm:$0xff] %vm143, %v9039
    %9056 = vst.msk [vmem:[#allocation4 + $0x70] sm:$0xff] %vm143, %v9040
    %9057 = vst.msk [vmem:[#allocation4 + $0x78] sm:$0xff] %vm143, %v9041
    %v9058 = vld [vmem:[#allocation4] ss:$2 sm:$0xff]
    %v9059 = vld [vmem:[%s3912] ss:$2 sm:$0xff]
    %v9060 = vld [vmem:[%s3914] ss:$2 sm:$0xff]
    %v9061 = vld [vmem:[%s3916] ss:$2 sm:$0xff]
    %v9062 = vld [vmem:[%s3918] ss:$2 sm:$0xff]
    %v9063 = vld [vmem:[%s3920] ss:$2 sm:$0xff]
    %v9064 = vld [vmem:[%s3922] ss:$2 sm:$0xff]
    %v9065 = vld [vmem:[%s3924] ss:$2 sm:$0xff]
    %v9066 = vld [vmem:[%s3926] ss:$2 sm:$0xff]
    %v9067 = vld [vmem:[%s3928] ss:$2 sm:$0xff]
    %v9068 = vld [vmem:[%s3930] ss:$2 sm:$0xff]
    %v9069 = vld [vmem:[%s3932] ss:$2 sm:$0xff]
    %v9070 = vld [vmem:[%s3934] ss:$2 sm:$0xff]
    %v9071 = vld [vmem:[%s3936] ss:$2 sm:$0xff]
    %v9072 = vld [vmem:[%s3938] ss:$2 sm:$0xff]
    %v9073 = vld [vmem:[%s3940] ss:$2 sm:$0xff]
    %v9074 = vmax.f32 %v9058, %v9066
    %v9075 = vmax.f32 %v9059, %v9067
    %v9076 = vmax.f32 %v9060, %v9068
    %v9077 = vmax.f32 %v9061, %v9069
    %v9078 = vmax.f32 %v9062, %v9070
    %v9079 = vmax.f32 %v9063, %v9071
    %v9080 = vmax.f32 %v9064, %v9072
    %v9081 = vmax.f32 %v9065, %v9073
    %9082 = vst.msk [vmem:[%s3950 + $0x1] sm:$0xff] %vm143, %v9074
    %9083 = vst.msk [vmem:[%s3950 + $0x11] sm:$0xff] %vm143, %v9075
    %9084 = vst.msk [vmem:[%s3950 + $0x21] sm:$0xff] %vm143, %v9076
    %9085 = vst.msk [vmem:[%s3950 + $0x31] sm:$0xff] %vm143, %v9077
    %9086 = vst.msk [vmem:[%s3950 + $0x41] sm:$0xff] %vm143, %v9078
    %9087 = vst.msk [vmem:[%s3950 + $0x51] sm:$0xff] %vm143, %v9079
    %9088 = vst.msk [vmem:[%s3950 + $0x61] sm:$0xff] %vm143, %v9080
    %9089 = vst.msk [vmem:[%s3950 + $0x71] sm:$0xff] %vm143, %v9081
    %v9090 = vld [vmem:[#allocation5] sm:$0xff]
    %v9091 = vld [vmem:[#allocation5 + $0x10] sm:$0xff]
    %v9092 = vld [vmem:[#allocation5 + $0x20] sm:$0xff]
    %v9093 = vld [vmem:[#allocation5 + $0x30] sm:$0xff]
    %v9094 = vld [vmem:[#allocation5 + $0x40] sm:$0xff]
    %v9095 = vld [vmem:[#allocation5 + $0x50] sm:$0xff]
    %v9096 = vld [vmem:[#allocation5 + $0x60] sm:$0xff]
    %v9097 = vld [vmem:[#allocation5 + $0x70] sm:$0xff]
    %v9098 = vld [vmem:[%s3] sm:$0xff]
    %v9099 = vld [vmem:[#allocation5 + $0x1] sm:$0xff]
    %v9100 = vld [vmem:[#allocation5 + $0x11] sm:$0xff]
    %v9101 = vld [vmem:[#allocation5 + $0x21] sm:$0xff]
    %v9102 = vld [vmem:[#allocation5 + $0x31] sm:$0xff]
    %v9103 = vld [vmem:[#allocation5 + $0x41] sm:$0xff]
    %v9104 = vld [vmem:[#allocation5 + $0x51] sm:$0xff]
    %v9105 = vld [vmem:[#allocation5 + $0x61] sm:$0xff]
    %v9106 = vld [vmem:[#allocation5 + $0x71] sm:$0xff]
    %v9107 = vld [vmem:[%s3976] sm:$0xff]
    %v9109 = vsel %vm143, %v9099, 0
    %v9112 = vsel %vm143, %v9100, 0
    %v9115 = vsel %vm143, %v9101, 0
    %v9118 = vsel %vm143, %v9102, 0
    %v9121 = vsel %vm143, %v9103, 0
    %v9124 = vsel %vm143, %v9104, 0
    %v9127 = vsel %vm143, %v9105, 0
    %v9130 = vsel %vm143, %v9106, 0
    %9132 = vmatprep.subr.mxu0 0.0
    %9133 = vmatpush1.msra.mxu0 0.0
    %9134 = vmatprep.subr.mxu0 0.0
    %9135 = vmatpush1.msra.mxu0 0.0
    %9136 = vmatprep.subr.mxu0 0.0
    %9137 = vmatpush1.msra.mxu0 0.0
    %9138 = vmatprep.subr.mxu0 0.0
    %9139 = vmatpush1.msra.mxu0 0.0
    %9140 = vmatprep.subr.mxu0 0.0
    %9141 = vmatpush1.msra.mxu0 0.0
    %9142 = vmatprep.subr.mxu0 0.0
    %9143 = vmatpush1.msra.mxu0 0.0
    %9144 = vmatprep.subr.mxu0 0.0
    %9145 = vmatpush1.msra.mxu0 0.0
    %9146 = vmatprep.subr.mxu0 0.0
    %9147 = vmatpush1.msra.mxu0 0.0
    %9148 = vmatprep.subr.mxu0 0.0
    %9149 = vmatpush1.msra.mxu0 0.0
    %9150 = vmatprep.subr.mxu0 0.0
    %9151 = vmatpush1.msra.mxu0 0.0
    %9152 = vmatprep.subr.mxu0 0.0
    %9153 = vmatpush1.msra.mxu0 0.0
    %9154 = vmatprep.subr.mxu0 0.0
    %9155 = vmatpush1.msra.mxu0 0.0
    %9156 = vmatprep.subr.mxu0 0.0
    %9157 = vmatpush1.msra.mxu0 0.0
    %9158 = vmatprep.subr.mxu0 0.0
    %9159 = vmatpush1.msra.mxu0 0.0
    %9160 = vmatprep.subr.mxu0 0.0
    %9161 = vmatpush1.msra.mxu0 0.0
    %9162 = vmatprep.subr.mxu0 0.0
    %9163 = vmatpush1.msra.mxu0 %v9107
    %9164 = vmatprep.subr.mxu0 0.0
    %9165 = vmatpush2.msra.mxu0 0.0
    %9166 = vmatprep.subr.mxu0 0.0
    %9167 = vmatpush2.msra.mxu0 0.0
    %9168 = vmatprep.subr.mxu0 0.0
    %9169 = vmatpush2.msra.mxu0 0.0
    %9170 = vmatprep.subr.mxu0 0.0
    %9171 = vmatpush2.msra.mxu0 0.0
    %9172 = vmatprep.subr.mxu0 0.0
    %9173 = vmatpush2.msra.mxu0 0.0
    %9174 = vmatprep.subr.mxu0 0.0
    %9175 = vmatpush2.msra.mxu0 0.0
    %9176 = vmatprep.subr.mxu0 0.0
    %9177 = vmatpush2.msra.mxu0 0.0
    %9178 = vmatprep.subr.mxu0 0.0
    %9179 = vmatpush2.msra.mxu0 0.0
    %9180 = vmatprep.subr.mxu0 0.0
    %9181 = vmatpush2.msra.mxu0 0.0
    %9182 = vmatprep.subr.mxu0 0.0
    %9183 = vmatpush2.msra.mxu0 0.0
    %9184 = vmatprep.subr.mxu0 0.0
    %9185 = vmatpush2.msra.mxu0 0.0
    %9186 = vmatprep.subr.mxu0 0.0
    %9187 = vmatpush2.msra.mxu0 0.0
    %9188 = vmatprep.subr.mxu0 0.0
    %9189 = vmatpush2.msra.mxu0 0.0
    %9190 = vmatprep.subr.mxu0 0.0
    %9191 = vmatpush2.msra.mxu0 0.0
    %9192 = vmatprep.subr.mxu0 0.0
    %9193 = vmatpush2.msra.mxu0 0.0
    %9194 = vmatprep.subr.mxu0 0.0
    %9195 = vmatpush2.msra.mxu0 0.0
    %9196 = vmatprep.mubr.f32.mxu0 0.0
    %9197 = vmatmul.mubr.f32.gmra.mxu0 %v9109
    %v9198 = vpop.f32.mrf.mxu0
    %v9199 = vadd.f32 0.0, %v9198
    %v9200 = vpop.f32.mrf.mxu0
    %9201 = vmatprep.mubr.f32.mxu0 0.0
    %9202 = vmatmul.mubr.f32.gmra.mxu0 %v9112
    %v9203 = vpop.f32.mrf.mxu0
    %v9204 = vadd.f32 0.0, %v9203
    %v9205 = vpop.f32.mrf.mxu0
    %9206 = vmatprep.mubr.f32.mxu0 0.0
    %9207 = vmatmul.mubr.f32.gmra.mxu0 %v9115
    %v9208 = vpop.f32.mrf.mxu0
    %v9209 = vadd.f32 0.0, %v9208
    %v9210 = vpop.f32.mrf.mxu0
    %9211 = vmatprep.mubr.f32.mxu0 0.0
    %9212 = vmatmul.mubr.f32.gmra.mxu0 %v9118
    %v9213 = vpop.f32.mrf.mxu0
    %v9214 = vadd.f32 0.0, %v9213
    %v9215 = vpop.f32.mrf.mxu0
    %9216 = vmatprep.mubr.f32.mxu0 0.0
    %9217 = vmatmul.mubr.f32.gmra.mxu0 %v9121
    %v9218 = vpop.f32.mrf.mxu0
    %v9219 = vadd.f32 0.0, %v9218
    %v9220 = vpop.f32.mrf.mxu0
    %9221 = vmatprep.mubr.f32.mxu0 0.0
    %9222 = vmatmul.mubr.f32.gmra.mxu0 %v9124
    %v9223 = vpop.f32.mrf.mxu0
    %v9224 = vadd.f32 0.0, %v9223
    %v9225 = vpop.f32.mrf.mxu0
    %9226 = vmatprep.mubr.f32.mxu0 0.0
    %9227 = vmatmul.mubr.f32.gmra.mxu0 %v9127
    %v9228 = vpop.f32.mrf.mxu0
    %v9229 = vadd.f32 0.0, %v9228
    %v9230 = vpop.f32.mrf.mxu0
    %9231 = vmatprep.mubr.f32.mxu0 0.0
    %9232 = vmatmul.mubr.f32.gmra.mxu0 %v9130
    %v9233 = vpop.f32.mrf.mxu0
    %v9234 = vadd.f32 0.0, %v9233
    %v9235 = vpop.f32.mrf.mxu0
    %9236 = vdwg.mxu0
    %v9238 = vsel %vm143, %v9090, 0
    %v9241 = vsel %vm143, %v9091, 0
    %v9244 = vsel %vm143, %v9092, 0
    %v9247 = vsel %vm143, %v9093, 0
    %v9250 = vsel %vm143, %v9094, 0
    %v9253 = vsel %vm143, %v9095, 0
    %v9256 = vsel %vm143, %v9096, 0
    %v9259 = vsel %vm143, %v9097, 0
    %9261 = vmatprep.subr.mxu0 0.0
    %9262 = vmatpush1.msra.mxu0 0.0
    %9263 = vmatprep.subr.mxu0 0.0
    %9264 = vmatpush1.msra.mxu0 0.0
    %9265 = vmatprep.subr.mxu0 0.0
    %9266 = vmatpush1.msra.mxu0 0.0
    %9267 = vmatprep.subr.mxu0 0.0
    %9268 = vmatpush1.msra.mxu0 0.0
    %9269 = vmatprep.subr.mxu0 0.0
    %9270 = vmatpush1.msra.mxu0 0.0
    %9271 = vmatprep.subr.mxu0 0.0
    %9272 = vmatpush1.msra.mxu0 0.0
    %9273 = vmatprep.subr.mxu0 0.0
    %9274 = vmatpush1.msra.mxu0 0.0
    %9275 = vmatprep.subr.mxu0 0.0
    %9276 = vmatpush1.msra.mxu0 0.0
    %9277 = vmatprep.subr.mxu0 0.0
    %9278 = vmatpush1.msra.mxu0 0.0
    %9279 = vmatprep.subr.mxu0 0.0
    %9280 = vmatpush1.msra.mxu0 0.0
    %9281 = vmatprep.subr.mxu0 0.0
    %9282 = vmatpush1.msra.mxu0 0.0
    %9283 = vmatprep.subr.mxu0 0.0
    %9284 = vmatpush1.msra.mxu0 0.0
    %9285 = vmatprep.subr.mxu0 0.0
    %9286 = vmatpush1.msra.mxu0 0.0
    %9287 = vmatprep.subr.mxu0 0.0
    %9288 = vmatpush1.msra.mxu0 0.0
    %9289 = vmatprep.subr.mxu0 0.0
    %9290 = vmatpush1.msra.mxu0 0.0
    %9291 = vmatprep.subr.mxu0 0.0
    %9292 = vmatpush1.msra.mxu0 %v9098
    %9293 = vmatprep.subr.mxu0 0.0
    %9294 = vmatpush2.msra.mxu0 0.0
    %9295 = vmatprep.subr.mxu0 0.0
    %9296 = vmatpush2.msra.mxu0 0.0
    %9297 = vmatprep.subr.mxu0 0.0
    %9298 = vmatpush2.msra.mxu0 0.0
    %9299 = vmatprep.subr.mxu0 0.0
    %9300 = vmatpush2.msra.mxu0 0.0
    %9301 = vmatprep.subr.mxu0 0.0
    %9302 = vmatpush2.msra.mxu0 0.0
    %9303 = vmatprep.subr.mxu0 0.0
    %9304 = vmatpush2.msra.mxu0 0.0
    %9305 = vmatprep.subr.mxu0 0.0
    %9306 = vmatpush2.msra.mxu0 0.0
    %9307 = vmatprep.subr.mxu0 0.0
    %9308 = vmatpush2.msra.mxu0 0.0
    %9309 = vmatprep.subr.mxu0 0.0
    %9310 = vmatpush2.msra.mxu0 0.0
    %9311 = vmatprep.subr.mxu0 0.0
    %9312 = vmatpush2.msra.mxu0 0.0
    %9313 = vmatprep.subr.mxu0 0.0
    %9314 = vmatpush2.msra.mxu0 0.0
    %9315 = vmatprep.subr.mxu0 0.0
    %9316 = vmatpush2.msra.mxu0 0.0
    %9317 = vmatprep.subr.mxu0 0.0
    %9318 = vmatpush2.msra.mxu0 0.0
    %9319 = vmatprep.subr.mxu0 0.0
    %9320 = vmatpush2.msra.mxu0 0.0
    %9321 = vmatprep.subr.mxu0 0.0
    %9322 = vmatpush2.msra.mxu0 0.0
    %9323 = vmatprep.subr.mxu0 0.0
    %9324 = vmatpush2.msra.mxu0 0.0
    %9325 = vmatprep.mubr.f32.mxu0 0.0
    %9326 = vmatmul.mubr.f32.gmra.mxu0 %v9238
    %v9327 = vpop.f32.mrf.mxu0
    %v9328 = vadd.f32 %v9199, %v9327
    %v9329 = vpop.f32.mrf.mxu0
    %9330 = vmatprep.mubr.f32.mxu0 0.0
    %9331 = vmatmul.mubr.f32.gmra.mxu0 %v9241
    %v9332 = vpop.f32.mrf.mxu0
    %v9333 = vadd.f32 %v9204, %v9332
    %v9334 = vpop.f32.mrf.mxu0
    %9335 = vmatprep.mubr.f32.mxu0 0.0
    %9336 = vmatmul.mubr.f32.gmra.mxu0 %v9244
    %v9337 = vpop.f32.mrf.mxu0
    %v9338 = vadd.f32 %v9209, %v9337
    %v9339 = vpop.f32.mrf.mxu0
    %9340 = vmatprep.mubr.f32.mxu0 0.0
    %9341 = vmatmul.mubr.f32.gmra.mxu0 %v9247
    %v9342 = vpop.f32.mrf.mxu0
    %v9343 = vadd.f32 %v9214, %v9342
    %v9344 = vpop.f32.mrf.mxu0
    %9345 = vmatprep.mubr.f32.mxu0 0.0
    %9346 = vmatmul.mubr.f32.gmra.mxu0 %v9250
    %v9347 = vpop.f32.mrf.mxu0
    %v9348 = vadd.f32 %v9219, %v9347
    %v9349 = vpop.f32.mrf.mxu0
    %9350 = vmatprep.mubr.f32.mxu0 0.0
    %9351 = vmatmul.mubr.f32.gmra.mxu0 %v9253
    %v9352 = vpop.f32.mrf.mxu0
    %v9353 = vadd.f32 %v9224, %v9352
    %v9354 = vpop.f32.mrf.mxu0
    %9355 = vmatprep.mubr.f32.mxu0 0.0
    %9356 = vmatmul.mubr.f32.gmra.mxu0 %v9256
    %v9357 = vpop.f32.mrf.mxu0
    %v9358 = vadd.f32 %v9229, %v9357
    %v9359 = vpop.f32.mrf.mxu0
    %9360 = vmatprep.mubr.f32.mxu0 0.0
    %9361 = vmatmul.mubr.f32.gmra.mxu0 %v9259
    %v9362 = vpop.f32.mrf.mxu0
    %v9363 = vadd.f32 %v9234, %v9362
    %v9364 = vpop.f32.mrf.mxu0
    %9365 = vdwg.mxu0
    %v9366 = vld [vmem:[#allocation5 + $0x2] sm:$0xff]
    %v9367 = vld [vmem:[#allocation5 + $0x12] sm:$0xff]
    %v9368 = vld [vmem:[#allocation5 + $0x22] sm:$0xff]
    %v9369 = vld [vmem:[#allocation5 + $0x32] sm:$0xff]
    %v9370 = vld [vmem:[#allocation5 + $0x42] sm:$0xff]
    %v9371 = vld [vmem:[#allocation5 + $0x52] sm:$0xff]
    %v9372 = vld [vmem:[#allocation5 + $0x62] sm:$0xff]
    %v9373 = vld [vmem:[#allocation5 + $0x72] sm:$0xff]
    %v9374 = vld [vmem:[%s4244] sm:$0xff]
    %v9376 = vsel %vm143, %v9366, 0
    %v9379 = vsel %vm143, %v9367, 0
    %v9382 = vsel %vm143, %v9368, 0
    %v9385 = vsel %vm143, %v9369, 0
    %v9388 = vsel %vm143, %v9370, 0
    %v9391 = vsel %vm143, %v9371, 0
    %v9394 = vsel %vm143, %v9372, 0
    %v9397 = vsel %vm143, %v9373, 0
    %9399 = vmatprep.subr.mxu0 0.0
    %9400 = vmatpush1.msra.mxu0 0.0
    %9401 = vmatprep.subr.mxu0 0.0
    %9402 = vmatpush1.msra.mxu0 0.0
    %9403 = vmatprep.subr.mxu0 0.0
    %9404 = vmatpush1.msra.mxu0 0.0
    %9405 = vmatprep.subr.mxu0 0.0
    %9406 = vmatpush1.msra.mxu0 0.0
    %9407 = vmatprep.subr.mxu0 0.0
    %9408 = vmatpush1.msra.mxu0 0.0
    %9409 = vmatprep.subr.mxu0 0.0
    %9410 = vmatpush1.msra.mxu0 0.0
    %9411 = vmatprep.subr.mxu0 0.0
    %9412 = vmatpush1.msra.mxu0 0.0
    %9413 = vmatprep.subr.mxu0 0.0
    %9414 = vmatpush1.msra.mxu0 0.0
    %9415 = vmatprep.subr.mxu0 0.0
    %9416 = vmatpush1.msra.mxu0 0.0
    %9417 = vmatprep.subr.mxu0 0.0
    %9418 = vmatpush1.msra.mxu0 0.0
    %9419 = vmatprep.subr.mxu0 0.0
    %9420 = vmatpush1.msra.mxu0 0.0
    %9421 = vmatprep.subr.mxu0 0.0
    %9422 = vmatpush1.msra.mxu0 0.0
    %9423 = vmatprep.subr.mxu0 0.0
    %9424 = vmatpush1.msra.mxu0 0.0
    %9425 = vmatprep.subr.mxu0 0.0
    %9426 = vmatpush1.msra.mxu0 0.0
    %9427 = vmatprep.subr.mxu0 0.0
    %9428 = vmatpush1.msra.mxu0 0.0
    %9429 = vmatprep.subr.mxu0 0.0
    %9430 = vmatpush1.msra.mxu0 %v9374
    %9431 = vmatprep.subr.mxu0 0.0
    %9432 = vmatpush2.msra.mxu0 0.0
    %9433 = vmatprep.subr.mxu0 0.0
    %9434 = vmatpush2.msra.mxu0 0.0
    %9435 = vmatprep.subr.mxu0 0.0
    %9436 = vmatpush2.msra.mxu0 0.0
    %9437 = vmatprep.subr.mxu0 0.0
    %9438 = vmatpush2.msra.mxu0 0.0
    %9439 = vmatprep.subr.mxu0 0.0
    %9440 = vmatpush2.msra.mxu0 0.0
    %9441 = vmatprep.subr.mxu0 0.0
    %9442 = vmatpush2.msra.mxu0 0.0
    %9443 = vmatprep.subr.mxu0 0.0
    %9444 = vmatpush2.msra.mxu0 0.0
    %9445 = vmatprep.subr.mxu0 0.0
    %9446 = vmatpush2.msra.mxu0 0.0
    %9447 = vmatprep.subr.mxu0 0.0
    %9448 = vmatpush2.msra.mxu0 0.0
    %9449 = vmatprep.subr.mxu0 0.0
    %9450 = vmatpush2.msra.mxu0 0.0
    %9451 = vmatprep.subr.mxu0 0.0
    %9452 = vmatpush2.msra.mxu0 0.0
    %9453 = vmatprep.subr.mxu0 0.0
    %9454 = vmatpush2.msra.mxu0 0.0
    %9455 = vmatprep.subr.mxu0 0.0
    %9456 = vmatpush2.msra.mxu0 0.0
    %9457 = vmatprep.subr.mxu0 0.0
    %9458 = vmatpush2.msra.mxu0 0.0
    %9459 = vmatprep.subr.mxu0 0.0
    %9460 = vmatpush2.msra.mxu0 0.0
    %9461 = vmatprep.subr.mxu0 0.0
    %9462 = vmatpush2.msra.mxu0 0.0
    %9463 = vmatprep.mubr.f32.mxu0 0.0
    %9464 = vmatmul.mubr.f32.gmra.mxu0 %v9376
    %v9465 = vpop.f32.mrf.mxu0
    %v9466 = vadd.f32 0.0, %v9465
    %v9467 = vpop.f32.mrf.mxu0
    %9468 = vmatprep.mubr.f32.mxu0 0.0
    %9469 = vmatmul.mubr.f32.gmra.mxu0 %v9379
    %v9470 = vpop.f32.mrf.mxu0
    %v9471 = vadd.f32 0.0, %v9470
    %v9472 = vpop.f32.mrf.mxu0
    %9473 = vmatprep.mubr.f32.mxu0 0.0
    %9474 = vmatmul.mubr.f32.gmra.mxu0 %v9382
    %v9475 = vpop.f32.mrf.mxu0
    %v9476 = vadd.f32 0.0, %v9475
    %v9477 = vpop.f32.mrf.mxu0
    %9478 = vmatprep.mubr.f32.mxu0 0.0
    %9479 = vmatmul.mubr.f32.gmra.mxu0 %v9385
    %v9480 = vpop.f32.mrf.mxu0
    %v9481 = vadd.f32 0.0, %v9480
    %v9482 = vpop.f32.mrf.mxu0
    %9483 = vmatprep.mubr.f32.mxu0 0.0
    %9484 = vmatmul.mubr.f32.gmra.mxu0 %v9388
    %v9485 = vpop.f32.mrf.mxu0
    %v9486 = vadd.f32 0.0, %v9485
    %v9487 = vpop.f32.mrf.mxu0
    %9488 = vmatprep.mubr.f32.mxu0 0.0
    %9489 = vmatmul.mubr.f32.gmra.mxu0 %v9391
    %v9490 = vpop.f32.mrf.mxu0
    %v9491 = vadd.f32 0.0, %v9490
    %v9492 = vpop.f32.mrf.mxu0
    %9493 = vmatprep.mubr.f32.mxu0 0.0
    %9494 = vmatmul.mubr.f32.gmra.mxu0 %v9394
    %v9495 = vpop.f32.mrf.mxu0
    %v9496 = vadd.f32 0.0, %v9495
    %v9497 = vpop.f32.mrf.mxu0
    %9498 = vmatprep.mubr.f32.mxu0 0.0
    %9499 = vmatmul.mubr.f32.gmra.mxu0 %v9397
    %v9500 = vpop.f32.mrf.mxu0
    %v9501 = vadd.f32 0.0, %v9500
    %v9502 = vpop.f32.mrf.mxu0
    %9503 = vdwg.mxu0
    %v9504 = vadd.f32 %v9328, %v9466
    %v9505 = vadd.f32 %v9333, %v9471
    %v9506 = vadd.f32 %v9338, %v9476
    %v9507 = vadd.f32 %v9343, %v9481
    %v9508 = vadd.f32 %v9348, %v9486
    %v9509 = vadd.f32 %v9353, %v9491
    %v9510 = vadd.f32 %v9358, %v9496
    %v9511 = vadd.f32 %v9363, %v9501
    %v9512 = vld [vmem:[%s3950] sm:$0xff]
    %v9513 = vld [vmem:[%s3950 + $0x10] sm:$0xff]
    %v9514 = vld [vmem:[%s3950 + $0x20] sm:$0xff]
    %v9515 = vld [vmem:[%s3950 + $0x30] sm:$0xff]
    %v9516 = vld [vmem:[%s3950 + $0x40] sm:$0xff]
    %v9517 = vld [vmem:[%s3950 + $0x50] sm:$0xff]
    %v9518 = vld [vmem:[%s3950 + $0x60] sm:$0xff]
    %v9519 = vld [vmem:[%s3950 + $0x70] sm:$0xff]
    %v9520 = vld [vmem:[%s4391] sm:$0xff]
    %v9522 = vsel %vm143, %v9512, 0
    %v9525 = vsel %vm143, %v9513, 0
    %v9528 = vsel %vm143, %v9514, 0
    %v9531 = vsel %vm143, %v9515, 0
    %v9534 = vsel %vm143, %v9516, 0
    %v9537 = vsel %vm143, %v9517, 0
    %v9540 = vsel %vm143, %v9518, 0
    %v9543 = vsel %vm143, %v9519, 0
    %9545 = vmatprep.subr.mxu0 0.0
    %9546 = vmatpush1.msra.mxu0 0.0
    %9547 = vmatprep.subr.mxu0 0.0
    %9548 = vmatpush1.msra.mxu0 0.0
    %9549 = vmatprep.subr.mxu0 0.0
    %9550 = vmatpush1.msra.mxu0 0.0
    %9551 = vmatprep.subr.mxu0 0.0
    %9552 = vmatpush1.msra.mxu0 0.0
    %9553 = vmatprep.subr.mxu0 0.0
    %9554 = vmatpush1.msra.mxu0 0.0
    %9555 = vmatprep.subr.mxu0 0.0
    %9556 = vmatpush1.msra.mxu0 0.0
    %9557 = vmatprep.subr.mxu0 0.0
    %9558 = vmatpush1.msra.mxu0 0.0
    %9559 = vmatprep.subr.mxu0 0.0
    %9560 = vmatpush1.msra.mxu0 0.0
    %9561 = vmatprep.subr.mxu0 0.0
    %9562 = vmatpush1.msra.mxu0 0.0
    %9563 = vmatprep.subr.mxu0 0.0
    %9564 = vmatpush1.msra.mxu0 0.0
    %9565 = vmatprep.subr.mxu0 0.0
    %9566 = vmatpush1.msra.mxu0 0.0
    %9567 = vmatprep.subr.mxu0 0.0
    %9568 = vmatpush1.msra.mxu0 0.0
    %9569 = vmatprep.subr.mxu0 0.0
    %9570 = vmatpush1.msra.mxu0 0.0
    %9571 = vmatprep.subr.mxu0 0.0
    %9572 = vmatpush1.msra.mxu0 0.0
    %9573 = vmatprep.subr.mxu0 0.0
    %9574 = vmatpush1.msra.mxu0 0.0
    %9575 = vmatprep.subr.mxu0 0.0
    %9576 = vmatpush1.msra.mxu0 %v9520
    %9577 = vmatprep.subr.mxu0 0.0
    %9578 = vmatpush2.msra.mxu0 0.0
    %9579 = vmatprep.subr.mxu0 0.0
    %9580 = vmatpush2.msra.mxu0 0.0
    %9581 = vmatprep.subr.mxu0 0.0
    %9582 = vmatpush2.msra.mxu0 0.0
    %9583 = vmatprep.subr.mxu0 0.0
    %9584 = vmatpush2.msra.mxu0 0.0
    %9585 = vmatprep.subr.mxu0 0.0
    %9586 = vmatpush2.msra.mxu0 0.0
    %9587 = vmatprep.subr.mxu0 0.0
    %9588 = vmatpush2.msra.mxu0 0.0
    %9589 = vmatprep.subr.mxu0 0.0
    %9590 = vmatpush2.msra.mxu0 0.0
    %9591 = vmatprep.subr.mxu0 0.0
    %9592 = vmatpush2.msra.mxu0 0.0
    %9593 = vmatprep.subr.mxu0 0.0
    %9594 = vmatpush2.msra.mxu0 0.0
    %9595 = vmatprep.subr.mxu0 0.0
    %9596 = vmatpush2.msra.mxu0 0.0
    %9597 = vmatprep.subr.mxu0 0.0
    %9598 = vmatpush2.msra.mxu0 0.0
    %9599 = vmatprep.subr.mxu0 0.0
    %9600 = vmatpush2.msra.mxu0 0.0
    %9601 = vmatprep.subr.mxu0 0.0
    %9602 = vmatpush2.msra.mxu0 0.0
    %9603 = vmatprep.subr.mxu0 0.0
    %9604 = vmatpush2.msra.mxu0 0.0
    %9605 = vmatprep.subr.mxu0 0.0
    %9606 = vmatpush2.msra.mxu0 0.0
    %9607 = vmatprep.subr.mxu0 0.0
    %9608 = vmatpush2.msra.mxu0 0.0
    %9609 = vmatprep.mubr.f32.mxu0 0.0
    %9610 = vmatmul.mubr.f32.gmra.mxu0 %v9522
    %v9611 = vpop.f32.mrf.mxu0
    %v9612 = vadd.f32 0.0, %v9611
    %v9613 = vpop.f32.mrf.mxu0
    %9614 = vmatprep.mubr.f32.mxu0 0.0
    %9615 = vmatmul.mubr.f32.gmra.mxu0 %v9525
    %v9616 = vpop.f32.mrf.mxu0
    %v9617 = vadd.f32 0.0, %v9616
    %v9618 = vpop.f32.mrf.mxu0
    %9619 = vmatprep.mubr.f32.mxu0 0.0
    %9620 = vmatmul.mubr.f32.gmra.mxu0 %v9528
    %v9621 = vpop.f32.mrf.mxu0
    %v9622 = vadd.f32 0.0, %v9621
    %v9623 = vpop.f32.mrf.mxu0
    %9624 = vmatprep.mubr.f32.mxu0 0.0
    %9625 = vmatmul.mubr.f32.gmra.mxu0 %v9531
    %v9626 = vpop.f32.mrf.mxu0
    %v9627 = vadd.f32 0.0, %v9626
    %v9628 = vpop.f32.mrf.mxu0
    %9629 = vmatprep.mubr.f32.mxu0 0.0
    %9630 = vmatmul.mubr.f32.gmra.mxu0 %v9534
    %v9631 = vpop.f32.mrf.mxu0
    %v9632 = vadd.f32 0.0, %v9631
    %v9633 = vpop.f32.mrf.mxu0
    %9634 = vmatprep.mubr.f32.mxu0 0.0
    %9635 = vmatmul.mubr.f32.gmra.mxu0 %v9537
    %v9636 = vpop.f32.mrf.mxu0
    %v9637 = vadd.f32 0.0, %v9636
    %v9638 = vpop.f32.mrf.mxu0
    %9639 = vmatprep.mubr.f32.mxu0 0.0
    %9640 = vmatmul.mubr.f32.gmra.mxu0 %v9540
    %v9641 = vpop.f32.mrf.mxu0
    %v9642 = vadd.f32 0.0, %v9641
    %v9643 = vpop.f32.mrf.mxu0
    %9644 = vmatprep.mubr.f32.mxu0 0.0
    %9645 = vmatmul.mubr.f32.gmra.mxu0 %v9543
    %v9646 = vpop.f32.mrf.mxu0
    %v9647 = vadd.f32 0.0, %v9646
    %v9648 = vpop.f32.mrf.mxu0
    %9649 = vdwg.mxu0
    %v9650 = vadd.f32 %v9504, %v9612
    %v9651 = vadd.f32 %v9505, %v9617
    %v9652 = vadd.f32 %v9506, %v9622
    %v9653 = vadd.f32 %v9507, %v9627
    %v9654 = vadd.f32 %v9508, %v9632
    %v9655 = vadd.f32 %v9509, %v9637
    %v9656 = vadd.f32 %v9510, %v9642
    %v9657 = vadd.f32 %v9511, %v9647
    %v9658 = vld [vmem:[%s3950 + $0x1] sm:$0xff]
    %v9659 = vld [vmem:[%s3950 + $0x11] sm:$0xff]
    %v9660 = vld [vmem:[%s3950 + $0x21] sm:$0xff]
    %v9661 = vld [vmem:[%s3950 + $0x31] sm:$0xff]
    %v9662 = vld [vmem:[%s3950 + $0x41] sm:$0xff]
    %v9663 = vld [vmem:[%s3950 + $0x51] sm:$0xff]
    %v9664 = vld [vmem:[%s3950 + $0x61] sm:$0xff]
    %v9665 = vld [vmem:[%s3950 + $0x71] sm:$0xff]
    %v9666 = vld [vmem:[%s4538] sm:$0xff]
    %v9668 = vsel %vm143, %v9658, 0
    %v9671 = vsel %vm143, %v9659, 0
    %v9674 = vsel %vm143, %v9660, 0
    %v9677 = vsel %vm143, %v9661, 0
    %v9680 = vsel %vm143, %v9662, 0
    %v9683 = vsel %vm143, %v9663, 0
    %v9686 = vsel %vm143, %v9664, 0
    %v9689 = vsel %vm143, %v9665, 0
    %9691 = vmatprep.subr.mxu0 0.0
    %9692 = vmatpush1.msra.mxu0 0.0
    %9693 = vmatprep.subr.mxu0 0.0
    %9694 = vmatpush1.msra.mxu0 0.0
    %9695 = vmatprep.subr.mxu0 0.0
    %9696 = vmatpush1.msra.mxu0 0.0
    %9697 = vmatprep.subr.mxu0 0.0
    %9698 = vmatpush1.msra.mxu0 0.0
    %9699 = vmatprep.subr.mxu0 0.0
    %9700 = vmatpush1.msra.mxu0 0.0
    %9701 = vmatprep.subr.mxu0 0.0
    %9702 = vmatpush1.msra.mxu0 0.0
    %9703 = vmatprep.subr.mxu0 0.0
    %9704 = vmatpush1.msra.mxu0 0.0
    %9705 = vmatprep.subr.mxu0 0.0
    %9706 = vmatpush1.msra.mxu0 0.0
    %9707 = vmatprep.subr.mxu0 0.0
    %9708 = vmatpush1.msra.mxu0 0.0
    %9709 = vmatprep.subr.mxu0 0.0
    %9710 = vmatpush1.msra.mxu0 0.0
    %9711 = vmatprep.subr.mxu0 0.0
    %9712 = vmatpush1.msra.mxu0 0.0
    %9713 = vmatprep.subr.mxu0 0.0
    %9714 = vmatpush1.msra.mxu0 0.0
    %9715 = vmatprep.subr.mxu0 0.0
    %9716 = vmatpush1.msra.mxu0 0.0
    %9717 = vmatprep.subr.mxu0 0.0
    %9718 = vmatpush1.msra.mxu0 0.0
    %9719 = vmatprep.subr.mxu0 0.0
    %9720 = vmatpush1.msra.mxu0 0.0
    %9721 = vmatprep.subr.mxu0 0.0
    %9722 = vmatpush1.msra.mxu0 %v9666
    %9723 = vmatprep.subr.mxu0 0.0
    %9724 = vmatpush2.msra.mxu0 0.0
    %9725 = vmatprep.subr.mxu0 0.0
    %9726 = vmatpush2.msra.mxu0 0.0
    %9727 = vmatprep.subr.mxu0 0.0
    %9728 = vmatpush2.msra.mxu0 0.0
    %9729 = vmatprep.subr.mxu0 0.0
    %9730 = vmatpush2.msra.mxu0 0.0
    %9731 = vmatprep.subr.mxu0 0.0
    %9732 = vmatpush2.msra.mxu0 0.0
    %9733 = vmatprep.subr.mxu0 0.0
    %9734 = vmatpush2.msra.mxu0 0.0
    %9735 = vmatprep.subr.mxu0 0.0
    %9736 = vmatpush2.msra.mxu0 0.0
    %9737 = vmatprep.subr.mxu0 0.0
    %9738 = vmatpush2.msra.mxu0 0.0
    %9739 = vmatprep.subr.mxu0 0.0
    %9740 = vmatpush2.msra.mxu0 0.0
    %9741 = vmatprep.subr.mxu0 0.0
    %9742 = vmatpush2.msra.mxu0 0.0
    %9743 = vmatprep.subr.mxu0 0.0
    %9744 = vmatpush2.msra.mxu0 0.0
    %9745 = vmatprep.subr.mxu0 0.0
    %9746 = vmatpush2.msra.mxu0 0.0
    %9747 = vmatprep.subr.mxu0 0.0
    %9748 = vmatpush2.msra.mxu0 0.0
    %9749 = vmatprep.subr.mxu0 0.0
    %9750 = vmatpush2.msra.mxu0 0.0
    %9751 = vmatprep.subr.mxu0 0.0
    %9752 = vmatpush2.msra.mxu0 0.0
    %9753 = vmatprep.subr.mxu0 0.0
    %9754 = vmatpush2.msra.mxu0 0.0
    %9755 = vmatprep.mubr.f32.mxu0 0.0
    %9756 = vmatmul.mubr.f32.gmra.mxu0 %v9668
    %v9757 = vpop.f32.mrf.mxu0
    %v9758 = vadd.f32 0.0, %v9757
    %v9759 = vpop.f32.mrf.mxu0
    %9760 = vmatprep.mubr.f32.mxu0 0.0
    %9761 = vmatmul.mubr.f32.gmra.mxu0 %v9671
    %v9762 = vpop.f32.mrf.mxu0
    %v9763 = vadd.f32 0.0, %v9762
    %v9764 = vpop.f32.mrf.mxu0
    %9765 = vmatprep.mubr.f32.mxu0 0.0
    %9766 = vmatmul.mubr.f32.gmra.mxu0 %v9674
    %v9767 = vpop.f32.mrf.mxu0
    %v9768 = vadd.f32 0.0, %v9767
    %v9769 = vpop.f32.mrf.mxu0
    %9770 = vmatprep.mubr.f32.mxu0 0.0
    %9771 = vmatmul.mubr.f32.gmra.mxu0 %v9677
    %v9772 = vpop.f32.mrf.mxu0
    %v9773 = vadd.f32 0.0, %v9772
    %v9774 = vpop.f32.mrf.mxu0
    %9775 = vmatprep.mubr.f32.mxu0 0.0
    %9776 = vmatmul.mubr.f32.gmra.mxu0 %v9680
    %v9777 = vpop.f32.mrf.mxu0
    %v9778 = vadd.f32 0.0, %v9777
    %v9779 = vpop.f32.mrf.mxu0
    %9780 = vmatprep.mubr.f32.mxu0 0.0
    %9781 = vmatmul.mubr.f32.gmra.mxu0 %v9683
    %v9782 = vpop.f32.mrf.mxu0
    %v9783 = vadd.f32 0.0, %v9782
    %v9784 = vpop.f32.mrf.mxu0
    %9785 = vmatprep.mubr.f32.mxu0 0.0
    %9786 = vmatmul.mubr.f32.gmra.mxu0 %v9686
    %v9787 = vpop.f32.mrf.mxu0
    %v9788 = vadd.f32 0.0, %v9787
    %v9789 = vpop.f32.mrf.mxu0
    %9790 = vmatprep.mubr.f32.mxu0 0.0
    %9791 = vmatmul.mubr.f32.gmra.mxu0 %v9689
    %v9792 = vpop.f32.mrf.mxu0
    %v9793 = vadd.f32 0.0, %v9792
    %v9794 = vpop.f32.mrf.mxu0
    %9795 = vdwg.mxu0
    %v9796 = vadd.f32 %v9650, %v9758
    %v9797 = vadd.f32 %v9651, %v9763
    %v9798 = vadd.f32 %v9652, %v9768
    %v9799 = vadd.f32 %v9653, %v9773
    %v9800 = vadd.f32 %v9654, %v9778
    %v9801 = vadd.f32 %v9655, %v9783
    %v9802 = vadd.f32 %v9656, %v9788
    %v9803 = vadd.f32 %v9657, %v9793
    %v9804 = vld [vmem:[%s3950 + $0x2] sm:$0xff]
    %v9805 = vld [vmem:[%s3950 + $0x12] sm:$0xff]
    %v9806 = vld [vmem:[%s3950 + $0x22] sm:$0xff]
    %v9807 = vld [vmem:[%s3950 + $0x32] sm:$0xff]
    %v9808 = vld [vmem:[%s3950 + $0x42] sm:$0xff]
    %v9809 = vld [vmem:[%s3950 + $0x52] sm:$0xff]
    %v9810 = vld [vmem:[%s3950 + $0x62] sm:$0xff]
    %v9811 = vld [vmem:[%s3950 + $0x72] sm:$0xff]
    %v9812 = vld [vmem:[%s4685] sm:$0xff]
    %v9814 = vsel %vm143, %v9804, 0
    %v9817 = vsel %vm143, %v9805, 0
    %v9820 = vsel %vm143, %v9806, 0
    %v9823 = vsel %vm143, %v9807, 0
    %v9826 = vsel %vm143, %v9808, 0
    %v9829 = vsel %vm143, %v9809, 0
    %v9832 = vsel %vm143, %v9810, 0
    %v9835 = vsel %vm143, %v9811, 0
    %9837 = vmatprep.subr.mxu0 0.0
    %9838 = vmatpush1.msra.mxu0 0.0
    %9839 = vmatprep.subr.mxu0 0.0
    %9840 = vmatpush1.msra.mxu0 0.0
    %9841 = vmatprep.subr.mxu0 0.0
    %9842 = vmatpush1.msra.mxu0 0.0
    %9843 = vmatprep.subr.mxu0 0.0
    %9844 = vmatpush1.msra.mxu0 0.0
    %9845 = vmatprep.subr.mxu0 0.0
    %9846 = vmatpush1.msra.mxu0 0.0
    %9847 = vmatprep.subr.mxu0 0.0
    %9848 = vmatpush1.msra.mxu0 0.0
    %9849 = vmatprep.subr.mxu0 0.0
    %9850 = vmatpush1.msra.mxu0 0.0
    %9851 = vmatprep.subr.mxu0 0.0
    %9852 = vmatpush1.msra.mxu0 0.0
    %9853 = vmatprep.subr.mxu0 0.0
    %9854 = vmatpush1.msra.mxu0 0.0
    %9855 = vmatprep.subr.mxu0 0.0
    %9856 = vmatpush1.msra.mxu0 0.0
    %9857 = vmatprep.subr.mxu0 0.0
    %9858 = vmatpush1.msra.mxu0 0.0
    %9859 = vmatprep.subr.mxu0 0.0
    %9860 = vmatpush1.msra.mxu0 0.0
    %9861 = vmatprep.subr.mxu0 0.0
    %9862 = vmatpush1.msra.mxu0 0.0
    %9863 = vmatprep.subr.mxu0 0.0
    %9864 = vmatpush1.msra.mxu0 0.0
    %9865 = vmatprep.subr.mxu0 0.0
    %9866 = vmatpush1.msra.mxu0 0.0
    %9867 = vmatprep.subr.mxu0 0.0
    %9868 = vmatpush1.msra.mxu0 %v9812
    %9869 = vmatprep.subr.mxu0 0.0
    %9870 = vmatpush2.msra.mxu0 0.0
    %9871 = vmatprep.subr.mxu0 0.0
    %9872 = vmatpush2.msra.mxu0 0.0
    %9873 = vmatprep.subr.mxu0 0.0
    %9874 = vmatpush2.msra.mxu0 0.0
    %9875 = vmatprep.subr.mxu0 0.0
    %9876 = vmatpush2.msra.mxu0 0.0
    %9877 = vmatprep.subr.mxu0 0.0
    %9878 = vmatpush2.msra.mxu0 0.0
    %9879 = vmatprep.subr.mxu0 0.0
    %9880 = vmatpush2.msra.mxu0 0.0
    %9881 = vmatprep.subr.mxu0 0.0
    %9882 = vmatpush2.msra.mxu0 0.0
    %9883 = vmatprep.subr.mxu0 0.0
    %9884 = vmatpush2.msra.mxu0 0.0
    %9885 = vmatprep.subr.mxu0 0.0
    %9886 = vmatpush2.msra.mxu0 0.0
    %9887 = vmatprep.subr.mxu0 0.0
    %9888 = vmatpush2.msra.mxu0 0.0
    %9889 = vmatprep.subr.mxu0 0.0
    %9890 = vmatpush2.msra.mxu0 0.0
    %9891 = vmatprep.subr.mxu0 0.0
    %9892 = vmatpush2.msra.mxu0 0.0
    %9893 = vmatprep.subr.mxu0 0.0
    %9894 = vmatpush2.msra.mxu0 0.0
    %9895 = vmatprep.subr.mxu0 0.0
    %9896 = vmatpush2.msra.mxu0 0.0
    %9897 = vmatprep.subr.mxu0 0.0
    %9898 = vmatpush2.msra.mxu0 0.0
    %9899 = vmatprep.subr.mxu0 0.0
    %9900 = vmatpush2.msra.mxu0 0.0
    %9901 = vmatprep.mubr.f32.mxu0 0.0
    %9902 = vmatmul.mubr.f32.gmra.mxu0 %v9814
    %v9903 = vpop.f32.mrf.mxu0
    %v9904 = vadd.f32 0.0, %v9903
    %v9905 = vpop.f32.mrf.mxu0
    %9906 = vmatprep.mubr.f32.mxu0 0.0
    %9907 = vmatmul.mubr.f32.gmra.mxu0 %v9817
    %v9908 = vpop.f32.mrf.mxu0
    %v9909 = vadd.f32 0.0, %v9908
    %v9910 = vpop.f32.mrf.mxu0
    %9911 = vmatprep.mubr.f32.mxu0 0.0
    %9912 = vmatmul.mubr.f32.gmra.mxu0 %v9820
    %v9913 = vpop.f32.mrf.mxu0
    %v9914 = vadd.f32 0.0, %v9913
    %v9915 = vpop.f32.mrf.mxu0
    %9916 = vmatprep.mubr.f32.mxu0 0.0
    %9917 = vmatmul.mubr.f32.gmra.mxu0 %v9823
    %v9918 = vpop.f32.mrf.mxu0
    %v9919 = vadd.f32 0.0, %v9918
    %v9920 = vpop.f32.mrf.mxu0
    %9921 = vmatprep.mubr.f32.mxu0 0.0
    %9922 = vmatmul.mubr.f32.gmra.mxu0 %v9826
    %v9923 = vpop.f32.mrf.mxu0
    %v9924 = vadd.f32 0.0, %v9923
    %v9925 = vpop.f32.mrf.mxu0
    %9926 = vmatprep.mubr.f32.mxu0 0.0
    %9927 = vmatmul.mubr.f32.gmra.mxu0 %v9829
    %v9928 = vpop.f32.mrf.mxu0
    %v9929 = vadd.f32 0.0, %v9928
    %v9930 = vpop.f32.mrf.mxu0
    %9931 = vmatprep.mubr.f32.mxu0 0.0
    %9932 = vmatmul.mubr.f32.gmra.mxu0 %v9832
    %v9933 = vpop.f32.mrf.mxu0
    %v9934 = vadd.f32 0.0, %v9933
    %v9935 = vpop.f32.mrf.mxu0
    %9936 = vmatprep.mubr.f32.mxu0 0.0
    %9937 = vmatmul.mubr.f32.gmra.mxu0 %v9835
    %v9938 = vpop.f32.mrf.mxu0
    %v9939 = vadd.f32 0.0, %v9938
    %v9940 = vpop.f32.mrf.mxu0
    %9941 = vdwg.mxu0
    %v9942 = vadd.f32 %v9796, %v9904
    %v9943 = vadd.f32 %v9797, %v9909
    %v9944 = vadd.f32 %v9798, %v9914
    %v9945 = vadd.f32 %v9799, %v9919
    %v9946 = vadd.f32 %v9800, %v9924
    %v9947 = vadd.f32 %v9801, %v9929
    %v9948 = vadd.f32 %v9802, %v9934
    %v9949 = vadd.f32 %v9803, %v9939
    %v9950 = vld [vmem:[%s4824] sm:$0xff]
    %v9951 = vld [vmem:[%s4824 + $0x10] sm:$0xff]
    %v9952 = vld [vmem:[%s4824 + $0x20] sm:$0xff]
    %v9953 = vld [vmem:[%s4824 + $0x30] sm:$0xff]
    %v9954 = vld [vmem:[%s4824 + $0x40] sm:$0xff]
    %v9955 = vld [vmem:[%s4824 + $0x50] sm:$0xff]
    %v9956 = vld [vmem:[%s4824 + $0x60] sm:$0xff]
    %v9957 = vld [vmem:[%s4824 + $0x70] sm:$0xff]
    %v9958 = vld [vmem:[%s4833] sm:$0xff]
    %v9960 = vsel %vm143, %v9950, 0
    %v9963 = vsel %vm143, %v9951, 0
    %v9966 = vsel %vm143, %v9952, 0
    %v9969 = vsel %vm143, %v9953, 0
    %v9972 = vsel %vm143, %v9954, 0
    %v9975 = vsel %vm143, %v9955, 0
    %v9978 = vsel %vm143, %v9956, 0
    %v9981 = vsel %vm143, %v9957, 0
    %9983 = vmatprep.subr.mxu0 0.0
    %9984 = vmatpush1.msra.mxu0 0.0
    %9985 = vmatprep.subr.mxu0 0.0
    %9986 = vmatpush1.msra.mxu0 0.0
    %9987 = vmatprep.subr.mxu0 0.0
    %9988 = vmatpush1.msra.mxu0 0.0
    %9989 = vmatprep.subr.mxu0 0.0
    %9990 = vmatpush1.msra.mxu0 0.0
    %9991 = vmatprep.subr.mxu0 0.0
    %9992 = vmatpush1.msra.mxu0 0.0
    %9993 = vmatprep.subr.mxu0 0.0
    %9994 = vmatpush1.msra.mxu0 0.0
    %9995 = vmatprep.subr.mxu0 0.0
    %9996 = vmatpush1.msra.mxu0 0.0
    %9997 = vmatprep.subr.mxu0 0.0
    %9998 = vmatpush1.msra.mxu0 0.0
    %9999 = vmatprep.subr.mxu0 0.0
    %10000 = vmatpush1.msra.mxu0 0.0
    %10001 = vmatprep.subr.mxu0 0.0
    %10002 = vmatpush1.msra.mxu0 0.0
    %10003 = vmatprep.subr.mxu0 0.0
    %10004 = vmatpush1.msra.mxu0 0.0
    %10005 = vmatprep.subr.mxu0 0.0
    %10006 = vmatpush1.msra.mxu0 0.0
    %10007 = vmatprep.subr.mxu0 0.0
    %10008 = vmatpush1.msra.mxu0 0.0
    %10009 = vmatprep.subr.mxu0 0.0
    %10010 = vmatpush1.msra.mxu0 0.0
    %10011 = vmatprep.subr.mxu0 0.0
    %10012 = vmatpush1.msra.mxu0 0.0
    %10013 = vmatprep.subr.mxu0 0.0
    %10014 = vmatpush1.msra.mxu0 %v9958
    %10015 = vmatprep.subr.mxu0 0.0
    %10016 = vmatpush2.msra.mxu0 0.0
    %10017 = vmatprep.subr.mxu0 0.0
    %10018 = vmatpush2.msra.mxu0 0.0
    %10019 = vmatprep.subr.mxu0 0.0
    %10020 = vmatpush2.msra.mxu0 0.0
    %10021 = vmatprep.subr.mxu0 0.0
    %10022 = vmatpush2.msra.mxu0 0.0
    %10023 = vmatprep.subr.mxu0 0.0
    %10024 = vmatpush2.msra.mxu0 0.0
    %10025 = vmatprep.subr.mxu0 0.0
    %10026 = vmatpush2.msra.mxu0 0.0
    %10027 = vmatprep.subr.mxu0 0.0
    %10028 = vmatpush2.msra.mxu0 0.0
    %10029 = vmatprep.subr.mxu0 0.0
    %10030 = vmatpush2.msra.mxu0 0.0
    %10031 = vmatprep.subr.mxu0 0.0
    %10032 = vmatpush2.msra.mxu0 0.0
    %10033 = vmatprep.subr.mxu0 0.0
    %10034 = vmatpush2.msra.mxu0 0.0
    %10035 = vmatprep.subr.mxu0 0.0
    %10036 = vmatpush2.msra.mxu0 0.0
    %10037 = vmatprep.subr.mxu0 0.0
    %10038 = vmatpush2.msra.mxu0 0.0
    %10039 = vmatprep.subr.mxu0 0.0
    %10040 = vmatpush2.msra.mxu0 0.0
    %10041 = vmatprep.subr.mxu0 0.0
    %10042 = vmatpush2.msra.mxu0 0.0
    %10043 = vmatprep.subr.mxu0 0.0
    %10044 = vmatpush2.msra.mxu0 0.0
    %10045 = vmatprep.subr.mxu0 0.0
    %10046 = vmatpush2.msra.mxu0 0.0
    %10047 = vmatprep.mubr.f32.mxu0 0.0
    %10048 = vmatmul.mubr.f32.gmra.mxu0 %v9960
    %v10049 = vpop.f32.mrf.mxu0
    %v10050 = vadd.f32 0.0, %v10049
    %v10051 = vpop.f32.mrf.mxu0
    %10052 = vmatprep.mubr.f32.mxu0 0.0
    %10053 = vmatmul.mubr.f32.gmra.mxu0 %v9963
    %v10054 = vpop.f32.mrf.mxu0
    %v10055 = vadd.f32 0.0, %v10054
    %v10056 = vpop.f32.mrf.mxu0
    %10057 = vmatprep.mubr.f32.mxu0 0.0
    %10058 = vmatmul.mubr.f32.gmra.mxu0 %v9966
    %v10059 = vpop.f32.mrf.mxu0
    %v10060 = vadd.f32 0.0, %v10059
    %v10061 = vpop.f32.mrf.mxu0
    %10062 = vmatprep.mubr.f32.mxu0 0.0
    %10063 = vmatmul.mubr.f32.gmra.mxu0 %v9969
    %v10064 = vpop.f32.mrf.mxu0
    %v10065 = vadd.f32 0.0, %v10064
    %v10066 = vpop.f32.mrf.mxu0
    %10067 = vmatprep.mubr.f32.mxu0 0.0
    %10068 = vmatmul.mubr.f32.gmra.mxu0 %v9972
    %v10069 = vpop.f32.mrf.mxu0
    %v10070 = vadd.f32 0.0, %v10069
    %v10071 = vpop.f32.mrf.mxu0
    %10072 = vmatprep.mubr.f32.mxu0 0.0
    %10073 = vmatmul.mubr.f32.gmra.mxu0 %v9975
    %v10074 = vpop.f32.mrf.mxu0
    %v10075 = vadd.f32 0.0, %v10074
    %v10076 = vpop.f32.mrf.mxu0
    %10077 = vmatprep.mubr.f32.mxu0 0.0
    %10078 = vmatmul.mubr.f32.gmra.mxu0 %v9978
    %v10079 = vpop.f32.mrf.mxu0
    %v10080 = vadd.f32 0.0, %v10079
    %v10081 = vpop.f32.mrf.mxu0
    %10082 = vmatprep.mubr.f32.mxu0 0.0
    %10083 = vmatmul.mubr.f32.gmra.mxu0 %v9981
    %v10084 = vpop.f32.mrf.mxu0
    %v10085 = vadd.f32 0.0, %v10084
    %v10086 = vpop.f32.mrf.mxu0
    %10087 = vdwg.mxu0
    %v10088 = vadd.f32 %v9942, %v10050
    %v10089 = vadd.f32 %v9943, %v10055
    %v10090 = vadd.f32 %v9944, %v10060
    %v10091 = vadd.f32 %v9945, %v10065
    %v10092 = vadd.f32 %v9946, %v10070
    %v10093 = vadd.f32 %v9947, %v10075
    %v10094 = vadd.f32 %v9948, %v10080
    %v10095 = vadd.f32 %v9949, %v10085
    %v10096 = vld [vmem:[%s4824 + $0x1] sm:$0xff]
    %v10097 = vld [vmem:[%s4824 + $0x11] sm:$0xff]
    %v10098 = vld [vmem:[%s4824 + $0x21] sm:$0xff]
    %v10099 = vld [vmem:[%s4824 + $0x31] sm:$0xff]
    %v10100 = vld [vmem:[%s4824 + $0x41] sm:$0xff]
    %v10101 = vld [vmem:[%s4824 + $0x51] sm:$0xff]
    %v10102 = vld [vmem:[%s4824 + $0x61] sm:$0xff]
    %v10103 = vld [vmem:[%s4824 + $0x71] sm:$0xff]
    %v10104 = vld [vmem:[%s4980] sm:$0xff]
    %v10106 = vsel %vm143, %v10096, 0
    %v10109 = vsel %vm143, %v10097, 0
    %v10112 = vsel %vm143, %v10098, 0
    %v10115 = vsel %vm143, %v10099, 0
    %v10118 = vsel %vm143, %v10100, 0
    %v10121 = vsel %vm143, %v10101, 0
    %v10124 = vsel %vm143, %v10102, 0
    %v10127 = vsel %vm143, %v10103, 0
    %10129 = vmatprep.subr.mxu0 0.0
    %10130 = vmatpush1.msra.mxu0 0.0
    %10131 = vmatprep.subr.mxu0 0.0
    %10132 = vmatpush1.msra.mxu0 0.0
    %10133 = vmatprep.subr.mxu0 0.0
    %10134 = vmatpush1.msra.mxu0 0.0
    %10135 = vmatprep.subr.mxu0 0.0
    %10136 = vmatpush1.msra.mxu0 0.0
    %10137 = vmatprep.subr.mxu0 0.0
    %10138 = vmatpush1.msra.mxu0 0.0
    %10139 = vmatprep.subr.mxu0 0.0
    %10140 = vmatpush1.msra.mxu0 0.0
    %10141 = vmatprep.subr.mxu0 0.0
    %10142 = vmatpush1.msra.mxu0 0.0
    %10143 = vmatprep.subr.mxu0 0.0
    %10144 = vmatpush1.msra.mxu0 0.0
    %10145 = vmatprep.subr.mxu0 0.0
    %10146 = vmatpush1.msra.mxu0 0.0
    %10147 = vmatprep.subr.mxu0 0.0
    %10148 = vmatpush1.msra.mxu0 0.0
    %10149 = vmatprep.subr.mxu0 0.0
    %10150 = vmatpush1.msra.mxu0 0.0
    %10151 = vmatprep.subr.mxu0 0.0
    %10152 = vmatpush1.msra.mxu0 0.0
    %10153 = vmatprep.subr.mxu0 0.0
    %10154 = vmatpush1.msra.mxu0 0.0
    %10155 = vmatprep.subr.mxu0 0.0
    %10156 = vmatpush1.msra.mxu0 0.0
    %10157 = vmatprep.subr.mxu0 0.0
    %10158 = vmatpush1.msra.mxu0 0.0
    %10159 = vmatprep.subr.mxu0 0.0
    %10160 = vmatpush1.msra.mxu0 %v10104
    %10161 = vmatprep.subr.mxu0 0.0
    %10162 = vmatpush2.msra.mxu0 0.0
    %10163 = vmatprep.subr.mxu0 0.0
    %10164 = vmatpush2.msra.mxu0 0.0
    %10165 = vmatprep.subr.mxu0 0.0
    %10166 = vmatpush2.msra.mxu0 0.0
    %10167 = vmatprep.subr.mxu0 0.0
    %10168 = vmatpush2.msra.mxu0 0.0
    %10169 = vmatprep.subr.mxu0 0.0
    %10170 = vmatpush2.msra.mxu0 0.0
    %10171 = vmatprep.subr.mxu0 0.0
    %10172 = vmatpush2.msra.mxu0 0.0
    %10173 = vmatprep.subr.mxu0 0.0
    %10174 = vmatpush2.msra.mxu0 0.0
    %10175 = vmatprep.subr.mxu0 0.0
    %10176 = vmatpush2.msra.mxu0 0.0
    %10177 = vmatprep.subr.mxu0 0.0
    %10178 = vmatpush2.msra.mxu0 0.0
    %10179 = vmatprep.subr.mxu0 0.0
    %10180 = vmatpush2.msra.mxu0 0.0
    %10181 = vmatprep.subr.mxu0 0.0
    %10182 = vmatpush2.msra.mxu0 0.0
    %10183 = vmatprep.subr.mxu0 0.0
    %10184 = vmatpush2.msra.mxu0 0.0
    %10185 = vmatprep.subr.mxu0 0.0
    %10186 = vmatpush2.msra.mxu0 0.0
    %10187 = vmatprep.subr.mxu0 0.0
    %10188 = vmatpush2.msra.mxu0 0.0
    %10189 = vmatprep.subr.mxu0 0.0
    %10190 = vmatpush2.msra.mxu0 0.0
    %10191 = vmatprep.subr.mxu0 0.0
    %10192 = vmatpush2.msra.mxu0 0.0
    %10193 = vmatprep.mubr.f32.mxu0 0.0
    %10194 = vmatmul.mubr.f32.gmra.mxu0 %v10106
    %v10195 = vpop.f32.mrf.mxu0
    %v10196 = vadd.f32 0.0, %v10195
    %v10197 = vpop.f32.mrf.mxu0
    %10198 = vmatprep.mubr.f32.mxu0 0.0
    %10199 = vmatmul.mubr.f32.gmra.mxu0 %v10109
    %v10200 = vpop.f32.mrf.mxu0
    %v10201 = vadd.f32 0.0, %v10200
    %v10202 = vpop.f32.mrf.mxu0
    %10203 = vmatprep.mubr.f32.mxu0 0.0
    %10204 = vmatmul.mubr.f32.gmra.mxu0 %v10112
    %v10205 = vpop.f32.mrf.mxu0
    %v10206 = vadd.f32 0.0, %v10205
    %v10207 = vpop.f32.mrf.mxu0
    %10208 = vmatprep.mubr.f32.mxu0 0.0
    %10209 = vmatmul.mubr.f32.gmra.mxu0 %v10115
    %v10210 = vpop.f32.mrf.mxu0
    %v10211 = vadd.f32 0.0, %v10210
    %v10212 = vpop.f32.mrf.mxu0
    %10213 = vmatprep.mubr.f32.mxu0 0.0
    %10214 = vmatmul.mubr.f32.gmra.mxu0 %v10118
    %v10215 = vpop.f32.mrf.mxu0
    %v10216 = vadd.f32 0.0, %v10215
    %v10217 = vpop.f32.mrf.mxu0
    %10218 = vmatprep.mubr.f32.mxu0 0.0
    %10219 = vmatmul.mubr.f32.gmra.mxu0 %v10121
    %v10220 = vpop.f32.mrf.mxu0
    %v10221 = vadd.f32 0.0, %v10220
    %v10222 = vpop.f32.mrf.mxu0
    %10223 = vmatprep.mubr.f32.mxu0 0.0
    %10224 = vmatmul.mubr.f32.gmra.mxu0 %v10124
    %v10225 = vpop.f32.mrf.mxu0
    %v10226 = vadd.f32 0.0, %v10225
    %v10227 = vpop.f32.mrf.mxu0
    %10228 = vmatprep.mubr.f32.mxu0 0.0
    %10229 = vmatmul.mubr.f32.gmra.mxu0 %v10127
    %v10230 = vpop.f32.mrf.mxu0
    %v10231 = vadd.f32 0.0, %v10230
    %v10232 = vpop.f32.mrf.mxu0
    %10233 = vdwg.mxu0
    %v10234 = vadd.f32 %v10088, %v10196
    %v10235 = vadd.f32 %v10089, %v10201
    %v10236 = vadd.f32 %v10090, %v10206
    %v10237 = vadd.f32 %v10091, %v10211
    %v10238 = vadd.f32 %v10092, %v10216
    %v10239 = vadd.f32 %v10093, %v10221
    %v10240 = vadd.f32 %v10094, %v10226
    %v10241 = vadd.f32 %v10095, %v10231
    %v10242 = vld [vmem:[%s4824 + $0x2] sm:$0xff]
    %v10243 = vld [vmem:[%s4824 + $0x12] sm:$0xff]
    %v10244 = vld [vmem:[%s4824 + $0x22] sm:$0xff]
    %v10245 = vld [vmem:[%s4824 + $0x32] sm:$0xff]
    %v10246 = vld [vmem:[%s4824 + $0x42] sm:$0xff]
    %v10247 = vld [vmem:[%s4824 + $0x52] sm:$0xff]
    %v10248 = vld [vmem:[%s4824 + $0x62] sm:$0xff]
    %v10249 = vld [vmem:[%s4824 + $0x72] sm:$0xff]
    %v10250 = vld [vmem:[%s5127] sm:$0xff]
    %v10252 = vsel %vm143, %v10242, 0
    %v10255 = vsel %vm143, %v10243, 0
    %v10258 = vsel %vm143, %v10244, 0
    %v10261 = vsel %vm143, %v10245, 0
    %v10264 = vsel %vm143, %v10246, 0
    %v10267 = vsel %vm143, %v10247, 0
    %v10270 = vsel %vm143, %v10248, 0
    %v10273 = vsel %vm143, %v10249, 0
    %10275 = vmatprep.subr.mxu0 0.0
    %10276 = vmatpush1.msra.mxu0 0.0
    %10277 = vmatprep.subr.mxu0 0.0
    %10278 = vmatpush1.msra.mxu0 0.0
    %10279 = vmatprep.subr.mxu0 0.0
    %10280 = vmatpush1.msra.mxu0 0.0
    %10281 = vmatprep.subr.mxu0 0.0
    %10282 = vmatpush1.msra.mxu0 0.0
    %10283 = vmatprep.subr.mxu0 0.0
    %10284 = vmatpush1.msra.mxu0 0.0
    %10285 = vmatprep.subr.mxu0 0.0
    %10286 = vmatpush1.msra.mxu0 0.0
    %10287 = vmatprep.subr.mxu0 0.0
    %10288 = vmatpush1.msra.mxu0 0.0
    %10289 = vmatprep.subr.mxu0 0.0
    %10290 = vmatpush1.msra.mxu0 0.0
    %10291 = vmatprep.subr.mxu0 0.0
    %10292 = vmatpush1.msra.mxu0 0.0
    %10293 = vmatprep.subr.mxu0 0.0
    %10294 = vmatpush1.msra.mxu0 0.0
    %10295 = vmatprep.subr.mxu0 0.0
    %10296 = vmatpush1.msra.mxu0 0.0
    %10297 = vmatprep.subr.mxu0 0.0
    %10298 = vmatpush1.msra.mxu0 0.0
    %10299 = vmatprep.subr.mxu0 0.0
    %10300 = vmatpush1.msra.mxu0 0.0
    %10301 = vmatprep.subr.mxu0 0.0
    %10302 = vmatpush1.msra.mxu0 0.0
    %10303 = vmatprep.subr.mxu0 0.0
    %10304 = vmatpush1.msra.mxu0 0.0
    %10305 = vmatprep.subr.mxu0 0.0
    %10306 = vmatpush1.msra.mxu0 %v10250
    %10307 = vmatprep.subr.mxu0 0.0
    %10308 = vmatpush2.msra.mxu0 0.0
    %10309 = vmatprep.subr.mxu0 0.0
    %10310 = vmatpush2.msra.mxu0 0.0
    %10311 = vmatprep.subr.mxu0 0.0
    %10312 = vmatpush2.msra.mxu0 0.0
    %10313 = vmatprep.subr.mxu0 0.0
    %10314 = vmatpush2.msra.mxu0 0.0
    %10315 = vmatprep.subr.mxu0 0.0
    %10316 = vmatpush2.msra.mxu0 0.0
    %10317 = vmatprep.subr.mxu0 0.0
    %10318 = vmatpush2.msra.mxu0 0.0
    %10319 = vmatprep.subr.mxu0 0.0
    %10320 = vmatpush2.msra.mxu0 0.0
    %10321 = vmatprep.subr.mxu0 0.0
    %10322 = vmatpush2.msra.mxu0 0.0
    %10323 = vmatprep.subr.mxu0 0.0
    %10324 = vmatpush2.msra.mxu0 0.0
    %10325 = vmatprep.subr.mxu0 0.0
    %10326 = vmatpush2.msra.mxu0 0.0
    %10327 = vmatprep.subr.mxu0 0.0
    %10328 = vmatpush2.msra.mxu0 0.0
    %10329 = vmatprep.subr.mxu0 0.0
    %10330 = vmatpush2.msra.mxu0 0.0
    %10331 = vmatprep.subr.mxu0 0.0
    %10332 = vmatpush2.msra.mxu0 0.0
    %10333 = vmatprep.subr.mxu0 0.0
    %10334 = vmatpush2.msra.mxu0 0.0
    %10335 = vmatprep.subr.mxu0 0.0
    %10336 = vmatpush2.msra.mxu0 0.0
    %10337 = vmatprep.subr.mxu0 0.0
    %10338 = vmatpush2.msra.mxu0 0.0
    %10339 = vmatprep.mubr.f32.mxu0 0.0
    %10340 = vmatmul.mubr.f32.gmra.mxu0 %v10252
    %v10341 = vpop.f32.mrf.mxu0
    %v10342 = vadd.f32 0.0, %v10341
    %v10343 = vpop.f32.mrf.mxu0
    %10344 = vmatprep.mubr.f32.mxu0 0.0
    %10345 = vmatmul.mubr.f32.gmra.mxu0 %v10255
    %v10346 = vpop.f32.mrf.mxu0
    %v10347 = vadd.f32 0.0, %v10346
    %v10348 = vpop.f32.mrf.mxu0
    %10349 = vmatprep.mubr.f32.mxu0 0.0
    %10350 = vmatmul.mubr.f32.gmra.mxu0 %v10258
    %v10351 = vpop.f32.mrf.mxu0
    %v10352 = vadd.f32 0.0, %v10351
    %v10353 = vpop.f32.mrf.mxu0
    %10354 = vmatprep.mubr.f32.mxu0 0.0
    %10355 = vmatmul.mubr.f32.gmra.mxu0 %v10261
    %v10356 = vpop.f32.mrf.mxu0
    %v10357 = vadd.f32 0.0, %v10356
    %v10358 = vpop.f32.mrf.mxu0
    %10359 = vmatprep.mubr.f32.mxu0 0.0
    %10360 = vmatmul.mubr.f32.gmra.mxu0 %v10264
    %v10361 = vpop.f32.mrf.mxu0
    %v10362 = vadd.f32 0.0, %v10361
    %v10363 = vpop.f32.mrf.mxu0
    %10364 = vmatprep.mubr.f32.mxu0 0.0
    %10365 = vmatmul.mubr.f32.gmra.mxu0 %v10267
    %v10366 = vpop.f32.mrf.mxu0
    %v10367 = vadd.f32 0.0, %v10366
    %v10368 = vpop.f32.mrf.mxu0
    %10369 = vmatprep.mubr.f32.mxu0 0.0
    %10370 = vmatmul.mubr.f32.gmra.mxu0 %v10270
    %v10371 = vpop.f32.mrf.mxu0
    %v10372 = vadd.f32 0.0, %v10371
    %v10373 = vpop.f32.mrf.mxu0
    %10374 = vmatprep.mubr.f32.mxu0 0.0
    %10375 = vmatmul.mubr.f32.gmra.mxu0 %v10273
    %v10376 = vpop.f32.mrf.mxu0
    %v10377 = vadd.f32 0.0, %v10376
    %v10378 = vpop.f32.mrf.mxu0
    %10379 = vdwg.mxu0
    %v10380 = vadd.f32 %v10234, %v10342
    %v10381 = vadd.f32 %v10235, %v10347
    %v10382 = vadd.f32 %v10236, %v10352
    %v10383 = vadd.f32 %v10237, %v10357
    %v10384 = vadd.f32 %v10238, %v10362
    %v10385 = vadd.f32 %v10239, %v10367
    %v10386 = vadd.f32 %v10240, %v10372
    %v10387 = vadd.f32 %v10241, %v10377
    %v10388 = vld [vmem:[%s4] sm:$0x1]
    %v10390 = vlaneseq
    %v10391 = vshrl.u32 %v10390, 7
    %v10392 = vsub.s32 0, %v10391
    %v10393 = vrot.slane %v10388, %v10392
    %v10395 = vadd.f32 %v10380, %v10393
    %v10396 = vadd.f32 %v10381, %v10393
    %v10397 = vadd.f32 %v10382, %v10393
    %v10398 = vadd.f32 %v10383, %v10393
    %v10399 = vadd.f32 %v10384, %v10393
    %v10400 = vadd.f32 %v10385, %v10393
    %v10401 = vadd.f32 %v10386, %v10393
    %v10402 = vadd.f32 %v10387, %v10393
    %v10403 = vmax.f32 %v10395, 0.0
    %v10404 = vmax.f32 %v10396, 0.0
    %v10405 = vmax.f32 %v10397, 0.0
    %v10406 = vmax.f32 %v10398, 0.0
    %v10407 = vmax.f32 %v10399, 0.0
    %v10408 = vmax.f32 %v10400, 0.0
    %v10409 = vmax.f32 %v10401, 0.0
    %v10410 = vmax.f32 %v10402, 0.0
    %10411 = vst.msk [vmem:[#allocation6] sm:$0xff] %vm5289, %v10403
    %10412 = vst.msk [vmem:[#allocation6 + $0x8] sm:$0xff] %vm5289, %v10404
    %10413 = vst.msk [vmem:[#allocation6 + $0x10] sm:$0xff] %vm5289, %v10405
    %10414 = vst.msk [vmem:[#allocation6 + $0x18] sm:$0xff] %vm5289, %v10406
    %10415 = vst.msk [vmem:[#allocation6 + $0x20] sm:$0xff] %vm5289, %v10407
    %10416 = vst.msk [vmem:[#allocation6 + $0x28] sm:$0xff] %vm5289, %v10408
    %10417 = vst.msk [vmem:[#allocation6 + $0x30] sm:$0xff] %vm5289, %v10409
    %10418 = vst.msk [vmem:[#allocation6 + $0x38] sm:$0xff] %vm5289, %v10410
    %v10419 = vld [vmem:[#allocation6] sm:$0xff]
    %v10420 = vld [vmem:[#allocation6 + $0x10] sm:$0xff]
    %v10421 = vld [vmem:[#allocation6 + $0x20] sm:$0xff]
    %v10422 = vld [vmem:[#allocation6 + $0x30] sm:$0xff]
    %v10423 = vld [vmem:[%s5302] sm:$0xff]
    %v10424 = vld [vmem:[%s5302 + $0x10] sm:$0xff]
    %v10425 = vld [vmem:[%s5302 + $0x20] sm:$0xff]
    %v10426 = vld [vmem:[%s5302 + $0x30] sm:$0xff]
    %v10427 = vmax.f32 %v10419, %v10423
    %v10428 = vmax.f32 %v10420, %v10424
    %v10429 = vmax.f32 %v10421, %v10425
    %v10430 = vmax.f32 %v10422, %v10426
    %10431 = vst.msk [vmem:[#allocation7] sm:$0xff] %vm5289, %v10427
    %10432 = vst.msk [vmem:[#allocation7 + $0x8] sm:$0xff] %vm5289, %v10428
    %10433 = vst.msk [vmem:[#allocation7 + $0x10] sm:$0xff] %vm5289, %v10429
    %10434 = vst.msk [vmem:[#allocation7 + $0x18] sm:$0xff] %vm5289, %v10430
    %v10435 = vld [vmem:[#allocation7] ss:$2 sm:$0xf]
    %v10436 = vld [vmem:[%s5316] ss:$2 sm:$0xf]
    %v10437 = vld [vmem:[%s5318] ss:$2 sm:$0xf]
    %v10438 = vld [vmem:[%s5320] ss:$2 sm:$0xf]
    %v10439 = vld [vmem:[%s5322] ss:$2 sm:$0xf]
    %v10440 = vld [vmem:[%s5324] ss:$2 sm:$0xf]
    %v10441 = vld [vmem:[%s5326] ss:$2 sm:$0xf]
    %v10442 = vld [vmem:[%s5328] ss:$2 sm:$0xf]
    %v10443 = vmax.f32 %v10435, %v10439
    %v10444 = vmax.f32 %v10436, %v10440
    %v10445 = vmax.f32 %v10437, %v10441
    %v10446 = vmax.f32 %v10438, %v10442
    %10447 = vst.msk [vmem:[#allocation8 + $0x1] sm:$0x1] %vm5334, %v10443
    %v10450 = vunpack.c.l.s4 1983009808
    %v10451 = vunpack.c.0.s8 %v10450
    %v10452 = vlaneseq
    %v10453 = vshrl.u32 %v10452, 7
    %v10454 = vsub.s32 %v10451, %v10453
    %v10455 = vrot.slane %v10443, %v10454
    %v10456 = vrot.slane %v10455, 7
    %v10457 = vrot.slane %v10456, 2
    %10458 = vrot.lane.b32.xlu0 %v10457, 16
    %v10459 = vpop.permute.xlu0 %10458
    %10461 = vst.msk [vmem:[#allocation8 + $0x1] sm:$0x1] %vm5349, %v10459
    %v10462 = vcombine.high %v10455, %v10455
    %10463 = vrot.lane.b32.xlu0 %v10462, 32
    %v10464 = vpop.permute.xlu0 %10463
    %10466 = vst.msk [vmem:[#allocation8 + $0x1] sm:$0x1] %vm5355, %v10464
    %v10467 = vrot.slane %v10462, 7
    %v10468 = vrot.slane %v10467, 2
    %10469 = vrot.lane.b32.xlu0 %v10468, 48
    %v10470 = vpop.permute.xlu0 %10469
    %10472 = vst.msk [vmem:[#allocation8 + $0x1] sm:$0x1] %vm5362, %v10470
    %v10475 = vunpack.c.l.s4 1983009808
    %v10476 = vunpack.c.0.s8 %v10475
    %v10477 = vlaneseq
    %v10478 = vshrl.u32 %v10477, 7
    %v10479 = vsub.s32 %v10476, %v10478
    %v10480 = vrot.slane %v10444, %v10479
    %10481 = vrot.lane.b32.xlu0 %v10480, 64
    %v10482 = vpop.permute.xlu0 %10481
    %10484 = vst.msk [vmem:[#allocation8 + $0x1] sm:$0x1] %vm5375, %v10482
    %v10485 = vrot.slane %v10480, 7
    %v10486 = vrot.slane %v10485, 2
    %10487 = vrot.lane.b32.xlu0 %v10486, 80
    %v10488 = vpop.permute.xlu0 %10487
    %10490 = vst.msk [vmem:[#allocation8 + $0x1] sm:$0x1] %vm5382, %v10488
    %v10491 = vcombine.high %v10480, %v10480
    %10492 = vrot.lane.b32.xlu0 %v10491, 96
    %v10493 = vpop.permute.xlu0 %10492
    %10495 = vst.msk [vmem:[#allocation8 + $0x1] sm:$0x1] %vm5388, %v10493
    %v10496 = vrot.slane %v10491, 7
    %v10497 = vrot.slane %v10496, 2
    %10498 = vrot.lane.b32.xlu0 %v10497, 112
    %v10499 = vpop.permute.xlu0 %10498
    %10501 = vst.msk [vmem:[#allocation8 + $0x1] sm:$0x1] %vm5395, %v10499
    %10502 = vst.msk [vmem:[#allocation8 + $0x3] sm:$0x1] %vm5334, %v10445
    %v10505 = vunpack.c.l.s4 1983009808
    %v10506 = vunpack.c.0.s8 %v10505
    %v10507 = vlaneseq
    %v10508 = vshrl.u32 %v10507, 7
    %v10509 = vsub.s32 %v10506, %v10508
    %v10510 = vrot.slane %v10445, %v10509
    %v10511 = vrot.slane %v10510, 7
    %v10512 = vrot.slane %v10511, 2
    %10513 = vrot.lane.b32.xlu0 %v10512, 16
    %v10514 = vpop.permute.xlu0 %10513
    %10516 = vst.msk [vmem:[#allocation8 + $0x3] sm:$0x1] %vm5349, %v10514
    %v10517 = vcombine.high %v10510, %v10510
    %10518 = vrot.lane.b32.xlu0 %v10517, 32
    %v10519 = vpop.permute.xlu0 %10518
    %10521 = vst.msk [vmem:[#allocation8 + $0x3] sm:$0x1] %vm5355, %v10519
    %v10522 = vrot.slane %v10517, 7
    %v10523 = vrot.slane %v10522, 2
    %10524 = vrot.lane.b32.xlu0 %v10523, 48
    %v10525 = vpop.permute.xlu0 %10524
    %10527 = vst.msk [vmem:[#allocation8 + $0x3] sm:$0x1] %vm5362, %v10525
    %v10530 = vunpack.c.l.s4 1983009808
    %v10531 = vunpack.c.0.s8 %v10530
    %v10532 = vlaneseq
    %v10533 = vshrl.u32 %v10532, 7
    %v10534 = vsub.s32 %v10531, %v10533
    %v10535 = vrot.slane %v10446, %v10534
    %10536 = vrot.lane.b32.xlu0 %v10535, 64
    %v10537 = vpop.permute.xlu0 %10536
    %10539 = vst.msk [vmem:[#allocation8 + $0x3] sm:$0x1] %vm5375, %v10537
    %v10540 = vrot.slane %v10535, 7
    %v10541 = vrot.slane %v10540, 2
    %10542 = vrot.lane.b32.xlu0 %v10541, 80
    %v10543 = vpop.permute.xlu0 %10542
    %10545 = vst.msk [vmem:[#allocation8 + $0x3] sm:$0x1] %vm5382, %v10543
    %v10546 = vcombine.high %v10535, %v10535
    %10547 = vrot.lane.b32.xlu0 %v10546, 96
    %v10548 = vpop.permute.xlu0 %10547
    %10550 = vst.msk [vmem:[#allocation8 + $0x3] sm:$0x1] %vm5388, %v10548
    %v10551 = vrot.slane %v10546, 7
    %v10552 = vrot.slane %v10551, 2
    %10553 = vrot.lane.b32.xlu0 %v10552, 112
    %v10554 = vpop.permute.xlu0 %10553
    %10556 = vst.msk [vmem:[#allocation8 + $0x3] sm:$0x1] %vm5395, %v10554
    %v10557 = vld [vmem:[#allocation8] sm:$0xf]
    %v10558 = vld [vmem:[%s5] sm:$0xff]
    %v10559 = vld [vmem:[%s5 + $0x8] sm:$0xff]
    %v10560 = vld [vmem:[%s5 + $0x10] sm:$0xff]
    %v10561 = vld [vmem:[%s5 + $0x18] sm:$0xff]
    %v10562 = vld [vmem:[%s5 + $0x20] sm:$0xff]
    %v10563 = vld [vmem:[%s5 + $0x28] sm:$0xff]
    %v10564 = vld [vmem:[%s5 + $0x30] sm:$0xff]
    %v10565 = vld [vmem:[%s5 + $0x38] sm:$0xff]
    %v10566 = vld [vmem:[%s5 + $0x40] sm:$0xff]
    %v10567 = vld [vmem:[%s5 + $0x48] sm:$0xff]
    %v10568 = vld [vmem:[%s5 + $0x50] sm:$0xff]
    %v10569 = vld [vmem:[%s5 + $0x58] sm:$0xff]
    %v10570 = vld [vmem:[%s5 + $0x60] sm:$0xff]
    %v10571 = vld [vmem:[%s5 + $0x68] sm:$0xff]
    %v10572 = vld [vmem:[%s5 + $0x70] sm:$0xff]
    %v10573 = vld [vmem:[%s5 + $0x78] sm:$0xff]
    %v10574 = vld [vmem:[%s5 + $0x80] sm:$0xff]
    %v10575 = vld [vmem:[%s5 + $0x88] sm:$0xff]
    %v10576 = vld [vmem:[%s5 + $0x90] sm:$0xff]
    %v10577 = vld [vmem:[%s5 + $0x98] sm:$0xff]
    %v10578 = vld [vmem:[%s5 + $0xa0] sm:$0xff]
    %v10579 = vld [vmem:[%s5 + $0xa8] sm:$0xff]
    %v10580 = vld [vmem:[%s5 + $0xb0] sm:$0xff]
    %v10581 = vld [vmem:[%s5 + $0xb8] sm:$0xff]
    %v10582 = vld [vmem:[%s5 + $0xc0] sm:$0xff]
    %v10583 = vld [vmem:[%s5 + $0xc8] sm:$0xff]
    %v10584 = vld [vmem:[%s5 + $0xd0] sm:$0xff]
    %v10585 = vld [vmem:[%s5 + $0xd8] sm:$0xff]
    %v10586 = vld [vmem:[%s5 + $0xe0] sm:$0xff]
    %v10587 = vld [vmem:[%s5 + $0xe8] sm:$0xff]
    %v10588 = vld [vmem:[%s5 + $0xf0] sm:$0xff]
    %v10589 = vld [vmem:[%s5 + $0xf8] sm:$0xff]
    %v10590 = vld [vmem:[%s6] sm:$0x1]
    %v10592 = vlaneseq
    %v10593 = vshrl.u32 %v10592, 7
    %v10594 = vsub.s32 0, %v10593
    %v10595 = vrot.slane %v10590, %v10594
    %v10599 = vunpack.c.l.s4 1983009808
    %v10600 = vunpack.c.0.s8 %v10599
    %v10601 = vlaneseq
    %v10602 = vshrl.u32 %v10601, 7
    %v10603 = vsub.s32 %v10600, %v10602
    %v10604 = vrot.slane %v10557, %v10603
    %v10605 = vcombine.high %v10604, %v10604
    %10608 = vmatprep.subr.mxu0 0.0
    %10609 = vmatpush1.msra.mxu0 %v10573
    %10610 = vmatprep.subr.mxu0 0.0
    %10611 = vmatpush1.msra.mxu0 %v10572
    %10612 = vmatprep.subr.mxu0 0.0
    %10613 = vmatpush1.msra.mxu0 %v10571
    %10614 = vmatprep.subr.mxu0 0.0
    %10615 = vmatpush1.msra.mxu0 %v10570
    %10616 = vmatprep.subr.mxu0 0.0
    %10617 = vmatpush1.msra.mxu0 %v10569
    %10618 = vmatprep.subr.mxu0 0.0
    %10619 = vmatpush1.msra.mxu0 %v10568
    %10620 = vmatprep.subr.mxu0 0.0
    %10621 = vmatpush1.msra.mxu0 %v10567
    %10622 = vmatprep.subr.mxu0 0.0
    %10623 = vmatpush1.msra.mxu0 %v10566
    %10624 = vmatprep.subr.mxu0 0.0
    %10625 = vmatpush1.msra.mxu0 %v10565
    %10626 = vmatprep.subr.mxu0 0.0
    %10627 = vmatpush1.msra.mxu0 %v10564
    %10628 = vmatprep.subr.mxu0 0.0
    %10629 = vmatpush1.msra.mxu0 %v10563
    %10630 = vmatprep.subr.mxu0 0.0
    %10631 = vmatpush1.msra.mxu0 %v10562
    %10632 = vmatprep.subr.mxu0 0.0
    %10633 = vmatpush1.msra.mxu0 %v10561
    %10634 = vmatprep.subr.mxu0 0.0
    %10635 = vmatpush1.msra.mxu0 %v10560
    %10636 = vmatprep.subr.mxu0 0.0
    %10637 = vmatpush1.msra.mxu0 %v10559
    %10638 = vmatprep.subr.mxu0 0.0
    %10639 = vmatpush1.msra.mxu0 %v10558
    %10640 = vmatprep.subr.mxu0 0.0
    %10641 = vmatpush2.msra.mxu0 %v10589
    %10642 = vmatprep.subr.mxu0 0.0
    %10643 = vmatpush2.msra.mxu0 %v10588
    %10644 = vmatprep.subr.mxu0 0.0
    %10645 = vmatpush2.msra.mxu0 %v10587
    %10646 = vmatprep.subr.mxu0 0.0
    %10647 = vmatpush2.msra.mxu0 %v10586
    %10648 = vmatprep.subr.mxu0 0.0
    %10649 = vmatpush2.msra.mxu0 %v10585
    %10650 = vmatprep.subr.mxu0 0.0
    %10651 = vmatpush2.msra.mxu0 %v10584
    %10652 = vmatprep.subr.mxu0 0.0
    %10653 = vmatpush2.msra.mxu0 %v10583
    %10654 = vmatprep.subr.mxu0 0.0
    %10655 = vmatpush2.msra.mxu0 %v10582
    %10656 = vmatprep.subr.mxu0 0.0
    %10657 = vmatpush2.msra.mxu0 %v10581
    %10658 = vmatprep.subr.mxu0 0.0
    %10659 = vmatpush2.msra.mxu0 %v10580
    %10660 = vmatprep.subr.mxu0 0.0
    %10661 = vmatpush2.msra.mxu0 %v10579
    %10662 = vmatprep.subr.mxu0 0.0
    %10663 = vmatpush2.msra.mxu0 %v10578
    %10664 = vmatprep.subr.mxu0 0.0
    %10665 = vmatpush2.msra.mxu0 %v10577
    %10666 = vmatprep.subr.mxu0 0.0
    %10667 = vmatpush2.msra.mxu0 %v10576
    %10668 = vmatprep.subr.mxu0 0.0
    %10669 = vmatpush2.msra.mxu0 %v10575
    %10670 = vmatprep.subr.mxu0 0.0
    %10671 = vmatpush2.msra.mxu0 %v10574
    %10672 = vmatprep.mubr.f32.mxu0 %v10605
    %10673 = vmatmul.mubr.f32.gmra.mxu0 %v10604
    %v10674 = vpop.f32.mrf.mxu0
    %v10675 = vadd.f32 %v10595, %v10674
    %v10676 = vpop.f32.mrf.mxu0
    %10677 = vdwg.mxu0
    %v10678 = vmax.f32 %v10675, 0.0
    %v10679 = vld [vmem:[%s7] sm:$0xff]
    %v10680 = vld [vmem:[%s7 + $0x8] sm:$0xff]
    %v10681 = vld [vmem:[%s7 + $0x10] sm:$0xff]
    %v10682 = vld [vmem:[%s7 + $0x18] sm:$0xff]
    %v10683 = vld [vmem:[%s8] sm:$0x1]
    %v10685 = vlaneseq
    %v10686 = vshrl.u32 %v10685, 7
    %v10687 = vsub.s32 0, %v10686
    %v10688 = vrot.slane %v10683, %v10687
    %vm10690 = vcmask 261120
    %v10692 = vsel %vm10690, %v10678, 0
    %10694 = vmatprep.subr.mxu0 0.0
    %10695 = vmatpush1.msra.mxu0 0.0
    %10696 = vmatprep.subr.mxu0 0.0
    %10697 = vmatpush1.msra.mxu0 0.0
    %10698 = vmatprep.subr.mxu0 0.0
    %10699 = vmatpush1.msra.mxu0 0.0
    %10700 = vmatprep.subr.mxu0 0.0
    %10701 = vmatpush1.msra.mxu0 0.0
    %10702 = vmatprep.subr.mxu0 0.0
    %10703 = vmatpush1.msra.mxu0 0.0
    %10704 = vmatprep.subr.mxu0 0.0
    %10705 = vmatpush1.msra.mxu0 0.0
    %10706 = vmatprep.subr.mxu0 0.0
    %10707 = vmatpush1.msra.mxu0 0.0
    %10708 = vmatprep.subr.mxu0 0.0
    %10709 = vmatpush1.msra.mxu0 0.0
    %10710 = vmatprep.subr.mxu0 0.0
    %10711 = vmatpush1.msra.mxu0 0.0
    %10712 = vmatprep.subr.mxu0 0.0
    %10713 = vmatpush1.msra.mxu0 0.0
    %10714 = vmatprep.subr.mxu0 0.0
    %10715 = vmatpush1.msra.mxu0 0.0
    %10716 = vmatprep.subr.mxu0 0.0
    %10717 = vmatpush1.msra.mxu0 0.0
    %10718 = vmatprep.subr.mxu0 0.0
    %10719 = vmatpush1.msra.mxu0 %v10682
    %10720 = vmatprep.subr.mxu0 0.0
    %10721 = vmatpush1.msra.mxu0 %v10681
    %10722 = vmatprep.subr.mxu0 0.0
    %10723 = vmatpush1.msra.mxu0 %v10680
    %10724 = vmatprep.subr.mxu0 0.0
    %10725 = vmatpush1.msra.mxu0 %v10679
    %10726 = vmatprep.subr.mxu0 0.0
    %10727 = vmatpush2.msra.mxu0 0.0
    %10728 = vmatprep.subr.mxu0 0.0
    %10729 = vmatpush2.msra.mxu0 0.0
    %10730 = vmatprep.subr.mxu0 0.0
    %10731 = vmatpush2.msra.mxu0 0.0
    %10732 = vmatprep.subr.mxu0 0.0
    %10733 = vmatpush2.msra.mxu0 0.0
    %10734 = vmatprep.subr.mxu0 0.0
    %10735 = vmatpush2.msra.mxu0 0.0
    %10736 = vmatprep.subr.mxu0 0.0
    %10737 = vmatpush2.msra.mxu0 0.0
    %10738 = vmatprep.subr.mxu0 0.0
    %10739 = vmatpush2.msra.mxu0 0.0
    %10740 = vmatprep.subr.mxu0 0.0
    %10741 = vmatpush2.msra.mxu0 0.0
    %10742 = vmatprep.subr.mxu0 0.0
    %10743 = vmatpush2.msra.mxu0 0.0
    %10744 = vmatprep.subr.mxu0 0.0
    %10745 = vmatpush2.msra.mxu0 0.0
    %10746 = vmatprep.subr.mxu0 0.0
    %10747 = vmatpush2.msra.mxu0 0.0
    %10748 = vmatprep.subr.mxu0 0.0
    %10749 = vmatpush2.msra.mxu0 0.0
    %10750 = vmatprep.subr.mxu0 0.0
    %10751 = vmatpush2.msra.mxu0 0.0
    %10752 = vmatprep.subr.mxu0 0.0
    %10753 = vmatpush2.msra.mxu0 0.0
    %10754 = vmatprep.subr.mxu0 0.0
    %10755 = vmatpush2.msra.mxu0 0.0
    %10756 = vmatprep.subr.mxu0 0.0
    %10757 = vmatpush2.msra.mxu0 0.0
    %10758 = vmatprep.mubr.f32.mxu0 0.0
    %10759 = vmatmul.mubr.f32.gmra.mxu0 %v10692
    %v10760 = vpop.f32.mrf.mxu0
    %v10761 = vadd.f32 %v10688, %v10760
    %v10762 = vpop.f32.mrf.mxu0
    %10763 = vdwg.mxu0
    %vm10764 = vcmask 74752
    %10765 = vst.msk [vmem:[#allocation9] sm:$0x3] %vm10764, %v10761
    // Predicated region
    $region38: #{cnn_forward.1} parent=1 // pred_check
      _
    $region39: #{cnn_forward.1} parent=1 // pred_check_branch
      %10767 = sbr.rel (0) target = $region41
    $region40: #{cnn_forward.1} parent=1 // pred_region
      %s10769 = ssub.s32 32, 32
      %10770 = vsyncadd [#allocation10], %s10769
      %s10772 = sshll.u32 [#allocation9], 4
      %s10773 = int_to_ptr.vmem [resolvable:$true] %s10772
      %10775 = dma.vmem_to_hbm [thread:$0]  %s10773, 32, %s9, [#allocation10]
    $region41: #{cnn_forward.1} parent=1 // pred_fallthru
      _
    // Predicated region
    $region42: #{cnn_forward.1} parent=1 // pred_check
      _
    $region43: #{cnn_forward.1} parent=1 // pred_check_branch
      %10777 = sbr.rel (0) target = $region45
    $region44: #{cnn_forward.1} parent=1 // pred_region
      %10778 = dma.done [#allocation10], 32
    $region45: #{cnn_forward.1} parent=1 // pred_fallthru
      _
    %10779 = vsyncpa [#allocation10], 1

</llo_original>
